<compile_context>
chip_gen: v7x
topology: tpu7x:2x2x1
jax: 0.10.0
libtpu: 0.0.40
codegen_flags: <defaults>
</compile_context>

<pallas_src>
import numpy as np
import jax
import jax.numpy as jnp
from jax.experimental import pallas as pl
from jax.experimental.pallas import tpu as pltpu

LANE = 128
SUB = 8


def make_istft(n_fft=512, hop_length=160, n_frames=6):
    N = n_fft
    F = N // 2 + 1
    T = n_frames
    hop = hop_length
    L = hop * (T - 1)                      # torch.istft(center=True, length=None)
    full_len = L + N

    Kp = ((2 * F + LANE - 1) // LANE) * LANE                 # contraction dim -> 640

    # Lane residues of the frame offsets and their 128-aligned base columns.
    res_list = sorted({(t * hop) % LANE for t in range(T)})
    res_index = {r: i for i, r in enumerate(res_list)}
    R = len(res_list)                                         # 4 for hop=160
    NS = ((N + max(res_list) + LANE - 1) // LANE) * LANE      # shifted frame width -> 640
    c_list = [(t * hop) - (t * hop) % LANE for t in range(T)]
    FULL_PAD = max(c_list) + NS                               # lane-dense OLA width -> 1408
    assert FULL_PAD % LANE == 0 and FULL_PAD >= full_len

    # ---------------- host-side constants (float64, then cast) ----------------
    n = np.arange(N, dtype=np.float64)
    k = np.arange(F, dtype=np.float64)

    # periodic hann window (torch.hann_window default)
    window = 0.5 * (1.0 - np.cos(2.0 * np.pi * n / N))                      # (N,)

    # real-input inverse DFT basis (irfft semantics: imag of DC/Nyquist bins is
    # ignored because sin(ang)=0 there), with the synthesis window folded in.
    ang = 2.0 * np.pi * np.outer(k, n) / N                                  # (F, N)
    coef = np.where((np.arange(F) == 0) | (np.arange(F) == N // 2), 1.0, 2.0)
    Br = (coef[:, None] * np.cos(ang)) / N * window[None, :]                # (F, N)
    Bi = (-coef[:, None] * np.sin(ang)) / N * window[None, :]               # (F, N)

    # One pre-shifted copy per lane residue: real bins in rows [0,F), imag bins
    # in rows [F,2F), placed at columns [r, r+N) so the matmul output is already
    # at the correct offset modulo 128.
    basis_np = np.zeros((R, Kp, NS), dtype=np.float64)
    for r, i in res_index.items():
        basis_np[i, 0:F, r:r + N] = Br
        basis_np[i, F:2 * F, r:r + N] = Bi
    basis_bf16 = jnp.asarray(basis_np, dtype=jnp.bfloat16)                  # (R, Kp, NS)

    # hann^2 overlap-add envelope; inverse only over the trimmed output region.
    wsq = window ** 2
    env_full = np.zeros(full_len, dtype=np.float64)
    for t in range(T):
        env_full[t * hop:t * hop + N] += wsq
    env_inv_np = np.zeros((1, FULL_PAD), dtype=np.float32)
    env_inv_np[0, N // 2:N // 2 + L] = 1.0 / env_full[N // 2:N // 2 + L]
    env_inv = jnp.asarray(env_inv_np)                                       # (1, FULL_PAD)

    window_j = jnp.asarray(window, dtype=jnp.float32)
    env_trim_j = jnp.asarray(env_full[N // 2:N // 2 + L], dtype=jnp.float32)

    def istft_impl(real, imag):
        # real, imag: (B, F, T) float32
        assert real.shape == imag.shape
        assert real.shape[1] == F and real.shape[2] == T
        B = real.shape[0]
        BP = ((B + SUB - 1) // SUB) * SUB          # sublane-aligned batch rows

        # per-frame rows: x[t] = [real bins | imag bins | zero pad]  (BP, Kp)
        rt = jnp.transpose(real, (2, 0, 1)).astype(jnp.float32)    # (T, B, F)
        it = jnp.transpose(imag, (2, 0, 1)).astype(jnp.float32)
        x = jnp.concatenate([rt, it], axis=-1)                     # (T, B, 2F)
        x = jnp.pad(x, ((0, 0), (0, BP - B), (0, Kp - 2 * F)))
        x = x.astype(jnp.bfloat16)                                 # (T, BP, Kp)

        def kernel(x_ref, basis_ref, envinv_ref, out_ref):
            out_ref[...] = jnp.zeros_like(out_ref)
            for t in range(T):                     # small static (unrolled) loop
                r = (t * hop) % LANE               # lane residue (folded into basis)
                c = (t * hop) - r                  # 128-aligned output column
                fr = jnp.dot(x_ref[t], basis_ref[res_index[r]],
                             preferred_element_type=jnp.float32)   # (BP, NS) on MXU
                out_ref[:, c:c + NS] = out_ref[:, c:c + NS] + fr   # aligned OLA
            # hann^2 envelope divide + zero outside the trimmed region (VPU).
            out_ref[...] = out_ref[...] * envinv_ref[...]

        out_full = pl.pallas_call(
            kernel,
            out_shape=jax.ShapeDtypeStruct((BP, FULL_PAD), jnp.float32),
            in_specs=[
                pl.BlockSpec(memory_space=pltpu.MemorySpace.VMEM),  # x
                pl.BlockSpec(memory_space=pltpu.MemorySpace.VMEM),  # shifted bases
                pl.BlockSpec(memory_space=pltpu.MemorySpace.VMEM),  # env_inv
            ],
            out_specs=pl.BlockSpec(memory_space=pltpu.MemorySpace.VMEM),
        )(x, basis_bf16, env_inv)

        # center trim: torch.istft(center=True) output region.
        return out_full[:B, N // 2:N // 2 + L]                      # (B, L)

    istft = jax.jit(istft_impl)

    # Pure-JAX reference with torch.istft semantics (validation only).
    def reference(real, imag):
        spec = jax.lax.complex(real.astype(jnp.float32), imag.astype(jnp.float32))
        fr = jnp.fft.irfft(spec, n=N, axis=1)                       # (B, N, T)
        fr = jnp.transpose(fr, (0, 2, 1)) * window_j[None, None, :]
        Bb = real.shape[0]
        y = jnp.zeros((Bb, full_len), jnp.float32)
        for t in range(T):
            y = y.at[:, t * hop:t * hop + N].add(fr[:, t, :])
        return y[:, N // 2:N // 2 + L] / env_trim_j[None, :]

    return istft, reference


if __name__ == "__main__":
    n_fft, hop = 512, 160            # module defaults
    B, T = 2, 6                      # small batch / frame count
    F = n_fft // 2 + 1               # 257 onesided frequency bins

    key = jax.random.PRNGKey(0)
    k1, k2 = jax.random.split(key)
    real = jax.random.normal(k1, (B, F, T), dtype=jnp.float32)
    imag = jax.random.normal(k2, (B, F, T), dtype=jnp.float32)

    istft, reference = make_istft(n_fft, hop, n_frames=T)

    out = jax.block_until_ready(istft(real, imag))
    ref = jax.block_until_ready(reference(real, imag))

    assert out.shape == (B, hop * (T - 1)), out.shape
    np.testing.assert_allclose(np.asarray(out), np.asarray(ref),
                               rtol=2e-2, atol=1e-2)
    print("KERNEL_OK")
</pallas_src>

<mosaic_0001>
module attributes {stable_mosaic.version = 11 : i64} {
  func.func @kernel(%arg0: memref<6x8x640xbf16, #tpu.memory_space<vmem>>, %arg1: memref<4x640x640xbf16, #tpu.memory_space<vmem>>, %arg2: memref<1x1408xf32, #tpu.memory_space<vmem>>, %arg3: memref<8x1408xf32, #tpu.memory_space<vmem>>) attributes {dimension_semantics = [], scalar_prefetch = 0 : i64, scratch_operands = 0 : i64, tpu.core_type = #tpu.core_type<tc>} {
    %cst = arith.constant 0.000000e+00 : f32
    %0 = vector.broadcast %cst : f32 to vector<8x1408xf32>
    %c0 = arith.constant 0 : index
    %c0_0 = arith.constant 0 : index
    %1 = vector.load %arg3[%c0, %c0_0] : memref<8x1408xf32, #tpu.memory_space<vmem>>, vector<8x1408xf32>
    tpu.vector_store %arg3[%c0, %c0_0], %0 {strides = array<i32>} : memref<8x1408xf32, #tpu.memory_space<vmem>>, vector<8x1408xf32>,
    %c0_1 = arith.constant 0 : index
    %c0_2 = arith.constant 0 : index
    %c0_3 = arith.constant 0 : index
    %2 = vector.load %arg0[%c0_1, %c0_2, %c0_3] : memref<6x8x640xbf16, #tpu.memory_space<vmem>>, vector<1x8x640xbf16>
    %3 = vector.shape_cast %2 : vector<1x8x640xbf16> to vector<8x640xbf16>
    %c0_4 = arith.constant 0 : index
    %c0_5 = arith.constant 0 : index
    %c0_6 = arith.constant 0 : index
    %4 = vector.load %arg1[%c0_4, %c0_5, %c0_6] : memref<4x640x640xbf16, #tpu.memory_space<vmem>>, vector<1x640x640xbf16>
    %5 = vector.shape_cast %4 : vector<1x640x640xbf16> to vector<640x640xbf16>
    %cst_7 = arith.constant dense<0.000000e+00> : vector<8x640xf32>
    %6 = tpu.matmul %3, %5, %cst_7 {dimension_numbers = #tpu.dot_dimension_numbers<[1], [0], [0], [1], [0, 0, 1, 1], [], []>} : vector<8x640xbf16>, vector<640x640xbf16>, vector<8x640xf32> -> vector<8x640xf32>
    %c0_8 = arith.constant 0 : index
    %c0_9 = arith.constant 0 : index
    %7 = vector.load %arg3[%c0_8, %c0_9] : memref<8x1408xf32, #tpu.memory_space<vmem>>, vector<8x640xf32>
    %8 = arith.addf %7, %6 : vector<8x640xf32>
    %c0_10 = arith.constant 0 : index
    %c0_11 = arith.constant 0 : index
    %9 = vector.load %arg3[%c0_10, %c0_11] : memref<8x1408xf32, #tpu.memory_space<vmem>>, vector<8x640xf32>
    tpu.vector_store %arg3[%c0_10, %c0_11], %8 {strides = array<i32>} : memref<8x1408xf32, #tpu.memory_space<vmem>>, vector<8x640xf32>,
    %c1 = arith.constant 1 : index
    %c0_12 = arith.constant 0 : index
    %c0_13 = arith.constant 0 : index
    %10 = vector.load %arg0[%c1, %c0_12, %c0_13] : memref<6x8x640xbf16, #tpu.memory_space<vmem>>, vector<1x8x640xbf16>
    %11 = vector.shape_cast %10 : vector<1x8x640xbf16> to vector<8x640xbf16>
    %c1_14 = arith.constant 1 : index
    %c0_15 = arith.constant 0 : index
    %c0_16 = arith.constant 0 : index
    %12 = vector.load %arg1[%c1_14, %c0_15, %c0_16] : memref<4x640x640xbf16, #tpu.memory_space<vmem>>, vector<1x640x640xbf16>
    %13 = vector.shape_cast %12 : vector<1x640x640xbf16> to vector<640x640xbf16>
    %cst_17 = arith.constant dense<0.000000e+00> : vector<8x640xf32>
    %14 = tpu.matmul %11, %13, %cst_17 {dimension_numbers = #tpu.dot_dimension_numbers<[1], [0], [0], [1], [0, 0, 1, 1], [], []>} : vector<8x640xbf16>, vector<640x640xbf16>, vector<8x640xf32> -> vector<8x640xf32>
    %c0_18 = arith.constant 0 : index
    %c128 = arith.constant 128 : index
    %15 = vector.load %arg3[%c0_18, %c128] : memref<8x1408xf32, #tpu.memory_space<vmem>>, vector<8x640xf32>
    %16 = arith.addf %15, %14 : vector<8x640xf32>
    %c0_19 = arith.constant 0 : index
    %c128_20 = arith.constant 128 : index
    %17 = vector.load %arg3[%c0_19, %c128_20] : memref<8x1408xf32, #tpu.memory_space<vmem>>, vector<8x640xf32>
    tpu.vector_store %arg3[%c0_19, %c128_20], %16 {strides = array<i32>} : memref<8x1408xf32, #tpu.memory_space<vmem>>, vector<8x640xf32>,
    %c2 = arith.constant 2 : index
    %c0_21 = arith.constant 0 : index
    %c0_22 = arith.constant 0 : index
    %18 = vector.load %arg0[%c2, %c0_21, %c0_22] : memref<6x8x640xbf16, #tpu.memory_space<vmem>>, vector<1x8x640xbf16>
    %19 = vector.shape_cast %18 : vector<1x8x640xbf16> to vector<8x640xbf16>
    %c2_23 = arith.constant 2 : index
    %c0_24 = arith.constant 0 : index
    %c0_25 = arith.constant 0 : index
    %20 = vector.load %arg1[%c2_23, %c0_24, %c0_25] : memref<4x640x640xbf16, #tpu.memory_space<vmem>>, vector<1x640x640xbf16>
    %21 = vector.shape_cast %20 : vector<1x640x640xbf16> to vector<640x640xbf16>
    %cst_26 = arith.constant dense<0.000000e+00> : vector<8x640xf32>
    %22 = tpu.matmul %19, %21, %cst_26 {dimension_numbers = #tpu.dot_dimension_numbers<[1], [0], [0], [1], [0, 0, 1, 1], [], []>} : vector<8x640xbf16>, vector<640x640xbf16>, vector<8x640xf32> -> vector<8x640xf32>
    %c0_27 = arith.constant 0 : index
    %c256 = arith.constant 256 : index
    %23 = vector.load %arg3[%c0_27, %c256] : memref<8x1408xf32, #tpu.memory_space<vmem>>, vector<8x640xf32>
    %24 = arith.addf %23, %22 : vector<8x640xf32>
    %c0_28 = arith.constant 0 : index
    %c256_29 = arith.constant 256 : index
    %25 = vector.load %arg3[%c0_28, %c256_29] : memref<8x1408xf32, #tpu.memory_space<vmem>>, vector<8x640xf32>
    tpu.vector_store %arg3[%c0_28, %c256_29], %24 {strides = array<i32>} : memref<8x1408xf32, #tpu.memory_space<vmem>>, vector<8x640xf32>,
    %c3 = arith.constant 3 : index
    %c0_30 = arith.constant 0 : index
    %c0_31 = arith.constant 0 : index
    %26 = vector.load %arg0[%c3, %c0_30, %c0_31] : memref<6x8x640xbf16, #tpu.memory_space<vmem>>, vector<1x8x640xbf16>
    %27 = vector.shape_cast %26 : vector<1x8x640xbf16> to vector<8x640xbf16>
    %c3_32 = arith.constant 3 : index
    %c0_33 = arith.constant 0 : index
    %c0_34 = arith.constant 0 : index
    %28 = vector.load %arg1[%c3_32, %c0_33, %c0_34] : memref<4x640x640xbf16, #tpu.memory_space<vmem>>, vector<1x640x640xbf16>
    %29 = vector.shape_cast %28 : vector<1x640x640xbf16> to vector<640x640xbf16>
    %cst_35 = arith.constant dense<0.000000e+00> : vector<8x640xf32>
    %30 = tpu.matmul %27, %29, %cst_35 {dimension_numbers = #tpu.dot_dimension_numbers<[1], [0], [0], [1], [0, 0, 1, 1], [], []>} : vector<8x640xbf16>, vector<640x640xbf16>, vector<8x640xf32> -> vector<8x640xf32>
    %c0_36 = arith.constant 0 : index
    %c384 = arith.constant 384 : index
    %31 = vector.load %arg3[%c0_36, %c384] : memref<8x1408xf32, #tpu.memory_space<vmem>>, vector<8x640xf32>
    %32 = arith.addf %31, %30 : vector<8x640xf32>
    %c0_37 = arith.constant 0 : index
    %c384_38 = arith.constant 384 : index
    %33 = vector.load %arg3[%c0_37, %c384_38] : memref<8x1408xf32, #tpu.memory_space<vmem>>, vector<8x640xf32>
    tpu.vector_store %arg3[%c0_37, %c384_38], %32 {strides = array<i32>} : memref<8x1408xf32, #tpu.memory_space<vmem>>, vector<8x640xf32>,
    %c4 = arith.constant 4 : index
    %c0_39 = arith.constant 0 : index
    %c0_40 = arith.constant 0 : index
    %34 = vector.load %arg0[%c4, %c0_39, %c0_40] : memref<6x8x640xbf16, #tpu.memory_space<vmem>>, vector<1x8x640xbf16>
    %35 = vector.shape_cast %34 : vector<1x8x640xbf16> to vector<8x640xbf16>
    %c0_41 = arith.constant 0 : index
    %c0_42 = arith.constant 0 : index
    %c0_43 = arith.constant 0 : index
    %36 = vector.load %arg1[%c0_41, %c0_42, %c0_43] : memref<4x640x640xbf16, #tpu.memory_space<vmem>>, vector<1x640x640xbf16>
    %37 = vector.shape_cast %36 : vector<1x640x640xbf16> to vector<640x640xbf16>
    %cst_44 = arith.constant dense<0.000000e+00> : vector<8x640xf32>
    %38 = tpu.matmul %35, %37, %cst_44 {dimension_numbers = #tpu.dot_dimension_numbers<[1], [0], [0], [1], [0, 0, 1, 1], [], []>} : vector<8x640xbf16>, vector<640x640xbf16>, vector<8x640xf32> -> vector<8x640xf32>
    %c0_45 = arith.constant 0 : index
    %c640 = arith.constant 640 : index
    %39 = vector.load %arg3[%c0_45, %c640] : memref<8x1408xf32, #tpu.memory_space<vmem>>, vector<8x640xf32>
    %40 = arith.addf %39, %38 : vector<8x640xf32>
    %c0_46 = arith.constant 0 : index
    %c640_47 = arith.constant 640 : index
    %41 = vector.load %arg3[%c0_46, %c640_47] : memref<8x1408xf32, #tpu.memory_space<vmem>>, vector<8x640xf32>
    tpu.vector_store %arg3[%c0_46, %c640_47], %40 {strides = array<i32>} : memref<8x1408xf32, #tpu.memory_space<vmem>>, vector<8x640xf32>,
    %c5 = arith.constant 5 : index
    %c0_48 = arith.constant 0 : index
    %c0_49 = arith.constant 0 : index
    %42 = vector.load %arg0[%c5, %c0_48, %c0_49] : memref<6x8x640xbf16, #tpu.memory_space<vmem>>, vector<1x8x640xbf16>
    %43 = vector.shape_cast %42 : vector<1x8x640xbf16> to vector<8x640xbf16>
    %c1_50 = arith.constant 1 : index
    %c0_51 = arith.constant 0 : index
    %c0_52 = arith.constant 0 : index
    %44 = vector.load %arg1[%c1_50, %c0_51, %c0_52] : memref<4x640x640xbf16, #tpu.memory_space<vmem>>, vector<1x640x640xbf16>
    %45 = vector.shape_cast %44 : vector<1x640x640xbf16> to vector<640x640xbf16>
    %cst_53 = arith.constant dense<0.000000e+00> : vector<8x640xf32>
    %46 = tpu.matmul %43, %45, %cst_53 {dimension_numbers = #tpu.dot_dimension_numbers<[1], [0], [0], [1], [0, 0, 1, 1], [], []>} : vector<8x640xbf16>, vector<640x640xbf16>, vector<8x640xf32> -> vector<8x640xf32>
    %c0_54 = arith.constant 0 : index
    %c768 = arith.constant 768 : index
    %47 = vector.load %arg3[%c0_54, %c768] : memref<8x1408xf32, #tpu.memory_space<vmem>>, vector<8x640xf32>
    %48 = arith.addf %47, %46 : vector<8x640xf32>
    %c0_55 = arith.constant 0 : index
    %c768_56 = arith.constant 768 : index
    %49 = vector.load %arg3[%c0_55, %c768_56] : memref<8x1408xf32, #tpu.memory_space<vmem>>, vector<8x640xf32>
    tpu.vector_store %arg3[%c0_55, %c768_56], %48 {strides = array<i32>} : memref<8x1408xf32, #tpu.memory_space<vmem>>, vector<8x640xf32>,
    %c0_57 = arith.constant 0 : index
    %c0_58 = arith.constant 0 : index
    %50 = vector.load %arg3[%c0_57, %c0_58] : memref<8x1408xf32, #tpu.memory_space<vmem>>, vector<8x1408xf32>
    %c0_59 = arith.constant 0 : index
    %c0_60 = arith.constant 0 : index
    %51 = vector.load %arg2[%c0_59, %c0_60] : memref<1x1408xf32, #tpu.memory_space<vmem>>, vector<1x1408xf32>
    %52 = vector.broadcast %51 : vector<1x1408xf32> to vector<8x1408xf32>
    %53 = arith.mulf %50, %52 : vector<8x1408xf32>
    %c0_61 = arith.constant 0 : index
    %c0_62 = arith.constant 0 : index
    %54 = vector.load %arg3[%c0_61, %c0_62] : memref<8x1408xf32, #tpu.memory_space<vmem>>, vector<8x1408xf32>
    tpu.vector_store %arg3[%c0_61, %c0_62], %53 {strides = array<i32>} : memref<8x1408xf32, #tpu.memory_space<vmem>>, vector<8x1408xf32>,
    return
  }
}

</mosaic_0001>

<llo_original>
// kernel: istft_impl.1
$region0: #{istft_impl.1}
  #allocation0 [shape = 'u32[]', space=smem, size = 0x4, offset = 0x4, fixed_abs, tag = 'smem constant byte address 0x4 - core index']
  #allocation1 [shape = 'u32[144,128]{1,0:T(1,128)}', space=vmem, size = 0x12000, scoped, tag = 'internal scratch']
  %s0 = inlined_call_operand.vmem [shape: bf16[6,8,640], index: 0, kind: input, shape index: {}]
  %s1 = inlined_call_operand.vmem [shape: bf16[4,640,640], index: 1, kind: input, shape index: {}]
  %s2 = inlined_call_operand.vmem [shape: f32[1,1408], index: 2, kind: input, shape index: {}]
  %s3 = inlined_call_operand.vmem [shape: f32[8,1408], index: 3, kind: output, shape index: {}]
  %s4 = sld [smem:[#allocation0]]
  $region22: #{istft_impl.1} parent=0
    _
  %s6 = ssub.s32 1, %s4
  %s7 = scalar_select 0, %s6, %s4
  // Predicated region
  $region2: #{istft_impl.1} parent=0 // pred_check
    _
  $region3: #{istft_impl.1} parent=0 // pred_check_branch
    %9 = sbr.rel (0) target = $region5
  $region4: #{istft_impl.1} parent=0 // pred_region
    _
  $region5: #{istft_impl.1} parent=0 // pred_fallthru
    _
  // Predicated region
  $region6: #{istft_impl.1} parent=0 // pred_check
    _
  $region7: #{istft_impl.1} parent=0 // pred_check_branch
    %11 = sbr.rel (0) target = $region9
  $region8: #{istft_impl.1} parent=0 // pred_region
    _
  $region9: #{istft_impl.1} parent=0 // pred_fallthru
    _
  // Predicated region
  $region10: #{istft_impl.1} parent=0 // pred_check
    _
  $region11: #{istft_impl.1} parent=0 // pred_check_branch
    %13 = sbr.rel (0) target = $region13
  $region12: #{istft_impl.1} parent=0 // pred_region
    _
  $region13: #{istft_impl.1} parent=0 // pred_fallthru
    _
  %15 = vst [vmem:[%s3] sm:$0xff] 0.0
  %16 = vst [vmem:[%s3 + $0x8] sm:$0xff] 0.0
  %17 = vst [vmem:[%s3 + $0x10] sm:$0xff] 0.0
  %18 = vst [vmem:[%s3 + $0x18] sm:$0xff] 0.0
  %19 = vst [vmem:[%s3 + $0x20] sm:$0xff] 0.0
  %20 = vst [vmem:[%s3 + $0x28] sm:$0xff] 0.0
  %21 = vst [vmem:[%s3 + $0x30] sm:$0xff] 0.0
  %22 = vst [vmem:[%s3 + $0x38] sm:$0xff] 0.0
  %23 = vst [vmem:[%s3 + $0x40] sm:$0xff] 0.0
  %24 = vst [vmem:[%s3 + $0x48] sm:$0xff] 0.0
  %25 = vst [vmem:[%s3 + $0x50] sm:$0xff] 0.0
  %v26 = vld [vmem:[%s0] sm:$0xff]
  %v27 = vld [vmem:[%s0 + $0x8] sm:$0xff]
  %v28 = vld [vmem:[%s0 + $0x10] sm:$0xf]
  %v29 = vld [vmem:[%s1] sm:$0xff]
  %v30 = vld [vmem:[%s1 + $0x8] sm:$0xff]
  %v31 = vld [vmem:[%s1 + $0x10] sm:$0xf]
  %v32 = vld [vmem:[%s1 + $0x14] sm:$0xff]
  %v33 = vld [vmem:[%s1 + $0x1c] sm:$0xff]
  %v34 = vld [vmem:[%s1 + $0x24] sm:$0xf]
  %v35 = vld [vmem:[%s1 + $0x28] sm:$0xff]
  %v36 = vld [vmem:[%s1 + $0x30] sm:$0xff]
  %v37 = vld [vmem:[%s1 + $0x38] sm:$0xf]
  %v38 = vld [vmem:[%s1 + $0x3c] sm:$0xff]
  %v39 = vld [vmem:[%s1 + $0x44] sm:$0xff]
  %v40 = vld [vmem:[%s1 + $0x4c] sm:$0xf]
  %v41 = vld [vmem:[%s1 + $0x50] sm:$0xff]
  %v42 = vld [vmem:[%s1 + $0x58] sm:$0xff]
  %v43 = vld [vmem:[%s1 + $0x60] sm:$0xf]
  %v44 = vld [vmem:[%s1 + $0x64] sm:$0xff]
  %v45 = vld [vmem:[%s1 + $0x6c] sm:$0xff]
  %v46 = vld [vmem:[%s1 + $0x74] sm:$0xf]
  %v47 = vld [vmem:[%s1 + $0x78] sm:$0xff]
  %v48 = vld [vmem:[%s1 + $0x80] sm:$0xff]
  %v49 = vld [vmem:[%s1 + $0x88] sm:$0xf]
  %v50 = vld [vmem:[%s1 + $0x8c] sm:$0xff]
  %v51 = vld [vmem:[%s1 + $0x94] sm:$0xff]
  %v52 = vld [vmem:[%s1 + $0x9c] sm:$0xf]
  %v53 = vld [vmem:[%s1 + $0xa0] sm:$0xff]
  %v54 = vld [vmem:[%s1 + $0xa8] sm:$0xff]
  %v55 = vld [vmem:[%s1 + $0xb0] sm:$0xf]
  %v56 = vld [vmem:[%s1 + $0xb4] sm:$0xff]
  %v57 = vld [vmem:[%s1 + $0xbc] sm:$0xff]
  %v58 = vld [vmem:[%s1 + $0xc4] sm:$0xf]
  %v59 = vld [vmem:[%s1 + $0xc8] sm:$0xff]
  %v60 = vld [vmem:[%s1 + $0xd0] sm:$0xff]
  %v61 = vld [vmem:[%s1 + $0xd8] sm:$0xf]
  %v62 = vld [vmem:[%s1 + $0xdc] sm:$0xff]
  %v63 = vld [vmem:[%s1 + $0xe4] sm:$0xff]
  %v64 = vld [vmem:[%s1 + $0xec] sm:$0xf]
  %v65 = vld [vmem:[%s1 + $0xf0] sm:$0xff]
  %v66 = vld [vmem:[%s1 + $0xf8] sm:$0xff]
  %v67 = vld [vmem:[%s1 + $0x100] sm:$0xf]
  %v68 = vld [vmem:[%s1 + $0x104] sm:$0xff]
  %v69 = vld [vmem:[%s1 + $0x10c] sm:$0xff]
  %v70 = vld [vmem:[%s1 + $0x114] sm:$0xf]
  %v71 = vld [vmem:[%s1 + $0x118] sm:$0xff]
  %v72 = vld [vmem:[%s1 + $0x120] sm:$0xff]
  %v73 = vld [vmem:[%s1 + $0x128] sm:$0xf]
  %v74 = vld [vmem:[%s1 + $0x12c] sm:$0xff]
  %v75 = vld [vmem:[%s1 + $0x134] sm:$0xff]
  %v76 = vld [vmem:[%s1 + $0x13c] sm:$0xf]
  %v77 = vld [vmem:[%s1 + $0x140] sm:$0xff]
  %v78 = vld [vmem:[%s1 + $0x148] sm:$0xff]
  %v79 = vld [vmem:[%s1 + $0x150] sm:$0xf]
  %v80 = vld [vmem:[%s1 + $0x154] sm:$0xff]
  %v81 = vld [vmem:[%s1 + $0x15c] sm:$0xff]
  %v82 = vld [vmem:[%s1 + $0x164] sm:$0xf]
  %v83 = vld [vmem:[%s1 + $0x168] sm:$0xff]
  %v84 = vld [vmem:[%s1 + $0x170] sm:$0xff]
  %v85 = vld [vmem:[%s1 + $0x178] sm:$0xf]
  %v86 = vld [vmem:[%s1 + $0x17c] sm:$0xff]
  %v87 = vld [vmem:[%s1 + $0x184] sm:$0xff]
  %v88 = vld [vmem:[%s1 + $0x18c] sm:$0xf]
  %v89 = vld [vmem:[%s1 + $0x190] sm:$0xff]
  %v90 = vld [vmem:[%s1 + $0x198] sm:$0xff]
  %v91 = vld [vmem:[%s1 + $0x1a0] sm:$0xf]
  %v92 = vld [vmem:[%s1 + $0x1a4] sm:$0xff]
  %v93 = vld [vmem:[%s1 + $0x1ac] sm:$0xff]
  %v94 = vld [vmem:[%s1 + $0x1b4] sm:$0xf]
  %v95 = vld [vmem:[%s1 + $0x1b8] sm:$0xff]
  %v96 = vld [vmem:[%s1 + $0x1c0] sm:$0xff]
  %v97 = vld [vmem:[%s1 + $0x1c8] sm:$0xf]
  %v98 = vld [vmem:[%s1 + $0x1cc] sm:$0xff]
  %v99 = vld [vmem:[%s1 + $0x1d4] sm:$0xff]
  %v100 = vld [vmem:[%s1 + $0x1dc] sm:$0xf]
  %v101 = vld [vmem:[%s1 + $0x1e0] sm:$0xff]
  %v102 = vld [vmem:[%s1 + $0x1e8] sm:$0xff]
  %v103 = vld [vmem:[%s1 + $0x1f0] sm:$0xf]
  %v104 = vld [vmem:[%s1 + $0x1f4] sm:$0xff]
  %v105 = vld [vmem:[%s1 + $0x1fc] sm:$0xff]
  %v106 = vld [vmem:[%s1 + $0x204] sm:$0xf]
  %v107 = vld [vmem:[%s1 + $0x208] sm:$0xff]
  %v108 = vld [vmem:[%s1 + $0x210] sm:$0xff]
  %v109 = vld [vmem:[%s1 + $0x218] sm:$0xf]
  %v110 = vld [vmem:[%s1 + $0x21c] sm:$0xff]
  %v111 = vld [vmem:[%s1 + $0x224] sm:$0xff]
  %v112 = vld [vmem:[%s1 + $0x22c] sm:$0xf]
  %v113 = vld [vmem:[%s1 + $0x230] sm:$0xff]
  %v114 = vld [vmem:[%s1 + $0x238] sm:$0xff]
  %v115 = vld [vmem:[%s1 + $0x240] sm:$0xf]
  %v116 = vld [vmem:[%s1 + $0x244] sm:$0xff]
  %v117 = vld [vmem:[%s1 + $0x24c] sm:$0xff]
  %v118 = vld [vmem:[%s1 + $0x254] sm:$0xf]
  %v119 = vld [vmem:[%s1 + $0x258] sm:$0xff]
  %v120 = vld [vmem:[%s1 + $0x260] sm:$0xff]
  %v121 = vld [vmem:[%s1 + $0x268] sm:$0xf]
  %v122 = vld [vmem:[%s1 + $0x26c] sm:$0xff]
  %v123 = vld [vmem:[%s1 + $0x274] sm:$0xff]
  %v124 = vld [vmem:[%s1 + $0x27c] sm:$0xf]
  %v125 = vld [vmem:[%s1 + $0x280] sm:$0xff]
  %v126 = vld [vmem:[%s1 + $0x288] sm:$0xff]
  %v127 = vld [vmem:[%s1 + $0x290] sm:$0xf]
  %v128 = vld [vmem:[%s1 + $0x294] sm:$0xff]
  %v129 = vld [vmem:[%s1 + $0x29c] sm:$0xff]
  %v130 = vld [vmem:[%s1 + $0x2a4] sm:$0xf]
  %v131 = vld [vmem:[%s1 + $0x2a8] sm:$0xff]
  %v132 = vld [vmem:[%s1 + $0x2b0] sm:$0xff]
  %v133 = vld [vmem:[%s1 + $0x2b8] sm:$0xf]
  %v134 = vld [vmem:[%s1 + $0x2bc] sm:$0xff]
  %v135 = vld [vmem:[%s1 + $0x2c4] sm:$0xff]
  %v136 = vld [vmem:[%s1 + $0x2cc] sm:$0xf]
  %v137 = vld [vmem:[%s1 + $0x2d0] sm:$0xff]
  %v138 = vld [vmem:[%s1 + $0x2d8] sm:$0xff]
  %v139 = vld [vmem:[%s1 + $0x2e0] sm:$0xf]
  %v140 = vld [vmem:[%s1 + $0x2e4] sm:$0xff]
  %v141 = vld [vmem:[%s1 + $0x2ec] sm:$0xff]
  %v142 = vld [vmem:[%s1 + $0x2f4] sm:$0xf]
  %v143 = vld [vmem:[%s1 + $0x2f8] sm:$0xff]
  %v144 = vld [vmem:[%s1 + $0x300] sm:$0xff]
  %v145 = vld [vmem:[%s1 + $0x308] sm:$0xf]
  %v146 = vld [vmem:[%s1 + $0x30c] sm:$0xff]
  %v147 = vld [vmem:[%s1 + $0x314] sm:$0xff]
  %v148 = vld [vmem:[%s1 + $0x31c] sm:$0xf]
  %v149 = vld [vmem:[%s1 + $0x320] sm:$0xff]
  %v150 = vld [vmem:[%s1 + $0x328] sm:$0xff]
  %v151 = vld [vmem:[%s1 + $0x330] sm:$0xf]
  %v152 = vld [vmem:[%s1 + $0x334] sm:$0xff]
  %v153 = vld [vmem:[%s1 + $0x33c] sm:$0xff]
  %v154 = vld [vmem:[%s1 + $0x344] sm:$0xf]
  %v155 = vld [vmem:[%s1 + $0x348] sm:$0xff]
  %v156 = vld [vmem:[%s1 + $0x350] sm:$0xff]
  %v157 = vld [vmem:[%s1 + $0x358] sm:$0xf]
  %v158 = vld [vmem:[%s1 + $0x35c] sm:$0xff]
  %v159 = vld [vmem:[%s1 + $0x364] sm:$0xff]
  %v160 = vld [vmem:[%s1 + $0x36c] sm:$0xf]
  %v161 = vld [vmem:[%s1 + $0x370] sm:$0xff]
  %v162 = vld [vmem:[%s1 + $0x378] sm:$0xff]
  %v163 = vld [vmem:[%s1 + $0x380] sm:$0xf]
  %v164 = vld [vmem:[%s1 + $0x384] sm:$0xff]
  %v165 = vld [vmem:[%s1 + $0x38c] sm:$0xff]
  %v166 = vld [vmem:[%s1 + $0x394] sm:$0xf]
  %v167 = vld [vmem:[%s1 + $0x398] sm:$0xff]
  %v168 = vld [vmem:[%s1 + $0x3a0] sm:$0xff]
  %v169 = vld [vmem:[%s1 + $0x3a8] sm:$0xf]
  %v170 = vld [vmem:[%s1 + $0x3ac] sm:$0xff]
  %v171 = vld [vmem:[%s1 + $0x3b4] sm:$0xff]
  %v172 = vld [vmem:[%s1 + $0x3bc] sm:$0xf]
  %v173 = vld [vmem:[%s1 + $0x3c0] sm:$0xff]
  %v174 = vld [vmem:[%s1 + $0x3c8] sm:$0xff]
  %v175 = vld [vmem:[%s1 + $0x3d0] sm:$0xf]
  %v176 = vld [vmem:[%s1 + $0x3d4] sm:$0xff]
  %v177 = vld [vmem:[%s1 + $0x3dc] sm:$0xff]
  %v178 = vld [vmem:[%s1 + $0x3e4] sm:$0xf]
  %v179 = vld [vmem:[%s1 + $0x3e8] sm:$0xff]
  %v180 = vld [vmem:[%s1 + $0x3f0] sm:$0xff]
  %v181 = vld [vmem:[%s1 + $0x3f8] sm:$0xf]
  %v182 = vld [vmem:[%s1 + $0x3fc] sm:$0xff]
  %v183 = vld [vmem:[%s1 + $0x404] sm:$0xff]
  %v184 = vld [vmem:[%s1 + $0x40c] sm:$0xf]
  %v185 = vld [vmem:[%s1 + $0x410] sm:$0xff]
  %v186 = vld [vmem:[%s1 + $0x418] sm:$0xff]
  %v187 = vld [vmem:[%s1 + $0x420] sm:$0xf]
  %v188 = vld [vmem:[%s1 + $0x424] sm:$0xff]
  %v189 = vld [vmem:[%s1 + $0x42c] sm:$0xff]
  %v190 = vld [vmem:[%s1 + $0x434] sm:$0xf]
  %v191 = vld [vmem:[%s1 + $0x438] sm:$0xff]
  %v192 = vld [vmem:[%s1 + $0x440] sm:$0xff]
  %v193 = vld [vmem:[%s1 + $0x448] sm:$0xf]
  %v194 = vld [vmem:[%s1 + $0x44c] sm:$0xff]
  %v195 = vld [vmem:[%s1 + $0x454] sm:$0xff]
  %v196 = vld [vmem:[%s1 + $0x45c] sm:$0xf]
  %v197 = vld [vmem:[%s1 + $0x460] sm:$0xff]
  %v198 = vld [vmem:[%s1 + $0x468] sm:$0xff]
  %v199 = vld [vmem:[%s1 + $0x470] sm:$0xf]
  %v200 = vld [vmem:[%s1 + $0x474] sm:$0xff]
  %v201 = vld [vmem:[%s1 + $0x47c] sm:$0xff]
  %v202 = vld [vmem:[%s1 + $0x484] sm:$0xf]
  %v203 = vld [vmem:[%s1 + $0x488] sm:$0xff]
  %v204 = vld [vmem:[%s1 + $0x490] sm:$0xff]
  %v205 = vld [vmem:[%s1 + $0x498] sm:$0xf]
  %v206 = vld [vmem:[%s1 + $0x49c] sm:$0xff]
  %v207 = vld [vmem:[%s1 + $0x4a4] sm:$0xff]
  %v208 = vld [vmem:[%s1 + $0x4ac] sm:$0xf]
  %v209 = vld [vmem:[%s1 + $0x4b0] sm:$0xff]
  %v210 = vld [vmem:[%s1 + $0x4b8] sm:$0xff]
  %v211 = vld [vmem:[%s1 + $0x4c0] sm:$0xf]
  %v212 = vld [vmem:[%s1 + $0x4c4] sm:$0xff]
  %v213 = vld [vmem:[%s1 + $0x4cc] sm:$0xff]
  %v214 = vld [vmem:[%s1 + $0x4d4] sm:$0xf]
  %v215 = vld [vmem:[%s1 + $0x4d8] sm:$0xff]
  %v216 = vld [vmem:[%s1 + $0x4e0] sm:$0xff]
  %v217 = vld [vmem:[%s1 + $0x4e8] sm:$0xf]
  %v218 = vld [vmem:[%s1 + $0x4ec] sm:$0xff]
  %v219 = vld [vmem:[%s1 + $0x4f4] sm:$0xff]
  %v220 = vld [vmem:[%s1 + $0x4fc] sm:$0xf]
  %v221 = vld [vmem:[%s1 + $0x500] sm:$0xff]
  %v222 = vld [vmem:[%s1 + $0x508] sm:$0xff]
  %v223 = vld [vmem:[%s1 + $0x510] sm:$0xf]
  %v224 = vld [vmem:[%s1 + $0x514] sm:$0xff]
  %v225 = vld [vmem:[%s1 + $0x51c] sm:$0xff]
  %v226 = vld [vmem:[%s1 + $0x524] sm:$0xf]
  %v227 = vld [vmem:[%s1 + $0x528] sm:$0xff]
  %v228 = vld [vmem:[%s1 + $0x530] sm:$0xff]
  %v229 = vld [vmem:[%s1 + $0x538] sm:$0xf]
  %v230 = vld [vmem:[%s1 + $0x53c] sm:$0xff]
  %v231 = vld [vmem:[%s1 + $0x544] sm:$0xff]
  %v232 = vld [vmem:[%s1 + $0x54c] sm:$0xf]
  %v233 = vld [vmem:[%s1 + $0x550] sm:$0xff]
  %v234 = vld [vmem:[%s1 + $0x558] sm:$0xff]
  %v235 = vld [vmem:[%s1 + $0x560] sm:$0xf]
  %v236 = vld [vmem:[%s1 + $0x564] sm:$0xff]
  %v237 = vld [vmem:[%s1 + $0x56c] sm:$0xff]
  %v238 = vld [vmem:[%s1 + $0x574] sm:$0xf]
  %v239 = vld [vmem:[%s1 + $0x578] sm:$0xff]
  %v240 = vld [vmem:[%s1 + $0x580] sm:$0xff]
  %v241 = vld [vmem:[%s1 + $0x588] sm:$0xf]
  %v242 = vld [vmem:[%s1 + $0x58c] sm:$0xff]
  %v243 = vld [vmem:[%s1 + $0x594] sm:$0xff]
  %v244 = vld [vmem:[%s1 + $0x59c] sm:$0xf]
  %v245 = vld [vmem:[%s1 + $0x5a0] sm:$0xff]
  %v246 = vld [vmem:[%s1 + $0x5a8] sm:$0xff]
  %v247 = vld [vmem:[%s1 + $0x5b0] sm:$0xf]
  %v248 = vld [vmem:[%s1 + $0x5b4] sm:$0xff]
  %v249 = vld [vmem:[%s1 + $0x5bc] sm:$0xff]
  %v250 = vld [vmem:[%s1 + $0x5c4] sm:$0xf]
  %v251 = vld [vmem:[%s1 + $0x5c8] sm:$0xff]
  %v252 = vld [vmem:[%s1 + $0x5d0] sm:$0xff]
  %v253 = vld [vmem:[%s1 + $0x5d8] sm:$0xf]
  %v254 = vld [vmem:[%s1 + $0x5dc] sm:$0xff]
  %v255 = vld [vmem:[%s1 + $0x5e4] sm:$0xff]
  %v256 = vld [vmem:[%s1 + $0x5ec] sm:$0xf]
  %v257 = vld [vmem:[%s1 + $0x5f0] sm:$0xff]
  %v258 = vld [vmem:[%s1 + $0x5f8] sm:$0xff]
  %v259 = vld [vmem:[%s1 + $0x600] sm:$0xf]
  %v260 = vld [vmem:[%s1 + $0x604] sm:$0xff]
  %v261 = vld [vmem:[%s1 + $0x60c] sm:$0xff]
  %v262 = vld [vmem:[%s1 + $0x614] sm:$0xf]
  %v263 = vld [vmem:[%s1 + $0x618] sm:$0xff]
  %v264 = vld [vmem:[%s1 + $0x620] sm:$0xff]
  %v265 = vld [vmem:[%s1 + $0x628] sm:$0xf]
  %v266 = vld [vmem:[%s1 + $0x62c] sm:$0xff]
  %v267 = vld [vmem:[%s1 + $0x634] sm:$0xff]
  %v268 = vld [vmem:[%s1 + $0x63c] sm:$0xf]
  %v272 = vunpack.c.l.b16 %v26
  %v273 = vunpack.c.h.b16 %v26
  %v274 = vunpack.c.l.b16 %v27
  %v275 = vunpack.c.h.b16 %v27
  %v276 = vunpack.c.l.b16 %v28
  %v277 = vpack.c.b16 %v272, %v272
  %v278 = vpack.c.b16 %v273, %v273
  %v279 = vpack.c.b16 %v274, %v274
  %v280 = vpack.c.b16 %v275, %v275
  %v281 = vpack.c.b16 %v276, %v276
  %v527 = vunpack.c.l.b16 %v29
  %v528 = vunpack.c.h.b16 %v29
  %v529 = vunpack.c.l.b16 %v30
  %v530 = vunpack.c.h.b16 %v30
  %v531 = vunpack.c.l.b16 %v31
  %v532 = vunpack.c.l.b16 %v32
  %v533 = vunpack.c.h.b16 %v32
  %v534 = vunpack.c.l.b16 %v33
  %v535 = vunpack.c.h.b16 %v33
  %v536 = vunpack.c.l.b16 %v34
  %v537 = vunpack.c.l.b16 %v35
  %v538 = vunpack.c.h.b16 %v35
  %v539 = vunpack.c.l.b16 %v36
  %v540 = vunpack.c.h.b16 %v36
  %v541 = vunpack.c.l.b16 %v37
  %v542 = vunpack.c.l.b16 %v38
  %v543 = vunpack.c.h.b16 %v38
  %v544 = vunpack.c.l.b16 %v39
  %v545 = vunpack.c.h.b16 %v39
  %v546 = vunpack.c.l.b16 %v40
  %v547 = vunpack.c.l.b16 %v41
  %v548 = vunpack.c.h.b16 %v41
  %v549 = vunpack.c.l.b16 %v42
  %v550 = vunpack.c.h.b16 %v42
  %v551 = vunpack.c.l.b16 %v43
  %v552 = vunpack.c.l.b16 %v44
  %v553 = vunpack.c.h.b16 %v44
  %v554 = vunpack.c.l.b16 %v45
  %v555 = vunpack.c.h.b16 %v45
  %v556 = vunpack.c.l.b16 %v46
  %v557 = vunpack.c.l.b16 %v47
  %v558 = vunpack.c.h.b16 %v47
  %v559 = vunpack.c.l.b16 %v48
  %v560 = vunpack.c.h.b16 %v48
  %v561 = vunpack.c.l.b16 %v49
  %v562 = vunpack.c.l.b16 %v50
  %v563 = vunpack.c.h.b16 %v50
  %v564 = vunpack.c.l.b16 %v51
  %v565 = vunpack.c.h.b16 %v51
  %v566 = vunpack.c.l.b16 %v52
  %v567 = vunpack.c.l.b16 %v53
  %v568 = vunpack.c.h.b16 %v53
  %v569 = vunpack.c.l.b16 %v54
  %v570 = vunpack.c.h.b16 %v54
  %v571 = vunpack.c.l.b16 %v55
  %v572 = vunpack.c.l.b16 %v56
  %v573 = vunpack.c.h.b16 %v56
  %v574 = vunpack.c.l.b16 %v57
  %v575 = vunpack.c.h.b16 %v57
  %v576 = vunpack.c.l.b16 %v58
  %v577 = vunpack.c.l.b16 %v59
  %v578 = vunpack.c.h.b16 %v59
  %v579 = vunpack.c.l.b16 %v60
  %v580 = vunpack.c.h.b16 %v60
  %v581 = vunpack.c.l.b16 %v61
  %v582 = vunpack.c.l.b16 %v62
  %v583 = vunpack.c.h.b16 %v62
  %v584 = vunpack.c.l.b16 %v63
  %v585 = vunpack.c.h.b16 %v63
  %v586 = vunpack.c.l.b16 %v64
  %v587 = vunpack.c.l.b16 %v65
  %v588 = vunpack.c.h.b16 %v65
  %v589 = vunpack.c.l.b16 %v66
  %v590 = vunpack.c.h.b16 %v66
  %v591 = vunpack.c.l.b16 %v67
  %v592 = vunpack.c.l.b16 %v68
  %v593 = vunpack.c.h.b16 %v68
  %v594 = vunpack.c.l.b16 %v69
  %v595 = vunpack.c.h.b16 %v69
  %v596 = vunpack.c.l.b16 %v70
  %v597 = vunpack.c.l.b16 %v71
  %v598 = vunpack.c.h.b16 %v71
  %v599 = vunpack.c.l.b16 %v72
  %v600 = vunpack.c.h.b16 %v72
  %v601 = vunpack.c.l.b16 %v73
  %v602 = vunpack.c.l.b16 %v74
  %v603 = vunpack.c.h.b16 %v74
  %v604 = vunpack.c.l.b16 %v75
  %v605 = vunpack.c.h.b16 %v75
  %v606 = vunpack.c.l.b16 %v76
  %v607 = vunpack.c.l.b16 %v77
  %v608 = vunpack.c.h.b16 %v77
  %v609 = vunpack.c.l.b16 %v78
  %v610 = vunpack.c.h.b16 %v78
  %v611 = vunpack.c.l.b16 %v79
  %v612 = vunpack.c.l.b16 %v80
  %v613 = vunpack.c.h.b16 %v80
  %v614 = vunpack.c.l.b16 %v81
  %v615 = vunpack.c.h.b16 %v81
  %v616 = vunpack.c.l.b16 %v82
  %v617 = vunpack.c.l.b16 %v83
  %v618 = vunpack.c.h.b16 %v83
  %v619 = vunpack.c.l.b16 %v84
  %v620 = vunpack.c.h.b16 %v84
  %v621 = vunpack.c.l.b16 %v85
  %v622 = vunpack.c.l.b16 %v86
  %v623 = vunpack.c.h.b16 %v86
  %v624 = vunpack.c.l.b16 %v87
  %v625 = vunpack.c.h.b16 %v87
  %v626 = vunpack.c.l.b16 %v88
  %v627 = vunpack.c.l.b16 %v89
  %v628 = vunpack.c.h.b16 %v89
  %v629 = vunpack.c.l.b16 %v90
  %v630 = vunpack.c.h.b16 %v90
  %v631 = vunpack.c.l.b16 %v91
  %v632 = vunpack.c.l.b16 %v92
  %v633 = vunpack.c.h.b16 %v92
  %v634 = vunpack.c.l.b16 %v93
  %v635 = vunpack.c.h.b16 %v93
  %v636 = vunpack.c.l.b16 %v94
  %v637 = vunpack.c.l.b16 %v95
  %v638 = vunpack.c.h.b16 %v95
  %v639 = vunpack.c.l.b16 %v96
  %v640 = vunpack.c.h.b16 %v96
  %v641 = vunpack.c.l.b16 %v97
  %v642 = vunpack.c.l.b16 %v98
  %v643 = vunpack.c.h.b16 %v98
  %v644 = vunpack.c.l.b16 %v99
  %v645 = vunpack.c.h.b16 %v99
  %v646 = vunpack.c.l.b16 %v100
  %v647 = vunpack.c.l.b16 %v101
  %v648 = vunpack.c.h.b16 %v101
  %v649 = vunpack.c.l.b16 %v102
  %v650 = vunpack.c.h.b16 %v102
  %v651 = vunpack.c.l.b16 %v103
  %v652 = vunpack.c.l.b16 %v104
  %v653 = vunpack.c.h.b16 %v104
  %v654 = vunpack.c.l.b16 %v105
  %v655 = vunpack.c.h.b16 %v105
  %v656 = vunpack.c.l.b16 %v106
  %v657 = vunpack.c.l.b16 %v107
  %v658 = vunpack.c.h.b16 %v107
  %v659 = vunpack.c.l.b16 %v108
  %v660 = vunpack.c.h.b16 %v108
  %v661 = vunpack.c.l.b16 %v109
  %v662 = vunpack.c.l.b16 %v110
  %v663 = vunpack.c.h.b16 %v110
  %v664 = vunpack.c.l.b16 %v111
  %v665 = vunpack.c.h.b16 %v111
  %v666 = vunpack.c.l.b16 %v112
  %v667 = vunpack.c.l.b16 %v113
  %v668 = vunpack.c.h.b16 %v113
  %v669 = vunpack.c.l.b16 %v114
  %v670 = vunpack.c.h.b16 %v114
  %v671 = vunpack.c.l.b16 %v115
  %v672 = vunpack.c.l.b16 %v116
  %v673 = vunpack.c.h.b16 %v116
  %v674 = vunpack.c.l.b16 %v117
  %v675 = vunpack.c.h.b16 %v117
  %v676 = vunpack.c.l.b16 %v118
  %v677 = vunpack.c.l.b16 %v119
  %v678 = vunpack.c.h.b16 %v119
  %v679 = vunpack.c.l.b16 %v120
  %v680 = vunpack.c.h.b16 %v120
  %v681 = vunpack.c.l.b16 %v121
  %v682 = vunpack.c.l.b16 %v122
  %v683 = vunpack.c.h.b16 %v122
  %v684 = vunpack.c.l.b16 %v123
  %v685 = vunpack.c.h.b16 %v123
  %v686 = vunpack.c.l.b16 %v124
  %v687 = vunpack.c.l.b16 %v125
  %v688 = vunpack.c.h.b16 %v125
  %v689 = vunpack.c.l.b16 %v126
  %v690 = vunpack.c.h.b16 %v126
  %v691 = vunpack.c.l.b16 %v127
  %v692 = vunpack.c.l.b16 %v128
  %v693 = vunpack.c.h.b16 %v128
  %v694 = vunpack.c.l.b16 %v129
  %v695 = vunpack.c.h.b16 %v129
  %v696 = vunpack.c.l.b16 %v130
  %v697 = vunpack.c.l.b16 %v131
  %v698 = vunpack.c.h.b16 %v131
  %v699 = vunpack.c.l.b16 %v132
  %v700 = vunpack.c.h.b16 %v132
  %v701 = vunpack.c.l.b16 %v133
  %v702 = vunpack.c.l.b16 %v134
  %v703 = vunpack.c.h.b16 %v134
  %v704 = vunpack.c.l.b16 %v135
  %v705 = vunpack.c.h.b16 %v135
  %v706 = vunpack.c.l.b16 %v136
  %v707 = vunpack.c.l.b16 %v137
  %v708 = vunpack.c.h.b16 %v137
  %v709 = vunpack.c.l.b16 %v138
  %v710 = vunpack.c.h.b16 %v138
  %v711 = vunpack.c.l.b16 %v139
  %v712 = vunpack.c.l.b16 %v140
  %v713 = vunpack.c.h.b16 %v140
  %v714 = vunpack.c.l.b16 %v141
  %v715 = vunpack.c.h.b16 %v141
  %v716 = vunpack.c.l.b16 %v142
  %v717 = vunpack.c.l.b16 %v143
  %v718 = vunpack.c.h.b16 %v143
  %v719 = vunpack.c.l.b16 %v144
  %v720 = vunpack.c.h.b16 %v144
  %v721 = vunpack.c.l.b16 %v145
  %v722 = vunpack.c.l.b16 %v146
  %v723 = vunpack.c.h.b16 %v146
  %v724 = vunpack.c.l.b16 %v147
  %v725 = vunpack.c.h.b16 %v147
  %v726 = vunpack.c.l.b16 %v148
  %v727 = vunpack.c.l.b16 %v149
  %v728 = vunpack.c.h.b16 %v149
  %v729 = vunpack.c.l.b16 %v150
  %v730 = vunpack.c.h.b16 %v150
  %v731 = vunpack.c.l.b16 %v151
  %v732 = vunpack.c.l.b16 %v152
  %v733 = vunpack.c.h.b16 %v152
  %v734 = vunpack.c.l.b16 %v153
  %v735 = vunpack.c.h.b16 %v153
  %v736 = vunpack.c.l.b16 %v154
  %v737 = vunpack.c.l.b16 %v155
  %v738 = vunpack.c.h.b16 %v155
  %v739 = vunpack.c.l.b16 %v156
  %v740 = vunpack.c.h.b16 %v156
  %v741 = vunpack.c.l.b16 %v157
  %v742 = vunpack.c.l.b16 %v158
  %v743 = vunpack.c.h.b16 %v158
  %v744 = vunpack.c.l.b16 %v159
  %v745 = vunpack.c.h.b16 %v159
  %v746 = vunpack.c.l.b16 %v160
  %v747 = vunpack.c.l.b16 %v161
  %v748 = vunpack.c.h.b16 %v161
  %v749 = vunpack.c.l.b16 %v162
  %v750 = vunpack.c.h.b16 %v162
  %v751 = vunpack.c.l.b16 %v163
  %v752 = vunpack.c.l.b16 %v164
  %v753 = vunpack.c.h.b16 %v164
  %v754 = vunpack.c.l.b16 %v165
  %v755 = vunpack.c.h.b16 %v165
  %v756 = vunpack.c.l.b16 %v166
  %v757 = vunpack.c.l.b16 %v167
  %v758 = vunpack.c.h.b16 %v167
  %v759 = vunpack.c.l.b16 %v168
  %v760 = vunpack.c.h.b16 %v168
  %v761 = vunpack.c.l.b16 %v169
  %v762 = vunpack.c.l.b16 %v170
  %v763 = vunpack.c.h.b16 %v170
  %v764 = vunpack.c.l.b16 %v171
  %v765 = vunpack.c.h.b16 %v171
  %v766 = vunpack.c.l.b16 %v172
  %v767 = vunpack.c.l.b16 %v173
  %v768 = vunpack.c.h.b16 %v173
  %v769 = vunpack.c.l.b16 %v174
  %v770 = vunpack.c.h.b16 %v174
  %v771 = vunpack.c.l.b16 %v175
  %v772 = vunpack.c.l.b16 %v176
  %v773 = vunpack.c.h.b16 %v176
  %v774 = vunpack.c.l.b16 %v177
  %v775 = vunpack.c.h.b16 %v177
  %v776 = vunpack.c.l.b16 %v178
  %v777 = vunpack.c.l.b16 %v179
  %v778 = vunpack.c.h.b16 %v179
  %v779 = vunpack.c.l.b16 %v180
  %v780 = vunpack.c.h.b16 %v180
  %v781 = vunpack.c.l.b16 %v181
  %v782 = vunpack.c.l.b16 %v182
  %v783 = vunpack.c.h.b16 %v182
  %v784 = vunpack.c.l.b16 %v183
  %v785 = vunpack.c.h.b16 %v183
  %v786 = vunpack.c.l.b16 %v184
  %v787 = vunpack.c.l.b16 %v185
  %v788 = vunpack.c.h.b16 %v185
  %v789 = vunpack.c.l.b16 %v186
  %v790 = vunpack.c.h.b16 %v186
  %v791 = vunpack.c.l.b16 %v187
  %v792 = vunpack.c.l.b16 %v188
  %v793 = vunpack.c.h.b16 %v188
  %v794 = vunpack.c.l.b16 %v189
  %v795 = vunpack.c.h.b16 %v189
  %v796 = vunpack.c.l.b16 %v190
  %v797 = vunpack.c.l.b16 %v191
  %v798 = vunpack.c.h.b16 %v191
  %v799 = vunpack.c.l.b16 %v192
  %v800 = vunpack.c.h.b16 %v192
  %v801 = vunpack.c.l.b16 %v193
  %v802 = vunpack.c.l.b16 %v194
  %v803 = vunpack.c.h.b16 %v194
  %v804 = vunpack.c.l.b16 %v195
  %v805 = vunpack.c.h.b16 %v195
  %v806 = vunpack.c.l.b16 %v196
  %v807 = vunpack.c.l.b16 %v197
  %v808 = vunpack.c.h.b16 %v197
  %v809 = vunpack.c.l.b16 %v198
  %v810 = vunpack.c.h.b16 %v198
  %v811 = vunpack.c.l.b16 %v199
  %v812 = vunpack.c.l.b16 %v200
  %v813 = vunpack.c.h.b16 %v200
  %v814 = vunpack.c.l.b16 %v201
  %v815 = vunpack.c.h.b16 %v201
  %v816 = vunpack.c.l.b16 %v202
  %v817 = vunpack.c.l.b16 %v203
  %v818 = vunpack.c.h.b16 %v203
  %v819 = vunpack.c.l.b16 %v204
  %v820 = vunpack.c.h.b16 %v204
  %v821 = vunpack.c.l.b16 %v205
  %v822 = vunpack.c.l.b16 %v206
  %v823 = vunpack.c.h.b16 %v206
  %v824 = vunpack.c.l.b16 %v207
  %v825 = vunpack.c.h.b16 %v207
  %v826 = vunpack.c.l.b16 %v208
  %v827 = vunpack.c.l.b16 %v209
  %v828 = vunpack.c.h.b16 %v209
  %v829 = vunpack.c.l.b16 %v210
  %v830 = vunpack.c.h.b16 %v210
  %v831 = vunpack.c.l.b16 %v211
  %v832 = vunpack.c.l.b16 %v212
  %v833 = vunpack.c.h.b16 %v212
  %v834 = vunpack.c.l.b16 %v213
  %v835 = vunpack.c.h.b16 %v213
  %v836 = vunpack.c.l.b16 %v214
  %v837 = vunpack.c.l.b16 %v215
  %v838 = vunpack.c.h.b16 %v215
  %v839 = vunpack.c.l.b16 %v216
  %v840 = vunpack.c.h.b16 %v216
  %v841 = vunpack.c.l.b16 %v217
  %v842 = vunpack.c.l.b16 %v218
  %v843 = vunpack.c.h.b16 %v218
  %v844 = vunpack.c.l.b16 %v219
  %v845 = vunpack.c.h.b16 %v219
  %v846 = vunpack.c.l.b16 %v220
  %v847 = vunpack.c.l.b16 %v221
  %v848 = vunpack.c.h.b16 %v221
  %v849 = vunpack.c.l.b16 %v222
  %v850 = vunpack.c.h.b16 %v222
  %v851 = vunpack.c.l.b16 %v223
  %v852 = vunpack.c.l.b16 %v224
  %v853 = vunpack.c.h.b16 %v224
  %v854 = vunpack.c.l.b16 %v225
  %v855 = vunpack.c.h.b16 %v225
  %v856 = vunpack.c.l.b16 %v226
  %v857 = vunpack.c.l.b16 %v227
  %v858 = vunpack.c.h.b16 %v227
  %v859 = vunpack.c.l.b16 %v228
  %v860 = vunpack.c.h.b16 %v228
  %v861 = vunpack.c.l.b16 %v229
  %v862 = vunpack.c.l.b16 %v230
  %v863 = vunpack.c.h.b16 %v230
  %v864 = vunpack.c.l.b16 %v231
  %v865 = vunpack.c.h.b16 %v231
  %v866 = vunpack.c.l.b16 %v232
  %v867 = vunpack.c.l.b16 %v233
  %v868 = vunpack.c.h.b16 %v233
  %v869 = vunpack.c.l.b16 %v234
  %v870 = vunpack.c.h.b16 %v234
  %v871 = vunpack.c.l.b16 %v235
  %v872 = vunpack.c.l.b16 %v236
  %v873 = vunpack.c.h.b16 %v236
  %v874 = vunpack.c.l.b16 %v237
  %v875 = vunpack.c.h.b16 %v237
  %v876 = vunpack.c.l.b16 %v238
  %v877 = vunpack.c.l.b16 %v239
  %v878 = vunpack.c.h.b16 %v239
  %v879 = vunpack.c.l.b16 %v240
  %v880 = vunpack.c.h.b16 %v240
  %v881 = vunpack.c.l.b16 %v241
  %v882 = vunpack.c.l.b16 %v242
  %v883 = vunpack.c.h.b16 %v242
  %v884 = vunpack.c.l.b16 %v243
  %v885 = vunpack.c.h.b16 %v243
  %v886 = vunpack.c.l.b16 %v244
  %v887 = vunpack.c.l.b16 %v245
  %v888 = vunpack.c.h.b16 %v245
  %v889 = vunpack.c.l.b16 %v246
  %v890 = vunpack.c.h.b16 %v246
  %v891 = vunpack.c.l.b16 %v247
  %v892 = vunpack.c.l.b16 %v248
  %v893 = vunpack.c.h.b16 %v248
  %v894 = vunpack.c.l.b16 %v249
  %v895 = vunpack.c.h.b16 %v249
  %v896 = vunpack.c.l.b16 %v250
  %v897 = vunpack.c.l.b16 %v251
  %v898 = vunpack.c.h.b16 %v251
  %v899 = vunpack.c.l.b16 %v252
  %v900 = vunpack.c.h.b16 %v252
  %v901 = vunpack.c.l.b16 %v253
  %v902 = vunpack.c.l.b16 %v254
  %v903 = vunpack.c.h.b16 %v254
  %v904 = vunpack.c.l.b16 %v255
  %v905 = vunpack.c.h.b16 %v255
  %v906 = vunpack.c.l.b16 %v256
  %v907 = vunpack.c.l.b16 %v257
  %v908 = vunpack.c.h.b16 %v257
  %v909 = vunpack.c.l.b16 %v258
  %v910 = vunpack.c.h.b16 %v258
  %v911 = vunpack.c.l.b16 %v259
  %v912 = vunpack.c.l.b16 %v260
  %v913 = vunpack.c.h.b16 %v260
  %v914 = vunpack.c.l.b16 %v261
  %v915 = vunpack.c.h.b16 %v261
  %v916 = vunpack.c.l.b16 %v262
  %v917 = vunpack.c.l.b16 %v263
  %v918 = vunpack.c.h.b16 %v263
  %v919 = vunpack.c.l.b16 %v264
  %v920 = vunpack.c.h.b16 %v264
  %v921 = vunpack.c.l.b16 %v265
  %v922 = vunpack.c.l.b16 %v266
  %v923 = vunpack.c.h.b16 %v266
  %v924 = vunpack.c.l.b16 %v267
  %v925 = vunpack.c.h.b16 %v267
  %v926 = vunpack.c.l.b16 %v268
  %v927 = vpack.c.b16 %v532, %v527
  %v928 = vpack.c.b16 %v533, %v528
  %v929 = vpack.c.b16 %v534, %v529
  %v930 = vpack.c.b16 %v535, %v530
  %v931 = vpack.c.b16 %v536, %v531
  %v932 = vpack.c.b16 %v542, %v537
  %v933 = vpack.c.b16 %v543, %v538
  %v934 = vpack.c.b16 %v544, %v539
  %v935 = vpack.c.b16 %v545, %v540
  %v936 = vpack.c.b16 %v546, %v541
  %v937 = vpack.c.b16 %v552, %v547
  %v938 = vpack.c.b16 %v553, %v548
  %v939 = vpack.c.b16 %v554, %v549
  %v940 = vpack.c.b16 %v555, %v550
  %v941 = vpack.c.b16 %v556, %v551
  %v942 = vpack.c.b16 %v562, %v557
  %v943 = vpack.c.b16 %v563, %v558
  %v944 = vpack.c.b16 %v564, %v559
  %v945 = vpack.c.b16 %v565, %v560
  %v946 = vpack.c.b16 %v566, %v561
  %v947 = vpack.c.b16 %v572, %v567
  %v948 = vpack.c.b16 %v573, %v568
  %v949 = vpack.c.b16 %v574, %v569
  %v950 = vpack.c.b16 %v575, %v570
  %v951 = vpack.c.b16 %v576, %v571
  %v952 = vpack.c.b16 %v582, %v577
  %v953 = vpack.c.b16 %v583, %v578
  %v954 = vpack.c.b16 %v584, %v579
  %v955 = vpack.c.b16 %v585, %v580
  %v956 = vpack.c.b16 %v586, %v581
  %v957 = vpack.c.b16 %v592, %v587
  %v958 = vpack.c.b16 %v593, %v588
  %v959 = vpack.c.b16 %v594, %v589
  %v960 = vpack.c.b16 %v595, %v590
  %v961 = vpack.c.b16 %v596, %v591
  %v962 = vpack.c.b16 %v602, %v597
  %v963 = vpack.c.b16 %v603, %v598
  %v964 = vpack.c.b16 %v604, %v599
  %v965 = vpack.c.b16 %v605, %v600
  %v966 = vpack.c.b16 %v606, %v601
  %v967 = vpack.c.b16 %v612, %v607
  %v968 = vpack.c.b16 %v613, %v608
  %v969 = vpack.c.b16 %v614, %v609
  %v970 = vpack.c.b16 %v615, %v610
  %v971 = vpack.c.b16 %v616, %v611
  %v972 = vpack.c.b16 %v622, %v617
  %v973 = vpack.c.b16 %v623, %v618
  %v974 = vpack.c.b16 %v624, %v619
  %v975 = vpack.c.b16 %v625, %v620
  %v976 = vpack.c.b16 %v626, %v621
  %v977 = vpack.c.b16 %v632, %v627
  %v978 = vpack.c.b16 %v633, %v628
  %v979 = vpack.c.b16 %v634, %v629
  %v980 = vpack.c.b16 %v635, %v630
  %v981 = vpack.c.b16 %v636, %v631
  %v982 = vpack.c.b16 %v642, %v637
  %v983 = vpack.c.b16 %v643, %v638
  %v984 = vpack.c.b16 %v644, %v639
  %v985 = vpack.c.b16 %v645, %v640
  %v986 = vpack.c.b16 %v646, %v641
  %v987 = vpack.c.b16 %v652, %v647
  %v988 = vpack.c.b16 %v653, %v648
  %v989 = vpack.c.b16 %v654, %v649
  %v990 = vpack.c.b16 %v655, %v650
  %v991 = vpack.c.b16 %v656, %v651
  %v992 = vpack.c.b16 %v662, %v657
  %v993 = vpack.c.b16 %v663, %v658
  %v994 = vpack.c.b16 %v664, %v659
  %v995 = vpack.c.b16 %v665, %v660
  %v996 = vpack.c.b16 %v666, %v661
  %v997 = vpack.c.b16 %v672, %v667
  %v998 = vpack.c.b16 %v673, %v668
  %v999 = vpack.c.b16 %v674, %v669
  %v1000 = vpack.c.b16 %v675, %v670
  %v1001 = vpack.c.b16 %v676, %v671
  %v1002 = vpack.c.b16 %v682, %v677
  %v1003 = vpack.c.b16 %v683, %v678
  %v1004 = vpack.c.b16 %v684, %v679
  %v1005 = vpack.c.b16 %v685, %v680
  %v1006 = vpack.c.b16 %v686, %v681
  %v1007 = vpack.c.b16 %v692, %v687
  %v1008 = vpack.c.b16 %v693, %v688
  %v1009 = vpack.c.b16 %v694, %v689
  %v1010 = vpack.c.b16 %v695, %v690
  %v1011 = vpack.c.b16 %v696, %v691
  %v1012 = vpack.c.b16 %v702, %v697
  %v1013 = vpack.c.b16 %v703, %v698
  %v1014 = vpack.c.b16 %v704, %v699
  %v1015 = vpack.c.b16 %v705, %v700
  %v1016 = vpack.c.b16 %v706, %v701
  %v1017 = vpack.c.b16 %v712, %v707
  %v1018 = vpack.c.b16 %v713, %v708
  %v1019 = vpack.c.b16 %v714, %v709
  %v1020 = vpack.c.b16 %v715, %v710
  %v1021 = vpack.c.b16 %v716, %v711
  %v1022 = vpack.c.b16 %v722, %v717
  %v1023 = vpack.c.b16 %v723, %v718
  %v1024 = vpack.c.b16 %v724, %v719
  %v1025 = vpack.c.b16 %v725, %v720
  %v1026 = vpack.c.b16 %v726, %v721
  %v1027 = vpack.c.b16 %v732, %v727
  %v1028 = vpack.c.b16 %v733, %v728
  %v1029 = vpack.c.b16 %v734, %v729
  %v1030 = vpack.c.b16 %v735, %v730
  %v1031 = vpack.c.b16 %v736, %v731
  %v1032 = vpack.c.b16 %v742, %v737
  %v1033 = vpack.c.b16 %v743, %v738
  %v1034 = vpack.c.b16 %v744, %v739
  %v1035 = vpack.c.b16 %v745, %v740
  %v1036 = vpack.c.b16 %v746, %v741
  %v1037 = vpack.c.b16 %v752, %v747
  %v1038 = vpack.c.b16 %v753, %v748
  %v1039 = vpack.c.b16 %v754, %v749
  %v1040 = vpack.c.b16 %v755, %v750
  %v1041 = vpack.c.b16 %v756, %v751
  %v1042 = vpack.c.b16 %v762, %v757
  %v1043 = vpack.c.b16 %v763, %v758
  %v1044 = vpack.c.b16 %v764, %v759
  %v1045 = vpack.c.b16 %v765, %v760
  %v1046 = vpack.c.b16 %v766, %v761
  %v1047 = vpack.c.b16 %v772, %v767
  %v1048 = vpack.c.b16 %v773, %v768
  %v1049 = vpack.c.b16 %v774, %v769
  %v1050 = vpack.c.b16 %v775, %v770
  %v1051 = vpack.c.b16 %v776, %v771
  %v1052 = vpack.c.b16 %v782, %v777
  %v1053 = vpack.c.b16 %v783, %v778
  %v1054 = vpack.c.b16 %v784, %v779
  %v1055 = vpack.c.b16 %v785, %v780
  %v1056 = vpack.c.b16 %v786, %v781
  %v1057 = vpack.c.b16 %v792, %v787
  %v1058 = vpack.c.b16 %v793, %v788
  %v1059 = vpack.c.b16 %v794, %v789
  %v1060 = vpack.c.b16 %v795, %v790
  %v1061 = vpack.c.b16 %v796, %v791
  %v1062 = vpack.c.b16 %v802, %v797
  %v1063 = vpack.c.b16 %v803, %v798
  %v1064 = vpack.c.b16 %v804, %v799
  %v1065 = vpack.c.b16 %v805, %v800
  %v1066 = vpack.c.b16 %v806, %v801
  %v1067 = vpack.c.b16 %v812, %v807
  %v1068 = vpack.c.b16 %v813, %v808
  %v1069 = vpack.c.b16 %v814, %v809
  %v1070 = vpack.c.b16 %v815, %v810
  %v1071 = vpack.c.b16 %v816, %v811
  %v1072 = vpack.c.b16 %v822, %v817
  %v1073 = vpack.c.b16 %v823, %v818
  %v1074 = vpack.c.b16 %v824, %v819
  %v1075 = vpack.c.b16 %v825, %v820
  %v1076 = vpack.c.b16 %v826, %v821
  %v1077 = vpack.c.b16 %v832, %v827
  %v1078 = vpack.c.b16 %v833, %v828
  %v1079 = vpack.c.b16 %v834, %v829
  %v1080 = vpack.c.b16 %v835, %v830
  %v1081 = vpack.c.b16 %v836, %v831
  %v1082 = vpack.c.b16 %v842, %v837
  %v1083 = vpack.c.b16 %v843, %v838
  %v1084 = vpack.c.b16 %v844, %v839
  %v1085 = vpack.c.b16 %v845, %v840
  %v1086 = vpack.c.b16 %v846, %v841
  %v1087 = vpack.c.b16 %v852, %v847
  %v1088 = vpack.c.b16 %v853, %v848
  %v1089 = vpack.c.b16 %v854, %v849
  %v1090 = vpack.c.b16 %v855, %v850
  %v1091 = vpack.c.b16 %v856, %v851
  %v1092 = vpack.c.b16 %v862, %v857
  %v1093 = vpack.c.b16 %v863, %v858
  %v1094 = vpack.c.b16 %v864, %v859
  %v1095 = vpack.c.b16 %v865, %v860
  %v1096 = vpack.c.b16 %v866, %v861
  %v1097 = vpack.c.b16 %v872, %v867
  %v1098 = vpack.c.b16 %v873, %v868
  %v1099 = vpack.c.b16 %v874, %v869
  %v1100 = vpack.c.b16 %v875, %v870
  %v1101 = vpack.c.b16 %v876, %v871
  %v1102 = vpack.c.b16 %v882, %v877
  %v1103 = vpack.c.b16 %v883, %v878
  %v1104 = vpack.c.b16 %v884, %v879
  %v1105 = vpack.c.b16 %v885, %v880
  %v1106 = vpack.c.b16 %v886, %v881
  %v1107 = vpack.c.b16 %v892, %v887
  %v1108 = vpack.c.b16 %v893, %v888
  %v1109 = vpack.c.b16 %v894, %v889
  %v1110 = vpack.c.b16 %v895, %v890
  %v1111 = vpack.c.b16 %v896, %v891
  %v1112 = vpack.c.b16 %v902, %v897
  %v1113 = vpack.c.b16 %v903, %v898
  %v1114 = vpack.c.b16 %v904, %v899
  %v1115 = vpack.c.b16 %v905, %v900
  %v1116 = vpack.c.b16 %v906, %v901
  %v1117 = vpack.c.b16 %v912, %v907
  %v1118 = vpack.c.b16 %v913, %v908
  %v1119 = vpack.c.b16 %v914, %v909
  %v1120 = vpack.c.b16 %v915, %v910
  %v1121 = vpack.c.b16 %v916, %v911
  %v1122 = vpack.c.b16 %v922, %v917
  %v1123 = vpack.c.b16 %v923, %v918
  %v1124 = vpack.c.b16 %v924, %v919
  %v1125 = vpack.c.b16 %v925, %v920
  %v1126 = vpack.c.b16 %v926, %v921
  %1327 = vmatprep.subr.bf16.mxu0 %v928
  %1328 = vmatpush1.bf16.msra.mxu0 %v927
  %1329 = vmatprep.subr.bf16.mxu0 %v933
  %1330 = vmatpush1.bf16.msra.mxu0 %v932
  %1331 = vmatprep.subr.bf16.mxu0 %v938
  %1332 = vmatpush1.bf16.msra.mxu0 %v937
  %1333 = vmatprep.subr.bf16.mxu0 %v943
  %1334 = vmatpush1.bf16.msra.mxu0 %v942
  %1335 = vmatprep.subr.bf16.mxu0 %v948
  %1336 = vmatpush1.bf16.msra.mxu0 %v947
  %1337 = vmatprep.subr.bf16.mxu0 %v953
  %1338 = vmatpush1.bf16.msra.mxu0 %v952
  %1339 = vmatprep.subr.bf16.mxu0 %v958
  %1340 = vmatpush1.bf16.msra.mxu0 %v957
  %1341 = vmatprep.subr.bf16.mxu0 %v963
  %1342 = vmatpush1.bf16.msra.mxu0 %v962
  %1343 = vmatprep.subr.bf16.mxu0 %v968
  %1344 = vmatpush1.bf16.msra.mxu0 %v967
  %1345 = vmatprep.subr.bf16.mxu0 %v973
  %1346 = vmatpush1.bf16.msra.mxu0 %v972
  %1347 = vmatprep.subr.bf16.mxu0 %v978
  %1348 = vmatpush1.bf16.msra.mxu0 %v977
  %1349 = vmatprep.subr.bf16.mxu0 %v983
  %1350 = vmatpush1.bf16.msra.mxu0 %v982
  %1351 = vmatprep.subr.bf16.mxu0 %v988
  %1352 = vmatpush1.bf16.msra.mxu0 %v987
  %1353 = vmatprep.subr.bf16.mxu0 %v993
  %1354 = vmatpush1.bf16.msra.mxu0 %v992
  %1355 = vmatprep.subr.bf16.mxu0 %v998
  %1356 = vmatpush1.bf16.msra.mxu0 %v997
  %1357 = vmatprep.subr.bf16.mxu0 %v1003
  %1358 = vmatpush1.bf16.msra.mxu0 %v1002
  %1359 = vmatprep.mubr.bf16.mxu0 %v278
  %1360 = vmatmul.mubr.bf16.gmra.mrb[0].mxu0 %v277
  %v1361 = vpop.f32.mrb[0].mxu0
  %v1362 = vadd.f32 0.0, %v1361
  %v1363 = vpop.f32.mrb[0].mxu0
  %v1364 = vadd.f32 0.0, %v1363
  %v1365 = vpop.f32.mrb[0].mxu0
  %v1366 = vpop.f32.mrb[0].mxu0
  %1367 = vdwg.mxu0
  %1368 = vmatprep.subr.bf16.mxu0 %v1008
  %1369 = vmatpush1.bf16.msra.mxu0 %v1007
  %1370 = vmatprep.subr.bf16.mxu0 %v1013
  %1371 = vmatpush1.bf16.msra.mxu0 %v1012
  %1372 = vmatprep.subr.bf16.mxu0 %v1018
  %1373 = vmatpush1.bf16.msra.mxu0 %v1017
  %1374 = vmatprep.subr.bf16.mxu0 %v1023
  %1375 = vmatpush1.bf16.msra.mxu0 %v1022
  %1376 = vmatprep.subr.bf16.mxu0 %v1028
  %1377 = vmatpush1.bf16.msra.mxu0 %v1027
  %1378 = vmatprep.subr.bf16.mxu0 %v1033
  %1379 = vmatpush1.bf16.msra.mxu0 %v1032
  %1380 = vmatprep.subr.bf16.mxu0 %v1038
  %1381 = vmatpush1.bf16.msra.mxu0 %v1037
  %1382 = vmatprep.subr.bf16.mxu0 %v1043
  %1383 = vmatpush1.bf16.msra.mxu0 %v1042
  %1384 = vmatprep.subr.bf16.mxu0 %v1048
  %1385 = vmatpush1.bf16.msra.mxu0 %v1047
  %1386 = vmatprep.subr.bf16.mxu0 %v1053
  %1387 = vmatpush1.bf16.msra.mxu0 %v1052
  %1388 = vmatprep.subr.bf16.mxu0 %v1058
  %1389 = vmatpush1.bf16.msra.mxu0 %v1057
  %1390 = vmatprep.subr.bf16.mxu0 %v1063
  %1391 = vmatpush1.bf16.msra.mxu0 %v1062
  %1392 = vmatprep.subr.bf16.mxu0 %v1068
  %1393 = vmatpush1.bf16.msra.mxu0 %v1067
  %1394 = vmatprep.subr.bf16.mxu0 %v1073
  %1395 = vmatpush1.bf16.msra.mxu0 %v1072
  %1396 = vmatprep.subr.bf16.mxu0 %v1078
  %1397 = vmatpush1.bf16.msra.mxu0 %v1077
  %1398 = vmatprep.subr.bf16.mxu0 %v1083
  %1399 = vmatpush1.bf16.msra.mxu0 %v1082
  %1400 = vmatprep.mubr.bf16.mxu0 %v280
  %1401 = vmatmul.mubr.bf16.gmra.mrb[0].mxu0 %v279
  %v1402 = vpop.f32.mrb[0].mxu0
  %v1403 = vadd.f32 %v1362, %v1402
  %v1404 = vpop.f32.mrb[0].mxu0
  %v1405 = vadd.f32 %v1364, %v1404
  %v1406 = vpop.f32.mrb[0].mxu0
  %v1407 = vpop.f32.mrb[0].mxu0
  %1408 = vdwg.mxu0
  %1409 = vmatprep.subr.bf16.mxu0 %v1088
  %1410 = vmatpush1.bf16.msra.mxu0 %v1087
  %1411 = vmatprep.subr.bf16.mxu0 %v1093
  %1412 = vmatpush1.bf16.msra.mxu0 %v1092
  %1413 = vmatprep.subr.bf16.mxu0 %v1098
  %1414 = vmatpush1.bf16.msra.mxu0 %v1097
  %1415 = vmatprep.subr.bf16.mxu0 %v1103
  %1416 = vmatpush1.bf16.msra.mxu0 %v1102
  %1417 = vmatprep.subr.bf16.mxu0 %v1108
  %1418 = vmatpush1.bf16.msra.mxu0 %v1107
  %1419 = vmatprep.subr.bf16.mxu0 %v1113
  %1420 = vmatpush1.bf16.msra.mxu0 %v1112
  %1421 = vmatprep.subr.bf16.mxu0 %v1118
  %1422 = vmatpush1.bf16.msra.mxu0 %v1117
  %1423 = vmatprep.subr.bf16.mxu0 %v1123
  %1424 = vmatpush1.bf16.msra.mxu0 %v1122
  %1425 = vmatprep.subr.bf16.mxu0 0
  %1426 = vmatpush1.bf16.msra.mxu0 0
  %1427 = vmatprep.subr.bf16.mxu0 0
  %1428 = vmatpush1.bf16.msra.mxu0 0
  %1429 = vmatprep.subr.bf16.mxu0 0
  %1430 = vmatpush1.bf16.msra.mxu0 0
  %1431 = vmatprep.subr.bf16.mxu0 0
  %1432 = vmatpush1.bf16.msra.mxu0 0
  %1433 = vmatprep.subr.bf16.mxu0 0
  %1434 = vmatpush1.bf16.msra.mxu0 0
  %1435 = vmatprep.subr.bf16.mxu0 0
  %1436 = vmatpush1.bf16.msra.mxu0 0
  %1437 = vmatprep.subr.bf16.mxu0 0
  %1438 = vmatpush1.bf16.msra.mxu0 0
  %1439 = vmatprep.subr.bf16.mxu0 0
  %1440 = vmatpush1.bf16.msra.mxu0 0
  %1441 = vmatprep.mubr.bf16.mxu0 0
  %1442 = vmatmul.mubr.bf16.gmra.mrb[0].mxu0 %v281
  %v1443 = vpop.f32.mrb[0].mxu0
  %v1444 = vadd.f32 %v1403, %v1443
  %v1445 = vpop.f32.mrb[0].mxu0
  %v1446 = vadd.f32 %v1405, %v1445
  %v1447 = vpop.f32.mrb[0].mxu0
  %v1448 = vpop.f32.mrb[0].mxu0
  %1449 = vdwg.mxu0
  %1450 = vmatprep.subr.bf16.mxu0 %v930
  %1451 = vmatpush1.bf16.msra.mxu0 %v929
  %1452 = vmatprep.subr.bf16.mxu0 %v935
  %1453 = vmatpush1.bf16.msra.mxu0 %v934
  %1454 = vmatprep.subr.bf16.mxu0 %v940
  %1455 = vmatpush1.bf16.msra.mxu0 %v939
  %1456 = vmatprep.subr.bf16.mxu0 %v945
  %1457 = vmatpush1.bf16.msra.mxu0 %v944
  %1458 = vmatprep.subr.bf16.mxu0 %v950
  %1459 = vmatpush1.bf16.msra.mxu0 %v949
  %1460 = vmatprep.subr.bf16.mxu0 %v955
  %1461 = vmatpush1.bf16.msra.mxu0 %v954
  %1462 = vmatprep.subr.bf16.mxu0 %v960
  %1463 = vmatpush1.bf16.msra.mxu0 %v959
  %1464 = vmatprep.subr.bf16.mxu0 %v965
  %1465 = vmatpush1.bf16.msra.mxu0 %v964
  %1466 = vmatprep.subr.bf16.mxu0 %v970
  %1467 = vmatpush1.bf16.msra.mxu0 %v969
  %1468 = vmatprep.subr.bf16.mxu0 %v975
  %1469 = vmatpush1.bf16.msra.mxu0 %v974
  %1470 = vmatprep.subr.bf16.mxu0 %v980
  %1471 = vmatpush1.bf16.msra.mxu0 %v979
  %1472 = vmatprep.subr.bf16.mxu0 %v985
  %1473 = vmatpush1.bf16.msra.mxu0 %v984
  %1474 = vmatprep.subr.bf16.mxu0 %v990
  %1475 = vmatpush1.bf16.msra.mxu0 %v989
  %1476 = vmatprep.subr.bf16.mxu0 %v995
  %1477 = vmatpush1.bf16.msra.mxu0 %v994
  %1478 = vmatprep.subr.bf16.mxu0 %v1000
  %1479 = vmatpush1.bf16.msra.mxu0 %v999
  %1480 = vmatprep.subr.bf16.mxu0 %v1005
  %1481 = vmatpush1.bf16.msra.mxu0 %v1004
  %1482 = vmatprep.mubr.bf16.mxu0 %v278
  %1483 = vmatmul.mubr.bf16.gmra.mrb[0].mxu0 %v277
  %v1484 = vpop.f32.mrb[0].mxu0
  %v1485 = vadd.f32 0.0, %v1484
  %v1486 = vpop.f32.mrb[0].mxu0
  %v1487 = vadd.f32 0.0, %v1486
  %v1488 = vpop.f32.mrb[0].mxu0
  %v1489 = vpop.f32.mrb[0].mxu0
  %1490 = vdwg.mxu0
  %1491 = vmatprep.subr.bf16.mxu0 %v1010
  %1492 = vmatpush1.bf16.msra.mxu0 %v1009
  %1493 = vmatprep.subr.bf16.mxu0 %v1015
  %1494 = vmatpush1.bf16.msra.mxu0 %v1014
  %1495 = vmatprep.subr.bf16.mxu0 %v1020
  %1496 = vmatpush1.bf16.msra.mxu0 %v1019
  %1497 = vmatprep.subr.bf16.mxu0 %v1025
  %1498 = vmatpush1.bf16.msra.mxu0 %v1024
  %1499 = vmatprep.subr.bf16.mxu0 %v1030
  %1500 = vmatpush1.bf16.msra.mxu0 %v1029
  %1501 = vmatprep.subr.bf16.mxu0 %v1035
  %1502 = vmatpush1.bf16.msra.mxu0 %v1034
  %1503 = vmatprep.subr.bf16.mxu0 %v1040
  %1504 = vmatpush1.bf16.msra.mxu0 %v1039
  %1505 = vmatprep.subr.bf16.mxu0 %v1045
  %1506 = vmatpush1.bf16.msra.mxu0 %v1044
  %1507 = vmatprep.subr.bf16.mxu0 %v1050
  %1508 = vmatpush1.bf16.msra.mxu0 %v1049
  %1509 = vmatprep.subr.bf16.mxu0 %v1055
  %1510 = vmatpush1.bf16.msra.mxu0 %v1054
  %1511 = vmatprep.subr.bf16.mxu0 %v1060
  %1512 = vmatpush1.bf16.msra.mxu0 %v1059
  %1513 = vmatprep.subr.bf16.mxu0 %v1065
  %1514 = vmatpush1.bf16.msra.mxu0 %v1064
  %1515 = vmatprep.subr.bf16.mxu0 %v1070
  %1516 = vmatpush1.bf16.msra.mxu0 %v1069
  %1517 = vmatprep.subr.bf16.mxu0 %v1075
  %1518 = vmatpush1.bf16.msra.mxu0 %v1074
  %1519 = vmatprep.subr.bf16.mxu0 %v1080
  %1520 = vmatpush1.bf16.msra.mxu0 %v1079
  %1521 = vmatprep.subr.bf16.mxu0 %v1085
  %1522 = vmatpush1.bf16.msra.mxu0 %v1084
  %1523 = vmatprep.mubr.bf16.mxu0 %v280
  %1524 = vmatmul.mubr.bf16.gmra.mrb[0].mxu0 %v279
  %v1525 = vpop.f32.mrb[0].mxu0
  %v1526 = vadd.f32 %v1485, %v1525
  %v1527 = vpop.f32.mrb[0].mxu0
  %v1528 = vadd.f32 %v1487, %v1527
  %v1529 = vpop.f32.mrb[0].mxu0
  %v1530 = vpop.f32.mrb[0].mxu0
  %1531 = vdwg.mxu0
  %1532 = vmatprep.subr.bf16.mxu0 %v1090
  %1533 = vmatpush1.bf16.msra.mxu0 %v1089
  %1534 = vmatprep.subr.bf16.mxu0 %v1095
  %1535 = vmatpush1.bf16.msra.mxu0 %v1094
  %1536 = vmatprep.subr.bf16.mxu0 %v1100
  %1537 = vmatpush1.bf16.msra.mxu0 %v1099
  %1538 = vmatprep.subr.bf16.mxu0 %v1105
  %1539 = vmatpush1.bf16.msra.mxu0 %v1104
  %1540 = vmatprep.subr.bf16.mxu0 %v1110
  %1541 = vmatpush1.bf16.msra.mxu0 %v1109
  %1542 = vmatprep.subr.bf16.mxu0 %v1115
  %1543 = vmatpush1.bf16.msra.mxu0 %v1114
  %1544 = vmatprep.subr.bf16.mxu0 %v1120
  %1545 = vmatpush1.bf16.msra.mxu0 %v1119
  %1546 = vmatprep.subr.bf16.mxu0 %v1125
  %1547 = vmatpush1.bf16.msra.mxu0 %v1124
  %1548 = vmatprep.subr.bf16.mxu0 0
  %1549 = vmatpush1.bf16.msra.mxu0 0
  %1550 = vmatprep.subr.bf16.mxu0 0
  %1551 = vmatpush1.bf16.msra.mxu0 0
  %1552 = vmatprep.subr.bf16.mxu0 0
  %1553 = vmatpush1.bf16.msra.mxu0 0
  %1554 = vmatprep.subr.bf16.mxu0 0
  %1555 = vmatpush1.bf16.msra.mxu0 0
  %1556 = vmatprep.subr.bf16.mxu0 0
  %1557 = vmatpush1.bf16.msra.mxu0 0
  %1558 = vmatprep.subr.bf16.mxu0 0
  %1559 = vmatpush1.bf16.msra.mxu0 0
  %1560 = vmatprep.subr.bf16.mxu0 0
  %1561 = vmatpush1.bf16.msra.mxu0 0
  %1562 = vmatprep.subr.bf16.mxu0 0
  %1563 = vmatpush1.bf16.msra.mxu0 0
  %1564 = vmatprep.mubr.bf16.mxu0 0
  %1565 = vmatmul.mubr.bf16.gmra.mrb[0].mxu0 %v281
  %v1566 = vpop.f32.mrb[0].mxu0
  %v1567 = vadd.f32 %v1526, %v1566
  %v1568 = vpop.f32.mrb[0].mxu0
  %v1569 = vadd.f32 %v1528, %v1568
  %v1570 = vpop.f32.mrb[0].mxu0
  %v1571 = vpop.f32.mrb[0].mxu0
  %1572 = vdwg.mxu0
  %1573 = vmatprep.subr.bf16.mxu0 0
  %1574 = vmatpush1.bf16.msra.mxu0 %v931
  %1575 = vmatprep.subr.bf16.mxu0 0
  %1576 = vmatpush1.bf16.msra.mxu0 %v936
  %1577 = vmatprep.subr.bf16.mxu0 0
  %1578 = vmatpush1.bf16.msra.mxu0 %v941
  %1579 = vmatprep.subr.bf16.mxu0 0
  %1580 = vmatpush1.bf16.msra.mxu0 %v946
  %1581 = vmatprep.subr.bf16.mxu0 0
  %1582 = vmatpush1.bf16.msra.mxu0 %v951
  %1583 = vmatprep.subr.bf16.mxu0 0
  %1584 = vmatpush1.bf16.msra.mxu0 %v956
  %1585 = vmatprep.subr.bf16.mxu0 0
  %1586 = vmatpush1.bf16.msra.mxu0 %v961
  %1587 = vmatprep.subr.bf16.mxu0 0
  %1588 = vmatpush1.bf16.msra.mxu0 %v966
  %1589 = vmatprep.subr.bf16.mxu0 0
  %1590 = vmatpush1.bf16.msra.mxu0 %v971
  %1591 = vmatprep.subr.bf16.mxu0 0
  %1592 = vmatpush1.bf16.msra.mxu0 %v976
  %1593 = vmatprep.subr.bf16.mxu0 0
  %1594 = vmatpush1.bf16.msra.mxu0 %v981
  %1595 = vmatprep.subr.bf16.mxu0 0
  %1596 = vmatpush1.bf16.msra.mxu0 %v986
  %1597 = vmatprep.subr.bf16.mxu0 0
  %1598 = vmatpush1.bf16.msra.mxu0 %v991
  %1599 = vmatprep.subr.bf16.mxu0 0
  %1600 = vmatpush1.bf16.msra.mxu0 %v996
  %1601 = vmatprep.subr.bf16.mxu0 0
  %1602 = vmatpush1.bf16.msra.mxu0 %v1001
  %1603 = vmatprep.subr.bf16.mxu0 0
  %1604 = vmatpush1.bf16.msra.mxu0 %v1006
  %1605 = vmatprep.mubr.bf16.mxu0 %v278
  %1606 = vmatmul.mubr.bf16.gmra.mrb[0].mxu0 %v277
  %v1607 = vpop.f32.mrb[0].mxu0
  %v1608 = vadd.f32 0.0, %v1607
  %v1609 = vpop.f32.mrb[0].mxu0
  %v1610 = vpop.f32.mrb[0].mxu0
  %v1611 = vpop.f32.mrb[0].mxu0
  %1612 = vdwg.mxu0
  %1613 = vmatprep.subr.bf16.mxu0 0
  %1614 = vmatpush1.bf16.msra.mxu0 %v1011
  %1615 = vmatprep.subr.bf16.mxu0 0
  %1616 = vmatpush1.bf16.msra.mxu0 %v1016
  %1617 = vmatprep.subr.bf16.mxu0 0
  %1618 = vmatpush1.bf16.msra.mxu0 %v1021
  %1619 = vmatprep.subr.bf16.mxu0 0
  %1620 = vmatpush1.bf16.msra.mxu0 %v1026
  %1621 = vmatprep.subr.bf16.mxu0 0
  %1622 = vmatpush1.bf16.msra.mxu0 %v1031
  %1623 = vmatprep.subr.bf16.mxu0 0
  %1624 = vmatpush1.bf16.msra.mxu0 %v1036
  %1625 = vmatprep.subr.bf16.mxu0 0
  %1626 = vmatpush1.bf16.msra.mxu0 %v1041
  %1627 = vmatprep.subr.bf16.mxu0 0
  %1628 = vmatpush1.bf16.msra.mxu0 %v1046
  %1629 = vmatprep.subr.bf16.mxu0 0
  %1630 = vmatpush1.bf16.msra.mxu0 %v1051
  %1631 = vmatprep.subr.bf16.mxu0 0
  %1632 = vmatpush1.bf16.msra.mxu0 %v1056
  %1633 = vmatprep.subr.bf16.mxu0 0
  %1634 = vmatpush1.bf16.msra.mxu0 %v1061
  %1635 = vmatprep.subr.bf16.mxu0 0
  %1636 = vmatpush1.bf16.msra.mxu0 %v1066
  %1637 = vmatprep.subr.bf16.mxu0 0
  %1638 = vmatpush1.bf16.msra.mxu0 %v1071
  %1639 = vmatprep.subr.bf16.mxu0 0
  %1640 = vmatpush1.bf16.msra.mxu0 %v1076
  %1641 = vmatprep.subr.bf16.mxu0 0
  %1642 = vmatpush1.bf16.msra.mxu0 %v1081
  %1643 = vmatprep.subr.bf16.mxu0 0
  %1644 = vmatpush1.bf16.msra.mxu0 %v1086
  %1645 = vmatprep.mubr.bf16.mxu0 %v280
  %1646 = vmatmul.mubr.bf16.gmra.mrb[0].mxu0 %v279
  %v1647 = vpop.f32.mrb[0].mxu0
  %v1648 = vadd.f32 %v1608, %v1647
  %v1649 = vpop.f32.mrb[0].mxu0
  %v1650 = vpop.f32.mrb[0].mxu0
  %v1651 = vpop.f32.mrb[0].mxu0
  %1652 = vdwg.mxu0
  %1653 = vmatprep.subr.bf16.mxu0 0
  %1654 = vmatpush1.bf16.msra.mxu0 %v1091
  %1655 = vmatprep.subr.bf16.mxu0 0
  %1656 = vmatpush1.bf16.msra.mxu0 %v1096
  %1657 = vmatprep.subr.bf16.mxu0 0
  %1658 = vmatpush1.bf16.msra.mxu0 %v1101
  %1659 = vmatprep.subr.bf16.mxu0 0
  %1660 = vmatpush1.bf16.msra.mxu0 %v1106
  %1661 = vmatprep.subr.bf16.mxu0 0
  %1662 = vmatpush1.bf16.msra.mxu0 %v1111
  %1663 = vmatprep.subr.bf16.mxu0 0
  %1664 = vmatpush1.bf16.msra.mxu0 %v1116
  %1665 = vmatprep.subr.bf16.mxu0 0
  %1666 = vmatpush1.bf16.msra.mxu0 %v1121
  %1667 = vmatprep.subr.bf16.mxu0 0
  %1668 = vmatpush1.bf16.msra.mxu0 %v1126
  %1669 = vmatprep.subr.bf16.mxu0 0
  %1670 = vmatpush1.bf16.msra.mxu0 0
  %1671 = vmatprep.subr.bf16.mxu0 0
  %1672 = vmatpush1.bf16.msra.mxu0 0
  %1673 = vmatprep.subr.bf16.mxu0 0
  %1674 = vmatpush1.bf16.msra.mxu0 0
  %1675 = vmatprep.subr.bf16.mxu0 0
  %1676 = vmatpush1.bf16.msra.mxu0 0
  %1677 = vmatprep.subr.bf16.mxu0 0
  %1678 = vmatpush1.bf16.msra.mxu0 0
  %1679 = vmatprep.subr.bf16.mxu0 0
  %1680 = vmatpush1.bf16.msra.mxu0 0
  %1681 = vmatprep.subr.bf16.mxu0 0
  %1682 = vmatpush1.bf16.msra.mxu0 0
  %1683 = vmatprep.subr.bf16.mxu0 0
  %1684 = vmatpush1.bf16.msra.mxu0 0
  %1685 = vmatprep.mubr.bf16.mxu0 0
  %1686 = vmatmul.mubr.bf16.gmra.mrb[0].mxu0 %v281
  %v1687 = vpop.f32.mrb[0].mxu0
  %v1688 = vadd.f32 %v1648, %v1687
  %v1689 = vpop.f32.mrb[0].mxu0
  %v1690 = vpop.f32.mrb[0].mxu0
  %v1691 = vpop.f32.mrb[0].mxu0
  %1692 = vdwg.mxu0
  %v1693 = vld [vmem:[%s3] sm:$0xff]
  %v1694 = vld [vmem:[%s3 + $0x8] sm:$0xff]
  %v1695 = vld [vmem:[%s3 + $0x10] sm:$0xff]
  %v1696 = vld [vmem:[%s3 + $0x18] sm:$0xff]
  %v1697 = vld [vmem:[%s3 + $0x20] sm:$0xff]
  %v1698 = vadd.f32 %v1693, %v1444
  %v1699 = vadd.f32 %v1694, %v1446
  %v1700 = vadd.f32 %v1695, %v1567
  %v1701 = vadd.f32 %v1696, %v1569
  %v1702 = vadd.f32 %v1697, %v1688
  %1703 = vst [vmem:[%s3] sm:$0xff] %v1698
  %1704 = vst [vmem:[%s3 + $0x8] sm:$0xff] %v1699
  %1705 = vst [vmem:[%s3 + $0x10] sm:$0xff] %v1700
  %1706 = vst [vmem:[%s3 + $0x18] sm:$0xff] %v1701
  %1707 = vst [vmem:[%s3 + $0x20] sm:$0xff] %v1702
  %s1708 = scalar_lea.vmem %s0, 20
  %v1709 = vld [vmem:[%s1708] sm:$0xff]
  %v1710 = vld [vmem:[%s1708 + $0x8] sm:$0xff]
  %v1711 = vld [vmem:[%s1708 + $0x10] sm:$0xf]
  %s1712 = scalar_lea.vmem %s1, 1600
  %v1713 = vld [vmem:[%s1712] sm:$0xff]
  %v1714 = vld [vmem:[%s1712 + $0x8] sm:$0xff]
  %v1715 = vld [vmem:[%s1712 + $0x10] sm:$0xf]
  %v1716 = vld [vmem:[%s1712 + $0x14] sm:$0xff]
  %v1717 = vld [vmem:[%s1712 + $0x1c] sm:$0xff]
  %v1718 = vld [vmem:[%s1712 + $0x24] sm:$0xf]
  %v1719 = vld [vmem:[%s1712 + $0x28] sm:$0xff]
  %v1720 = vld [vmem:[%s1712 + $0x30] sm:$0xff]
  %v1721 = vld [vmem:[%s1712 + $0x38] sm:$0xf]
  %v1722 = vld [vmem:[%s1712 + $0x3c] sm:$0xff]
  %v1723 = vld [vmem:[%s1712 + $0x44] sm:$0xff]
  %v1724 = vld [vmem:[%s1712 + $0x4c] sm:$0xf]
  %v1725 = vld [vmem:[%s1712 + $0x50] sm:$0xff]
  %v1726 = vld [vmem:[%s1712 + $0x58] sm:$0xff]
  %v1727 = vld [vmem:[%s1712 + $0x60] sm:$0xf]
  %v1728 = vld [vmem:[%s1712 + $0x64] sm:$0xff]
  %v1729 = vld [vmem:[%s1712 + $0x6c] sm:$0xff]
  %v1730 = vld [vmem:[%s1712 + $0x74] sm:$0xf]
  %v1731 = vld [vmem:[%s1712 + $0x78] sm:$0xff]
  %v1732 = vld [vmem:[%s1712 + $0x80] sm:$0xff]
  %v1733 = vld [vmem:[%s1712 + $0x88] sm:$0xf]
  %v1734 = vld [vmem:[%s1712 + $0x8c] sm:$0xff]
  %v1735 = vld [vmem:[%s1712 + $0x94] sm:$0xff]
  %v1736 = vld [vmem:[%s1712 + $0x9c] sm:$0xf]
  %v1737 = vld [vmem:[%s1712 + $0xa0] sm:$0xff]
  %v1738 = vld [vmem:[%s1712 + $0xa8] sm:$0xff]
  %v1739 = vld [vmem:[%s1712 + $0xb0] sm:$0xf]
  %v1740 = vld [vmem:[%s1712 + $0xb4] sm:$0xff]
  %v1741 = vld [vmem:[%s1712 + $0xbc] sm:$0xff]
  %v1742 = vld [vmem:[%s1712 + $0xc4] sm:$0xf]
  %v1743 = vld [vmem:[%s1712 + $0xc8] sm:$0xff]
  %v1744 = vld [vmem:[%s1712 + $0xd0] sm:$0xff]
  %v1745 = vld [vmem:[%s1712 + $0xd8] sm:$0xf]
  %v1746 = vld [vmem:[%s1712 + $0xdc] sm:$0xff]
  %v1747 = vld [vmem:[%s1712 + $0xe4] sm:$0xff]
  %v1748 = vld [vmem:[%s1712 + $0xec] sm:$0xf]
  %v1749 = vld [vmem:[%s1712 + $0xf0] sm:$0xff]
  %v1750 = vld [vmem:[%s1712 + $0xf8] sm:$0xff]
  %v1751 = vld [vmem:[%s1712 + $0x100] sm:$0xf]
  %v1752 = vld [vmem:[%s1712 + $0x104] sm:$0xff]
  %v1753 = vld [vmem:[%s1712 + $0x10c] sm:$0xff]
  %v1754 = vld [vmem:[%s1712 + $0x114] sm:$0xf]
  %v1755 = vld [vmem:[%s1712 + $0x118] sm:$0xff]
  %v1756 = vld [vmem:[%s1712 + $0x120] sm:$0xff]
  %v1757 = vld [vmem:[%s1712 + $0x128] sm:$0xf]
  %v1758 = vld [vmem:[%s1712 + $0x12c] sm:$0xff]
  %v1759 = vld [vmem:[%s1712 + $0x134] sm:$0xff]
  %v1760 = vld [vmem:[%s1712 + $0x13c] sm:$0xf]
  %v1761 = vld [vmem:[%s1712 + $0x140] sm:$0xff]
  %v1762 = vld [vmem:[%s1712 + $0x148] sm:$0xff]
  %v1763 = vld [vmem:[%s1712 + $0x150] sm:$0xf]
  %v1764 = vld [vmem:[%s1712 + $0x154] sm:$0xff]
  %v1765 = vld [vmem:[%s1712 + $0x15c] sm:$0xff]
  %v1766 = vld [vmem:[%s1712 + $0x164] sm:$0xf]
  %v1767 = vld [vmem:[%s1712 + $0x168] sm:$0xff]
  %v1768 = vld [vmem:[%s1712 + $0x170] sm:$0xff]
  %v1769 = vld [vmem:[%s1712 + $0x178] sm:$0xf]
  %v1770 = vld [vmem:[%s1712 + $0x17c] sm:$0xff]
  %v1771 = vld [vmem:[%s1712 + $0x184] sm:$0xff]
  %v1772 = vld [vmem:[%s1712 + $0x18c] sm:$0xf]
  %v1773 = vld [vmem:[%s1712 + $0x190] sm:$0xff]
  %v1774 = vld [vmem:[%s1712 + $0x198] sm:$0xff]
  %v1775 = vld [vmem:[%s1712 + $0x1a0] sm:$0xf]
  %v1776 = vld [vmem:[%s1712 + $0x1a4] sm:$0xff]
  %v1777 = vld [vmem:[%s1712 + $0x1ac] sm:$0xff]
  %v1778 = vld [vmem:[%s1712 + $0x1b4] sm:$0xf]
  %v1779 = vld [vmem:[%s1712 + $0x1b8] sm:$0xff]
  %v1780 = vld [vmem:[%s1712 + $0x1c0] sm:$0xff]
  %v1781 = vld [vmem:[%s1712 + $0x1c8] sm:$0xf]
  %v1782 = vld [vmem:[%s1712 + $0x1cc] sm:$0xff]
  %v1783 = vld [vmem:[%s1712 + $0x1d4] sm:$0xff]
  %v1784 = vld [vmem:[%s1712 + $0x1dc] sm:$0xf]
  %v1785 = vld [vmem:[%s1712 + $0x1e0] sm:$0xff]
  %v1786 = vld [vmem:[%s1712 + $0x1e8] sm:$0xff]
  %v1787 = vld [vmem:[%s1712 + $0x1f0] sm:$0xf]
  %v1788 = vld [vmem:[%s1712 + $0x1f4] sm:$0xff]
  %v1789 = vld [vmem:[%s1712 + $0x1fc] sm:$0xff]
  %v1790 = vld [vmem:[%s1712 + $0x204] sm:$0xf]
  %v1791 = vld [vmem:[%s1712 + $0x208] sm:$0xff]
  %v1792 = vld [vmem:[%s1712 + $0x210] sm:$0xff]
  %v1793 = vld [vmem:[%s1712 + $0x218] sm:$0xf]
  %v1794 = vld [vmem:[%s1712 + $0x21c] sm:$0xff]
  %v1795 = vld [vmem:[%s1712 + $0x224] sm:$0xff]
  %v1796 = vld [vmem:[%s1712 + $0x22c] sm:$0xf]
  %v1797 = vld [vmem:[%s1712 + $0x230] sm:$0xff]
  %v1798 = vld [vmem:[%s1712 + $0x238] sm:$0xff]
  %v1799 = vld [vmem:[%s1712 + $0x240] sm:$0xf]
  %v1800 = vld [vmem:[%s1712 + $0x244] sm:$0xff]
  %v1801 = vld [vmem:[%s1712 + $0x24c] sm:$0xff]
  %v1802 = vld [vmem:[%s1712 + $0x254] sm:$0xf]
  %v1803 = vld [vmem:[%s1712 + $0x258] sm:$0xff]
  %v1804 = vld [vmem:[%s1712 + $0x260] sm:$0xff]
  %v1805 = vld [vmem:[%s1712 + $0x268] sm:$0xf]
  %v1806 = vld [vmem:[%s1712 + $0x26c] sm:$0xff]
  %v1807 = vld [vmem:[%s1712 + $0x274] sm:$0xff]
  %v1808 = vld [vmem:[%s1712 + $0x27c] sm:$0xf]
  %v1809 = vld [vmem:[%s1712 + $0x280] sm:$0xff]
  %v1810 = vld [vmem:[%s1712 + $0x288] sm:$0xff]
  %v1811 = vld [vmem:[%s1712 + $0x290] sm:$0xf]
  %v1812 = vld [vmem:[%s1712 + $0x294] sm:$0xff]
  %v1813 = vld [vmem:[%s1712 + $0x29c] sm:$0xff]
  %v1814 = vld [vmem:[%s1712 + $0x2a4] sm:$0xf]
  %v1815 = vld [vmem:[%s1712 + $0x2a8] sm:$0xff]
  %v1816 = vld [vmem:[%s1712 + $0x2b0] sm:$0xff]
  %v1817 = vld [vmem:[%s1712 + $0x2b8] sm:$0xf]
  %v1818 = vld [vmem:[%s1712 + $0x2bc] sm:$0xff]
  %v1819 = vld [vmem:[%s1712 + $0x2c4] sm:$0xff]
  %v1820 = vld [vmem:[%s1712 + $0x2cc] sm:$0xf]
  %v1821 = vld [vmem:[%s1712 + $0x2d0] sm:$0xff]
  %v1822 = vld [vmem:[%s1712 + $0x2d8] sm:$0xff]
  %v1823 = vld [vmem:[%s1712 + $0x2e0] sm:$0xf]
  %v1824 = vld [vmem:[%s1712 + $0x2e4] sm:$0xff]
  %v1825 = vld [vmem:[%s1712 + $0x2ec] sm:$0xff]
  %v1826 = vld [vmem:[%s1712 + $0x2f4] sm:$0xf]
  %v1827 = vld [vmem:[%s1712 + $0x2f8] sm:$0xff]
  %v1828 = vld [vmem:[%s1712 + $0x300] sm:$0xff]
  %v1829 = vld [vmem:[%s1712 + $0x308] sm:$0xf]
  %v1830 = vld [vmem:[%s1712 + $0x30c] sm:$0xff]
  %v1831 = vld [vmem:[%s1712 + $0x314] sm:$0xff]
  %v1832 = vld [vmem:[%s1712 + $0x31c] sm:$0xf]
  %v1833 = vld [vmem:[%s1712 + $0x320] sm:$0xff]
  %v1834 = vld [vmem:[%s1712 + $0x328] sm:$0xff]
  %v1835 = vld [vmem:[%s1712 + $0x330] sm:$0xf]
  %v1836 = vld [vmem:[%s1712 + $0x334] sm:$0xff]
  %v1837 = vld [vmem:[%s1712 + $0x33c] sm:$0xff]
  %v1838 = vld [vmem:[%s1712 + $0x344] sm:$0xf]
  %v1839 = vld [vmem:[%s1712 + $0x348] sm:$0xff]
  %v1840 = vld [vmem:[%s1712 + $0x350] sm:$0xff]
  %v1841 = vld [vmem:[%s1712 + $0x358] sm:$0xf]
  %v1842 = vld [vmem:[%s1712 + $0x35c] sm:$0xff]
  %v1843 = vld [vmem:[%s1712 + $0x364] sm:$0xff]
  %v1844 = vld [vmem:[%s1712 + $0x36c] sm:$0xf]
  %v1845 = vld [vmem:[%s1712 + $0x370] sm:$0xff]
  %v1846 = vld [vmem:[%s1712 + $0x378] sm:$0xff]
  %v1847 = vld [vmem:[%s1712 + $0x380] sm:$0xf]
  %v1848 = vld [vmem:[%s1712 + $0x384] sm:$0xff]
  %v1849 = vld [vmem:[%s1712 + $0x38c] sm:$0xff]
  %v1850 = vld [vmem:[%s1712 + $0x394] sm:$0xf]
  %v1851 = vld [vmem:[%s1712 + $0x398] sm:$0xff]
  %v1852 = vld [vmem:[%s1712 + $0x3a0] sm:$0xff]
  %v1853 = vld [vmem:[%s1712 + $0x3a8] sm:$0xf]
  %v1854 = vld [vmem:[%s1712 + $0x3ac] sm:$0xff]
  %v1855 = vld [vmem:[%s1712 + $0x3b4] sm:$0xff]
  %v1856 = vld [vmem:[%s1712 + $0x3bc] sm:$0xf]
  %v1857 = vld [vmem:[%s1712 + $0x3c0] sm:$0xff]
  %v1858 = vld [vmem:[%s1712 + $0x3c8] sm:$0xff]
  %v1859 = vld [vmem:[%s1712 + $0x3d0] sm:$0xf]
  %v1860 = vld [vmem:[%s1712 + $0x3d4] sm:$0xff]
  %v1861 = vld [vmem:[%s1712 + $0x3dc] sm:$0xff]
  %v1862 = vld [vmem:[%s1712 + $0x3e4] sm:$0xf]
  %v1863 = vld [vmem:[%s1712 + $0x3e8] sm:$0xff]
  %v1864 = vld [vmem:[%s1712 + $0x3f0] sm:$0xff]
  %v1865 = vld [vmem:[%s1712 + $0x3f8] sm:$0xf]
  %v1866 = vld [vmem:[%s1712 + $0x3fc] sm:$0xff]
  %v1867 = vld [vmem:[%s1712 + $0x404] sm:$0xff]
  %v1868 = vld [vmem:[%s1712 + $0x40c] sm:$0xf]
  %v1869 = vld [vmem:[%s1712 + $0x410] sm:$0xff]
  %v1870 = vld [vmem:[%s1712 + $0x418] sm:$0xff]
  %v1871 = vld [vmem:[%s1712 + $0x420] sm:$0xf]
  %v1872 = vld [vmem:[%s1712 + $0x424] sm:$0xff]
  %v1873 = vld [vmem:[%s1712 + $0x42c] sm:$0xff]
  %v1874 = vld [vmem:[%s1712 + $0x434] sm:$0xf]
  %v1875 = vld [vmem:[%s1712 + $0x438] sm:$0xff]
  %v1876 = vld [vmem:[%s1712 + $0x440] sm:$0xff]
  %v1877 = vld [vmem:[%s1712 + $0x448] sm:$0xf]
  %v1878 = vld [vmem:[%s1712 + $0x44c] sm:$0xff]
  %v1879 = vld [vmem:[%s1712 + $0x454] sm:$0xff]
  %v1880 = vld [vmem:[%s1712 + $0x45c] sm:$0xf]
  %v1881 = vld [vmem:[%s1712 + $0x460] sm:$0xff]
  %v1882 = vld [vmem:[%s1712 + $0x468] sm:$0xff]
  %v1883 = vld [vmem:[%s1712 + $0x470] sm:$0xf]
  %v1884 = vld [vmem:[%s1712 + $0x474] sm:$0xff]
  %v1885 = vld [vmem:[%s1712 + $0x47c] sm:$0xff]
  %v1886 = vld [vmem:[%s1712 + $0x484] sm:$0xf]
  %v1887 = vld [vmem:[%s1712 + $0x488] sm:$0xff]
  %v1888 = vld [vmem:[%s1712 + $0x490] sm:$0xff]
  %v1889 = vld [vmem:[%s1712 + $0x498] sm:$0xf]
  %v1890 = vld [vmem:[%s1712 + $0x49c] sm:$0xff]
  %v1891 = vld [vmem:[%s1712 + $0x4a4] sm:$0xff]
  %v1892 = vld [vmem:[%s1712 + $0x4ac] sm:$0xf]
  %v1893 = vld [vmem:[%s1712 + $0x4b0] sm:$0xff]
  %v1894 = vld [vmem:[%s1712 + $0x4b8] sm:$0xff]
  %v1895 = vld [vmem:[%s1712 + $0x4c0] sm:$0xf]
  %v1896 = vld [vmem:[%s1712 + $0x4c4] sm:$0xff]
  %v1897 = vld [vmem:[%s1712 + $0x4cc] sm:$0xff]
  %v1898 = vld [vmem:[%s1712 + $0x4d4] sm:$0xf]
  %v1899 = vld [vmem:[%s1712 + $0x4d8] sm:$0xff]
  %v1900 = vld [vmem:[%s1712 + $0x4e0] sm:$0xff]
  %v1901 = vld [vmem:[%s1712 + $0x4e8] sm:$0xf]
  %v1902 = vld [vmem:[%s1712 + $0x4ec] sm:$0xff]
  %v1903 = vld [vmem:[%s1712 + $0x4f4] sm:$0xff]
  %v1904 = vld [vmem:[%s1712 + $0x4fc] sm:$0xf]
  %v1905 = vld [vmem:[%s1712 + $0x500] sm:$0xff]
  %v1906 = vld [vmem:[%s1712 + $0x508] sm:$0xff]
  %v1907 = vld [vmem:[%s1712 + $0x510] sm:$0xf]
  %v1908 = vld [vmem:[%s1712 + $0x514] sm:$0xff]
  %v1909 = vld [vmem:[%s1712 + $0x51c] sm:$0xff]
  %v1910 = vld [vmem:[%s1712 + $0x524] sm:$0xf]
  %v1911 = vld [vmem:[%s1712 + $0x528] sm:$0xff]
  %v1912 = vld [vmem:[%s1712 + $0x530] sm:$0xff]
  %v1913 = vld [vmem:[%s1712 + $0x538] sm:$0xf]
  %v1914 = vld [vmem:[%s1712 + $0x53c] sm:$0xff]
  %v1915 = vld [vmem:[%s1712 + $0x544] sm:$0xff]
  %v1916 = vld [vmem:[%s1712 + $0x54c] sm:$0xf]
  %v1917 = vld [vmem:[%s1712 + $0x550] sm:$0xff]
  %v1918 = vld [vmem:[%s1712 + $0x558] sm:$0xff]
  %v1919 = vld [vmem:[%s1712 + $0x560] sm:$0xf]
  %v1920 = vld [vmem:[%s1712 + $0x564] sm:$0xff]
  %v1921 = vld [vmem:[%s1712 + $0x56c] sm:$0xff]
  %v1922 = vld [vmem:[%s1712 + $0x574] sm:$0xf]
  %v1923 = vld [vmem:[%s1712 + $0x578] sm:$0xff]
  %v1924 = vld [vmem:[%s1712 + $0x580] sm:$0xff]
  %v1925 = vld [vmem:[%s1712 + $0x588] sm:$0xf]
  %v1926 = vld [vmem:[%s1712 + $0x58c] sm:$0xff]
  %v1927 = vld [vmem:[%s1712 + $0x594] sm:$0xff]
  %v1928 = vld [vmem:[%s1712 + $0x59c] sm:$0xf]
  %v1929 = vld [vmem:[%s1712 + $0x5a0] sm:$0xff]
  %v1930 = vld [vmem:[%s1712 + $0x5a8] sm:$0xff]
  %v1931 = vld [vmem:[%s1712 + $0x5b0] sm:$0xf]
  %v1932 = vld [vmem:[%s1712 + $0x5b4] sm:$0xff]
  %v1933 = vld [vmem:[%s1712 + $0x5bc] sm:$0xff]
  %v1934 = vld [vmem:[%s1712 + $0x5c4] sm:$0xf]
  %v1935 = vld [vmem:[%s1712 + $0x5c8] sm:$0xff]
  %v1936 = vld [vmem:[%s1712 + $0x5d0] sm:$0xff]
  %v1937 = vld [vmem:[%s1712 + $0x5d8] sm:$0xf]
  %v1938 = vld [vmem:[%s1712 + $0x5dc] sm:$0xff]
  %v1939 = vld [vmem:[%s1712 + $0x5e4] sm:$0xff]
  %v1940 = vld [vmem:[%s1712 + $0x5ec] sm:$0xf]
  %v1941 = vld [vmem:[%s1712 + $0x5f0] sm:$0xff]
  %v1942 = vld [vmem:[%s1712 + $0x5f8] sm:$0xff]
  %v1943 = vld [vmem:[%s1712 + $0x600] sm:$0xf]
  %v1944 = vld [vmem:[%s1712 + $0x604] sm:$0xff]
  %v1945 = vld [vmem:[%s1712 + $0x60c] sm:$0xff]
  %v1946 = vld [vmem:[%s1712 + $0x614] sm:$0xf]
  %v1947 = vld [vmem:[%s1712 + $0x618] sm:$0xff]
  %v1948 = vld [vmem:[%s1712 + $0x620] sm:$0xff]
  %v1949 = vld [vmem:[%s1712 + $0x628] sm:$0xf]
  %v1950 = vld [vmem:[%s1712 + $0x62c] sm:$0xff]
  %v1951 = vld [vmem:[%s1712 + $0x634] sm:$0xff]
  %v1952 = vld [vmem:[%s1712 + $0x63c] sm:$0xf]
  %v1956 = vunpack.c.l.b16 %v1709
  %v1957 = vunpack.c.h.b16 %v1709
  %v1958 = vunpack.c.l.b16 %v1710
  %v1959 = vunpack.c.h.b16 %v1710
  %v1960 = vunpack.c.l.b16 %v1711
  %v1961 = vpack.c.b16 %v1956, %v1956
  %v1962 = vpack.c.b16 %v1957, %v1957
  %v1963 = vpack.c.b16 %v1958, %v1958
  %v1964 = vpack.c.b16 %v1959, %v1959
  %v1965 = vpack.c.b16 %v1960, %v1960
  %v2211 = vunpack.c.l.b16 %v1713
  %v2212 = vunpack.c.h.b16 %v1713
  %v2213 = vunpack.c.l.b16 %v1714
  %v2214 = vunpack.c.h.b16 %v1714
  %v2215 = vunpack.c.l.b16 %v1715
  %v2216 = vunpack.c.l.b16 %v1716
  %v2217 = vunpack.c.h.b16 %v1716
  %v2218 = vunpack.c.l.b16 %v1717
  %v2219 = vunpack.c.h.b16 %v1717
  %v2220 = vunpack.c.l.b16 %v1718
  %v2221 = vunpack.c.l.b16 %v1719
  %v2222 = vunpack.c.h.b16 %v1719
  %v2223 = vunpack.c.l.b16 %v1720
  %v2224 = vunpack.c.h.b16 %v1720
  %v2225 = vunpack.c.l.b16 %v1721
  %v2226 = vunpack.c.l.b16 %v1722
  %v2227 = vunpack.c.h.b16 %v1722
  %v2228 = vunpack.c.l.b16 %v1723
  %v2229 = vunpack.c.h.b16 %v1723
  %v2230 = vunpack.c.l.b16 %v1724
  %v2231 = vunpack.c.l.b16 %v1725
  %v2232 = vunpack.c.h.b16 %v1725
  %v2233 = vunpack.c.l.b16 %v1726
  %v2234 = vunpack.c.h.b16 %v1726
  %v2235 = vunpack.c.l.b16 %v1727
  %v2236 = vunpack.c.l.b16 %v1728
  %v2237 = vunpack.c.h.b16 %v1728
  %v2238 = vunpack.c.l.b16 %v1729
  %v2239 = vunpack.c.h.b16 %v1729
  %v2240 = vunpack.c.l.b16 %v1730
  %v2241 = vunpack.c.l.b16 %v1731
  %v2242 = vunpack.c.h.b16 %v1731
  %v2243 = vunpack.c.l.b16 %v1732
  %v2244 = vunpack.c.h.b16 %v1732
  %v2245 = vunpack.c.l.b16 %v1733
  %v2246 = vunpack.c.l.b16 %v1734
  %v2247 = vunpack.c.h.b16 %v1734
  %v2248 = vunpack.c.l.b16 %v1735
  %v2249 = vunpack.c.h.b16 %v1735
  %v2250 = vunpack.c.l.b16 %v1736
  %v2251 = vunpack.c.l.b16 %v1737
  %v2252 = vunpack.c.h.b16 %v1737
  %v2253 = vunpack.c.l.b16 %v1738
  %v2254 = vunpack.c.h.b16 %v1738
  %v2255 = vunpack.c.l.b16 %v1739
  %v2256 = vunpack.c.l.b16 %v1740
  %v2257 = vunpack.c.h.b16 %v1740
  %v2258 = vunpack.c.l.b16 %v1741
  %v2259 = vunpack.c.h.b16 %v1741
  %v2260 = vunpack.c.l.b16 %v1742
  %v2261 = vunpack.c.l.b16 %v1743
  %v2262 = vunpack.c.h.b16 %v1743
  %v2263 = vunpack.c.l.b16 %v1744
  %v2264 = vunpack.c.h.b16 %v1744
  %v2265 = vunpack.c.l.b16 %v1745
  %v2266 = vunpack.c.l.b16 %v1746
  %v2267 = vunpack.c.h.b16 %v1746
  %v2268 = vunpack.c.l.b16 %v1747
  %v2269 = vunpack.c.h.b16 %v1747
  %v2270 = vunpack.c.l.b16 %v1748
  %v2271 = vunpack.c.l.b16 %v1749
  %v2272 = vunpack.c.h.b16 %v1749
  %v2273 = vunpack.c.l.b16 %v1750
  %v2274 = vunpack.c.h.b16 %v1750
  %v2275 = vunpack.c.l.b16 %v1751
  %v2276 = vunpack.c.l.b16 %v1752
  %v2277 = vunpack.c.h.b16 %v1752
  %v2278 = vunpack.c.l.b16 %v1753
  %v2279 = vunpack.c.h.b16 %v1753
  %v2280 = vunpack.c.l.b16 %v1754
  %v2281 = vunpack.c.l.b16 %v1755
  %v2282 = vunpack.c.h.b16 %v1755
  %v2283 = vunpack.c.l.b16 %v1756
  %v2284 = vunpack.c.h.b16 %v1756
  %v2285 = vunpack.c.l.b16 %v1757
  %v2286 = vunpack.c.l.b16 %v1758
  %v2287 = vunpack.c.h.b16 %v1758
  %v2288 = vunpack.c.l.b16 %v1759
  %v2289 = vunpack.c.h.b16 %v1759
  %v2290 = vunpack.c.l.b16 %v1760
  %v2291 = vunpack.c.l.b16 %v1761
  %v2292 = vunpack.c.h.b16 %v1761
  %v2293 = vunpack.c.l.b16 %v1762
  %v2294 = vunpack.c.h.b16 %v1762
  %v2295 = vunpack.c.l.b16 %v1763
  %v2296 = vunpack.c.l.b16 %v1764
  %v2297 = vunpack.c.h.b16 %v1764
  %v2298 = vunpack.c.l.b16 %v1765
  %v2299 = vunpack.c.h.b16 %v1765
  %v2300 = vunpack.c.l.b16 %v1766
  %v2301 = vunpack.c.l.b16 %v1767
  %v2302 = vunpack.c.h.b16 %v1767
  %v2303 = vunpack.c.l.b16 %v1768
  %v2304 = vunpack.c.h.b16 %v1768
  %v2305 = vunpack.c.l.b16 %v1769
  %v2306 = vunpack.c.l.b16 %v1770
  %v2307 = vunpack.c.h.b16 %v1770
  %v2308 = vunpack.c.l.b16 %v1771
  %v2309 = vunpack.c.h.b16 %v1771
  %v2310 = vunpack.c.l.b16 %v1772
  %v2311 = vunpack.c.l.b16 %v1773
  %v2312 = vunpack.c.h.b16 %v1773
  %v2313 = vunpack.c.l.b16 %v1774
  %v2314 = vunpack.c.h.b16 %v1774
  %v2315 = vunpack.c.l.b16 %v1775
  %v2316 = vunpack.c.l.b16 %v1776
  %v2317 = vunpack.c.h.b16 %v1776
  %v2318 = vunpack.c.l.b16 %v1777
  %v2319 = vunpack.c.h.b16 %v1777
  %v2320 = vunpack.c.l.b16 %v1778
  %v2321 = vunpack.c.l.b16 %v1779
  %v2322 = vunpack.c.h.b16 %v1779
  %v2323 = vunpack.c.l.b16 %v1780
  %v2324 = vunpack.c.h.b16 %v1780
  %v2325 = vunpack.c.l.b16 %v1781
  %v2326 = vunpack.c.l.b16 %v1782
  %v2327 = vunpack.c.h.b16 %v1782
  %v2328 = vunpack.c.l.b16 %v1783
  %v2329 = vunpack.c.h.b16 %v1783
  %v2330 = vunpack.c.l.b16 %v1784
  %v2331 = vunpack.c.l.b16 %v1785
  %v2332 = vunpack.c.h.b16 %v1785
  %v2333 = vunpack.c.l.b16 %v1786
  %v2334 = vunpack.c.h.b16 %v1786
  %v2335 = vunpack.c.l.b16 %v1787
  %v2336 = vunpack.c.l.b16 %v1788
  %v2337 = vunpack.c.h.b16 %v1788
  %v2338 = vunpack.c.l.b16 %v1789
  %v2339 = vunpack.c.h.b16 %v1789
  %v2340 = vunpack.c.l.b16 %v1790
  %v2341 = vunpack.c.l.b16 %v1791
  %v2342 = vunpack.c.h.b16 %v1791
  %v2343 = vunpack.c.l.b16 %v1792
  %v2344 = vunpack.c.h.b16 %v1792
  %v2345 = vunpack.c.l.b16 %v1793
  %v2346 = vunpack.c.l.b16 %v1794
  %v2347 = vunpack.c.h.b16 %v1794
  %v2348 = vunpack.c.l.b16 %v1795
  %v2349 = vunpack.c.h.b16 %v1795
  %v2350 = vunpack.c.l.b16 %v1796
  %v2351 = vunpack.c.l.b16 %v1797
  %v2352 = vunpack.c.h.b16 %v1797
  %v2353 = vunpack.c.l.b16 %v1798
  %v2354 = vunpack.c.h.b16 %v1798
  %v2355 = vunpack.c.l.b16 %v1799
  %v2356 = vunpack.c.l.b16 %v1800
  %v2357 = vunpack.c.h.b16 %v1800
  %v2358 = vunpack.c.l.b16 %v1801
  %v2359 = vunpack.c.h.b16 %v1801
  %v2360 = vunpack.c.l.b16 %v1802
  %v2361 = vunpack.c.l.b16 %v1803
  %v2362 = vunpack.c.h.b16 %v1803
  %v2363 = vunpack.c.l.b16 %v1804
  %v2364 = vunpack.c.h.b16 %v1804
  %v2365 = vunpack.c.l.b16 %v1805
  %v2366 = vunpack.c.l.b16 %v1806
  %v2367 = vunpack.c.h.b16 %v1806
  %v2368 = vunpack.c.l.b16 %v1807
  %v2369 = vunpack.c.h.b16 %v1807
  %v2370 = vunpack.c.l.b16 %v1808
  %v2371 = vunpack.c.l.b16 %v1809
  %v2372 = vunpack.c.h.b16 %v1809
  %v2373 = vunpack.c.l.b16 %v1810
  %v2374 = vunpack.c.h.b16 %v1810
  %v2375 = vunpack.c.l.b16 %v1811
  %v2376 = vunpack.c.l.b16 %v1812
  %v2377 = vunpack.c.h.b16 %v1812
  %v2378 = vunpack.c.l.b16 %v1813
  %v2379 = vunpack.c.h.b16 %v1813
  %v2380 = vunpack.c.l.b16 %v1814
  %v2381 = vunpack.c.l.b16 %v1815
  %v2382 = vunpack.c.h.b16 %v1815
  %v2383 = vunpack.c.l.b16 %v1816
  %v2384 = vunpack.c.h.b16 %v1816
  %v2385 = vunpack.c.l.b16 %v1817
  %v2386 = vunpack.c.l.b16 %v1818
  %v2387 = vunpack.c.h.b16 %v1818
  %v2388 = vunpack.c.l.b16 %v1819
  %v2389 = vunpack.c.h.b16 %v1819
  %v2390 = vunpack.c.l.b16 %v1820
  %v2391 = vunpack.c.l.b16 %v1821
  %v2392 = vunpack.c.h.b16 %v1821
  %v2393 = vunpack.c.l.b16 %v1822
  %v2394 = vunpack.c.h.b16 %v1822
  %v2395 = vunpack.c.l.b16 %v1823
  %v2396 = vunpack.c.l.b16 %v1824
  %v2397 = vunpack.c.h.b16 %v1824
  %v2398 = vunpack.c.l.b16 %v1825
  %v2399 = vunpack.c.h.b16 %v1825
  %v2400 = vunpack.c.l.b16 %v1826
  %v2401 = vunpack.c.l.b16 %v1827
  %v2402 = vunpack.c.h.b16 %v1827
  %v2403 = vunpack.c.l.b16 %v1828
  %v2404 = vunpack.c.h.b16 %v1828
  %v2405 = vunpack.c.l.b16 %v1829
  %v2406 = vunpack.c.l.b16 %v1830
  %v2407 = vunpack.c.h.b16 %v1830
  %v2408 = vunpack.c.l.b16 %v1831
  %v2409 = vunpack.c.h.b16 %v1831
  %v2410 = vunpack.c.l.b16 %v1832
  %v2411 = vunpack.c.l.b16 %v1833
  %v2412 = vunpack.c.h.b16 %v1833
  %v2413 = vunpack.c.l.b16 %v1834
  %v2414 = vunpack.c.h.b16 %v1834
  %v2415 = vunpack.c.l.b16 %v1835
  %v2416 = vunpack.c.l.b16 %v1836
  %v2417 = vunpack.c.h.b16 %v1836
  %v2418 = vunpack.c.l.b16 %v1837
  %v2419 = vunpack.c.h.b16 %v1837
  %v2420 = vunpack.c.l.b16 %v1838
  %v2421 = vunpack.c.l.b16 %v1839
  %v2422 = vunpack.c.h.b16 %v1839
  %v2423 = vunpack.c.l.b16 %v1840
  %v2424 = vunpack.c.h.b16 %v1840
  %v2425 = vunpack.c.l.b16 %v1841
  %v2426 = vunpack.c.l.b16 %v1842
  %v2427 = vunpack.c.h.b16 %v1842
  %v2428 = vunpack.c.l.b16 %v1843
  %v2429 = vunpack.c.h.b16 %v1843
  %v2430 = vunpack.c.l.b16 %v1844
  %v2431 = vunpack.c.l.b16 %v1845
  %v2432 = vunpack.c.h.b16 %v1845
  %v2433 = vunpack.c.l.b16 %v1846
  %v2434 = vunpack.c.h.b16 %v1846
  %v2435 = vunpack.c.l.b16 %v1847
  %v2436 = vunpack.c.l.b16 %v1848
  %v2437 = vunpack.c.h.b16 %v1848
  %v2438 = vunpack.c.l.b16 %v1849
  %v2439 = vunpack.c.h.b16 %v1849
  %v2440 = vunpack.c.l.b16 %v1850
  %v2441 = vunpack.c.l.b16 %v1851
  %v2442 = vunpack.c.h.b16 %v1851
  %v2443 = vunpack.c.l.b16 %v1852
  %v2444 = vunpack.c.h.b16 %v1852
  %v2445 = vunpack.c.l.b16 %v1853
  %v2446 = vunpack.c.l.b16 %v1854
  %v2447 = vunpack.c.h.b16 %v1854
  %v2448 = vunpack.c.l.b16 %v1855
  %v2449 = vunpack.c.h.b16 %v1855
  %v2450 = vunpack.c.l.b16 %v1856
  %v2451 = vunpack.c.l.b16 %v1857
  %v2452 = vunpack.c.h.b16 %v1857
  %v2453 = vunpack.c.l.b16 %v1858
  %v2454 = vunpack.c.h.b16 %v1858
  %v2455 = vunpack.c.l.b16 %v1859
  %v2456 = vunpack.c.l.b16 %v1860
  %v2457 = vunpack.c.h.b16 %v1860
  %v2458 = vunpack.c.l.b16 %v1861
  %v2459 = vunpack.c.h.b16 %v1861
  %v2460 = vunpack.c.l.b16 %v1862
  %v2461 = vunpack.c.l.b16 %v1863
  %v2462 = vunpack.c.h.b16 %v1863
  %v2463 = vunpack.c.l.b16 %v1864
  %v2464 = vunpack.c.h.b16 %v1864
  %v2465 = vunpack.c.l.b16 %v1865
  %v2466 = vunpack.c.l.b16 %v1866
  %v2467 = vunpack.c.h.b16 %v1866
  %v2468 = vunpack.c.l.b16 %v1867
  %v2469 = vunpack.c.h.b16 %v1867
  %v2470 = vunpack.c.l.b16 %v1868
  %v2471 = vunpack.c.l.b16 %v1869
  %v2472 = vunpack.c.h.b16 %v1869
  %v2473 = vunpack.c.l.b16 %v1870
  %v2474 = vunpack.c.h.b16 %v1870
  %v2475 = vunpack.c.l.b16 %v1871
  %v2476 = vunpack.c.l.b16 %v1872
  %v2477 = vunpack.c.h.b16 %v1872
  %v2478 = vunpack.c.l.b16 %v1873
  %v2479 = vunpack.c.h.b16 %v1873
  %v2480 = vunpack.c.l.b16 %v1874
  %v2481 = vunpack.c.l.b16 %v1875
  %v2482 = vunpack.c.h.b16 %v1875
  %v2483 = vunpack.c.l.b16 %v1876
  %v2484 = vunpack.c.h.b16 %v1876
  %v2485 = vunpack.c.l.b16 %v1877
  %v2486 = vunpack.c.l.b16 %v1878
  %v2487 = vunpack.c.h.b16 %v1878
  %v2488 = vunpack.c.l.b16 %v1879
  %v2489 = vunpack.c.h.b16 %v1879
  %v2490 = vunpack.c.l.b16 %v1880
  %v2491 = vunpack.c.l.b16 %v1881
  %v2492 = vunpack.c.h.b16 %v1881
  %v2493 = vunpack.c.l.b16 %v1882
  %v2494 = vunpack.c.h.b16 %v1882
  %v2495 = vunpack.c.l.b16 %v1883
  %v2496 = vunpack.c.l.b16 %v1884
  %v2497 = vunpack.c.h.b16 %v1884
  %v2498 = vunpack.c.l.b16 %v1885
  %v2499 = vunpack.c.h.b16 %v1885
  %v2500 = vunpack.c.l.b16 %v1886
  %v2501 = vunpack.c.l.b16 %v1887
  %v2502 = vunpack.c.h.b16 %v1887
  %v2503 = vunpack.c.l.b16 %v1888
  %v2504 = vunpack.c.h.b16 %v1888
  %v2505 = vunpack.c.l.b16 %v1889
  %v2506 = vunpack.c.l.b16 %v1890
  %v2507 = vunpack.c.h.b16 %v1890
  %v2508 = vunpack.c.l.b16 %v1891
  %v2509 = vunpack.c.h.b16 %v1891
  %v2510 = vunpack.c.l.b16 %v1892
  %v2511 = vunpack.c.l.b16 %v1893
  %v2512 = vunpack.c.h.b16 %v1893
  %v2513 = vunpack.c.l.b16 %v1894
  %v2514 = vunpack.c.h.b16 %v1894
  %v2515 = vunpack.c.l.b16 %v1895
  %v2516 = vunpack.c.l.b16 %v1896
  %v2517 = vunpack.c.h.b16 %v1896
  %v2518 = vunpack.c.l.b16 %v1897
  %v2519 = vunpack.c.h.b16 %v1897
  %v2520 = vunpack.c.l.b16 %v1898
  %v2521 = vunpack.c.l.b16 %v1899
  %v2522 = vunpack.c.h.b16 %v1899
  %v2523 = vunpack.c.l.b16 %v1900
  %v2524 = vunpack.c.h.b16 %v1900
  %v2525 = vunpack.c.l.b16 %v1901
  %v2526 = vunpack.c.l.b16 %v1902
  %v2527 = vunpack.c.h.b16 %v1902
  %v2528 = vunpack.c.l.b16 %v1903
  %v2529 = vunpack.c.h.b16 %v1903
  %v2530 = vunpack.c.l.b16 %v1904
  %v2531 = vunpack.c.l.b16 %v1905
  %v2532 = vunpack.c.h.b16 %v1905
  %v2533 = vunpack.c.l.b16 %v1906
  %v2534 = vunpack.c.h.b16 %v1906
  %v2535 = vunpack.c.l.b16 %v1907
  %v2536 = vunpack.c.l.b16 %v1908
  %v2537 = vunpack.c.h.b16 %v1908
  %v2538 = vunpack.c.l.b16 %v1909
  %v2539 = vunpack.c.h.b16 %v1909
  %v2540 = vunpack.c.l.b16 %v1910
  %v2541 = vunpack.c.l.b16 %v1911
  %v2542 = vunpack.c.h.b16 %v1911
  %v2543 = vunpack.c.l.b16 %v1912
  %v2544 = vunpack.c.h.b16 %v1912
  %v2545 = vunpack.c.l.b16 %v1913
  %v2546 = vunpack.c.l.b16 %v1914
  %v2547 = vunpack.c.h.b16 %v1914
  %v2548 = vunpack.c.l.b16 %v1915
  %v2549 = vunpack.c.h.b16 %v1915
  %v2550 = vunpack.c.l.b16 %v1916
  %v2551 = vunpack.c.l.b16 %v1917
  %v2552 = vunpack.c.h.b16 %v1917
  %v2553 = vunpack.c.l.b16 %v1918
  %v2554 = vunpack.c.h.b16 %v1918
  %v2555 = vunpack.c.l.b16 %v1919
  %v2556 = vunpack.c.l.b16 %v1920
  %v2557 = vunpack.c.h.b16 %v1920
  %v2558 = vunpack.c.l.b16 %v1921
  %v2559 = vunpack.c.h.b16 %v1921
  %v2560 = vunpack.c.l.b16 %v1922
  %v2561 = vunpack.c.l.b16 %v1923
  %v2562 = vunpack.c.h.b16 %v1923
  %v2563 = vunpack.c.l.b16 %v1924
  %v2564 = vunpack.c.h.b16 %v1924
  %v2565 = vunpack.c.l.b16 %v1925
  %v2566 = vunpack.c.l.b16 %v1926
  %v2567 = vunpack.c.h.b16 %v1926
  %v2568 = vunpack.c.l.b16 %v1927
  %v2569 = vunpack.c.h.b16 %v1927
  %v2570 = vunpack.c.l.b16 %v1928
  %v2571 = vunpack.c.l.b16 %v1929
  %v2572 = vunpack.c.h.b16 %v1929
  %v2573 = vunpack.c.l.b16 %v1930
  %v2574 = vunpack.c.h.b16 %v1930
  %v2575 = vunpack.c.l.b16 %v1931
  %v2576 = vunpack.c.l.b16 %v1932
  %v2577 = vunpack.c.h.b16 %v1932
  %v2578 = vunpack.c.l.b16 %v1933
  %v2579 = vunpack.c.h.b16 %v1933
  %v2580 = vunpack.c.l.b16 %v1934
  %v2581 = vunpack.c.l.b16 %v1935
  %v2582 = vunpack.c.h.b16 %v1935
  %v2583 = vunpack.c.l.b16 %v1936
  %v2584 = vunpack.c.h.b16 %v1936
  %v2585 = vunpack.c.l.b16 %v1937
  %v2586 = vunpack.c.l.b16 %v1938
  %v2587 = vunpack.c.h.b16 %v1938
  %v2588 = vunpack.c.l.b16 %v1939
  %v2589 = vunpack.c.h.b16 %v1939
  %v2590 = vunpack.c.l.b16 %v1940
  %v2591 = vunpack.c.l.b16 %v1941
  %v2592 = vunpack.c.h.b16 %v1941
  %v2593 = vunpack.c.l.b16 %v1942
  %v2594 = vunpack.c.h.b16 %v1942
  %v2595 = vunpack.c.l.b16 %v1943
  %v2596 = vunpack.c.l.b16 %v1944
  %v2597 = vunpack.c.h.b16 %v1944
  %v2598 = vunpack.c.l.b16 %v1945
  %v2599 = vunpack.c.h.b16 %v1945
  %v2600 = vunpack.c.l.b16 %v1946
  %v2601 = vunpack.c.l.b16 %v1947
  %v2602 = vunpack.c.h.b16 %v1947
  %v2603 = vunpack.c.l.b16 %v1948
  %v2604 = vunpack.c.h.b16 %v1948
  %v2605 = vunpack.c.l.b16 %v1949
  %v2606 = vunpack.c.l.b16 %v1950
  %v2607 = vunpack.c.h.b16 %v1950
  %v2608 = vunpack.c.l.b16 %v1951
  %v2609 = vunpack.c.h.b16 %v1951
  %v2610 = vunpack.c.l.b16 %v1952
  %v2611 = vpack.c.b16 %v2216, %v2211
  %v2612 = vpack.c.b16 %v2217, %v2212
  %v2613 = vpack.c.b16 %v2218, %v2213
  %v2614 = vpack.c.b16 %v2219, %v2214
  %v2615 = vpack.c.b16 %v2220, %v2215
  %v2616 = vpack.c.b16 %v2226, %v2221
  %v2617 = vpack.c.b16 %v2227, %v2222
  %v2618 = vpack.c.b16 %v2228, %v2223
  %v2619 = vpack.c.b16 %v2229, %v2224
  %v2620 = vpack.c.b16 %v2230, %v2225
  %v2621 = vpack.c.b16 %v2236, %v2231
  %v2622 = vpack.c.b16 %v2237, %v2232
  %v2623 = vpack.c.b16 %v2238, %v2233
  %v2624 = vpack.c.b16 %v2239, %v2234
  %v2625 = vpack.c.b16 %v2240, %v2235
  %v2626 = vpack.c.b16 %v2246, %v2241
  %v2627 = vpack.c.b16 %v2247, %v2242
  %v2628 = vpack.c.b16 %v2248, %v2243
  %v2629 = vpack.c.b16 %v2249, %v2244
  %v2630 = vpack.c.b16 %v2250, %v2245
  %v2631 = vpack.c.b16 %v2256, %v2251
  %v2632 = vpack.c.b16 %v2257, %v2252
  %v2633 = vpack.c.b16 %v2258, %v2253
  %v2634 = vpack.c.b16 %v2259, %v2254
  %v2635 = vpack.c.b16 %v2260, %v2255
  %v2636 = vpack.c.b16 %v2266, %v2261
  %v2637 = vpack.c.b16 %v2267, %v2262
  %v2638 = vpack.c.b16 %v2268, %v2263
  %v2639 = vpack.c.b16 %v2269, %v2264
  %v2640 = vpack.c.b16 %v2270, %v2265
  %v2641 = vpack.c.b16 %v2276, %v2271
  %v2642 = vpack.c.b16 %v2277, %v2272
  %v2643 = vpack.c.b16 %v2278, %v2273
  %v2644 = vpack.c.b16 %v2279, %v2274
  %v2645 = vpack.c.b16 %v2280, %v2275
  %v2646 = vpack.c.b16 %v2286, %v2281
  %v2647 = vpack.c.b16 %v2287, %v2282
  %v2648 = vpack.c.b16 %v2288, %v2283
  %v2649 = vpack.c.b16 %v2289, %v2284
  %v2650 = vpack.c.b16 %v2290, %v2285
  %v2651 = vpack.c.b16 %v2296, %v2291
  %v2652 = vpack.c.b16 %v2297, %v2292
  %v2653 = vpack.c.b16 %v2298, %v2293
  %v2654 = vpack.c.b16 %v2299, %v2294
  %v2655 = vpack.c.b16 %v2300, %v2295
  %v2656 = vpack.c.b16 %v2306, %v2301
  %v2657 = vpack.c.b16 %v2307, %v2302
  %v2658 = vpack.c.b16 %v2308, %v2303
  %v2659 = vpack.c.b16 %v2309, %v2304
  %v2660 = vpack.c.b16 %v2310, %v2305
  %v2661 = vpack.c.b16 %v2316, %v2311
  %v2662 = vpack.c.b16 %v2317, %v2312
  %v2663 = vpack.c.b16 %v2318, %v2313
  %v2664 = vpack.c.b16 %v2319, %v2314
  %v2665 = vpack.c.b16 %v2320, %v2315
  %v2666 = vpack.c.b16 %v2326, %v2321
  %v2667 = vpack.c.b16 %v2327, %v2322
  %v2668 = vpack.c.b16 %v2328, %v2323
  %v2669 = vpack.c.b16 %v2329, %v2324
  %v2670 = vpack.c.b16 %v2330, %v2325
  %v2671 = vpack.c.b16 %v2336, %v2331
  %v2672 = vpack.c.b16 %v2337, %v2332
  %v2673 = vpack.c.b16 %v2338, %v2333
  %v2674 = vpack.c.b16 %v2339, %v2334
  %v2675 = vpack.c.b16 %v2340, %v2335
  %v2676 = vpack.c.b16 %v2346, %v2341
  %v2677 = vpack.c.b16 %v2347, %v2342
  %v2678 = vpack.c.b16 %v2348, %v2343
  %v2679 = vpack.c.b16 %v2349, %v2344
  %v2680 = vpack.c.b16 %v2350, %v2345
  %v2681 = vpack.c.b16 %v2356, %v2351
  %v2682 = vpack.c.b16 %v2357, %v2352
  %v2683 = vpack.c.b16 %v2358, %v2353
  %v2684 = vpack.c.b16 %v2359, %v2354
  %v2685 = vpack.c.b16 %v2360, %v2355
  %v2686 = vpack.c.b16 %v2366, %v2361
  %v2687 = vpack.c.b16 %v2367, %v2362
  %v2688 = vpack.c.b16 %v2368, %v2363
  %v2689 = vpack.c.b16 %v2369, %v2364
  %v2690 = vpack.c.b16 %v2370, %v2365
  %v2691 = vpack.c.b16 %v2376, %v2371
  %v2692 = vpack.c.b16 %v2377, %v2372
  %v2693 = vpack.c.b16 %v2378, %v2373
  %v2694 = vpack.c.b16 %v2379, %v2374
  %v2695 = vpack.c.b16 %v2380, %v2375
  %v2696 = vpack.c.b16 %v2386, %v2381
  %v2697 = vpack.c.b16 %v2387, %v2382
  %v2698 = vpack.c.b16 %v2388, %v2383
  %v2699 = vpack.c.b16 %v2389, %v2384
  %v2700 = vpack.c.b16 %v2390, %v2385
  %v2701 = vpack.c.b16 %v2396, %v2391
  %v2702 = vpack.c.b16 %v2397, %v2392
  %v2703 = vpack.c.b16 %v2398, %v2393
  %v2704 = vpack.c.b16 %v2399, %v2394
  %v2705 = vpack.c.b16 %v2400, %v2395
  %v2706 = vpack.c.b16 %v2406, %v2401
  %v2707 = vpack.c.b16 %v2407, %v2402
  %v2708 = vpack.c.b16 %v2408, %v2403
  %v2709 = vpack.c.b16 %v2409, %v2404
  %v2710 = vpack.c.b16 %v2410, %v2405
  %v2711 = vpack.c.b16 %v2416, %v2411
  %v2712 = vpack.c.b16 %v2417, %v2412
  %v2713 = vpack.c.b16 %v2418, %v2413
  %v2714 = vpack.c.b16 %v2419, %v2414
  %v2715 = vpack.c.b16 %v2420, %v2415
  %v2716 = vpack.c.b16 %v2426, %v2421
  %v2717 = vpack.c.b16 %v2427, %v2422
  %v2718 = vpack.c.b16 %v2428, %v2423
  %v2719 = vpack.c.b16 %v2429, %v2424
  %v2720 = vpack.c.b16 %v2430, %v2425
  %v2721 = vpack.c.b16 %v2436, %v2431
  %v2722 = vpack.c.b16 %v2437, %v2432
  %v2723 = vpack.c.b16 %v2438, %v2433
  %v2724 = vpack.c.b16 %v2439, %v2434
  %v2725 = vpack.c.b16 %v2440, %v2435
  %v2726 = vpack.c.b16 %v2446, %v2441
  %v2727 = vpack.c.b16 %v2447, %v2442
  %v2728 = vpack.c.b16 %v2448, %v2443
  %v2729 = vpack.c.b16 %v2449, %v2444
  %v2730 = vpack.c.b16 %v2450, %v2445
  %v2731 = vpack.c.b16 %v2456, %v2451
  %v2732 = vpack.c.b16 %v2457, %v2452
  %v2733 = vpack.c.b16 %v2458, %v2453
  %v2734 = vpack.c.b16 %v2459, %v2454
  %v2735 = vpack.c.b16 %v2460, %v2455
  %v2736 = vpack.c.b16 %v2466, %v2461
  %v2737 = vpack.c.b16 %v2467, %v2462
  %v2738 = vpack.c.b16 %v2468, %v2463
  %v2739 = vpack.c.b16 %v2469, %v2464
  %v2740 = vpack.c.b16 %v2470, %v2465
  %v2741 = vpack.c.b16 %v2476, %v2471
  %v2742 = vpack.c.b16 %v2477, %v2472
  %v2743 = vpack.c.b16 %v2478, %v2473
  %v2744 = vpack.c.b16 %v2479, %v2474
  %v2745 = vpack.c.b16 %v2480, %v2475
  %v2746 = vpack.c.b16 %v2486, %v2481
  %v2747 = vpack.c.b16 %v2487, %v2482
  %v2748 = vpack.c.b16 %v2488, %v2483
  %v2749 = vpack.c.b16 %v2489, %v2484
  %v2750 = vpack.c.b16 %v2490, %v2485
  %v2751 = vpack.c.b16 %v2496, %v2491
  %v2752 = vpack.c.b16 %v2497, %v2492
  %v2753 = vpack.c.b16 %v2498, %v2493
  %v2754 = vpack.c.b16 %v2499, %v2494
  %v2755 = vpack.c.b16 %v2500, %v2495
  %v2756 = vpack.c.b16 %v2506, %v2501
  %v2757 = vpack.c.b16 %v2507, %v2502
  %v2758 = vpack.c.b16 %v2508, %v2503
  %v2759 = vpack.c.b16 %v2509, %v2504
  %v2760 = vpack.c.b16 %v2510, %v2505
  %v2761 = vpack.c.b16 %v2516, %v2511
  %v2762 = vpack.c.b16 %v2517, %v2512
  %v2763 = vpack.c.b16 %v2518, %v2513
  %v2764 = vpack.c.b16 %v2519, %v2514
  %v2765 = vpack.c.b16 %v2520, %v2515
  %v2766 = vpack.c.b16 %v2526, %v2521
  %v2767 = vpack.c.b16 %v2527, %v2522
  %v2768 = vpack.c.b16 %v2528, %v2523
  %v2769 = vpack.c.b16 %v2529, %v2524
  %v2770 = vpack.c.b16 %v2530, %v2525
  %v2771 = vpack.c.b16 %v2536, %v2531
  %v2772 = vpack.c.b16 %v2537, %v2532
  %v2773 = vpack.c.b16 %v2538, %v2533
  %v2774 = vpack.c.b16 %v2539, %v2534
  %v2775 = vpack.c.b16 %v2540, %v2535
  %v2776 = vpack.c.b16 %v2546, %v2541
  %v2777 = vpack.c.b16 %v2547, %v2542
  %v2778 = vpack.c.b16 %v2548, %v2543
  %v2779 = vpack.c.b16 %v2549, %v2544
  %v2780 = vpack.c.b16 %v2550, %v2545
  %v2781 = vpack.c.b16 %v2556, %v2551
  %v2782 = vpack.c.b16 %v2557, %v2552
  %v2783 = vpack.c.b16 %v2558, %v2553
  %v2784 = vpack.c.b16 %v2559, %v2554
  %v2785 = vpack.c.b16 %v2560, %v2555
  %v2786 = vpack.c.b16 %v2566, %v2561
  %v2787 = vpack.c.b16 %v2567, %v2562
  %v2788 = vpack.c.b16 %v2568, %v2563
  %v2789 = vpack.c.b16 %v2569, %v2564
  %v2790 = vpack.c.b16 %v2570, %v2565
  %v2791 = vpack.c.b16 %v2576, %v2571
  %v2792 = vpack.c.b16 %v2577, %v2572
  %v2793 = vpack.c.b16 %v2578, %v2573
  %v2794 = vpack.c.b16 %v2579, %v2574
  %v2795 = vpack.c.b16 %v2580, %v2575
  %v2796 = vpack.c.b16 %v2586, %v2581
  %v2797 = vpack.c.b16 %v2587, %v2582
  %v2798 = vpack.c.b16 %v2588, %v2583
  %v2799 = vpack.c.b16 %v2589, %v2584
  %v2800 = vpack.c.b16 %v2590, %v2585
  %v2801 = vpack.c.b16 %v2596, %v2591
  %v2802 = vpack.c.b16 %v2597, %v2592
  %v2803 = vpack.c.b16 %v2598, %v2593
  %v2804 = vpack.c.b16 %v2599, %v2594
  %v2805 = vpack.c.b16 %v2600, %v2595
  %v2806 = vpack.c.b16 %v2606, %v2601
  %v2807 = vpack.c.b16 %v2607, %v2602
  %v2808 = vpack.c.b16 %v2608, %v2603
  %v2809 = vpack.c.b16 %v2609, %v2604
  %v2810 = vpack.c.b16 %v2610, %v2605
  %3011 = vmatprep.subr.bf16.mxu0 %v2612
  %3012 = vmatpush1.bf16.msra.mxu0 %v2611
  %3013 = vmatprep.subr.bf16.mxu0 %v2617
  %3014 = vmatpush1.bf16.msra.mxu0 %v2616
  %3015 = vmatprep.subr.bf16.mxu0 %v2622
  %3016 = vmatpush1.bf16.msra.mxu0 %v2621
  %3017 = vmatprep.subr.bf16.mxu0 %v2627
  %3018 = vmatpush1.bf16.msra.mxu0 %v2626
  %3019 = vmatprep.subr.bf16.mxu0 %v2632
  %3020 = vmatpush1.bf16.msra.mxu0 %v2631
  %3021 = vmatprep.subr.bf16.mxu0 %v2637
  %3022 = vmatpush1.bf16.msra.mxu0 %v2636
  %3023 = vmatprep.subr.bf16.mxu0 %v2642
  %3024 = vmatpush1.bf16.msra.mxu0 %v2641
  %3025 = vmatprep.subr.bf16.mxu0 %v2647
  %3026 = vmatpush1.bf16.msra.mxu0 %v2646
  %3027 = vmatprep.subr.bf16.mxu0 %v2652
  %3028 = vmatpush1.bf16.msra.mxu0 %v2651
  %3029 = vmatprep.subr.bf16.mxu0 %v2657
  %3030 = vmatpush1.bf16.msra.mxu0 %v2656
  %3031 = vmatprep.subr.bf16.mxu0 %v2662
  %3032 = vmatpush1.bf16.msra.mxu0 %v2661
  %3033 = vmatprep.subr.bf16.mxu0 %v2667
  %3034 = vmatpush1.bf16.msra.mxu0 %v2666
  %3035 = vmatprep.subr.bf16.mxu0 %v2672
  %3036 = vmatpush1.bf16.msra.mxu0 %v2671
  %3037 = vmatprep.subr.bf16.mxu0 %v2677
  %3038 = vmatpush1.bf16.msra.mxu0 %v2676
  %3039 = vmatprep.subr.bf16.mxu0 %v2682
  %3040 = vmatpush1.bf16.msra.mxu0 %v2681
  %3041 = vmatprep.subr.bf16.mxu0 %v2687
  %3042 = vmatpush1.bf16.msra.mxu0 %v2686
  %3043 = vmatprep.mubr.bf16.mxu0 %v1962
  %3044 = vmatmul.mubr.bf16.gmra.mrb[0].mxu0 %v1961
  %v3045 = vpop.f32.mrb[0].mxu0
  %v3046 = vadd.f32 0.0, %v3045
  %v3047 = vpop.f32.mrb[0].mxu0
  %v3048 = vadd.f32 0.0, %v3047
  %v3049 = vpop.f32.mrb[0].mxu0
  %v3050 = vpop.f32.mrb[0].mxu0
  %3051 = vdwg.mxu0
  %3052 = vmatprep.subr.bf16.mxu0 %v2692
  %3053 = vmatpush1.bf16.msra.mxu0 %v2691
  %3054 = vmatprep.subr.bf16.mxu0 %v2697
  %3055 = vmatpush1.bf16.msra.mxu0 %v2696
  %3056 = vmatprep.subr.bf16.mxu0 %v2702
  %3057 = vmatpush1.bf16.msra.mxu0 %v2701
  %3058 = vmatprep.subr.bf16.mxu0 %v2707
  %3059 = vmatpush1.bf16.msra.mxu0 %v2706
  %3060 = vmatprep.subr.bf16.mxu0 %v2712
  %3061 = vmatpush1.bf16.msra.mxu0 %v2711
  %3062 = vmatprep.subr.bf16.mxu0 %v2717
  %3063 = vmatpush1.bf16.msra.mxu0 %v2716
  %3064 = vmatprep.subr.bf16.mxu0 %v2722
  %3065 = vmatpush1.bf16.msra.mxu0 %v2721
  %3066 = vmatprep.subr.bf16.mxu0 %v2727
  %3067 = vmatpush1.bf16.msra.mxu0 %v2726
  %3068 = vmatprep.subr.bf16.mxu0 %v2732
  %3069 = vmatpush1.bf16.msra.mxu0 %v2731
  %3070 = vmatprep.subr.bf16.mxu0 %v2737
  %3071 = vmatpush1.bf16.msra.mxu0 %v2736
  %3072 = vmatprep.subr.bf16.mxu0 %v2742
  %3073 = vmatpush1.bf16.msra.mxu0 %v2741
  %3074 = vmatprep.subr.bf16.mxu0 %v2747
  %3075 = vmatpush1.bf16.msra.mxu0 %v2746
  %3076 = vmatprep.subr.bf16.mxu0 %v2752
  %3077 = vmatpush1.bf16.msra.mxu0 %v2751
  %3078 = vmatprep.subr.bf16.mxu0 %v2757
  %3079 = vmatpush1.bf16.msra.mxu0 %v2756
  %3080 = vmatprep.subr.bf16.mxu0 %v2762
  %3081 = vmatpush1.bf16.msra.mxu0 %v2761
  %3082 = vmatprep.subr.bf16.mxu0 %v2767
  %3083 = vmatpush1.bf16.msra.mxu0 %v2766
  %3084 = vmatprep.mubr.bf16.mxu0 %v1964
  %3085 = vmatmul.mubr.bf16.gmra.mrb[0].mxu0 %v1963
  %v3086 = vpop.f32.mrb[0].mxu0
  %v3087 = vadd.f32 %v3046, %v3086
  %v3088 = vpop.f32.mrb[0].mxu0
  %v3089 = vadd.f32 %v3048, %v3088
  %v3090 = vpop.f32.mrb[0].mxu0
  %v3091 = vpop.f32.mrb[0].mxu0
  %3092 = vdwg.mxu0
  %3093 = vmatprep.subr.bf16.mxu0 %v2772
  %3094 = vmatpush1.bf16.msra.mxu0 %v2771
  %3095 = vmatprep.subr.bf16.mxu0 %v2777
  %3096 = vmatpush1.bf16.msra.mxu0 %v2776
  %3097 = vmatprep.subr.bf16.mxu0 %v2782
  %3098 = vmatpush1.bf16.msra.mxu0 %v2781
  %3099 = vmatprep.subr.bf16.mxu0 %v2787
  %3100 = vmatpush1.bf16.msra.mxu0 %v2786
  %3101 = vmatprep.subr.bf16.mxu0 %v2792
  %3102 = vmatpush1.bf16.msra.mxu0 %v2791
  %3103 = vmatprep.subr.bf16.mxu0 %v2797
  %3104 = vmatpush1.bf16.msra.mxu0 %v2796
  %3105 = vmatprep.subr.bf16.mxu0 %v2802
  %3106 = vmatpush1.bf16.msra.mxu0 %v2801
  %3107 = vmatprep.subr.bf16.mxu0 %v2807
  %3108 = vmatpush1.bf16.msra.mxu0 %v2806
  %3109 = vmatprep.subr.bf16.mxu0 0
  %3110 = vmatpush1.bf16.msra.mxu0 0
  %3111 = vmatprep.subr.bf16.mxu0 0
  %3112 = vmatpush1.bf16.msra.mxu0 0
  %3113 = vmatprep.subr.bf16.mxu0 0
  %3114 = vmatpush1.bf16.msra.mxu0 0
  %3115 = vmatprep.subr.bf16.mxu0 0
  %3116 = vmatpush1.bf16.msra.mxu0 0
  %3117 = vmatprep.subr.bf16.mxu0 0
  %3118 = vmatpush1.bf16.msra.mxu0 0
  %3119 = vmatprep.subr.bf16.mxu0 0
  %3120 = vmatpush1.bf16.msra.mxu0 0
  %3121 = vmatprep.subr.bf16.mxu0 0
  %3122 = vmatpush1.bf16.msra.mxu0 0
  %3123 = vmatprep.subr.bf16.mxu0 0
  %3124 = vmatpush1.bf16.msra.mxu0 0
  %3125 = vmatprep.mubr.bf16.mxu0 0
  %3126 = vmatmul.mubr.bf16.gmra.mrb[0].mxu0 %v1965
  %v3127 = vpop.f32.mrb[0].mxu0
  %v3128 = vadd.f32 %v3087, %v3127
  %v3129 = vpop.f32.mrb[0].mxu0
  %v3130 = vadd.f32 %v3089, %v3129
  %v3131 = vpop.f32.mrb[0].mxu0
  %v3132 = vpop.f32.mrb[0].mxu0
  %3133 = vdwg.mxu0
  %3134 = vmatprep.subr.bf16.mxu0 %v2614
  %3135 = vmatpush1.bf16.msra.mxu0 %v2613
  %3136 = vmatprep.subr.bf16.mxu0 %v2619
  %3137 = vmatpush1.bf16.msra.mxu0 %v2618
  %3138 = vmatprep.subr.bf16.mxu0 %v2624
  %3139 = vmatpush1.bf16.msra.mxu0 %v2623
  %3140 = vmatprep.subr.bf16.mxu0 %v2629
  %3141 = vmatpush1.bf16.msra.mxu0 %v2628
  %3142 = vmatprep.subr.bf16.mxu0 %v2634
  %3143 = vmatpush1.bf16.msra.mxu0 %v2633
  %3144 = vmatprep.subr.bf16.mxu0 %v2639
  %3145 = vmatpush1.bf16.msra.mxu0 %v2638
  %3146 = vmatprep.subr.bf16.mxu0 %v2644
  %3147 = vmatpush1.bf16.msra.mxu0 %v2643
  %3148 = vmatprep.subr.bf16.mxu0 %v2649
  %3149 = vmatpush1.bf16.msra.mxu0 %v2648
  %3150 = vmatprep.subr.bf16.mxu0 %v2654
  %3151 = vmatpush1.bf16.msra.mxu0 %v2653
  %3152 = vmatprep.subr.bf16.mxu0 %v2659
  %3153 = vmatpush1.bf16.msra.mxu0 %v2658
  %3154 = vmatprep.subr.bf16.mxu0 %v2664
  %3155 = vmatpush1.bf16.msra.mxu0 %v2663
  %3156 = vmatprep.subr.bf16.mxu0 %v2669
  %3157 = vmatpush1.bf16.msra.mxu0 %v2668
  %3158 = vmatprep.subr.bf16.mxu0 %v2674
  %3159 = vmatpush1.bf16.msra.mxu0 %v2673
  %3160 = vmatprep.subr.bf16.mxu0 %v2679
  %3161 = vmatpush1.bf16.msra.mxu0 %v2678
  %3162 = vmatprep.subr.bf16.mxu0 %v2684
  %3163 = vmatpush1.bf16.msra.mxu0 %v2683
  %3164 = vmatprep.subr.bf16.mxu0 %v2689
  %3165 = vmatpush1.bf16.msra.mxu0 %v2688
  %3166 = vmatprep.mubr.bf16.mxu0 %v1962
  %3167 = vmatmul.mubr.bf16.gmra.mrb[0].mxu0 %v1961
  %v3168 = vpop.f32.mrb[0].mxu0
  %v3169 = vadd.f32 0.0, %v3168
  %v3170 = vpop.f32.mrb[0].mxu0
  %v3171 = vadd.f32 0.0, %v3170
  %v3172 = vpop.f32.mrb[0].mxu0
  %v3173 = vpop.f32.mrb[0].mxu0
  %3174 = vdwg.mxu0
  %3175 = vmatprep.subr.bf16.mxu0 %v2694
  %3176 = vmatpush1.bf16.msra.mxu0 %v2693
  %3177 = vmatprep.subr.bf16.mxu0 %v2699
  %3178 = vmatpush1.bf16.msra.mxu0 %v2698
  %3179 = vmatprep.subr.bf16.mxu0 %v2704
  %3180 = vmatpush1.bf16.msra.mxu0 %v2703
  %3181 = vmatprep.subr.bf16.mxu0 %v2709
  %3182 = vmatpush1.bf16.msra.mxu0 %v2708
  %3183 = vmatprep.subr.bf16.mxu0 %v2714
  %3184 = vmatpush1.bf16.msra.mxu0 %v2713
  %3185 = vmatprep.subr.bf16.mxu0 %v2719
  %3186 = vmatpush1.bf16.msra.mxu0 %v2718
  %3187 = vmatprep.subr.bf16.mxu0 %v2724
  %3188 = vmatpush1.bf16.msra.mxu0 %v2723
  %3189 = vmatprep.subr.bf16.mxu0 %v2729
  %3190 = vmatpush1.bf16.msra.mxu0 %v2728
  %3191 = vmatprep.subr.bf16.mxu0 %v2734
  %3192 = vmatpush1.bf16.msra.mxu0 %v2733
  %3193 = vmatprep.subr.bf16.mxu0 %v2739
  %3194 = vmatpush1.bf16.msra.mxu0 %v2738
  %3195 = vmatprep.subr.bf16.mxu0 %v2744
  %3196 = vmatpush1.bf16.msra.mxu0 %v2743
  %3197 = vmatprep.subr.bf16.mxu0 %v2749
  %3198 = vmatpush1.bf16.msra.mxu0 %v2748
  %3199 = vmatprep.subr.bf16.mxu0 %v2754
  %3200 = vmatpush1.bf16.msra.mxu0 %v2753
  %3201 = vmatprep.subr.bf16.mxu0 %v2759
  %3202 = vmatpush1.bf16.msra.mxu0 %v2758
  %3203 = vmatprep.subr.bf16.mxu0 %v2764
  %3204 = vmatpush1.bf16.msra.mxu0 %v2763
  %3205 = vmatprep.subr.bf16.mxu0 %v2769
  %3206 = vmatpush1.bf16.msra.mxu0 %v2768
  %3207 = vmatprep.mubr.bf16.mxu0 %v1964
  %3208 = vmatmul.mubr.bf16.gmra.mrb[0].mxu0 %v1963
  %v3209 = vpop.f32.mrb[0].mxu0
  %v3210 = vadd.f32 %v3169, %v3209
  %v3211 = vpop.f32.mrb[0].mxu0
  %v3212 = vadd.f32 %v3171, %v3211
  %v3213 = vpop.f32.mrb[0].mxu0
  %v3214 = vpop.f32.mrb[0].mxu0
  %3215 = vdwg.mxu0
  %3216 = vmatprep.subr.bf16.mxu0 %v2774
  %3217 = vmatpush1.bf16.msra.mxu0 %v2773
  %3218 = vmatprep.subr.bf16.mxu0 %v2779
  %3219 = vmatpush1.bf16.msra.mxu0 %v2778
  %3220 = vmatprep.subr.bf16.mxu0 %v2784
  %3221 = vmatpush1.bf16.msra.mxu0 %v2783
  %3222 = vmatprep.subr.bf16.mxu0 %v2789
  %3223 = vmatpush1.bf16.msra.mxu0 %v2788
  %3224 = vmatprep.subr.bf16.mxu0 %v2794
  %3225 = vmatpush1.bf16.msra.mxu0 %v2793
  %3226 = vmatprep.subr.bf16.mxu0 %v2799
  %3227 = vmatpush1.bf16.msra.mxu0 %v2798
  %3228 = vmatprep.subr.bf16.mxu0 %v2804
  %3229 = vmatpush1.bf16.msra.mxu0 %v2803
  %3230 = vmatprep.subr.bf16.mxu0 %v2809
  %3231 = vmatpush1.bf16.msra.mxu0 %v2808
  %3232 = vmatprep.subr.bf16.mxu0 0
  %3233 = vmatpush1.bf16.msra.mxu0 0
  %3234 = vmatprep.subr.bf16.mxu0 0
  %3235 = vmatpush1.bf16.msra.mxu0 0
  %3236 = vmatprep.subr.bf16.mxu0 0
  %3237 = vmatpush1.bf16.msra.mxu0 0
  %3238 = vmatprep.subr.bf16.mxu0 0
  %3239 = vmatpush1.bf16.msra.mxu0 0
  %3240 = vmatprep.subr.bf16.mxu0 0
  %3241 = vmatpush1.bf16.msra.mxu0 0
  %3242 = vmatprep.subr.bf16.mxu0 0
  %3243 = vmatpush1.bf16.msra.mxu0 0
  %3244 = vmatprep.subr.bf16.mxu0 0
  %3245 = vmatpush1.bf16.msra.mxu0 0
  %3246 = vmatprep.subr.bf16.mxu0 0
  %3247 = vmatpush1.bf16.msra.mxu0 0
  %3248 = vmatprep.mubr.bf16.mxu0 0
  %3249 = vmatmul.mubr.bf16.gmra.mrb[0].mxu0 %v1965
  %v3250 = vpop.f32.mrb[0].mxu0
  %v3251 = vadd.f32 %v3210, %v3250
  %v3252 = vpop.f32.mrb[0].mxu0
  %v3253 = vadd.f32 %v3212, %v3252
  %v3254 = vpop.f32.mrb[0].mxu0
  %v3255 = vpop.f32.mrb[0].mxu0
  %3256 = vdwg.mxu0
  %3257 = vmatprep.subr.bf16.mxu0 0
  %3258 = vmatpush1.bf16.msra.mxu0 %v2615
  %3259 = vmatprep.subr.bf16.mxu0 0
  %3260 = vmatpush1.bf16.msra.mxu0 %v2620
  %3261 = vmatprep.subr.bf16.mxu0 0
  %3262 = vmatpush1.bf16.msra.mxu0 %v2625
  %3263 = vmatprep.subr.bf16.mxu0 0
  %3264 = vmatpush1.bf16.msra.mxu0 %v2630
  %3265 = vmatprep.subr.bf16.mxu0 0
  %3266 = vmatpush1.bf16.msra.mxu0 %v2635
  %3267 = vmatprep.subr.bf16.mxu0 0
  %3268 = vmatpush1.bf16.msra.mxu0 %v2640
  %3269 = vmatprep.subr.bf16.mxu0 0
  %3270 = vmatpush1.bf16.msra.mxu0 %v2645
  %3271 = vmatprep.subr.bf16.mxu0 0
  %3272 = vmatpush1.bf16.msra.mxu0 %v2650
  %3273 = vmatprep.subr.bf16.mxu0 0
  %3274 = vmatpush1.bf16.msra.mxu0 %v2655
  %3275 = vmatprep.subr.bf16.mxu0 0
  %3276 = vmatpush1.bf16.msra.mxu0 %v2660
  %3277 = vmatprep.subr.bf16.mxu0 0
  %3278 = vmatpush1.bf16.msra.mxu0 %v2665
  %3279 = vmatprep.subr.bf16.mxu0 0
  %3280 = vmatpush1.bf16.msra.mxu0 %v2670
  %3281 = vmatprep.subr.bf16.mxu0 0
  %3282 = vmatpush1.bf16.msra.mxu0 %v2675
  %3283 = vmatprep.subr.bf16.mxu0 0
  %3284 = vmatpush1.bf16.msra.mxu0 %v2680
  %3285 = vmatprep.subr.bf16.mxu0 0
  %3286 = vmatpush1.bf16.msra.mxu0 %v2685
  %3287 = vmatprep.subr.bf16.mxu0 0
  %3288 = vmatpush1.bf16.msra.mxu0 %v2690
  %3289 = vmatprep.mubr.bf16.mxu0 %v1962
  %3290 = vmatmul.mubr.bf16.gmra.mrb[0].mxu0 %v1961
  %v3291 = vpop.f32.mrb[0].mxu0
  %v3292 = vadd.f32 0.0, %v3291
  %v3293 = vpop.f32.mrb[0].mxu0
  %v3294 = vpop.f32.mrb[0].mxu0
  %v3295 = vpop.f32.mrb[0].mxu0
  %3296 = vdwg.mxu0
  %3297 = vmatprep.subr.bf16.mxu0 0
  %3298 = vmatpush1.bf16.msra.mxu0 %v2695
  %3299 = vmatprep.subr.bf16.mxu0 0
  %3300 = vmatpush1.bf16.msra.mxu0 %v2700
  %3301 = vmatprep.subr.bf16.mxu0 0
  %3302 = vmatpush1.bf16.msra.mxu0 %v2705
  %3303 = vmatprep.subr.bf16.mxu0 0
  %3304 = vmatpush1.bf16.msra.mxu0 %v2710
  %3305 = vmatprep.subr.bf16.mxu0 0
  %3306 = vmatpush1.bf16.msra.mxu0 %v2715
  %3307 = vmatprep.subr.bf16.mxu0 0
  %3308 = vmatpush1.bf16.msra.mxu0 %v2720
  %3309 = vmatprep.subr.bf16.mxu0 0
  %3310 = vmatpush1.bf16.msra.mxu0 %v2725
  %3311 = vmatprep.subr.bf16.mxu0 0
  %3312 = vmatpush1.bf16.msra.mxu0 %v2730
  %3313 = vmatprep.subr.bf16.mxu0 0
  %3314 = vmatpush1.bf16.msra.mxu0 %v2735
  %3315 = vmatprep.subr.bf16.mxu0 0
  %3316 = vmatpush1.bf16.msra.mxu0 %v2740
  %3317 = vmatprep.subr.bf16.mxu0 0
  %3318 = vmatpush1.bf16.msra.mxu0 %v2745
  %3319 = vmatprep.subr.bf16.mxu0 0
  %3320 = vmatpush1.bf16.msra.mxu0 %v2750
  %3321 = vmatprep.subr.bf16.mxu0 0
  %3322 = vmatpush1.bf16.msra.mxu0 %v2755
  %3323 = vmatprep.subr.bf16.mxu0 0
  %3324 = vmatpush1.bf16.msra.mxu0 %v2760
  %3325 = vmatprep.subr.bf16.mxu0 0
  %3326 = vmatpush1.bf16.msra.mxu0 %v2765
  %3327 = vmatprep.subr.bf16.mxu0 0
  %3328 = vmatpush1.bf16.msra.mxu0 %v2770
  %3329 = vmatprep.mubr.bf16.mxu0 %v1964
  %3330 = vmatmul.mubr.bf16.gmra.mrb[0].mxu0 %v1963
  %v3331 = vpop.f32.mrb[0].mxu0
  %v3332 = vadd.f32 %v3292, %v3331
  %v3333 = vpop.f32.mrb[0].mxu0
  %v3334 = vpop.f32.mrb[0].mxu0
  %v3335 = vpop.f32.mrb[0].mxu0
  %3336 = vdwg.mxu0
  %3337 = vmatprep.subr.bf16.mxu0 0
  %3338 = vmatpush1.bf16.msra.mxu0 %v2775
  %3339 = vmatprep.subr.bf16.mxu0 0
  %3340 = vmatpush1.bf16.msra.mxu0 %v2780
  %3341 = vmatprep.subr.bf16.mxu0 0
  %3342 = vmatpush1.bf16.msra.mxu0 %v2785
  %3343 = vmatprep.subr.bf16.mxu0 0
  %3344 = vmatpush1.bf16.msra.mxu0 %v2790
  %3345 = vmatprep.subr.bf16.mxu0 0
  %3346 = vmatpush1.bf16.msra.mxu0 %v2795
  %3347 = vmatprep.subr.bf16.mxu0 0
  %3348 = vmatpush1.bf16.msra.mxu0 %v2800
  %3349 = vmatprep.subr.bf16.mxu0 0
  %3350 = vmatpush1.bf16.msra.mxu0 %v2805
  %3351 = vmatprep.subr.bf16.mxu0 0
  %3352 = vmatpush1.bf16.msra.mxu0 %v2810
  %3353 = vmatprep.subr.bf16.mxu0 0
  %3354 = vmatpush1.bf16.msra.mxu0 0
  %3355 = vmatprep.subr.bf16.mxu0 0
  %3356 = vmatpush1.bf16.msra.mxu0 0
  %3357 = vmatprep.subr.bf16.mxu0 0
  %3358 = vmatpush1.bf16.msra.mxu0 0
  %3359 = vmatprep.subr.bf16.mxu0 0
  %3360 = vmatpush1.bf16.msra.mxu0 0
  %3361 = vmatprep.subr.bf16.mxu0 0
  %3362 = vmatpush1.bf16.msra.mxu0 0
  %3363 = vmatprep.subr.bf16.mxu0 0
  %3364 = vmatpush1.bf16.msra.mxu0 0
  %3365 = vmatprep.subr.bf16.mxu0 0
  %3366 = vmatpush1.bf16.msra.mxu0 0
  %3367 = vmatprep.subr.bf16.mxu0 0
  %3368 = vmatpush1.bf16.msra.mxu0 0
  %3369 = vmatprep.mubr.bf16.mxu0 0
  %3370 = vmatmul.mubr.bf16.gmra.mrb[0].mxu0 %v1965
  %v3371 = vpop.f32.mrb[0].mxu0
  %v3372 = vadd.f32 %v3332, %v3371
  %v3373 = vpop.f32.mrb[0].mxu0
  %v3374 = vpop.f32.mrb[0].mxu0
  %v3375 = vpop.f32.mrb[0].mxu0
  %3376 = vdwg.mxu0
  %v3377 = vld [vmem:[%s3 + $0x8] sm:$0xff]
  %v3378 = vld [vmem:[%s3 + $0x10] sm:$0xff]
  %v3379 = vld [vmem:[%s3 + $0x18] sm:$0xff]
  %v3380 = vld [vmem:[%s3 + $0x20] sm:$0xff]
  %v3381 = vld [vmem:[%s3 + $0x28] sm:$0xff]
  %v3382 = vadd.f32 %v3377, %v3128
  %v3383 = vadd.f32 %v3378, %v3130
  %v3384 = vadd.f32 %v3379, %v3251
  %v3385 = vadd.f32 %v3380, %v3253
  %v3386 = vadd.f32 %v3381, %v3372
  %3387 = vst [vmem:[%s3 + $0x8] sm:$0xff] %v3382
  %3388 = vst [vmem:[%s3 + $0x10] sm:$0xff] %v3383
  %3389 = vst [vmem:[%s3 + $0x18] sm:$0xff] %v3384
  %3390 = vst [vmem:[%s3 + $0x20] sm:$0xff] %v3385
  %3391 = vst [vmem:[%s3 + $0x28] sm:$0xff] %v3386
  %s3392 = scalar_lea.vmem %s0, 40
  %v3393 = vld [vmem:[%s3392] sm:$0xff]
  %v3394 = vld [vmem:[%s3392 + $0x8] sm:$0xff]
  %v3395 = vld [vmem:[%s3392 + $0x10] sm:$0xf]
  %s3396 = scalar_lea.vmem %s1, 3200
  %v3397 = vld [vmem:[%s3396] sm:$0xff]
  %v3398 = vld [vmem:[%s3396 + $0x8] sm:$0xff]
  %v3399 = vld [vmem:[%s3396 + $0x10] sm:$0xf]
  %v3400 = vld [vmem:[%s3396 + $0x14] sm:$0xff]
  %v3401 = vld [vmem:[%s3396 + $0x1c] sm:$0xff]
  %v3402 = vld [vmem:[%s3396 + $0x24] sm:$0xf]
  %v3403 = vld [vmem:[%s3396 + $0x28] sm:$0xff]
  %v3404 = vld [vmem:[%s3396 + $0x30] sm:$0xff]
  %v3405 = vld [vmem:[%s3396 + $0x38] sm:$0xf]
  %v3406 = vld [vmem:[%s3396 + $0x3c] sm:$0xff]
  %v3407 = vld [vmem:[%s3396 + $0x44] sm:$0xff]
  %v3408 = vld [vmem:[%s3396 + $0x4c] sm:$0xf]
  %v3409 = vld [vmem:[%s3396 + $0x50] sm:$0xff]
  %v3410 = vld [vmem:[%s3396 + $0x58] sm:$0xff]
  %v3411 = vld [vmem:[%s3396 + $0x60] sm:$0xf]
  %v3412 = vld [vmem:[%s3396 + $0x64] sm:$0xff]
  %v3413 = vld [vmem:[%s3396 + $0x6c] sm:$0xff]
  %v3414 = vld [vmem:[%s3396 + $0x74] sm:$0xf]
  %v3415 = vld [vmem:[%s3396 + $0x78] sm:$0xff]
  %v3416 = vld [vmem:[%s3396 + $0x80] sm:$0xff]
  %v3417 = vld [vmem:[%s3396 + $0x88] sm:$0xf]
  %v3418 = vld [vmem:[%s3396 + $0x8c] sm:$0xff]
  %v3419 = vld [vmem:[%s3396 + $0x94] sm:$0xff]
  %v3420 = vld [vmem:[%s3396 + $0x9c] sm:$0xf]
  %v3421 = vld [vmem:[%s3396 + $0xa0] sm:$0xff]
  %v3422 = vld [vmem:[%s3396 + $0xa8] sm:$0xff]
  %v3423 = vld [vmem:[%s3396 + $0xb0] sm:$0xf]
  %v3424 = vld [vmem:[%s3396 + $0xb4] sm:$0xff]
  %v3425 = vld [vmem:[%s3396 + $0xbc] sm:$0xff]
  %v3426 = vld [vmem:[%s3396 + $0xc4] sm:$0xf]
  %v3427 = vld [vmem:[%s3396 + $0xc8] sm:$0xff]
  %v3428 = vld [vmem:[%s3396 + $0xd0] sm:$0xff]
  %v3429 = vld [vmem:[%s3396 + $0xd8] sm:$0xf]
  %v3430 = vld [vmem:[%s3396 + $0xdc] sm:$0xff]
  %v3431 = vld [vmem:[%s3396 + $0xe4] sm:$0xff]
  %v3432 = vld [vmem:[%s3396 + $0xec] sm:$0xf]
  %v3433 = vld [vmem:[%s3396 + $0xf0] sm:$0xff]
  %v3434 = vld [vmem:[%s3396 + $0xf8] sm:$0xff]
  %v3435 = vld [vmem:[%s3396 + $0x100] sm:$0xf]
  %v3436 = vld [vmem:[%s3396 + $0x104] sm:$0xff]
  %v3437 = vld [vmem:[%s3396 + $0x10c] sm:$0xff]
  %v3438 = vld [vmem:[%s3396 + $0x114] sm:$0xf]
  %v3439 = vld [vmem:[%s3396 + $0x118] sm:$0xff]
  %v3440 = vld [vmem:[%s3396 + $0x120] sm:$0xff]
  %v3441 = vld [vmem:[%s3396 + $0x128] sm:$0xf]
  %v3442 = vld [vmem:[%s3396 + $0x12c] sm:$0xff]
  %v3443 = vld [vmem:[%s3396 + $0x134] sm:$0xff]
  %v3444 = vld [vmem:[%s3396 + $0x13c] sm:$0xf]
  %v3445 = vld [vmem:[%s3396 + $0x140] sm:$0xff]
  %v3446 = vld [vmem:[%s3396 + $0x148] sm:$0xff]
  %v3447 = vld [vmem:[%s3396 + $0x150] sm:$0xf]
  %v3448 = vld [vmem:[%s3396 + $0x154] sm:$0xff]
  %v3449 = vld [vmem:[%s3396 + $0x15c] sm:$0xff]
  %v3450 = vld [vmem:[%s3396 + $0x164] sm:$0xf]
  %v3451 = vld [vmem:[%s3396 + $0x168] sm:$0xff]
  %v3452 = vld [vmem:[%s3396 + $0x170] sm:$0xff]
  %v3453 = vld [vmem:[%s3396 + $0x178] sm:$0xf]
  %v3454 = vld [vmem:[%s3396 + $0x17c] sm:$0xff]
  %v3455 = vld [vmem:[%s3396 + $0x184] sm:$0xff]
  %v3456 = vld [vmem:[%s3396 + $0x18c] sm:$0xf]
  %v3457 = vld [vmem:[%s3396 + $0x190] sm:$0xff]
  %v3458 = vld [vmem:[%s3396 + $0x198] sm:$0xff]
  %v3459 = vld [vmem:[%s3396 + $0x1a0] sm:$0xf]
  %v3460 = vld [vmem:[%s3396 + $0x1a4] sm:$0xff]
  %v3461 = vld [vmem:[%s3396 + $0x1ac] sm:$0xff]
  %v3462 = vld [vmem:[%s3396 + $0x1b4] sm:$0xf]
  %v3463 = vld [vmem:[%s3396 + $0x1b8] sm:$0xff]
  %v3464 = vld [vmem:[%s3396 + $0x1c0] sm:$0xff]
  %v3465 = vld [vmem:[%s3396 + $0x1c8] sm:$0xf]
  %v3466 = vld [vmem:[%s3396 + $0x1cc] sm:$0xff]
  %v3467 = vld [vmem:[%s3396 + $0x1d4] sm:$0xff]
  %v3468 = vld [vmem:[%s3396 + $0x1dc] sm:$0xf]
  %v3469 = vld [vmem:[%s3396 + $0x1e0] sm:$0xff]
  %v3470 = vld [vmem:[%s3396 + $0x1e8] sm:$0xff]
  %v3471 = vld [vmem:[%s3396 + $0x1f0] sm:$0xf]
  %v3472 = vld [vmem:[%s3396 + $0x1f4] sm:$0xff]
  %v3473 = vld [vmem:[%s3396 + $0x1fc] sm:$0xff]
  %v3474 = vld [vmem:[%s3396 + $0x204] sm:$0xf]
  %v3475 = vld [vmem:[%s3396 + $0x208] sm:$0xff]
  %v3476 = vld [vmem:[%s3396 + $0x210] sm:$0xff]
  %v3477 = vld [vmem:[%s3396 + $0x218] sm:$0xf]
  %v3478 = vld [vmem:[%s3396 + $0x21c] sm:$0xff]
  %v3479 = vld [vmem:[%s3396 + $0x224] sm:$0xff]
  %v3480 = vld [vmem:[%s3396 + $0x22c] sm:$0xf]
  %v3481 = vld [vmem:[%s3396 + $0x230] sm:$0xff]
  %v3482 = vld [vmem:[%s3396 + $0x238] sm:$0xff]
  %v3483 = vld [vmem:[%s3396 + $0x240] sm:$0xf]
  %v3484 = vld [vmem:[%s3396 + $0x244] sm:$0xff]
  %v3485 = vld [vmem:[%s3396 + $0x24c] sm:$0xff]
  %v3486 = vld [vmem:[%s3396 + $0x254] sm:$0xf]
  %v3487 = vld [vmem:[%s3396 + $0x258] sm:$0xff]
  %v3488 = vld [vmem:[%s3396 + $0x260] sm:$0xff]
  %v3489 = vld [vmem:[%s3396 + $0x268] sm:$0xf]
  %v3490 = vld [vmem:[%s3396 + $0x26c] sm:$0xff]
  %v3491 = vld [vmem:[%s3396 + $0x274] sm:$0xff]
  %v3492 = vld [vmem:[%s3396 + $0x27c] sm:$0xf]
  %v3493 = vld [vmem:[%s3396 + $0x280] sm:$0xff]
  %v3494 = vld [vmem:[%s3396 + $0x288] sm:$0xff]
  %v3495 = vld [vmem:[%s3396 + $0x290] sm:$0xf]
  %v3496 = vld [vmem:[%s3396 + $0x294] sm:$0xff]
  %v3497 = vld [vmem:[%s3396 + $0x29c] sm:$0xff]
  %v3498 = vld [vmem:[%s3396 + $0x2a4] sm:$0xf]
  %v3499 = vld [vmem:[%s3396 + $0x2a8] sm:$0xff]
  %v3500 = vld [vmem:[%s3396 + $0x2b0] sm:$0xff]
  %v3501 = vld [vmem:[%s3396 + $0x2b8] sm:$0xf]
  %v3502 = vld [vmem:[%s3396 + $0x2bc] sm:$0xff]
  %v3503 = vld [vmem:[%s3396 + $0x2c4] sm:$0xff]
  %v3504 = vld [vmem:[%s3396 + $0x2cc] sm:$0xf]
  %v3505 = vld [vmem:[%s3396 + $0x2d0] sm:$0xff]
  %v3506 = vld [vmem:[%s3396 + $0x2d8] sm:$0xff]
  %v3507 = vld [vmem:[%s3396 + $0x2e0] sm:$0xf]
  %v3508 = vld [vmem:[%s3396 + $0x2e4] sm:$0xff]
  %v3509 = vld [vmem:[%s3396 + $0x2ec] sm:$0xff]
  %v3510 = vld [vmem:[%s3396 + $0x2f4] sm:$0xf]
  %v3511 = vld [vmem:[%s3396 + $0x2f8] sm:$0xff]
  %v3512 = vld [vmem:[%s3396 + $0x300] sm:$0xff]
  %v3513 = vld [vmem:[%s3396 + $0x308] sm:$0xf]
  %v3514 = vld [vmem:[%s3396 + $0x30c] sm:$0xff]
  %v3515 = vld [vmem:[%s3396 + $0x314] sm:$0xff]
  %v3516 = vld [vmem:[%s3396 + $0x31c] sm:$0xf]
  %v3517 = vld [vmem:[%s3396 + $0x320] sm:$0xff]
  %v3518 = vld [vmem:[%s3396 + $0x328] sm:$0xff]
  %v3519 = vld [vmem:[%s3396 + $0x330] sm:$0xf]
  %v3520 = vld [vmem:[%s3396 + $0x334] sm:$0xff]
  %v3521 = vld [vmem:[%s3396 + $0x33c] sm:$0xff]
  %v3522 = vld [vmem:[%s3396 + $0x344] sm:$0xf]
  %v3523 = vld [vmem:[%s3396 + $0x348] sm:$0xff]
  %v3524 = vld [vmem:[%s3396 + $0x350] sm:$0xff]
  %v3525 = vld [vmem:[%s3396 + $0x358] sm:$0xf]
  %v3526 = vld [vmem:[%s3396 + $0x35c] sm:$0xff]
  %v3527 = vld [vmem:[%s3396 + $0x364] sm:$0xff]
  %v3528 = vld [vmem:[%s3396 + $0x36c] sm:$0xf]
  %v3529 = vld [vmem:[%s3396 + $0x370] sm:$0xff]
  %v3530 = vld [vmem:[%s3396 + $0x378] sm:$0xff]
  %v3531 = vld [vmem:[%s3396 + $0x380] sm:$0xf]
  %v3532 = vld [vmem:[%s3396 + $0x384] sm:$0xff]
  %v3533 = vld [vmem:[%s3396 + $0x38c] sm:$0xff]
  %v3534 = vld [vmem:[%s3396 + $0x394] sm:$0xf]
  %v3535 = vld [vmem:[%s3396 + $0x398] sm:$0xff]
  %v3536 = vld [vmem:[%s3396 + $0x3a0] sm:$0xff]
  %v3537 = vld [vmem:[%s3396 + $0x3a8] sm:$0xf]
  %v3538 = vld [vmem:[%s3396 + $0x3ac] sm:$0xff]
  %v3539 = vld [vmem:[%s3396 + $0x3b4] sm:$0xff]
  %v3540 = vld [vmem:[%s3396 + $0x3bc] sm:$0xf]
  %v3541 = vld [vmem:[%s3396 + $0x3c0] sm:$0xff]
  %v3542 = vld [vmem:[%s3396 + $0x3c8] sm:$0xff]
  %v3543 = vld [vmem:[%s3396 + $0x3d0] sm:$0xf]
  %v3544 = vld [vmem:[%s3396 + $0x3d4] sm:$0xff]
  %v3545 = vld [vmem:[%s3396 + $0x3dc] sm:$0xff]
  %v3546 = vld [vmem:[%s3396 + $0x3e4] sm:$0xf]
  %v3547 = vld [vmem:[%s3396 + $0x3e8] sm:$0xff]
  %v3548 = vld [vmem:[%s3396 + $0x3f0] sm:$0xff]
  %v3549 = vld [vmem:[%s3396 + $0x3f8] sm:$0xf]
  %v3550 = vld [vmem:[%s3396 + $0x3fc] sm:$0xff]
  %v3551 = vld [vmem:[%s3396 + $0x404] sm:$0xff]
  %v3552 = vld [vmem:[%s3396 + $0x40c] sm:$0xf]
  %v3553 = vld [vmem:[%s3396 + $0x410] sm:$0xff]
  %v3554 = vld [vmem:[%s3396 + $0x418] sm:$0xff]
  %v3555 = vld [vmem:[%s3396 + $0x420] sm:$0xf]
  %v3556 = vld [vmem:[%s3396 + $0x424] sm:$0xff]
  %v3557 = vld [vmem:[%s3396 + $0x42c] sm:$0xff]
  %v3558 = vld [vmem:[%s3396 + $0x434] sm:$0xf]
  %v3559 = vld [vmem:[%s3396 + $0x438] sm:$0xff]
  %v3560 = vld [vmem:[%s3396 + $0x440] sm:$0xff]
  %v3561 = vld [vmem:[%s3396 + $0x448] sm:$0xf]
  %v3562 = vld [vmem:[%s3396 + $0x44c] sm:$0xff]
  %v3563 = vld [vmem:[%s3396 + $0x454] sm:$0xff]
  %v3564 = vld [vmem:[%s3396 + $0x45c] sm:$0xf]
  %v3565 = vld [vmem:[%s3396 + $0x460] sm:$0xff]
  %v3566 = vld [vmem:[%s3396 + $0x468] sm:$0xff]
  %v3567 = vld [vmem:[%s3396 + $0x470] sm:$0xf]
  %v3568 = vld [vmem:[%s3396 + $0x474] sm:$0xff]
  %v3569 = vld [vmem:[%s3396 + $0x47c] sm:$0xff]
  %v3570 = vld [vmem:[%s3396 + $0x484] sm:$0xf]
  %v3571 = vld [vmem:[%s3396 + $0x488] sm:$0xff]
  %v3572 = vld [vmem:[%s3396 + $0x490] sm:$0xff]
  %v3573 = vld [vmem:[%s3396 + $0x498] sm:$0xf]
  %v3574 = vld [vmem:[%s3396 + $0x49c] sm:$0xff]
  %v3575 = vld [vmem:[%s3396 + $0x4a4] sm:$0xff]
  %v3576 = vld [vmem:[%s3396 + $0x4ac] sm:$0xf]
  %v3577 = vld [vmem:[%s3396 + $0x4b0] sm:$0xff]
  %v3578 = vld [vmem:[%s3396 + $0x4b8] sm:$0xff]
  %v3579 = vld [vmem:[%s3396 + $0x4c0] sm:$0xf]
  %v3580 = vld [vmem:[%s3396 + $0x4c4] sm:$0xff]
  %v3581 = vld [vmem:[%s3396 + $0x4cc] sm:$0xff]
  %v3582 = vld [vmem:[%s3396 + $0x4d4] sm:$0xf]
  %v3583 = vld [vmem:[%s3396 + $0x4d8] sm:$0xff]
  %v3584 = vld [vmem:[%s3396 + $0x4e0] sm:$0xff]
  %v3585 = vld [vmem:[%s3396 + $0x4e8] sm:$0xf]
  %v3586 = vld [vmem:[%s3396 + $0x4ec] sm:$0xff]
  %v3587 = vld [vmem:[%s3396 + $0x4f4] sm:$0xff]
  %v3588 = vld [vmem:[%s3396 + $0x4fc] sm:$0xf]
  %v3589 = vld [vmem:[%s3396 + $0x500] sm:$0xff]
  %v3590 = vld [vmem:[%s3396 + $0x508] sm:$0xff]
  %v3591 = vld [vmem:[%s3396 + $0x510] sm:$0xf]
  %v3592 = vld [vmem:[%s3396 + $0x514] sm:$0xff]
  %v3593 = vld [vmem:[%s3396 + $0x51c] sm:$0xff]
  %v3594 = vld [vmem:[%s3396 + $0x524] sm:$0xf]
  %v3595 = vld [vmem:[%s3396 + $0x528] sm:$0xff]
  %v3596 = vld [vmem:[%s3396 + $0x530] sm:$0xff]
  %v3597 = vld [vmem:[%s3396 + $0x538] sm:$0xf]
  %v3598 = vld [vmem:[%s3396 + $0x53c] sm:$0xff]
  %v3599 = vld [vmem:[%s3396 + $0x544] sm:$0xff]
  %v3600 = vld [vmem:[%s3396 + $0x54c] sm:$0xf]
  %v3601 = vld [vmem:[%s3396 + $0x550] sm:$0xff]
  %v3602 = vld [vmem:[%s3396 + $0x558] sm:$0xff]
  %v3603 = vld [vmem:[%s3396 + $0x560] sm:$0xf]
  %v3604 = vld [vmem:[%s3396 + $0x564] sm:$0xff]
  %v3605 = vld [vmem:[%s3396 + $0x56c] sm:$0xff]
  %v3606 = vld [vmem:[%s3396 + $0x574] sm:$0xf]
  %v3607 = vld [vmem:[%s3396 + $0x578] sm:$0xff]
  %v3608 = vld [vmem:[%s3396 + $0x580] sm:$0xff]
  %v3609 = vld [vmem:[%s3396 + $0x588] sm:$0xf]
  %v3610 = vld [vmem:[%s3396 + $0x58c] sm:$0xff]
  %v3611 = vld [vmem:[%s3396 + $0x594] sm:$0xff]
  %v3612 = vld [vmem:[%s3396 + $0x59c] sm:$0xf]
  %v3613 = vld [vmem:[%s3396 + $0x5a0] sm:$0xff]
  %v3614 = vld [vmem:[%s3396 + $0x5a8] sm:$0xff]
  %v3615 = vld [vmem:[%s3396 + $0x5b0] sm:$0xf]
  %v3616 = vld [vmem:[%s3396 + $0x5b4] sm:$0xff]
  %v3617 = vld [vmem:[%s3396 + $0x5bc] sm:$0xff]
  %v3618 = vld [vmem:[%s3396 + $0x5c4] sm:$0xf]
  %v3619 = vld [vmem:[%s3396 + $0x5c8] sm:$0xff]
  %v3620 = vld [vmem:[%s3396 + $0x5d0] sm:$0xff]
  %v3621 = vld [vmem:[%s3396 + $0x5d8] sm:$0xf]
  %v3622 = vld [vmem:[%s3396 + $0x5dc] sm:$0xff]
  %v3623 = vld [vmem:[%s3396 + $0x5e4] sm:$0xff]
  %v3624 = vld [vmem:[%s3396 + $0x5ec] sm:$0xf]
  %v3625 = vld [vmem:[%s3396 + $0x5f0] sm:$0xff]
  %v3626 = vld [vmem:[%s3396 + $0x5f8] sm:$0xff]
  %v3627 = vld [vmem:[%s3396 + $0x600] sm:$0xf]
  %v3628 = vld [vmem:[%s3396 + $0x604] sm:$0xff]
  %v3629 = vld [vmem:[%s3396 + $0x60c] sm:$0xff]
  %v3630 = vld [vmem:[%s3396 + $0x614] sm:$0xf]
  %v3631 = vld [vmem:[%s3396 + $0x618] sm:$0xff]
  %v3632 = vld [vmem:[%s3396 + $0x620] sm:$0xff]
  %v3633 = vld [vmem:[%s3396 + $0x628] sm:$0xf]
  %v3634 = vld [vmem:[%s3396 + $0x62c] sm:$0xff]
  %v3635 = vld [vmem:[%s3396 + $0x634] sm:$0xff]
  %v3636 = vld [vmem:[%s3396 + $0x63c] sm:$0xf]
  %v3640 = vunpack.c.l.b16 %v3393
  %v3641 = vunpack.c.h.b16 %v3393
  %v3642 = vunpack.c.l.b16 %v3394
  %v3643 = vunpack.c.h.b16 %v3394
  %v3644 = vunpack.c.l.b16 %v3395
  %v3645 = vpack.c.b16 %v3640, %v3640
  %v3646 = vpack.c.b16 %v3641, %v3641
  %v3647 = vpack.c.b16 %v3642, %v3642
  %v3648 = vpack.c.b16 %v3643, %v3643
  %v3649 = vpack.c.b16 %v3644, %v3644
  %v3895 = vunpack.c.l.b16 %v3397
  %v3896 = vunpack.c.h.b16 %v3397
  %v3897 = vunpack.c.l.b16 %v3398
  %v3898 = vunpack.c.h.b16 %v3398
  %v3899 = vunpack.c.l.b16 %v3399
  %v3900 = vunpack.c.l.b16 %v3400
  %v3901 = vunpack.c.h.b16 %v3400
  %v3902 = vunpack.c.l.b16 %v3401
  %v3903 = vunpack.c.h.b16 %v3401
  %v3904 = vunpack.c.l.b16 %v3402
  %v3905 = vunpack.c.l.b16 %v3403
  %v3906 = vunpack.c.h.b16 %v3403
  %v3907 = vunpack.c.l.b16 %v3404
  %v3908 = vunpack.c.h.b16 %v3404
  %v3909 = vunpack.c.l.b16 %v3405
  %v3910 = vunpack.c.l.b16 %v3406
  %v3911 = vunpack.c.h.b16 %v3406
  %v3912 = vunpack.c.l.b16 %v3407
  %v3913 = vunpack.c.h.b16 %v3407
  %v3914 = vunpack.c.l.b16 %v3408
  %v3915 = vunpack.c.l.b16 %v3409
  %v3916 = vunpack.c.h.b16 %v3409
  %v3917 = vunpack.c.l.b16 %v3410
  %v3918 = vunpack.c.h.b16 %v3410
  %v3919 = vunpack.c.l.b16 %v3411
  %v3920 = vunpack.c.l.b16 %v3412
  %v3921 = vunpack.c.h.b16 %v3412
  %v3922 = vunpack.c.l.b16 %v3413
  %v3923 = vunpack.c.h.b16 %v3413
  %v3924 = vunpack.c.l.b16 %v3414
  %v3925 = vunpack.c.l.b16 %v3415
  %v3926 = vunpack.c.h.b16 %v3415
  %v3927 = vunpack.c.l.b16 %v3416
  %v3928 = vunpack.c.h.b16 %v3416
  %v3929 = vunpack.c.l.b16 %v3417
  %v3930 = vunpack.c.l.b16 %v3418
  %v3931 = vunpack.c.h.b16 %v3418
  %v3932 = vunpack.c.l.b16 %v3419
  %v3933 = vunpack.c.h.b16 %v3419
  %v3934 = vunpack.c.l.b16 %v3420
  %v3935 = vunpack.c.l.b16 %v3421
  %v3936 = vunpack.c.h.b16 %v3421
  %v3937 = vunpack.c.l.b16 %v3422
  %v3938 = vunpack.c.h.b16 %v3422
  %v3939 = vunpack.c.l.b16 %v3423
  %v3940 = vunpack.c.l.b16 %v3424
  %v3941 = vunpack.c.h.b16 %v3424
  %v3942 = vunpack.c.l.b16 %v3425
  %v3943 = vunpack.c.h.b16 %v3425
  %v3944 = vunpack.c.l.b16 %v3426
  %v3945 = vunpack.c.l.b16 %v3427
  %v3946 = vunpack.c.h.b16 %v3427
  %v3947 = vunpack.c.l.b16 %v3428
  %v3948 = vunpack.c.h.b16 %v3428
  %v3949 = vunpack.c.l.b16 %v3429
  %v3950 = vunpack.c.l.b16 %v3430
  %v3951 = vunpack.c.h.b16 %v3430
  %v3952 = vunpack.c.l.b16 %v3431
  %v3953 = vunpack.c.h.b16 %v3431
  %v3954 = vunpack.c.l.b16 %v3432
  %v3955 = vunpack.c.l.b16 %v3433
  %v3956 = vunpack.c.h.b16 %v3433
  %v3957 = vunpack.c.l.b16 %v3434
  %v3958 = vunpack.c.h.b16 %v3434
  %v3959 = vunpack.c.l.b16 %v3435
  %v3960 = vunpack.c.l.b16 %v3436
  %v3961 = vunpack.c.h.b16 %v3436
  %v3962 = vunpack.c.l.b16 %v3437
  %v3963 = vunpack.c.h.b16 %v3437
  %v3964 = vunpack.c.l.b16 %v3438
  %v3965 = vunpack.c.l.b16 %v3439
  %v3966 = vunpack.c.h.b16 %v3439
  %v3967 = vunpack.c.l.b16 %v3440
  %v3968 = vunpack.c.h.b16 %v3440
  %v3969 = vunpack.c.l.b16 %v3441
  %v3970 = vunpack.c.l.b16 %v3442
  %v3971 = vunpack.c.h.b16 %v3442
  %v3972 = vunpack.c.l.b16 %v3443
  %v3973 = vunpack.c.h.b16 %v3443
  %v3974 = vunpack.c.l.b16 %v3444
  %v3975 = vunpack.c.l.b16 %v3445
  %v3976 = vunpack.c.h.b16 %v3445
  %v3977 = vunpack.c.l.b16 %v3446
  %v3978 = vunpack.c.h.b16 %v3446
  %v3979 = vunpack.c.l.b16 %v3447
  %v3980 = vunpack.c.l.b16 %v3448
  %v3981 = vunpack.c.h.b16 %v3448
  %v3982 = vunpack.c.l.b16 %v3449
  %v3983 = vunpack.c.h.b16 %v3449
  %v3984 = vunpack.c.l.b16 %v3450
  %v3985 = vunpack.c.l.b16 %v3451
  %v3986 = vunpack.c.h.b16 %v3451
  %v3987 = vunpack.c.l.b16 %v3452
  %v3988 = vunpack.c.h.b16 %v3452
  %v3989 = vunpack.c.l.b16 %v3453
  %v3990 = vunpack.c.l.b16 %v3454
  %v3991 = vunpack.c.h.b16 %v3454
  %v3992 = vunpack.c.l.b16 %v3455
  %v3993 = vunpack.c.h.b16 %v3455
  %v3994 = vunpack.c.l.b16 %v3456
  %v3995 = vunpack.c.l.b16 %v3457
  %v3996 = vunpack.c.h.b16 %v3457
  %v3997 = vunpack.c.l.b16 %v3458
  %v3998 = vunpack.c.h.b16 %v3458
  %v3999 = vunpack.c.l.b16 %v3459
  %v4000 = vunpack.c.l.b16 %v3460
  %v4001 = vunpack.c.h.b16 %v3460
  %v4002 = vunpack.c.l.b16 %v3461
  %v4003 = vunpack.c.h.b16 %v3461
  %v4004 = vunpack.c.l.b16 %v3462
  %v4005 = vunpack.c.l.b16 %v3463
  %v4006 = vunpack.c.h.b16 %v3463
  %v4007 = vunpack.c.l.b16 %v3464
  %v4008 = vunpack.c.h.b16 %v3464
  %v4009 = vunpack.c.l.b16 %v3465
  %v4010 = vunpack.c.l.b16 %v3466
  %v4011 = vunpack.c.h.b16 %v3466
  %v4012 = vunpack.c.l.b16 %v3467
  %v4013 = vunpack.c.h.b16 %v3467
  %v4014 = vunpack.c.l.b16 %v3468
  %v4015 = vunpack.c.l.b16 %v3469
  %v4016 = vunpack.c.h.b16 %v3469
  %v4017 = vunpack.c.l.b16 %v3470
  %v4018 = vunpack.c.h.b16 %v3470
  %v4019 = vunpack.c.l.b16 %v3471
  %v4020 = vunpack.c.l.b16 %v3472
  %v4021 = vunpack.c.h.b16 %v3472
  %v4022 = vunpack.c.l.b16 %v3473
  %v4023 = vunpack.c.h.b16 %v3473
  %v4024 = vunpack.c.l.b16 %v3474
  %v4025 = vunpack.c.l.b16 %v3475
  %v4026 = vunpack.c.h.b16 %v3475
  %v4027 = vunpack.c.l.b16 %v3476
  %v4028 = vunpack.c.h.b16 %v3476
  %v4029 = vunpack.c.l.b16 %v3477
  %v4030 = vunpack.c.l.b16 %v3478
  %v4031 = vunpack.c.h.b16 %v3478
  %v4032 = vunpack.c.l.b16 %v3479
  %v4033 = vunpack.c.h.b16 %v3479
  %v4034 = vunpack.c.l.b16 %v3480
  %v4035 = vunpack.c.l.b16 %v3481
  %v4036 = vunpack.c.h.b16 %v3481
  %v4037 = vunpack.c.l.b16 %v3482
  %v4038 = vunpack.c.h.b16 %v3482
  %v4039 = vunpack.c.l.b16 %v3483
  %v4040 = vunpack.c.l.b16 %v3484
  %v4041 = vunpack.c.h.b16 %v3484
  %v4042 = vunpack.c.l.b16 %v3485
  %v4043 = vunpack.c.h.b16 %v3485
  %v4044 = vunpack.c.l.b16 %v3486
  %v4045 = vunpack.c.l.b16 %v3487
  %v4046 = vunpack.c.h.b16 %v3487
  %v4047 = vunpack.c.l.b16 %v3488
  %v4048 = vunpack.c.h.b16 %v3488
  %v4049 = vunpack.c.l.b16 %v3489
  %v4050 = vunpack.c.l.b16 %v3490
  %v4051 = vunpack.c.h.b16 %v3490
  %v4052 = vunpack.c.l.b16 %v3491
  %v4053 = vunpack.c.h.b16 %v3491
  %v4054 = vunpack.c.l.b16 %v3492
  %v4055 = vunpack.c.l.b16 %v3493
  %v4056 = vunpack.c.h.b16 %v3493
  %v4057 = vunpack.c.l.b16 %v3494
  %v4058 = vunpack.c.h.b16 %v3494
  %v4059 = vunpack.c.l.b16 %v3495
  %v4060 = vunpack.c.l.b16 %v3496
  %v4061 = vunpack.c.h.b16 %v3496
  %v4062 = vunpack.c.l.b16 %v3497
  %v4063 = vunpack.c.h.b16 %v3497
  %v4064 = vunpack.c.l.b16 %v3498
  %v4065 = vunpack.c.l.b16 %v3499
  %v4066 = vunpack.c.h.b16 %v3499
  %v4067 = vunpack.c.l.b16 %v3500
  %v4068 = vunpack.c.h.b16 %v3500
  %v4069 = vunpack.c.l.b16 %v3501
  %v4070 = vunpack.c.l.b16 %v3502
  %v4071 = vunpack.c.h.b16 %v3502
  %v4072 = vunpack.c.l.b16 %v3503
  %v4073 = vunpack.c.h.b16 %v3503
  %v4074 = vunpack.c.l.b16 %v3504
  %v4075 = vunpack.c.l.b16 %v3505
  %v4076 = vunpack.c.h.b16 %v3505
  %v4077 = vunpack.c.l.b16 %v3506
  %v4078 = vunpack.c.h.b16 %v3506
  %v4079 = vunpack.c.l.b16 %v3507
  %v4080 = vunpack.c.l.b16 %v3508
  %v4081 = vunpack.c.h.b16 %v3508
  %v4082 = vunpack.c.l.b16 %v3509
  %v4083 = vunpack.c.h.b16 %v3509
  %v4084 = vunpack.c.l.b16 %v3510
  %v4085 = vunpack.c.l.b16 %v3511
  %v4086 = vunpack.c.h.b16 %v3511
  %v4087 = vunpack.c.l.b16 %v3512
  %v4088 = vunpack.c.h.b16 %v3512
  %v4089 = vunpack.c.l.b16 %v3513
  %v4090 = vunpack.c.l.b16 %v3514
  %v4091 = vunpack.c.h.b16 %v3514
  %v4092 = vunpack.c.l.b16 %v3515
  %v4093 = vunpack.c.h.b16 %v3515
  %v4094 = vunpack.c.l.b16 %v3516
  %v4095 = vunpack.c.l.b16 %v3517
  %v4096 = vunpack.c.h.b16 %v3517
  %v4097 = vunpack.c.l.b16 %v3518
  %v4098 = vunpack.c.h.b16 %v3518
  %v4099 = vunpack.c.l.b16 %v3519
  %v4100 = vunpack.c.l.b16 %v3520
  %v4101 = vunpack.c.h.b16 %v3520
  %v4102 = vunpack.c.l.b16 %v3521
  %v4103 = vunpack.c.h.b16 %v3521
  %v4104 = vunpack.c.l.b16 %v3522
  %v4105 = vunpack.c.l.b16 %v3523
  %v4106 = vunpack.c.h.b16 %v3523
  %v4107 = vunpack.c.l.b16 %v3524
  %v4108 = vunpack.c.h.b16 %v3524
  %v4109 = vunpack.c.l.b16 %v3525
  %v4110 = vunpack.c.l.b16 %v3526
  %v4111 = vunpack.c.h.b16 %v3526
  %v4112 = vunpack.c.l.b16 %v3527
  %v4113 = vunpack.c.h.b16 %v3527
  %v4114 = vunpack.c.l.b16 %v3528
  %v4115 = vunpack.c.l.b16 %v3529
  %v4116 = vunpack.c.h.b16 %v3529
  %v4117 = vunpack.c.l.b16 %v3530
  %v4118 = vunpack.c.h.b16 %v3530
  %v4119 = vunpack.c.l.b16 %v3531
  %v4120 = vunpack.c.l.b16 %v3532
  %v4121 = vunpack.c.h.b16 %v3532
  %v4122 = vunpack.c.l.b16 %v3533
  %v4123 = vunpack.c.h.b16 %v3533
  %v4124 = vunpack.c.l.b16 %v3534
  %v4125 = vunpack.c.l.b16 %v3535
  %v4126 = vunpack.c.h.b16 %v3535
  %v4127 = vunpack.c.l.b16 %v3536
  %v4128 = vunpack.c.h.b16 %v3536
  %v4129 = vunpack.c.l.b16 %v3537
  %v4130 = vunpack.c.l.b16 %v3538
  %v4131 = vunpack.c.h.b16 %v3538
  %v4132 = vunpack.c.l.b16 %v3539
  %v4133 = vunpack.c.h.b16 %v3539
  %v4134 = vunpack.c.l.b16 %v3540
  %v4135 = vunpack.c.l.b16 %v3541
  %v4136 = vunpack.c.h.b16 %v3541
  %v4137 = vunpack.c.l.b16 %v3542
  %v4138 = vunpack.c.h.b16 %v3542
  %v4139 = vunpack.c.l.b16 %v3543
  %v4140 = vunpack.c.l.b16 %v3544
  %v4141 = vunpack.c.h.b16 %v3544
  %v4142 = vunpack.c.l.b16 %v3545
  %v4143 = vunpack.c.h.b16 %v3545
  %v4144 = vunpack.c.l.b16 %v3546
  %v4145 = vunpack.c.l.b16 %v3547
  %v4146 = vunpack.c.h.b16 %v3547
  %v4147 = vunpack.c.l.b16 %v3548
  %v4148 = vunpack.c.h.b16 %v3548
  %v4149 = vunpack.c.l.b16 %v3549
  %v4150 = vunpack.c.l.b16 %v3550
  %v4151 = vunpack.c.h.b16 %v3550
  %v4152 = vunpack.c.l.b16 %v3551
  %v4153 = vunpack.c.h.b16 %v3551
  %v4154 = vunpack.c.l.b16 %v3552
  %v4155 = vunpack.c.l.b16 %v3553
  %v4156 = vunpack.c.h.b16 %v3553
  %v4157 = vunpack.c.l.b16 %v3554
  %v4158 = vunpack.c.h.b16 %v3554
  %v4159 = vunpack.c.l.b16 %v3555
  %v4160 = vunpack.c.l.b16 %v3556
  %v4161 = vunpack.c.h.b16 %v3556
  %v4162 = vunpack.c.l.b16 %v3557
  %v4163 = vunpack.c.h.b16 %v3557
  %v4164 = vunpack.c.l.b16 %v3558
  %v4165 = vunpack.c.l.b16 %v3559
  %v4166 = vunpack.c.h.b16 %v3559
  %v4167 = vunpack.c.l.b16 %v3560
  %v4168 = vunpack.c.h.b16 %v3560
  %v4169 = vunpack.c.l.b16 %v3561
  %v4170 = vunpack.c.l.b16 %v3562
  %v4171 = vunpack.c.h.b16 %v3562
  %v4172 = vunpack.c.l.b16 %v3563
  %v4173 = vunpack.c.h.b16 %v3563
  %v4174 = vunpack.c.l.b16 %v3564
  %v4175 = vunpack.c.l.b16 %v3565
  %v4176 = vunpack.c.h.b16 %v3565
  %v4177 = vunpack.c.l.b16 %v3566
  %v4178 = vunpack.c.h.b16 %v3566
  %v4179 = vunpack.c.l.b16 %v3567
  %v4180 = vunpack.c.l.b16 %v3568
  %v4181 = vunpack.c.h.b16 %v3568
  %v4182 = vunpack.c.l.b16 %v3569
  %v4183 = vunpack.c.h.b16 %v3569
  %v4184 = vunpack.c.l.b16 %v3570
  %v4185 = vunpack.c.l.b16 %v3571
  %v4186 = vunpack.c.h.b16 %v3571
  %v4187 = vunpack.c.l.b16 %v3572
  %v4188 = vunpack.c.h.b16 %v3572
  %v4189 = vunpack.c.l.b16 %v3573
  %v4190 = vunpack.c.l.b16 %v3574
  %v4191 = vunpack.c.h.b16 %v3574
  %v4192 = vunpack.c.l.b16 %v3575
  %v4193 = vunpack.c.h.b16 %v3575
  %v4194 = vunpack.c.l.b16 %v3576
  %v4195 = vunpack.c.l.b16 %v3577
  %v4196 = vunpack.c.h.b16 %v3577
  %v4197 = vunpack.c.l.b16 %v3578
  %v4198 = vunpack.c.h.b16 %v3578
  %v4199 = vunpack.c.l.b16 %v3579
  %v4200 = vunpack.c.l.b16 %v3580
  %v4201 = vunpack.c.h.b16 %v3580
  %v4202 = vunpack.c.l.b16 %v3581
  %v4203 = vunpack.c.h.b16 %v3581
  %v4204 = vunpack.c.l.b16 %v3582
  %v4205 = vunpack.c.l.b16 %v3583
  %v4206 = vunpack.c.h.b16 %v3583
  %v4207 = vunpack.c.l.b16 %v3584
  %v4208 = vunpack.c.h.b16 %v3584
  %v4209 = vunpack.c.l.b16 %v3585
  %v4210 = vunpack.c.l.b16 %v3586
  %v4211 = vunpack.c.h.b16 %v3586
  %v4212 = vunpack.c.l.b16 %v3587
  %v4213 = vunpack.c.h.b16 %v3587
  %v4214 = vunpack.c.l.b16 %v3588
  %v4215 = vunpack.c.l.b16 %v3589
  %v4216 = vunpack.c.h.b16 %v3589
  %v4217 = vunpack.c.l.b16 %v3590
  %v4218 = vunpack.c.h.b16 %v3590
  %v4219 = vunpack.c.l.b16 %v3591
  %v4220 = vunpack.c.l.b16 %v3592
  %v4221 = vunpack.c.h.b16 %v3592
  %v4222 = vunpack.c.l.b16 %v3593
  %v4223 = vunpack.c.h.b16 %v3593
  %v4224 = vunpack.c.l.b16 %v3594
  %v4225 = vunpack.c.l.b16 %v3595
  %v4226 = vunpack.c.h.b16 %v3595
  %v4227 = vunpack.c.l.b16 %v3596
  %v4228 = vunpack.c.h.b16 %v3596
  %v4229 = vunpack.c.l.b16 %v3597
  %v4230 = vunpack.c.l.b16 %v3598
  %v4231 = vunpack.c.h.b16 %v3598
  %v4232 = vunpack.c.l.b16 %v3599
  %v4233 = vunpack.c.h.b16 %v3599
  %v4234 = vunpack.c.l.b16 %v3600
  %v4235 = vunpack.c.l.b16 %v3601
  %v4236 = vunpack.c.h.b16 %v3601
  %v4237 = vunpack.c.l.b16 %v3602
  %v4238 = vunpack.c.h.b16 %v3602
  %v4239 = vunpack.c.l.b16 %v3603
  %v4240 = vunpack.c.l.b16 %v3604
  %v4241 = vunpack.c.h.b16 %v3604
  %v4242 = vunpack.c.l.b16 %v3605
  %v4243 = vunpack.c.h.b16 %v3605
  %v4244 = vunpack.c.l.b16 %v3606
  %v4245 = vunpack.c.l.b16 %v3607
  %v4246 = vunpack.c.h.b16 %v3607
  %v4247 = vunpack.c.l.b16 %v3608
  %v4248 = vunpack.c.h.b16 %v3608
  %v4249 = vunpack.c.l.b16 %v3609
  %v4250 = vunpack.c.l.b16 %v3610
  %v4251 = vunpack.c.h.b16 %v3610
  %v4252 = vunpack.c.l.b16 %v3611
  %v4253 = vunpack.c.h.b16 %v3611
  %v4254 = vunpack.c.l.b16 %v3612
  %v4255 = vunpack.c.l.b16 %v3613
  %v4256 = vunpack.c.h.b16 %v3613
  %v4257 = vunpack.c.l.b16 %v3614
  %v4258 = vunpack.c.h.b16 %v3614
  %v4259 = vunpack.c.l.b16 %v3615
  %v4260 = vunpack.c.l.b16 %v3616
  %v4261 = vunpack.c.h.b16 %v3616
  %v4262 = vunpack.c.l.b16 %v3617
  %v4263 = vunpack.c.h.b16 %v3617
  %v4264 = vunpack.c.l.b16 %v3618
  %v4265 = vunpack.c.l.b16 %v3619
  %v4266 = vunpack.c.h.b16 %v3619
  %v4267 = vunpack.c.l.b16 %v3620
  %v4268 = vunpack.c.h.b16 %v3620
  %v4269 = vunpack.c.l.b16 %v3621
  %v4270 = vunpack.c.l.b16 %v3622
  %v4271 = vunpack.c.h.b16 %v3622
  %v4272 = vunpack.c.l.b16 %v3623
  %v4273 = vunpack.c.h.b16 %v3623
  %v4274 = vunpack.c.l.b16 %v3624
  %v4275 = vunpack.c.l.b16 %v3625
  %v4276 = vunpack.c.h.b16 %v3625
  %v4277 = vunpack.c.l.b16 %v3626
  %v4278 = vunpack.c.h.b16 %v3626
  %v4279 = vunpack.c.l.b16 %v3627
  %v4280 = vunpack.c.l.b16 %v3628
  %v4281 = vunpack.c.h.b16 %v3628
  %v4282 = vunpack.c.l.b16 %v3629
  %v4283 = vunpack.c.h.b16 %v3629
  %v4284 = vunpack.c.l.b16 %v3630
  %v4285 = vunpack.c.l.b16 %v3631
  %v4286 = vunpack.c.h.b16 %v3631
  %v4287 = vunpack.c.l.b16 %v3632
  %v4288 = vunpack.c.h.b16 %v3632
  %v4289 = vunpack.c.l.b16 %v3633
  %v4290 = vunpack.c.l.b16 %v3634
  %v4291 = vunpack.c.h.b16 %v3634
  %v4292 = vunpack.c.l.b16 %v3635
  %v4293 = vunpack.c.h.b16 %v3635
  %v4294 = vunpack.c.l.b16 %v3636
  %v4295 = vpack.c.b16 %v3900, %v3895
  %v4296 = vpack.c.b16 %v3901, %v3896
  %v4297 = vpack.c.b16 %v3902, %v3897
  %v4298 = vpack.c.b16 %v3903, %v3898
  %v4299 = vpack.c.b16 %v3904, %v3899
  %v4300 = vpack.c.b16 %v3910, %v3905
  %v4301 = vpack.c.b16 %v3911, %v3906
  %v4302 = vpack.c.b16 %v3912, %v3907
  %v4303 = vpack.c.b16 %v3913, %v3908
  %v4304 = vpack.c.b16 %v3914, %v3909
  %v4305 = vpack.c.b16 %v3920, %v3915
  %v4306 = vpack.c.b16 %v3921, %v3916
  %v4307 = vpack.c.b16 %v3922, %v3917
  %v4308 = vpack.c.b16 %v3923, %v3918
  %v4309 = vpack.c.b16 %v3924, %v3919
  %v4310 = vpack.c.b16 %v3930, %v3925
  %v4311 = vpack.c.b16 %v3931, %v3926
  %v4312 = vpack.c.b16 %v3932, %v3927
  %v4313 = vpack.c.b16 %v3933, %v3928
  %v4314 = vpack.c.b16 %v3934, %v3929
  %v4315 = vpack.c.b16 %v3940, %v3935
  %v4316 = vpack.c.b16 %v3941, %v3936
  %v4317 = vpack.c.b16 %v3942, %v3937
  %v4318 = vpack.c.b16 %v3943, %v3938
  %v4319 = vpack.c.b16 %v3944, %v3939
  %v4320 = vpack.c.b16 %v3950, %v3945
  %v4321 = vpack.c.b16 %v3951, %v3946
  %v4322 = vpack.c.b16 %v3952, %v3947
  %v4323 = vpack.c.b16 %v3953, %v3948
  %v4324 = vpack.c.b16 %v3954, %v3949
  %v4325 = vpack.c.b16 %v3960, %v3955
  %v4326 = vpack.c.b16 %v3961, %v3956
  %v4327 = vpack.c.b16 %v3962, %v3957
  %v4328 = vpack.c.b16 %v3963, %v3958
  %v4329 = vpack.c.b16 %v3964, %v3959
  %v4330 = vpack.c.b16 %v3970, %v3965
  %v4331 = vpack.c.b16 %v3971, %v3966
  %v4332 = vpack.c.b16 %v3972, %v3967
  %v4333 = vpack.c.b16 %v3973, %v3968
  %v4334 = vpack.c.b16 %v3974, %v3969
  %v4335 = vpack.c.b16 %v3980, %v3975
  %v4336 = vpack.c.b16 %v3981, %v3976
  %v4337 = vpack.c.b16 %v3982, %v3977
  %v4338 = vpack.c.b16 %v3983, %v3978
  %v4339 = vpack.c.b16 %v3984, %v3979
  %v4340 = vpack.c.b16 %v3990, %v3985
  %v4341 = vpack.c.b16 %v3991, %v3986
  %v4342 = vpack.c.b16 %v3992, %v3987
  %v4343 = vpack.c.b16 %v3993, %v3988
  %v4344 = vpack.c.b16 %v3994, %v3989
  %v4345 = vpack.c.b16 %v4000, %v3995
  %v4346 = vpack.c.b16 %v4001, %v3996
  %v4347 = vpack.c.b16 %v4002, %v3997
  %v4348 = vpack.c.b16 %v4003, %v3998
  %v4349 = vpack.c.b16 %v4004, %v3999
  %v4350 = vpack.c.b16 %v4010, %v4005
  %v4351 = vpack.c.b16 %v4011, %v4006
  %v4352 = vpack.c.b16 %v4012, %v4007
  %v4353 = vpack.c.b16 %v4013, %v4008
  %v4354 = vpack.c.b16 %v4014, %v4009
  %v4355 = vpack.c.b16 %v4020, %v4015
  %v4356 = vpack.c.b16 %v4021, %v4016
  %v4357 = vpack.c.b16 %v4022, %v4017
  %v4358 = vpack.c.b16 %v4023, %v4018
  %v4359 = vpack.c.b16 %v4024, %v4019
  %v4360 = vpack.c.b16 %v4030, %v4025
  %v4361 = vpack.c.b16 %v4031, %v4026
  %v4362 = vpack.c.b16 %v4032, %v4027
  %v4363 = vpack.c.b16 %v4033, %v4028
  %v4364 = vpack.c.b16 %v4034, %v4029
  %v4365 = vpack.c.b16 %v4040, %v4035
  %v4366 = vpack.c.b16 %v4041, %v4036
  %v4367 = vpack.c.b16 %v4042, %v4037
  %v4368 = vpack.c.b16 %v4043, %v4038
  %v4369 = vpack.c.b16 %v4044, %v4039
  %v4370 = vpack.c.b16 %v4050, %v4045
  %v4371 = vpack.c.b16 %v4051, %v4046
  %v4372 = vpack.c.b16 %v4052, %v4047
  %v4373 = vpack.c.b16 %v4053, %v4048
  %v4374 = vpack.c.b16 %v4054, %v4049
  %v4375 = vpack.c.b16 %v4060, %v4055
  %v4376 = vpack.c.b16 %v4061, %v4056
  %v4377 = vpack.c.b16 %v4062, %v4057
  %v4378 = vpack.c.b16 %v4063, %v4058
  %v4379 = vpack.c.b16 %v4064, %v4059
  %v4380 = vpack.c.b16 %v4070, %v4065
  %v4381 = vpack.c.b16 %v4071, %v4066
  %v4382 = vpack.c.b16 %v4072, %v4067
  %v4383 = vpack.c.b16 %v4073, %v4068
  %v4384 = vpack.c.b16 %v4074, %v4069
  %v4385 = vpack.c.b16 %v4080, %v4075
  %v4386 = vpack.c.b16 %v4081, %v4076
  %v4387 = vpack.c.b16 %v4082, %v4077
  %v4388 = vpack.c.b16 %v4083, %v4078
  %v4389 = vpack.c.b16 %v4084, %v4079
  %v4390 = vpack.c.b16 %v4090, %v4085
  %v4391 = vpack.c.b16 %v4091, %v4086
  %v4392 = vpack.c.b16 %v4092, %v4087
  %v4393 = vpack.c.b16 %v4093, %v4088
  %v4394 = vpack.c.b16 %v4094, %v4089
  %v4395 = vpack.c.b16 %v4100, %v4095
  %v4396 = vpack.c.b16 %v4101, %v4096
  %v4397 = vpack.c.b16 %v4102, %v4097
  %v4398 = vpack.c.b16 %v4103, %v4098
  %v4399 = vpack.c.b16 %v4104, %v4099
  %v4400 = vpack.c.b16 %v4110, %v4105
  %v4401 = vpack.c.b16 %v4111, %v4106
  %v4402 = vpack.c.b16 %v4112, %v4107
  %v4403 = vpack.c.b16 %v4113, %v4108
  %v4404 = vpack.c.b16 %v4114, %v4109
  %v4405 = vpack.c.b16 %v4120, %v4115
  %v4406 = vpack.c.b16 %v4121, %v4116
  %v4407 = vpack.c.b16 %v4122, %v4117
  %v4408 = vpack.c.b16 %v4123, %v4118
  %v4409 = vpack.c.b16 %v4124, %v4119
  %v4410 = vpack.c.b16 %v4130, %v4125
  %v4411 = vpack.c.b16 %v4131, %v4126
  %v4412 = vpack.c.b16 %v4132, %v4127
  %v4413 = vpack.c.b16 %v4133, %v4128
  %v4414 = vpack.c.b16 %v4134, %v4129
  %v4415 = vpack.c.b16 %v4140, %v4135
  %v4416 = vpack.c.b16 %v4141, %v4136
  %v4417 = vpack.c.b16 %v4142, %v4137
  %v4418 = vpack.c.b16 %v4143, %v4138
  %v4419 = vpack.c.b16 %v4144, %v4139
  %v4420 = vpack.c.b16 %v4150, %v4145
  %v4421 = vpack.c.b16 %v4151, %v4146
  %v4422 = vpack.c.b16 %v4152, %v4147
  %v4423 = vpack.c.b16 %v4153, %v4148
  %v4424 = vpack.c.b16 %v4154, %v4149
  %v4425 = vpack.c.b16 %v4160, %v4155
  %v4426 = vpack.c.b16 %v4161, %v4156
  %v4427 = vpack.c.b16 %v4162, %v4157
  %v4428 = vpack.c.b16 %v4163, %v4158
  %v4429 = vpack.c.b16 %v4164, %v4159
  %v4430 = vpack.c.b16 %v4170, %v4165
  %v4431 = vpack.c.b16 %v4171, %v4166
  %v4432 = vpack.c.b16 %v4172, %v4167
  %v4433 = vpack.c.b16 %v4173, %v4168
  %v4434 = vpack.c.b16 %v4174, %v4169
  %v4435 = vpack.c.b16 %v4180, %v4175
  %v4436 = vpack.c.b16 %v4181, %v4176
  %v4437 = vpack.c.b16 %v4182, %v4177
  %v4438 = vpack.c.b16 %v4183, %v4178
  %v4439 = vpack.c.b16 %v4184, %v4179
  %v4440 = vpack.c.b16 %v4190, %v4185
  %v4441 = vpack.c.b16 %v4191, %v4186
  %v4442 = vpack.c.b16 %v4192, %v4187
  %v4443 = vpack.c.b16 %v4193, %v4188
  %v4444 = vpack.c.b16 %v4194, %v4189
  %v4445 = vpack.c.b16 %v4200, %v4195
  %v4446 = vpack.c.b16 %v4201, %v4196
  %v4447 = vpack.c.b16 %v4202, %v4197
  %v4448 = vpack.c.b16 %v4203, %v4198
  %v4449 = vpack.c.b16 %v4204, %v4199
  %v4450 = vpack.c.b16 %v4210, %v4205
  %v4451 = vpack.c.b16 %v4211, %v4206
  %v4452 = vpack.c.b16 %v4212, %v4207
  %v4453 = vpack.c.b16 %v4213, %v4208
  %v4454 = vpack.c.b16 %v4214, %v4209
  %v4455 = vpack.c.b16 %v4220, %v4215
  %v4456 = vpack.c.b16 %v4221, %v4216
  %v4457 = vpack.c.b16 %v4222, %v4217
  %v4458 = vpack.c.b16 %v4223, %v4218
  %v4459 = vpack.c.b16 %v4224, %v4219
  %v4460 = vpack.c.b16 %v4230, %v4225
  %v4461 = vpack.c.b16 %v4231, %v4226
  %v4462 = vpack.c.b16 %v4232, %v4227
  %v4463 = vpack.c.b16 %v4233, %v4228
  %v4464 = vpack.c.b16 %v4234, %v4229
  %v4465 = vpack.c.b16 %v4240, %v4235
  %v4466 = vpack.c.b16 %v4241, %v4236
  %v4467 = vpack.c.b16 %v4242, %v4237
  %v4468 = vpack.c.b16 %v4243, %v4238
  %v4469 = vpack.c.b16 %v4244, %v4239
  %v4470 = vpack.c.b16 %v4250, %v4245
  %v4471 = vpack.c.b16 %v4251, %v4246
  %v4472 = vpack.c.b16 %v4252, %v4247
  %v4473 = vpack.c.b16 %v4253, %v4248
  %v4474 = vpack.c.b16 %v4254, %v4249
  %v4475 = vpack.c.b16 %v4260, %v4255
  %v4476 = vpack.c.b16 %v4261, %v4256
  %v4477 = vpack.c.b16 %v4262, %v4257
  %v4478 = vpack.c.b16 %v4263, %v4258
  %v4479 = vpack.c.b16 %v4264, %v4259
  %v4480 = vpack.c.b16 %v4270, %v4265
  %v4481 = vpack.c.b16 %v4271, %v4266
  %v4482 = vpack.c.b16 %v4272, %v4267
  %v4483 = vpack.c.b16 %v4273, %v4268
  %v4484 = vpack.c.b16 %v4274, %v4269
  %v4485 = vpack.c.b16 %v4280, %v4275
  %v4486 = vpack.c.b16 %v4281, %v4276
  %v4487 = vpack.c.b16 %v4282, %v4277
  %v4488 = vpack.c.b16 %v4283, %v4278
  %v4489 = vpack.c.b16 %v4284, %v4279
  %v4490 = vpack.c.b16 %v4290, %v4285
  %v4491 = vpack.c.b16 %v4291, %v4286
  %v4492 = vpack.c.b16 %v4292, %v4287
  %v4493 = vpack.c.b16 %v4293, %v4288
  %v4494 = vpack.c.b16 %v4294, %v4289
  %4695 = vmatprep.subr.bf16.mxu0 %v4296
  %4696 = vmatpush1.bf16.msra.mxu0 %v4295
  %4697 = vmatprep.subr.bf16.mxu0 %v4301
  %4698 = vmatpush1.bf16.msra.mxu0 %v4300
  %4699 = vmatprep.subr.bf16.mxu0 %v4306
  %4700 = vmatpush1.bf16.msra.mxu0 %v4305
  %4701 = vmatprep.subr.bf16.mxu0 %v4311
  %4702 = vmatpush1.bf16.msra.mxu0 %v4310
  %4703 = vmatprep.subr.bf16.mxu0 %v4316
  %4704 = vmatpush1.bf16.msra.mxu0 %v4315
  %4705 = vmatprep.subr.bf16.mxu0 %v4321
  %4706 = vmatpush1.bf16.msra.mxu0 %v4320
  %4707 = vmatprep.subr.bf16.mxu0 %v4326
  %4708 = vmatpush1.bf16.msra.mxu0 %v4325
  %4709 = vmatprep.subr.bf16.mxu0 %v4331
  %4710 = vmatpush1.bf16.msra.mxu0 %v4330
  %4711 = vmatprep.subr.bf16.mxu0 %v4336
  %4712 = vmatpush1.bf16.msra.mxu0 %v4335
  %4713 = vmatprep.subr.bf16.mxu0 %v4341
  %4714 = vmatpush1.bf16.msra.mxu0 %v4340
  %4715 = vmatprep.subr.bf16.mxu0 %v4346
  %4716 = vmatpush1.bf16.msra.mxu0 %v4345
  %4717 = vmatprep.subr.bf16.mxu0 %v4351
  %4718 = vmatpush1.bf16.msra.mxu0 %v4350
  %4719 = vmatprep.subr.bf16.mxu0 %v4356
  %4720 = vmatpush1.bf16.msra.mxu0 %v4355
  %4721 = vmatprep.subr.bf16.mxu0 %v4361
  %4722 = vmatpush1.bf16.msra.mxu0 %v4360
  %4723 = vmatprep.subr.bf16.mxu0 %v4366
  %4724 = vmatpush1.bf16.msra.mxu0 %v4365
  %4725 = vmatprep.subr.bf16.mxu0 %v4371
  %4726 = vmatpush1.bf16.msra.mxu0 %v4370
  %4727 = vmatprep.mubr.bf16.mxu0 %v3646
  %4728 = vmatmul.mubr.bf16.gmra.mrb[0].mxu0 %v3645
  %v4729 = vpop.f32.mrb[0].mxu0
  %v4730 = vadd.f32 0.0, %v4729
  %v4731 = vpop.f32.mrb[0].mxu0
  %v4732 = vadd.f32 0.0, %v4731
  %v4733 = vpop.f32.mrb[0].mxu0
  %v4734 = vpop.f32.mrb[0].mxu0
  %4735 = vdwg.mxu0
  %4736 = vmatprep.subr.bf16.mxu0 %v4376
  %4737 = vmatpush1.bf16.msra.mxu0 %v4375
  %4738 = vmatprep.subr.bf16.mxu0 %v4381
  %4739 = vmatpush1.bf16.msra.mxu0 %v4380
  %4740 = vmatprep.subr.bf16.mxu0 %v4386
  %4741 = vmatpush1.bf16.msra.mxu0 %v4385
  %4742 = vmatprep.subr.bf16.mxu0 %v4391
  %4743 = vmatpush1.bf16.msra.mxu0 %v4390
  %4744 = vmatprep.subr.bf16.mxu0 %v4396
  %4745 = vmatpush1.bf16.msra.mxu0 %v4395
  %4746 = vmatprep.subr.bf16.mxu0 %v4401
  %4747 = vmatpush1.bf16.msra.mxu0 %v4400
  %4748 = vmatprep.subr.bf16.mxu0 %v4406
  %4749 = vmatpush1.bf16.msra.mxu0 %v4405
  %4750 = vmatprep.subr.bf16.mxu0 %v4411
  %4751 = vmatpush1.bf16.msra.mxu0 %v4410
  %4752 = vmatprep.subr.bf16.mxu0 %v4416
  %4753 = vmatpush1.bf16.msra.mxu0 %v4415
  %4754 = vmatprep.subr.bf16.mxu0 %v4421
  %4755 = vmatpush1.bf16.msra.mxu0 %v4420
  %4756 = vmatprep.subr.bf16.mxu0 %v4426
  %4757 = vmatpush1.bf16.msra.mxu0 %v4425
  %4758 = vmatprep.subr.bf16.mxu0 %v4431
  %4759 = vmatpush1.bf16.msra.mxu0 %v4430
  %4760 = vmatprep.subr.bf16.mxu0 %v4436
  %4761 = vmatpush1.bf16.msra.mxu0 %v4435
  %4762 = vmatprep.subr.bf16.mxu0 %v4441
  %4763 = vmatpush1.bf16.msra.mxu0 %v4440
  %4764 = vmatprep.subr.bf16.mxu0 %v4446
  %4765 = vmatpush1.bf16.msra.mxu0 %v4445
  %4766 = vmatprep.subr.bf16.mxu0 %v4451
  %4767 = vmatpush1.bf16.msra.mxu0 %v4450
  %4768 = vmatprep.mubr.bf16.mxu0 %v3648
  %4769 = vmatmul.mubr.bf16.gmra.mrb[0].mxu0 %v3647
  %v4770 = vpop.f32.mrb[0].mxu0
  %v4771 = vadd.f32 %v4730, %v4770
  %v4772 = vpop.f32.mrb[0].mxu0
  %v4773 = vadd.f32 %v4732, %v4772
  %v4774 = vpop.f32.mrb[0].mxu0
  %v4775 = vpop.f32.mrb[0].mxu0
  %4776 = vdwg.mxu0
  %4777 = vmatprep.subr.bf16.mxu0 %v4456
  %4778 = vmatpush1.bf16.msra.mxu0 %v4455
  %4779 = vmatprep.subr.bf16.mxu0 %v4461
  %4780 = vmatpush1.bf16.msra.mxu0 %v4460
  %4781 = vmatprep.subr.bf16.mxu0 %v4466
  %4782 = vmatpush1.bf16.msra.mxu0 %v4465
  %4783 = vmatprep.subr.bf16.mxu0 %v4471
  %4784 = vmatpush1.bf16.msra.mxu0 %v4470
  %4785 = vmatprep.subr.bf16.mxu0 %v4476
  %4786 = vmatpush1.bf16.msra.mxu0 %v4475
  %4787 = vmatprep.subr.bf16.mxu0 %v4481
  %4788 = vmatpush1.bf16.msra.mxu0 %v4480
  %4789 = vmatprep.subr.bf16.mxu0 %v4486
  %4790 = vmatpush1.bf16.msra.mxu0 %v4485
  %4791 = vmatprep.subr.bf16.mxu0 %v4491
  %4792 = vmatpush1.bf16.msra.mxu0 %v4490
  %4793 = vmatprep.subr.bf16.mxu0 0
  %4794 = vmatpush1.bf16.msra.mxu0 0
  %4795 = vmatprep.subr.bf16.mxu0 0
  %4796 = vmatpush1.bf16.msra.mxu0 0
  %4797 = vmatprep.subr.bf16.mxu0 0
  %4798 = vmatpush1.bf16.msra.mxu0 0
  %4799 = vmatprep.subr.bf16.mxu0 0
  %4800 = vmatpush1.bf16.msra.mxu0 0
  %4801 = vmatprep.subr.bf16.mxu0 0
  %4802 = vmatpush1.bf16.msra.mxu0 0
  %4803 = vmatprep.subr.bf16.mxu0 0
  %4804 = vmatpush1.bf16.msra.mxu0 0
  %4805 = vmatprep.subr.bf16.mxu0 0
  %4806 = vmatpush1.bf16.msra.mxu0 0
  %4807 = vmatprep.subr.bf16.mxu0 0
  %4808 = vmatpush1.bf16.msra.mxu0 0
  %4809 = vmatprep.mubr.bf16.mxu0 0
  %4810 = vmatmul.mubr.bf16.gmra.mrb[0].mxu0 %v3649
  %v4811 = vpop.f32.mrb[0].mxu0
  %v4812 = vadd.f32 %v4771, %v4811
  %v4813 = vpop.f32.mrb[0].mxu0
  %v4814 = vadd.f32 %v4773, %v4813
  %v4815 = vpop.f32.mrb[0].mxu0
  %v4816 = vpop.f32.mrb[0].mxu0
  %4817 = vdwg.mxu0
  %4818 = vmatprep.subr.bf16.mxu0 %v4298
  %4819 = vmatpush1.bf16.msra.mxu0 %v4297
  %4820 = vmatprep.subr.bf16.mxu0 %v4303
  %4821 = vmatpush1.bf16.msra.mxu0 %v4302
  %4822 = vmatprep.subr.bf16.mxu0 %v4308
  %4823 = vmatpush1.bf16.msra.mxu0 %v4307
  %4824 = vmatprep.subr.bf16.mxu0 %v4313
  %4825 = vmatpush1.bf16.msra.mxu0 %v4312
  %4826 = vmatprep.subr.bf16.mxu0 %v4318
  %4827 = vmatpush1.bf16.msra.mxu0 %v4317
  %4828 = vmatprep.subr.bf16.mxu0 %v4323
  %4829 = vmatpush1.bf16.msra.mxu0 %v4322
  %4830 = vmatprep.subr.bf16.mxu0 %v4328
  %4831 = vmatpush1.bf16.msra.mxu0 %v4327
  %4832 = vmatprep.subr.bf16.mxu0 %v4333
  %4833 = vmatpush1.bf16.msra.mxu0 %v4332
  %4834 = vmatprep.subr.bf16.mxu0 %v4338
  %4835 = vmatpush1.bf16.msra.mxu0 %v4337
  %4836 = vmatprep.subr.bf16.mxu0 %v4343
  %4837 = vmatpush1.bf16.msra.mxu0 %v4342
  %4838 = vmatprep.subr.bf16.mxu0 %v4348
  %4839 = vmatpush1.bf16.msra.mxu0 %v4347
  %4840 = vmatprep.subr.bf16.mxu0 %v4353
  %4841 = vmatpush1.bf16.msra.mxu0 %v4352
  %4842 = vmatprep.subr.bf16.mxu0 %v4358
  %4843 = vmatpush1.bf16.msra.mxu0 %v4357
  %4844 = vmatprep.subr.bf16.mxu0 %v4363
  %4845 = vmatpush1.bf16.msra.mxu0 %v4362
  %4846 = vmatprep.subr.bf16.mxu0 %v4368
  %4847 = vmatpush1.bf16.msra.mxu0 %v4367
  %4848 = vmatprep.subr.bf16.mxu0 %v4373
  %4849 = vmatpush1.bf16.msra.mxu0 %v4372
  %4850 = vmatprep.mubr.bf16.mxu0 %v3646
  %4851 = vmatmul.mubr.bf16.gmra.mrb[0].mxu0 %v3645
  %v4852 = vpop.f32.mrb[0].mxu0
  %v4853 = vadd.f32 0.0, %v4852
  %v4854 = vpop.f32.mrb[0].mxu0
  %v4855 = vadd.f32 0.0, %v4854
  %v4856 = vpop.f32.mrb[0].mxu0
  %v4857 = vpop.f32.mrb[0].mxu0
  %4858 = vdwg.mxu0
  %4859 = vmatprep.subr.bf16.mxu0 %v4378
  %4860 = vmatpush1.bf16.msra.mxu0 %v4377
  %4861 = vmatprep.subr.bf16.mxu0 %v4383
  %4862 = vmatpush1.bf16.msra.mxu0 %v4382
  %4863 = vmatprep.subr.bf16.mxu0 %v4388
  %4864 = vmatpush1.bf16.msra.mxu0 %v4387
  %4865 = vmatprep.subr.bf16.mxu0 %v4393
  %4866 = vmatpush1.bf16.msra.mxu0 %v4392
  %4867 = vmatprep.subr.bf16.mxu0 %v4398
  %4868 = vmatpush1.bf16.msra.mxu0 %v4397
  %4869 = vmatprep.subr.bf16.mxu0 %v4403
  %4870 = vmatpush1.bf16.msra.mxu0 %v4402
  %4871 = vmatprep.subr.bf16.mxu0 %v4408
  %4872 = vmatpush1.bf16.msra.mxu0 %v4407
  %4873 = vmatprep.subr.bf16.mxu0 %v4413
  %4874 = vmatpush1.bf16.msra.mxu0 %v4412
  %4875 = vmatprep.subr.bf16.mxu0 %v4418
  %4876 = vmatpush1.bf16.msra.mxu0 %v4417
  %4877 = vmatprep.subr.bf16.mxu0 %v4423
  %4878 = vmatpush1.bf16.msra.mxu0 %v4422
  %4879 = vmatprep.subr.bf16.mxu0 %v4428
  %4880 = vmatpush1.bf16.msra.mxu0 %v4427
  %4881 = vmatprep.subr.bf16.mxu0 %v4433
  %4882 = vmatpush1.bf16.msra.mxu0 %v4432
  %4883 = vmatprep.subr.bf16.mxu0 %v4438
  %4884 = vmatpush1.bf16.msra.mxu0 %v4437
  %4885 = vmatprep.subr.bf16.mxu0 %v4443
  %4886 = vmatpush1.bf16.msra.mxu0 %v4442
  %4887 = vmatprep.subr.bf16.mxu0 %v4448
  %4888 = vmatpush1.bf16.msra.mxu0 %v4447
  %4889 = vmatprep.subr.bf16.mxu0 %v4453
  %4890 = vmatpush1.bf16.msra.mxu0 %v4452
  %4891 = vmatprep.mubr.bf16.mxu0 %v3648
  %4892 = vmatmul.mubr.bf16.gmra.mrb[0].mxu0 %v3647
  %v4893 = vpop.f32.mrb[0].mxu0
  %v4894 = vadd.f32 %v4853, %v4893
  %v4895 = vpop.f32.mrb[0].mxu0
  %v4896 = vadd.f32 %v4855, %v4895
  %v4897 = vpop.f32.mrb[0].mxu0
  %v4898 = vpop.f32.mrb[0].mxu0
  %4899 = vdwg.mxu0
  %4900 = vmatprep.subr.bf16.mxu0 %v4458
  %4901 = vmatpush1.bf16.msra.mxu0 %v4457
  %4902 = vmatprep.subr.bf16.mxu0 %v4463
  %4903 = vmatpush1.bf16.msra.mxu0 %v4462
  %4904 = vmatprep.subr.bf16.mxu0 %v4468
  %4905 = vmatpush1.bf16.msra.mxu0 %v4467
  %4906 = vmatprep.subr.bf16.mxu0 %v4473
  %4907 = vmatpush1.bf16.msra.mxu0 %v4472
  %4908 = vmatprep.subr.bf16.mxu0 %v4478
  %4909 = vmatpush1.bf16.msra.mxu0 %v4477
  %4910 = vmatprep.subr.bf16.mxu0 %v4483
  %4911 = vmatpush1.bf16.msra.mxu0 %v4482
  %4912 = vmatprep.subr.bf16.mxu0 %v4488
  %4913 = vmatpush1.bf16.msra.mxu0 %v4487
  %4914 = vmatprep.subr.bf16.mxu0 %v4493
  %4915 = vmatpush1.bf16.msra.mxu0 %v4492
  %4916 = vmatprep.subr.bf16.mxu0 0
  %4917 = vmatpush1.bf16.msra.mxu0 0
  %4918 = vmatprep.subr.bf16.mxu0 0
  %4919 = vmatpush1.bf16.msra.mxu0 0
  %4920 = vmatprep.subr.bf16.mxu0 0
  %4921 = vmatpush1.bf16.msra.mxu0 0
  %4922 = vmatprep.subr.bf16.mxu0 0
  %4923 = vmatpush1.bf16.msra.mxu0 0
  %4924 = vmatprep.subr.bf16.mxu0 0
  %4925 = vmatpush1.bf16.msra.mxu0 0
  %4926 = vmatprep.subr.bf16.mxu0 0
  %4927 = vmatpush1.bf16.msra.mxu0 0
  %4928 = vmatprep.subr.bf16.mxu0 0
  %4929 = vmatpush1.bf16.msra.mxu0 0
  %4930 = vmatprep.subr.bf16.mxu0 0
  %4931 = vmatpush1.bf16.msra.mxu0 0
  %4932 = vmatprep.mubr.bf16.mxu0 0
  %4933 = vmatmul.mubr.bf16.gmra.mrb[0].mxu0 %v3649
  %v4934 = vpop.f32.mrb[0].mxu0
  %v4935 = vadd.f32 %v4894, %v4934
  %v4936 = vpop.f32.mrb[0].mxu0
  %v4937 = vadd.f32 %v4896, %v4936
  %v4938 = vpop.f32.mrb[0].mxu0
  %v4939 = vpop.f32.mrb[0].mxu0
  %4940 = vdwg.mxu0
  %4941 = vmatprep.subr.bf16.mxu0 0
  %4942 = vmatpush1.bf16.msra.mxu0 %v4299
  %4943 = vmatprep.subr.bf16.mxu0 0
  %4944 = vmatpush1.bf16.msra.mxu0 %v4304
  %4945 = vmatprep.subr.bf16.mxu0 0
  %4946 = vmatpush1.bf16.msra.mxu0 %v4309
  %4947 = vmatprep.subr.bf16.mxu0 0
  %4948 = vmatpush1.bf16.msra.mxu0 %v4314
  %4949 = vmatprep.subr.bf16.mxu0 0
  %4950 = vmatpush1.bf16.msra.mxu0 %v4319
  %4951 = vmatprep.subr.bf16.mxu0 0
  %4952 = vmatpush1.bf16.msra.mxu0 %v4324
  %4953 = vmatprep.subr.bf16.mxu0 0
  %4954 = vmatpush1.bf16.msra.mxu0 %v4329
  %4955 = vmatprep.subr.bf16.mxu0 0
  %4956 = vmatpush1.bf16.msra.mxu0 %v4334
  %4957 = vmatprep.subr.bf16.mxu0 0
  %4958 = vmatpush1.bf16.msra.mxu0 %v4339
  %4959 = vmatprep.subr.bf16.mxu0 0
  %4960 = vmatpush1.bf16.msra.mxu0 %v4344
  %4961 = vmatprep.subr.bf16.mxu0 0
  %4962 = vmatpush1.bf16.msra.mxu0 %v4349
  %4963 = vmatprep.subr.bf16.mxu0 0
  %4964 = vmatpush1.bf16.msra.mxu0 %v4354
  %4965 = vmatprep.subr.bf16.mxu0 0
  %4966 = vmatpush1.bf16.msra.mxu0 %v4359
  %4967 = vmatprep.subr.bf16.mxu0 0
  %4968 = vmatpush1.bf16.msra.mxu0 %v4364
  %4969 = vmatprep.subr.bf16.mxu0 0
  %4970 = vmatpush1.bf16.msra.mxu0 %v4369
  %4971 = vmatprep.subr.bf16.mxu0 0
  %4972 = vmatpush1.bf16.msra.mxu0 %v4374
  %4973 = vmatprep.mubr.bf16.mxu0 %v3646
  %4974 = vmatmul.mubr.bf16.gmra.mrb[0].mxu0 %v3645
  %v4975 = vpop.f32.mrb[0].mxu0
  %v4976 = vadd.f32 0.0, %v4975
  %v4977 = vpop.f32.mrb[0].mxu0
  %v4978 = vpop.f32.mrb[0].mxu0
  %v4979 = vpop.f32.mrb[0].mxu0
  %4980 = vdwg.mxu0
  %4981 = vmatprep.subr.bf16.mxu0 0
  %4982 = vmatpush1.bf16.msra.mxu0 %v4379
  %4983 = vmatprep.subr.bf16.mxu0 0
  %4984 = vmatpush1.bf16.msra.mxu0 %v4384
  %4985 = vmatprep.subr.bf16.mxu0 0
  %4986 = vmatpush1.bf16.msra.mxu0 %v4389
  %4987 = vmatprep.subr.bf16.mxu0 0
  %4988 = vmatpush1.bf16.msra.mxu0 %v4394
  %4989 = vmatprep.subr.bf16.mxu0 0
  %4990 = vmatpush1.bf16.msra.mxu0 %v4399
  %4991 = vmatprep.subr.bf16.mxu0 0
  %4992 = vmatpush1.bf16.msra.mxu0 %v4404
  %4993 = vmatprep.subr.bf16.mxu0 0
  %4994 = vmatpush1.bf16.msra.mxu0 %v4409
  %4995 = vmatprep.subr.bf16.mxu0 0
  %4996 = vmatpush1.bf16.msra.mxu0 %v4414
  %4997 = vmatprep.subr.bf16.mxu0 0
  %4998 = vmatpush1.bf16.msra.mxu0 %v4419
  %4999 = vmatprep.subr.bf16.mxu0 0
  %5000 = vmatpush1.bf16.msra.mxu0 %v4424
  %5001 = vmatprep.subr.bf16.mxu0 0
  %5002 = vmatpush1.bf16.msra.mxu0 %v4429
  %5003 = vmatprep.subr.bf16.mxu0 0
  %5004 = vmatpush1.bf16.msra.mxu0 %v4434
  %5005 = vmatprep.subr.bf16.mxu0 0
  %5006 = vmatpush1.bf16.msra.mxu0 %v4439
  %5007 = vmatprep.subr.bf16.mxu0 0
  %5008 = vmatpush1.bf16.msra.mxu0 %v4444
  %5009 = vmatprep.subr.bf16.mxu0 0
  %5010 = vmatpush1.bf16.msra.mxu0 %v4449
  %5011 = vmatprep.subr.bf16.mxu0 0
  %5012 = vmatpush1.bf16.msra.mxu0 %v4454
  %5013 = vmatprep.mubr.bf16.mxu0 %v3648
  %5014 = vmatmul.mubr.bf16.gmra.mrb[0].mxu0 %v3647
  %v5015 = vpop.f32.mrb[0].mxu0
  %v5016 = vadd.f32 %v4976, %v5015
  %v5017 = vpop.f32.mrb[0].mxu0
  %v5018 = vpop.f32.mrb[0].mxu0
  %v5019 = vpop.f32.mrb[0].mxu0
  %5020 = vdwg.mxu0
  %5021 = vmatprep.subr.bf16.mxu0 0
  %5022 = vmatpush1.bf16.msra.mxu0 %v4459
  %5023 = vmatprep.subr.bf16.mxu0 0
  %5024 = vmatpush1.bf16.msra.mxu0 %v4464
  %5025 = vmatprep.subr.bf16.mxu0 0
  %5026 = vmatpush1.bf16.msra.mxu0 %v4469
  %5027 = vmatprep.subr.bf16.mxu0 0
  %5028 = vmatpush1.bf16.msra.mxu0 %v4474
  %5029 = vmatprep.subr.bf16.mxu0 0
  %5030 = vmatpush1.bf16.msra.mxu0 %v4479
  %5031 = vmatprep.subr.bf16.mxu0 0
  %5032 = vmatpush1.bf16.msra.mxu0 %v4484
  %5033 = vmatprep.subr.bf16.mxu0 0
  %5034 = vmatpush1.bf16.msra.mxu0 %v4489
  %5035 = vmatprep.subr.bf16.mxu0 0
  %5036 = vmatpush1.bf16.msra.mxu0 %v4494
  %5037 = vmatprep.subr.bf16.mxu0 0
  %5038 = vmatpush1.bf16.msra.mxu0 0
  %5039 = vmatprep.subr.bf16.mxu0 0
  %5040 = vmatpush1.bf16.msra.mxu0 0
  %5041 = vmatprep.subr.bf16.mxu0 0
  %5042 = vmatpush1.bf16.msra.mxu0 0
  %5043 = vmatprep.subr.bf16.mxu0 0
  %5044 = vmatpush1.bf16.msra.mxu0 0
  %5045 = vmatprep.subr.bf16.mxu0 0
  %5046 = vmatpush1.bf16.msra.mxu0 0
  %5047 = vmatprep.subr.bf16.mxu0 0
  %5048 = vmatpush1.bf16.msra.mxu0 0
  %5049 = vmatprep.subr.bf16.mxu0 0
  %5050 = vmatpush1.bf16.msra.mxu0 0
  %5051 = vmatprep.subr.bf16.mxu0 0
  %5052 = vmatpush1.bf16.msra.mxu0 0
  %5053 = vmatprep.mubr.bf16.mxu0 0
  %5054 = vmatmul.mubr.bf16.gmra.mrb[0].mxu0 %v3649
  %v5055 = vpop.f32.mrb[0].mxu0
  %v5056 = vadd.f32 %v5016, %v5055
  %v5057 = vpop.f32.mrb[0].mxu0
  %v5058 = vpop.f32.mrb[0].mxu0
  %v5059 = vpop.f32.mrb[0].mxu0
  %5060 = vdwg.mxu0
  %v5061 = vld [vmem:[%s3 + $0x10] sm:$0xff]
  %v5062 = vld [vmem:[%s3 + $0x18] sm:$0xff]
  %v5063 = vld [vmem:[%s3 + $0x20] sm:$0xff]
  %v5064 = vld [vmem:[%s3 + $0x28] sm:$0xff]
  %v5065 = vld [vmem:[%s3 + $0x30] sm:$0xff]
  %v5066 = vadd.f32 %v5061, %v4812
  %v5067 = vadd.f32 %v5062, %v4814
  %v5068 = vadd.f32 %v5063, %v4935
  %v5069 = vadd.f32 %v5064, %v4937
  %v5070 = vadd.f32 %v5065, %v5056
  %5071 = vst [vmem:[%s3 + $0x10] sm:$0xff] %v5066
  %5072 = vst [vmem:[%s3 + $0x18] sm:$0xff] %v5067
  %5073 = vst [vmem:[%s3 + $0x20] sm:$0xff] %v5068
  %5074 = vst [vmem:[%s3 + $0x28] sm:$0xff] %v5069
  %5075 = vst [vmem:[%s3 + $0x30] sm:$0xff] %v5070
  %s5076 = scalar_lea.vmem %s0, 60
  %v5077 = vld [vmem:[%s5076] sm:$0xff]
  %v5078 = vld [vmem:[%s5076 + $0x8] sm:$0xff]
  %v5079 = vld [vmem:[%s5076 + $0x10] sm:$0xf]
  %s5080 = scalar_lea.vmem %s1, 4800
  %v5081 = vld [vmem:[%s5080] sm:$0xff]
  %v5082 = vld [vmem:[%s5080 + $0x8] sm:$0xff]
  %v5083 = vld [vmem:[%s5080 + $0x10] sm:$0xf]
  %v5084 = vld [vmem:[%s5080 + $0x14] sm:$0xff]
  %v5085 = vld [vmem:[%s5080 + $0x1c] sm:$0xff]
  %v5086 = vld [vmem:[%s5080 + $0x24] sm:$0xf]
  %v5087 = vld [vmem:[%s5080 + $0x28] sm:$0xff]
  %v5088 = vld [vmem:[%s5080 + $0x30] sm:$0xff]
  %v5089 = vld [vmem:[%s5080 + $0x38] sm:$0xf]
  %v5090 = vld [vmem:[%s5080 + $0x3c] sm:$0xff]
  %v5091 = vld [vmem:[%s5080 + $0x44] sm:$0xff]
  %v5092 = vld [vmem:[%s5080 + $0x4c] sm:$0xf]
  %v5093 = vld [vmem:[%s5080 + $0x50] sm:$0xff]
  %v5094 = vld [vmem:[%s5080 + $0x58] sm:$0xff]
  %v5095 = vld [vmem:[%s5080 + $0x60] sm:$0xf]
  %v5096 = vld [vmem:[%s5080 + $0x64] sm:$0xff]
  %v5097 = vld [vmem:[%s5080 + $0x6c] sm:$0xff]
  %v5098 = vld [vmem:[%s5080 + $0x74] sm:$0xf]
  %v5099 = vld [vmem:[%s5080 + $0x78] sm:$0xff]
  %v5100 = vld [vmem:[%s5080 + $0x80] sm:$0xff]
  %v5101 = vld [vmem:[%s5080 + $0x88] sm:$0xf]
  %v5102 = vld [vmem:[%s5080 + $0x8c] sm:$0xff]
  %v5103 = vld [vmem:[%s5080 + $0x94] sm:$0xff]
  %v5104 = vld [vmem:[%s5080 + $0x9c] sm:$0xf]
  %v5105 = vld [vmem:[%s5080 + $0xa0] sm:$0xff]
  %v5106 = vld [vmem:[%s5080 + $0xa8] sm:$0xff]
  %v5107 = vld [vmem:[%s5080 + $0xb0] sm:$0xf]
  %v5108 = vld [vmem:[%s5080 + $0xb4] sm:$0xff]
  %v5109 = vld [vmem:[%s5080 + $0xbc] sm:$0xff]
  %v5110 = vld [vmem:[%s5080 + $0xc4] sm:$0xf]
  %v5111 = vld [vmem:[%s5080 + $0xc8] sm:$0xff]
  %v5112 = vld [vmem:[%s5080 + $0xd0] sm:$0xff]
  %v5113 = vld [vmem:[%s5080 + $0xd8] sm:$0xf]
  %v5114 = vld [vmem:[%s5080 + $0xdc] sm:$0xff]
  %v5115 = vld [vmem:[%s5080 + $0xe4] sm:$0xff]
  %v5116 = vld [vmem:[%s5080 + $0xec] sm:$0xf]
  %v5117 = vld [vmem:[%s5080 + $0xf0] sm:$0xff]
  %v5118 = vld [vmem:[%s5080 + $0xf8] sm:$0xff]
  %v5119 = vld [vmem:[%s5080 + $0x100] sm:$0xf]
  %v5120 = vld [vmem:[%s5080 + $0x104] sm:$0xff]
  %v5121 = vld [vmem:[%s5080 + $0x10c] sm:$0xff]
  %v5122 = vld [vmem:[%s5080 + $0x114] sm:$0xf]
  %v5123 = vld [vmem:[%s5080 + $0x118] sm:$0xff]
  %v5124 = vld [vmem:[%s5080 + $0x120] sm:$0xff]
  %v5125 = vld [vmem:[%s5080 + $0x128] sm:$0xf]
  %v5126 = vld [vmem:[%s5080 + $0x12c] sm:$0xff]
  %v5127 = vld [vmem:[%s5080 + $0x134] sm:$0xff]
  %v5128 = vld [vmem:[%s5080 + $0x13c] sm:$0xf]
  %v5129 = vld [vmem:[%s5080 + $0x140] sm:$0xff]
  %v5130 = vld [vmem:[%s5080 + $0x148] sm:$0xff]
  %v5131 = vld [vmem:[%s5080 + $0x150] sm:$0xf]
  %v5132 = vld [vmem:[%s5080 + $0x154] sm:$0xff]
  %v5133 = vld [vmem:[%s5080 + $0x15c] sm:$0xff]
  %v5134 = vld [vmem:[%s5080 + $0x164] sm:$0xf]
  %v5135 = vld [vmem:[%s5080 + $0x168] sm:$0xff]
  %v5136 = vld [vmem:[%s5080 + $0x170] sm:$0xff]
  %v5137 = vld [vmem:[%s5080 + $0x178] sm:$0xf]
  %v5138 = vld [vmem:[%s5080 + $0x17c] sm:$0xff]
  %v5139 = vld [vmem:[%s5080 + $0x184] sm:$0xff]
  %v5140 = vld [vmem:[%s5080 + $0x18c] sm:$0xf]
  %v5141 = vld [vmem:[%s5080 + $0x190] sm:$0xff]
  %v5142 = vld [vmem:[%s5080 + $0x198] sm:$0xff]
  %v5143 = vld [vmem:[%s5080 + $0x1a0] sm:$0xf]
  %v5144 = vld [vmem:[%s5080 + $0x1a4] sm:$0xff]
  %v5145 = vld [vmem:[%s5080 + $0x1ac] sm:$0xff]
  %v5146 = vld [vmem:[%s5080 + $0x1b4] sm:$0xf]
  %v5147 = vld [vmem:[%s5080 + $0x1b8] sm:$0xff]
  %v5148 = vld [vmem:[%s5080 + $0x1c0] sm:$0xff]
  %v5149 = vld [vmem:[%s5080 + $0x1c8] sm:$0xf]
  %v5150 = vld [vmem:[%s5080 + $0x1cc] sm:$0xff]
  %v5151 = vld [vmem:[%s5080 + $0x1d4] sm:$0xff]
  %v5152 = vld [vmem:[%s5080 + $0x1dc] sm:$0xf]
  %v5153 = vld [vmem:[%s5080 + $0x1e0] sm:$0xff]
  %v5154 = vld [vmem:[%s5080 + $0x1e8] sm:$0xff]
  %v5155 = vld [vmem:[%s5080 + $0x1f0] sm:$0xf]
  %v5156 = vld [vmem:[%s5080 + $0x1f4] sm:$0xff]
  %v5157 = vld [vmem:[%s5080 + $0x1fc] sm:$0xff]
  %v5158 = vld [vmem:[%s5080 + $0x204] sm:$0xf]
  %v5159 = vld [vmem:[%s5080 + $0x208] sm:$0xff]
  %v5160 = vld [vmem:[%s5080 + $0x210] sm:$0xff]
  %v5161 = vld [vmem:[%s5080 + $0x218] sm:$0xf]
  %v5162 = vld [vmem:[%s5080 + $0x21c] sm:$0xff]
  %v5163 = vld [vmem:[%s5080 + $0x224] sm:$0xff]
  %v5164 = vld [vmem:[%s5080 + $0x22c] sm:$0xf]
  %v5165 = vld [vmem:[%s5080 + $0x230] sm:$0xff]
  %v5166 = vld [vmem:[%s5080 + $0x238] sm:$0xff]
  %v5167 = vld [vmem:[%s5080 + $0x240] sm:$0xf]
  %v5168 = vld [vmem:[%s5080 + $0x244] sm:$0xff]
  %v5169 = vld [vmem:[%s5080 + $0x24c] sm:$0xff]
  %v5170 = vld [vmem:[%s5080 + $0x254] sm:$0xf]
  %v5171 = vld [vmem:[%s5080 + $0x258] sm:$0xff]
  %v5172 = vld [vmem:[%s5080 + $0x260] sm:$0xff]
  %v5173 = vld [vmem:[%s5080 + $0x268] sm:$0xf]
  %v5174 = vld [vmem:[%s5080 + $0x26c] sm:$0xff]
  %v5175 = vld [vmem:[%s5080 + $0x274] sm:$0xff]
  %v5176 = vld [vmem:[%s5080 + $0x27c] sm:$0xf]
  %v5177 = vld [vmem:[%s5080 + $0x280] sm:$0xff]
  %v5178 = vld [vmem:[%s5080 + $0x288] sm:$0xff]
  %v5179 = vld [vmem:[%s5080 + $0x290] sm:$0xf]
  %v5180 = vld [vmem:[%s5080 + $0x294] sm:$0xff]
  %v5181 = vld [vmem:[%s5080 + $0x29c] sm:$0xff]
  %v5182 = vld [vmem:[%s5080 + $0x2a4] sm:$0xf]
  %v5183 = vld [vmem:[%s5080 + $0x2a8] sm:$0xff]
  %v5184 = vld [vmem:[%s5080 + $0x2b0] sm:$0xff]
  %v5185 = vld [vmem:[%s5080 + $0x2b8] sm:$0xf]
  %v5186 = vld [vmem:[%s5080 + $0x2bc] sm:$0xff]
  %v5187 = vld [vmem:[%s5080 + $0x2c4] sm:$0xff]
  %v5188 = vld [vmem:[%s5080 + $0x2cc] sm:$0xf]
  %v5189 = vld [vmem:[%s5080 + $0x2d0] sm:$0xff]
  %v5190 = vld [vmem:[%s5080 + $0x2d8] sm:$0xff]
  %v5191 = vld [vmem:[%s5080 + $0x2e0] sm:$0xf]
  %v5192 = vld [vmem:[%s5080 + $0x2e4] sm:$0xff]
  %v5193 = vld [vmem:[%s5080 + $0x2ec] sm:$0xff]
  %v5194 = vld [vmem:[%s5080 + $0x2f4] sm:$0xf]
  %v5195 = vld [vmem:[%s5080 + $0x2f8] sm:$0xff]
  %v5196 = vld [vmem:[%s5080 + $0x300] sm:$0xff]
  %v5197 = vld [vmem:[%s5080 + $0x308] sm:$0xf]
  %v5198 = vld [vmem:[%s5080 + $0x30c] sm:$0xff]
  %v5199 = vld [vmem:[%s5080 + $0x314] sm:$0xff]
  %v5200 = vld [vmem:[%s5080 + $0x31c] sm:$0xf]
  %v5201 = vld [vmem:[%s5080 + $0x320] sm:$0xff]
  %v5202 = vld [vmem:[%s5080 + $0x328] sm:$0xff]
  %v5203 = vld [vmem:[%s5080 + $0x330] sm:$0xf]
  %v5204 = vld [vmem:[%s5080 + $0x334] sm:$0xff]
  %v5205 = vld [vmem:[%s5080 + $0x33c] sm:$0xff]
  %v5206 = vld [vmem:[%s5080 + $0x344] sm:$0xf]
  %v5207 = vld [vmem:[%s5080 + $0x348] sm:$0xff]
  %v5208 = vld [vmem:[%s5080 + $0x350] sm:$0xff]
  %v5209 = vld [vmem:[%s5080 + $0x358] sm:$0xf]
  %v5210 = vld [vmem:[%s5080 + $0x35c] sm:$0xff]
  %v5211 = vld [vmem:[%s5080 + $0x364] sm:$0xff]
  %v5212 = vld [vmem:[%s5080 + $0x36c] sm:$0xf]
  %v5213 = vld [vmem:[%s5080 + $0x370] sm:$0xff]
  %v5214 = vld [vmem:[%s5080 + $0x378] sm:$0xff]
  %v5215 = vld [vmem:[%s5080 + $0x380] sm:$0xf]
  %v5216 = vld [vmem:[%s5080 + $0x384] sm:$0xff]
  %v5217 = vld [vmem:[%s5080 + $0x38c] sm:$0xff]
  %v5218 = vld [vmem:[%s5080 + $0x394] sm:$0xf]
  %v5219 = vld [vmem:[%s5080 + $0x398] sm:$0xff]
  %v5220 = vld [vmem:[%s5080 + $0x3a0] sm:$0xff]
  %v5221 = vld [vmem:[%s5080 + $0x3a8] sm:$0xf]
  %v5222 = vld [vmem:[%s5080 + $0x3ac] sm:$0xff]
  %v5223 = vld [vmem:[%s5080 + $0x3b4] sm:$0xff]
  %v5224 = vld [vmem:[%s5080 + $0x3bc] sm:$0xf]
  %v5225 = vld [vmem:[%s5080 + $0x3c0] sm:$0xff]
  %v5226 = vld [vmem:[%s5080 + $0x3c8] sm:$0xff]
  %v5227 = vld [vmem:[%s5080 + $0x3d0] sm:$0xf]
  %v5228 = vld [vmem:[%s5080 + $0x3d4] sm:$0xff]
  %v5229 = vld [vmem:[%s5080 + $0x3dc] sm:$0xff]
  %v5230 = vld [vmem:[%s5080 + $0x3e4] sm:$0xf]
  %v5231 = vld [vmem:[%s5080 + $0x3e8] sm:$0xff]
  %v5232 = vld [vmem:[%s5080 + $0x3f0] sm:$0xff]
  %v5233 = vld [vmem:[%s5080 + $0x3f8] sm:$0xf]
  %v5234 = vld [vmem:[%s5080 + $0x3fc] sm:$0xff]
  %v5235 = vld [vmem:[%s5080 + $0x404] sm:$0xff]
  %v5236 = vld [vmem:[%s5080 + $0x40c] sm:$0xf]
  %v5237 = vld [vmem:[%s5080 + $0x410] sm:$0xff]
  %v5238 = vld [vmem:[%s5080 + $0x418] sm:$0xff]
  %v5239 = vld [vmem:[%s5080 + $0x420] sm:$0xf]
  %v5240 = vld [vmem:[%s5080 + $0x424] sm:$0xff]
  %v5241 = vld [vmem:[%s5080 + $0x42c] sm:$0xff]
  %v5242 = vld [vmem:[%s5080 + $0x434] sm:$0xf]
  %v5243 = vld [vmem:[%s5080 + $0x438] sm:$0xff]
  %v5244 = vld [vmem:[%s5080 + $0x440] sm:$0xff]
  %v5245 = vld [vmem:[%s5080 + $0x448] sm:$0xf]
  %v5246 = vld [vmem:[%s5080 + $0x44c] sm:$0xff]
  %v5247 = vld [vmem:[%s5080 + $0x454] sm:$0xff]
  %v5248 = vld [vmem:[%s5080 + $0x45c] sm:$0xf]
  %v5249 = vld [vmem:[%s5080 + $0x460] sm:$0xff]
  %v5250 = vld [vmem:[%s5080 + $0x468] sm:$0xff]
  %v5251 = vld [vmem:[%s5080 + $0x470] sm:$0xf]
  %v5252 = vld [vmem:[%s5080 + $0x474] sm:$0xff]
  %v5253 = vld [vmem:[%s5080 + $0x47c] sm:$0xff]
  %v5254 = vld [vmem:[%s5080 + $0x484] sm:$0xf]
  %v5255 = vld [vmem:[%s5080 + $0x488] sm:$0xff]
  %v5256 = vld [vmem:[%s5080 + $0x490] sm:$0xff]
  %v5257 = vld [vmem:[%s5080 + $0x498] sm:$0xf]
  %v5258 = vld [vmem:[%s5080 + $0x49c] sm:$0xff]
  %v5259 = vld [vmem:[%s5080 + $0x4a4] sm:$0xff]
  %v5260 = vld [vmem:[%s5080 + $0x4ac] sm:$0xf]
  %v5261 = vld [vmem:[%s5080 + $0x4b0] sm:$0xff]
  %v5262 = vld [vmem:[%s5080 + $0x4b8] sm:$0xff]
  %v5263 = vld [vmem:[%s5080 + $0x4c0] sm:$0xf]
  %v5264 = vld [vmem:[%s5080 + $0x4c4] sm:$0xff]
  %v5265 = vld [vmem:[%s5080 + $0x4cc] sm:$0xff]
  %v5266 = vld [vmem:[%s5080 + $0x4d4] sm:$0xf]
  %v5267 = vld [vmem:[%s5080 + $0x4d8] sm:$0xff]
  %v5268 = vld [vmem:[%s5080 + $0x4e0] sm:$0xff]
  %v5269 = vld [vmem:[%s5080 + $0x4e8] sm:$0xf]
  %v5270 = vld [vmem:[%s5080 + $0x4ec] sm:$0xff]
  %v5271 = vld [vmem:[%s5080 + $0x4f4] sm:$0xff]
  %v5272 = vld [vmem:[%s5080 + $0x4fc] sm:$0xf]
  %v5273 = vld [vmem:[%s5080 + $0x500] sm:$0xff]
  %v5274 = vld [vmem:[%s5080 + $0x508] sm:$0xff]
  %v5275 = vld [vmem:[%s5080 + $0x510] sm:$0xf]
  %v5276 = vld [vmem:[%s5080 + $0x514] sm:$0xff]
  %v5277 = vld [vmem:[%s5080 + $0x51c] sm:$0xff]
  %v5278 = vld [vmem:[%s5080 + $0x524] sm:$0xf]
  %v5279 = vld [vmem:[%s5080 + $0x528] sm:$0xff]
  %v5280 = vld [vmem:[%s5080 + $0x530] sm:$0xff]
  %v5281 = vld [vmem:[%s5080 + $0x538] sm:$0xf]
  %v5282 = vld [vmem:[%s5080 + $0x53c] sm:$0xff]
  %v5283 = vld [vmem:[%s5080 + $0x544] sm:$0xff]
  %v5284 = vld [vmem:[%s5080 + $0x54c] sm:$0xf]
  %v5285 = vld [vmem:[%s5080 + $0x550] sm:$0xff]
  %v5286 = vld [vmem:[%s5080 + $0x558] sm:$0xff]
  %v5287 = vld [vmem:[%s5080 + $0x560] sm:$0xf]
  %v5288 = vld [vmem:[%s5080 + $0x564] sm:$0xff]
  %v5289 = vld [vmem:[%s5080 + $0x56c] sm:$0xff]
  %v5290 = vld [vmem:[%s5080 + $0x574] sm:$0xf]
  %v5291 = vld [vmem:[%s5080 + $0x578] sm:$0xff]
  %v5292 = vld [vmem:[%s5080 + $0x580] sm:$0xff]
  %v5293 = vld [vmem:[%s5080 + $0x588] sm:$0xf]
  %v5294 = vld [vmem:[%s5080 + $0x58c] sm:$0xff]
  %v5295 = vld [vmem:[%s5080 + $0x594] sm:$0xff]
  %v5296 = vld [vmem:[%s5080 + $0x59c] sm:$0xf]
  %v5297 = vld [vmem:[%s5080 + $0x5a0] sm:$0xff]
  %v5298 = vld [vmem:[%s5080 + $0x5a8] sm:$0xff]
  %v5299 = vld [vmem:[%s5080 + $0x5b0] sm:$0xf]
  %v5300 = vld [vmem:[%s5080 + $0x5b4] sm:$0xff]
  %v5301 = vld [vmem:[%s5080 + $0x5bc] sm:$0xff]
  %v5302 = vld [vmem:[%s5080 + $0x5c4] sm:$0xf]
  %v5303 = vld [vmem:[%s5080 + $0x5c8] sm:$0xff]
  %v5304 = vld [vmem:[%s5080 + $0x5d0] sm:$0xff]
  %v5305 = vld [vmem:[%s5080 + $0x5d8] sm:$0xf]
  %v5306 = vld [vmem:[%s5080 + $0x5dc] sm:$0xff]
  %v5307 = vld [vmem:[%s5080 + $0x5e4] sm:$0xff]
  %v5308 = vld [vmem:[%s5080 + $0x5ec] sm:$0xf]
  %v5309 = vld [vmem:[%s5080 + $0x5f0] sm:$0xff]
  %v5310 = vld [vmem:[%s5080 + $0x5f8] sm:$0xff]
  %v5311 = vld [vmem:[%s5080 + $0x600] sm:$0xf]
  %v5312 = vld [vmem:[%s5080 + $0x604] sm:$0xff]
  %v5313 = vld [vmem:[%s5080 + $0x60c] sm:$0xff]
  %v5314 = vld [vmem:[%s5080 + $0x614] sm:$0xf]
  %v5315 = vld [vmem:[%s5080 + $0x618] sm:$0xff]
  %v5316 = vld [vmem:[%s5080 + $0x620] sm:$0xff]
  %v5317 = vld [vmem:[%s5080 + $0x628] sm:$0xf]
  %v5318 = vld [vmem:[%s5080 + $0x62c] sm:$0xff]
  %v5319 = vld [vmem:[%s5080 + $0x634] sm:$0xff]
  %v5320 = vld [vmem:[%s5080 + $0x63c] sm:$0xf]
  %v5324 = vunpack.c.l.b16 %v5077
  %v5325 = vunpack.c.h.b16 %v5077
  %v5326 = vunpack.c.l.b16 %v5078
  %v5327 = vunpack.c.h.b16 %v5078
  %v5328 = vunpack.c.l.b16 %v5079
  %v5329 = vpack.c.b16 %v5324, %v5324
  %v5330 = vpack.c.b16 %v5325, %v5325
  %v5331 = vpack.c.b16 %v5326, %v5326
  %v5332 = vpack.c.b16 %v5327, %v5327
  %v5333 = vpack.c.b16 %v5328, %v5328
  %v5579 = vunpack.c.l.b16 %v5081
  %v5580 = vunpack.c.h.b16 %v5081
  %v5581 = vunpack.c.l.b16 %v5082
  %v5582 = vunpack.c.h.b16 %v5082
  %v5583 = vunpack.c.l.b16 %v5083
  %v5584 = vunpack.c.l.b16 %v5084
  %v5585 = vunpack.c.h.b16 %v5084
  %v5586 = vunpack.c.l.b16 %v5085
  %v5587 = vunpack.c.h.b16 %v5085
  %v5588 = vunpack.c.l.b16 %v5086
  %v5589 = vunpack.c.l.b16 %v5087
  %v5590 = vunpack.c.h.b16 %v5087
  %v5591 = vunpack.c.l.b16 %v5088
  %v5592 = vunpack.c.h.b16 %v5088
  %v5593 = vunpack.c.l.b16 %v5089
  %v5594 = vunpack.c.l.b16 %v5090
  %v5595 = vunpack.c.h.b16 %v5090
  %v5596 = vunpack.c.l.b16 %v5091
  %v5597 = vunpack.c.h.b16 %v5091
  %v5598 = vunpack.c.l.b16 %v5092
  %v5599 = vunpack.c.l.b16 %v5093
  %v5600 = vunpack.c.h.b16 %v5093
  %v5601 = vunpack.c.l.b16 %v5094
  %v5602 = vunpack.c.h.b16 %v5094
  %v5603 = vunpack.c.l.b16 %v5095
  %v5604 = vunpack.c.l.b16 %v5096
  %v5605 = vunpack.c.h.b16 %v5096
  %v5606 = vunpack.c.l.b16 %v5097
  %v5607 = vunpack.c.h.b16 %v5097
  %v5608 = vunpack.c.l.b16 %v5098
  %v5609 = vunpack.c.l.b16 %v5099
  %v5610 = vunpack.c.h.b16 %v5099
  %v5611 = vunpack.c.l.b16 %v5100
  %v5612 = vunpack.c.h.b16 %v5100
  %v5613 = vunpack.c.l.b16 %v5101
  %v5614 = vunpack.c.l.b16 %v5102
  %v5615 = vunpack.c.h.b16 %v5102
  %v5616 = vunpack.c.l.b16 %v5103
  %v5617 = vunpack.c.h.b16 %v5103
  %v5618 = vunpack.c.l.b16 %v5104
  %v5619 = vunpack.c.l.b16 %v5105
  %v5620 = vunpack.c.h.b16 %v5105
  %v5621 = vunpack.c.l.b16 %v5106
  %v5622 = vunpack.c.h.b16 %v5106
  %v5623 = vunpack.c.l.b16 %v5107
  %v5624 = vunpack.c.l.b16 %v5108
  %v5625 = vunpack.c.h.b16 %v5108
  %v5626 = vunpack.c.l.b16 %v5109
  %v5627 = vunpack.c.h.b16 %v5109
  %v5628 = vunpack.c.l.b16 %v5110
  %v5629 = vunpack.c.l.b16 %v5111
  %v5630 = vunpack.c.h.b16 %v5111
  %v5631 = vunpack.c.l.b16 %v5112
  %v5632 = vunpack.c.h.b16 %v5112
  %v5633 = vunpack.c.l.b16 %v5113
  %v5634 = vunpack.c.l.b16 %v5114
  %v5635 = vunpack.c.h.b16 %v5114
  %v5636 = vunpack.c.l.b16 %v5115
  %v5637 = vunpack.c.h.b16 %v5115
  %v5638 = vunpack.c.l.b16 %v5116
  %v5639 = vunpack.c.l.b16 %v5117
  %v5640 = vunpack.c.h.b16 %v5117
  %v5641 = vunpack.c.l.b16 %v5118
  %v5642 = vunpack.c.h.b16 %v5118
  %v5643 = vunpack.c.l.b16 %v5119
  %v5644 = vunpack.c.l.b16 %v5120
  %v5645 = vunpack.c.h.b16 %v5120
  %v5646 = vunpack.c.l.b16 %v5121
  %v5647 = vunpack.c.h.b16 %v5121
  %v5648 = vunpack.c.l.b16 %v5122
  %v5649 = vunpack.c.l.b16 %v5123
  %v5650 = vunpack.c.h.b16 %v5123
  %v5651 = vunpack.c.l.b16 %v5124
  %v5652 = vunpack.c.h.b16 %v5124
  %v5653 = vunpack.c.l.b16 %v5125
  %v5654 = vunpack.c.l.b16 %v5126
  %v5655 = vunpack.c.h.b16 %v5126
  %v5656 = vunpack.c.l.b16 %v5127
  %v5657 = vunpack.c.h.b16 %v5127
  %v5658 = vunpack.c.l.b16 %v5128
  %v5659 = vunpack.c.l.b16 %v5129
  %v5660 = vunpack.c.h.b16 %v5129
  %v5661 = vunpack.c.l.b16 %v5130
  %v5662 = vunpack.c.h.b16 %v5130
  %v5663 = vunpack.c.l.b16 %v5131
  %v5664 = vunpack.c.l.b16 %v5132
  %v5665 = vunpack.c.h.b16 %v5132
  %v5666 = vunpack.c.l.b16 %v5133
  %v5667 = vunpack.c.h.b16 %v5133
  %v5668 = vunpack.c.l.b16 %v5134
  %v5669 = vunpack.c.l.b16 %v5135
  %v5670 = vunpack.c.h.b16 %v5135
  %v5671 = vunpack.c.l.b16 %v5136
  %v5672 = vunpack.c.h.b16 %v5136
  %v5673 = vunpack.c.l.b16 %v5137
  %v5674 = vunpack.c.l.b16 %v5138
  %v5675 = vunpack.c.h.b16 %v5138
  %v5676 = vunpack.c.l.b16 %v5139
  %v5677 = vunpack.c.h.b16 %v5139
  %v5678 = vunpack.c.l.b16 %v5140
  %v5679 = vunpack.c.l.b16 %v5141
  %v5680 = vunpack.c.h.b16 %v5141
  %v5681 = vunpack.c.l.b16 %v5142
  %v5682 = vunpack.c.h.b16 %v5142
  %v5683 = vunpack.c.l.b16 %v5143
  %v5684 = vunpack.c.l.b16 %v5144
  %v5685 = vunpack.c.h.b16 %v5144
  %v5686 = vunpack.c.l.b16 %v5145
  %v5687 = vunpack.c.h.b16 %v5145
  %v5688 = vunpack.c.l.b16 %v5146
  %v5689 = vunpack.c.l.b16 %v5147
  %v5690 = vunpack.c.h.b16 %v5147
  %v5691 = vunpack.c.l.b16 %v5148
  %v5692 = vunpack.c.h.b16 %v5148
  %v5693 = vunpack.c.l.b16 %v5149
  %v5694 = vunpack.c.l.b16 %v5150
  %v5695 = vunpack.c.h.b16 %v5150
  %v5696 = vunpack.c.l.b16 %v5151
  %v5697 = vunpack.c.h.b16 %v5151
  %v5698 = vunpack.c.l.b16 %v5152
  %v5699 = vunpack.c.l.b16 %v5153
  %v5700 = vunpack.c.h.b16 %v5153
  %v5701 = vunpack.c.l.b16 %v5154
  %v5702 = vunpack.c.h.b16 %v5154
  %v5703 = vunpack.c.l.b16 %v5155
  %v5704 = vunpack.c.l.b16 %v5156
  %v5705 = vunpack.c.h.b16 %v5156
  %v5706 = vunpack.c.l.b16 %v5157
  %v5707 = vunpack.c.h.b16 %v5157
  %v5708 = vunpack.c.l.b16 %v5158
  %v5709 = vunpack.c.l.b16 %v5159
  %v5710 = vunpack.c.h.b16 %v5159
  %v5711 = vunpack.c.l.b16 %v5160
  %v5712 = vunpack.c.h.b16 %v5160
  %v5713 = vunpack.c.l.b16 %v5161
  %v5714 = vunpack.c.l.b16 %v5162
  %v5715 = vunpack.c.h.b16 %v5162
  %v5716 = vunpack.c.l.b16 %v5163
  %v5717 = vunpack.c.h.b16 %v5163
  %v5718 = vunpack.c.l.b16 %v5164
  %v5719 = vunpack.c.l.b16 %v5165
  %v5720 = vunpack.c.h.b16 %v5165
  %v5721 = vunpack.c.l.b16 %v5166
  %v5722 = vunpack.c.h.b16 %v5166
  %v5723 = vunpack.c.l.b16 %v5167
  %v5724 = vunpack.c.l.b16 %v5168
  %v5725 = vunpack.c.h.b16 %v5168
  %v5726 = vunpack.c.l.b16 %v5169
  %v5727 = vunpack.c.h.b16 %v5169
  %v5728 = vunpack.c.l.b16 %v5170
  %v5729 = vunpack.c.l.b16 %v5171
  %v5730 = vunpack.c.h.b16 %v5171
  %v5731 = vunpack.c.l.b16 %v5172
  %v5732 = vunpack.c.h.b16 %v5172
  %v5733 = vunpack.c.l.b16 %v5173
  %v5734 = vunpack.c.l.b16 %v5174
  %v5735 = vunpack.c.h.b16 %v5174
  %v5736 = vunpack.c.l.b16 %v5175
  %v5737 = vunpack.c.h.b16 %v5175
  %v5738 = vunpack.c.l.b16 %v5176
  %v5739 = vunpack.c.l.b16 %v5177
  %v5740 = vunpack.c.h.b16 %v5177
  %v5741 = vunpack.c.l.b16 %v5178
  %v5742 = vunpack.c.h.b16 %v5178
  %v5743 = vunpack.c.l.b16 %v5179
  %v5744 = vunpack.c.l.b16 %v5180
  %v5745 = vunpack.c.h.b16 %v5180
  %v5746 = vunpack.c.l.b16 %v5181
  %v5747 = vunpack.c.h.b16 %v5181
  %v5748 = vunpack.c.l.b16 %v5182
  %v5749 = vunpack.c.l.b16 %v5183
  %v5750 = vunpack.c.h.b16 %v5183
  %v5751 = vunpack.c.l.b16 %v5184
  %v5752 = vunpack.c.h.b16 %v5184
  %v5753 = vunpack.c.l.b16 %v5185
  %v5754 = vunpack.c.l.b16 %v5186
  %v5755 = vunpack.c.h.b16 %v5186
  %v5756 = vunpack.c.l.b16 %v5187
  %v5757 = vunpack.c.h.b16 %v5187
  %v5758 = vunpack.c.l.b16 %v5188
  %v5759 = vunpack.c.l.b16 %v5189
  %v5760 = vunpack.c.h.b16 %v5189
  %v5761 = vunpack.c.l.b16 %v5190
  %v5762 = vunpack.c.h.b16 %v5190
  %v5763 = vunpack.c.l.b16 %v5191
  %v5764 = vunpack.c.l.b16 %v5192
  %v5765 = vunpack.c.h.b16 %v5192
  %v5766 = vunpack.c.l.b16 %v5193
  %v5767 = vunpack.c.h.b16 %v5193
  %v5768 = vunpack.c.l.b16 %v5194
  %v5769 = vunpack.c.l.b16 %v5195
  %v5770 = vunpack.c.h.b16 %v5195
  %v5771 = vunpack.c.l.b16 %v5196
  %v5772 = vunpack.c.h.b16 %v5196
  %v5773 = vunpack.c.l.b16 %v5197
  %v5774 = vunpack.c.l.b16 %v5198
  %v5775 = vunpack.c.h.b16 %v5198
  %v5776 = vunpack.c.l.b16 %v5199
  %v5777 = vunpack.c.h.b16 %v5199
  %v5778 = vunpack.c.l.b16 %v5200
  %v5779 = vunpack.c.l.b16 %v5201
  %v5780 = vunpack.c.h.b16 %v5201
  %v5781 = vunpack.c.l.b16 %v5202
  %v5782 = vunpack.c.h.b16 %v5202
  %v5783 = vunpack.c.l.b16 %v5203
  %v5784 = vunpack.c.l.b16 %v5204
  %v5785 = vunpack.c.h.b16 %v5204
  %v5786 = vunpack.c.l.b16 %v5205
  %v5787 = vunpack.c.h.b16 %v5205
  %v5788 = vunpack.c.l.b16 %v5206
  %v5789 = vunpack.c.l.b16 %v5207
  %v5790 = vunpack.c.h.b16 %v5207
  %v5791 = vunpack.c.l.b16 %v5208
  %v5792 = vunpack.c.h.b16 %v5208
  %v5793 = vunpack.c.l.b16 %v5209
  %v5794 = vunpack.c.l.b16 %v5210
  %v5795 = vunpack.c.h.b16 %v5210
  %v5796 = vunpack.c.l.b16 %v5211
  %v5797 = vunpack.c.h.b16 %v5211
  %v5798 = vunpack.c.l.b16 %v5212
  %v5799 = vunpack.c.l.b16 %v5213
  %v5800 = vunpack.c.h.b16 %v5213
  %v5801 = vunpack.c.l.b16 %v5214
  %v5802 = vunpack.c.h.b16 %v5214
  %v5803 = vunpack.c.l.b16 %v5215
  %v5804 = vunpack.c.l.b16 %v5216
  %v5805 = vunpack.c.h.b16 %v5216
  %v5806 = vunpack.c.l.b16 %v5217
  %v5807 = vunpack.c.h.b16 %v5217
  %v5808 = vunpack.c.l.b16 %v5218
  %v5809 = vunpack.c.l.b16 %v5219
  %v5810 = vunpack.c.h.b16 %v5219
  %v5811 = vunpack.c.l.b16 %v5220
  %v5812 = vunpack.c.h.b16 %v5220
  %v5813 = vunpack.c.l.b16 %v5221
  %v5814 = vunpack.c.l.b16 %v5222
  %v5815 = vunpack.c.h.b16 %v5222
  %v5816 = vunpack.c.l.b16 %v5223
  %v5817 = vunpack.c.h.b16 %v5223
  %v5818 = vunpack.c.l.b16 %v5224
  %v5819 = vunpack.c.l.b16 %v5225
  %v5820 = vunpack.c.h.b16 %v5225
  %v5821 = vunpack.c.l.b16 %v5226
  %v5822 = vunpack.c.h.b16 %v5226
  %v5823 = vunpack.c.l.b16 %v5227
  %v5824 = vunpack.c.l.b16 %v5228
  %v5825 = vunpack.c.h.b16 %v5228
  %v5826 = vunpack.c.l.b16 %v5229
  %v5827 = vunpack.c.h.b16 %v5229
  %v5828 = vunpack.c.l.b16 %v5230
  %v5829 = vunpack.c.l.b16 %v5231
  %v5830 = vunpack.c.h.b16 %v5231
  %v5831 = vunpack.c.l.b16 %v5232
  %v5832 = vunpack.c.h.b16 %v5232
  %v5833 = vunpack.c.l.b16 %v5233
  %v5834 = vunpack.c.l.b16 %v5234
  %v5835 = vunpack.c.h.b16 %v5234
  %v5836 = vunpack.c.l.b16 %v5235
  %v5837 = vunpack.c.h.b16 %v5235
  %v5838 = vunpack.c.l.b16 %v5236
  %v5839 = vunpack.c.l.b16 %v5237
  %v5840 = vunpack.c.h.b16 %v5237
  %v5841 = vunpack.c.l.b16 %v5238
  %v5842 = vunpack.c.h.b16 %v5238
  %v5843 = vunpack.c.l.b16 %v5239
  %v5844 = vunpack.c.l.b16 %v5240
  %v5845 = vunpack.c.h.b16 %v5240
  %v5846 = vunpack.c.l.b16 %v5241
  %v5847 = vunpack.c.h.b16 %v5241
  %v5848 = vunpack.c.l.b16 %v5242
  %v5849 = vunpack.c.l.b16 %v5243
  %v5850 = vunpack.c.h.b16 %v5243
  %v5851 = vunpack.c.l.b16 %v5244
  %v5852 = vunpack.c.h.b16 %v5244
  %v5853 = vunpack.c.l.b16 %v5245
  %v5854 = vunpack.c.l.b16 %v5246
  %v5855 = vunpack.c.h.b16 %v5246
  %v5856 = vunpack.c.l.b16 %v5247
  %v5857 = vunpack.c.h.b16 %v5247
  %v5858 = vunpack.c.l.b16 %v5248
  %v5859 = vunpack.c.l.b16 %v5249
  %v5860 = vunpack.c.h.b16 %v5249
  %v5861 = vunpack.c.l.b16 %v5250
  %v5862 = vunpack.c.h.b16 %v5250
  %v5863 = vunpack.c.l.b16 %v5251
  %v5864 = vunpack.c.l.b16 %v5252
  %v5865 = vunpack.c.h.b16 %v5252
  %v5866 = vunpack.c.l.b16 %v5253
  %v5867 = vunpack.c.h.b16 %v5253
  %v5868 = vunpack.c.l.b16 %v5254
  %v5869 = vunpack.c.l.b16 %v5255
  %v5870 = vunpack.c.h.b16 %v5255
  %v5871 = vunpack.c.l.b16 %v5256
  %v5872 = vunpack.c.h.b16 %v5256
  %v5873 = vunpack.c.l.b16 %v5257
  %v5874 = vunpack.c.l.b16 %v5258
  %v5875 = vunpack.c.h.b16 %v5258
  %v5876 = vunpack.c.l.b16 %v5259
  %v5877 = vunpack.c.h.b16 %v5259
  %v5878 = vunpack.c.l.b16 %v5260
  %v5879 = vunpack.c.l.b16 %v5261
  %v5880 = vunpack.c.h.b16 %v5261
  %v5881 = vunpack.c.l.b16 %v5262
  %v5882 = vunpack.c.h.b16 %v5262
  %v5883 = vunpack.c.l.b16 %v5263
  %v5884 = vunpack.c.l.b16 %v5264
  %v5885 = vunpack.c.h.b16 %v5264
  %v5886 = vunpack.c.l.b16 %v5265
  %v5887 = vunpack.c.h.b16 %v5265
  %v5888 = vunpack.c.l.b16 %v5266
  %v5889 = vunpack.c.l.b16 %v5267
  %v5890 = vunpack.c.h.b16 %v5267
  %v5891 = vunpack.c.l.b16 %v5268
  %v5892 = vunpack.c.h.b16 %v5268
  %v5893 = vunpack.c.l.b16 %v5269
  %v5894 = vunpack.c.l.b16 %v5270
  %v5895 = vunpack.c.h.b16 %v5270
  %v5896 = vunpack.c.l.b16 %v5271
  %v5897 = vunpack.c.h.b16 %v5271
  %v5898 = vunpack.c.l.b16 %v5272
  %v5899 = vunpack.c.l.b16 %v5273
  %v5900 = vunpack.c.h.b16 %v5273
  %v5901 = vunpack.c.l.b16 %v5274
  %v5902 = vunpack.c.h.b16 %v5274
  %v5903 = vunpack.c.l.b16 %v5275
  %v5904 = vunpack.c.l.b16 %v5276
  %v5905 = vunpack.c.h.b16 %v5276
  %v5906 = vunpack.c.l.b16 %v5277
  %v5907 = vunpack.c.h.b16 %v5277
  %v5908 = vunpack.c.l.b16 %v5278
  %v5909 = vunpack.c.l.b16 %v5279
  %v5910 = vunpack.c.h.b16 %v5279
  %v5911 = vunpack.c.l.b16 %v5280
  %v5912 = vunpack.c.h.b16 %v5280
  %v5913 = vunpack.c.l.b16 %v5281
  %v5914 = vunpack.c.l.b16 %v5282
  %v5915 = vunpack.c.h.b16 %v5282
  %v5916 = vunpack.c.l.b16 %v5283
  %v5917 = vunpack.c.h.b16 %v5283
  %v5918 = vunpack.c.l.b16 %v5284
  %v5919 = vunpack.c.l.b16 %v5285
  %v5920 = vunpack.c.h.b16 %v5285
  %v5921 = vunpack.c.l.b16 %v5286
  %v5922 = vunpack.c.h.b16 %v5286
  %v5923 = vunpack.c.l.b16 %v5287
  %v5924 = vunpack.c.l.b16 %v5288
  %v5925 = vunpack.c.h.b16 %v5288
  %v5926 = vunpack.c.l.b16 %v5289
  %v5927 = vunpack.c.h.b16 %v5289
  %v5928 = vunpack.c.l.b16 %v5290
  %v5929 = vunpack.c.l.b16 %v5291
  %v5930 = vunpack.c.h.b16 %v5291
  %v5931 = vunpack.c.l.b16 %v5292
  %v5932 = vunpack.c.h.b16 %v5292
  %v5933 = vunpack.c.l.b16 %v5293
  %v5934 = vunpack.c.l.b16 %v5294
  %v5935 = vunpack.c.h.b16 %v5294
  %v5936 = vunpack.c.l.b16 %v5295
  %v5937 = vunpack.c.h.b16 %v5295
  %v5938 = vunpack.c.l.b16 %v5296
  %v5939 = vunpack.c.l.b16 %v5297
  %v5940 = vunpack.c.h.b16 %v5297
  %v5941 = vunpack.c.l.b16 %v5298
  %v5942 = vunpack.c.h.b16 %v5298
  %v5943 = vunpack.c.l.b16 %v5299
  %v5944 = vunpack.c.l.b16 %v5300
  %v5945 = vunpack.c.h.b16 %v5300
  %v5946 = vunpack.c.l.b16 %v5301
  %v5947 = vunpack.c.h.b16 %v5301
  %v5948 = vunpack.c.l.b16 %v5302
  %v5949 = vunpack.c.l.b16 %v5303
  %v5950 = vunpack.c.h.b16 %v5303
  %v5951 = vunpack.c.l.b16 %v5304
  %v5952 = vunpack.c.h.b16 %v5304
  %v5953 = vunpack.c.l.b16 %v5305
  %v5954 = vunpack.c.l.b16 %v5306
  %v5955 = vunpack.c.h.b16 %v5306
  %v5956 = vunpack.c.l.b16 %v5307
  %v5957 = vunpack.c.h.b16 %v5307
  %v5958 = vunpack.c.l.b16 %v5308
  %v5959 = vunpack.c.l.b16 %v5309
  %v5960 = vunpack.c.h.b16 %v5309
  %v5961 = vunpack.c.l.b16 %v5310
  %v5962 = vunpack.c.h.b16 %v5310
  %v5963 = vunpack.c.l.b16 %v5311
  %v5964 = vunpack.c.l.b16 %v5312
  %v5965 = vunpack.c.h.b16 %v5312
  %v5966 = vunpack.c.l.b16 %v5313
  %v5967 = vunpack.c.h.b16 %v5313
  %v5968 = vunpack.c.l.b16 %v5314
  %v5969 = vunpack.c.l.b16 %v5315
  %v5970 = vunpack.c.h.b16 %v5315
  %v5971 = vunpack.c.l.b16 %v5316
  %v5972 = vunpack.c.h.b16 %v5316
  %v5973 = vunpack.c.l.b16 %v5317
  %v5974 = vunpack.c.l.b16 %v5318
  %v5975 = vunpack.c.h.b16 %v5318
  %v5976 = vunpack.c.l.b16 %v5319
  %v5977 = vunpack.c.h.b16 %v5319
  %v5978 = vunpack.c.l.b16 %v5320
  %v5979 = vpack.c.b16 %v5584, %v5579
  %v5980 = vpack.c.b16 %v5585, %v5580
  %v5981 = vpack.c.b16 %v5586, %v5581
  %v5982 = vpack.c.b16 %v5587, %v5582
  %v5983 = vpack.c.b16 %v5588, %v5583
  %v5984 = vpack.c.b16 %v5594, %v5589
  %v5985 = vpack.c.b16 %v5595, %v5590
  %v5986 = vpack.c.b16 %v5596, %v5591
  %v5987 = vpack.c.b16 %v5597, %v5592
  %v5988 = vpack.c.b16 %v5598, %v5593
  %v5989 = vpack.c.b16 %v5604, %v5599
  %v5990 = vpack.c.b16 %v5605, %v5600
  %v5991 = vpack.c.b16 %v5606, %v5601
  %v5992 = vpack.c.b16 %v5607, %v5602
  %v5993 = vpack.c.b16 %v5608, %v5603
  %v5994 = vpack.c.b16 %v5614, %v5609
  %v5995 = vpack.c.b16 %v5615, %v5610
  %v5996 = vpack.c.b16 %v5616, %v5611
  %v5997 = vpack.c.b16 %v5617, %v5612
  %v5998 = vpack.c.b16 %v5618, %v5613
  %v5999 = vpack.c.b16 %v5624, %v5619
  %v6000 = vpack.c.b16 %v5625, %v5620
  %v6001 = vpack.c.b16 %v5626, %v5621
  %v6002 = vpack.c.b16 %v5627, %v5622
  %v6003 = vpack.c.b16 %v5628, %v5623
  %v6004 = vpack.c.b16 %v5634, %v5629
  %v6005 = vpack.c.b16 %v5635, %v5630
  %v6006 = vpack.c.b16 %v5636, %v5631
  %v6007 = vpack.c.b16 %v5637, %v5632
  %v6008 = vpack.c.b16 %v5638, %v5633
  %v6009 = vpack.c.b16 %v5644, %v5639
  %v6010 = vpack.c.b16 %v5645, %v5640
  %v6011 = vpack.c.b16 %v5646, %v5641
  %v6012 = vpack.c.b16 %v5647, %v5642
  %v6013 = vpack.c.b16 %v5648, %v5643
  %v6014 = vpack.c.b16 %v5654, %v5649
  %v6015 = vpack.c.b16 %v5655, %v5650
  %v6016 = vpack.c.b16 %v5656, %v5651
  %v6017 = vpack.c.b16 %v5657, %v5652
  %v6018 = vpack.c.b16 %v5658, %v5653
  %v6019 = vpack.c.b16 %v5664, %v5659
  %v6020 = vpack.c.b16 %v5665, %v5660
  %v6021 = vpack.c.b16 %v5666, %v5661
  %v6022 = vpack.c.b16 %v5667, %v5662
  %v6023 = vpack.c.b16 %v5668, %v5663
  %v6024 = vpack.c.b16 %v5674, %v5669
  %v6025 = vpack.c.b16 %v5675, %v5670
  %v6026 = vpack.c.b16 %v5676, %v5671
  %v6027 = vpack.c.b16 %v5677, %v5672
  %v6028 = vpack.c.b16 %v5678, %v5673
  %v6029 = vpack.c.b16 %v5684, %v5679
  %v6030 = vpack.c.b16 %v5685, %v5680
  %v6031 = vpack.c.b16 %v5686, %v5681
  %v6032 = vpack.c.b16 %v5687, %v5682
  %v6033 = vpack.c.b16 %v5688, %v5683
  %v6034 = vpack.c.b16 %v5694, %v5689
  %v6035 = vpack.c.b16 %v5695, %v5690
  %v6036 = vpack.c.b16 %v5696, %v5691
  %v6037 = vpack.c.b16 %v5697, %v5692
  %v6038 = vpack.c.b16 %v5698, %v5693
  %v6039 = vpack.c.b16 %v5704, %v5699
  %v6040 = vpack.c.b16 %v5705, %v5700
  %v6041 = vpack.c.b16 %v5706, %v5701
  %v6042 = vpack.c.b16 %v5707, %v5702
  %v6043 = vpack.c.b16 %v5708, %v5703
  %v6044 = vpack.c.b16 %v5714, %v5709
  %v6045 = vpack.c.b16 %v5715, %v5710
  %v6046 = vpack.c.b16 %v5716, %v5711
  %v6047 = vpack.c.b16 %v5717, %v5712
  %v6048 = vpack.c.b16 %v5718, %v5713
  %v6049 = vpack.c.b16 %v5724, %v5719
  %v6050 = vpack.c.b16 %v5725, %v5720
  %v6051 = vpack.c.b16 %v5726, %v5721
  %v6052 = vpack.c.b16 %v5727, %v5722
  %v6053 = vpack.c.b16 %v5728, %v5723
  %v6054 = vpack.c.b16 %v5734, %v5729
  %v6055 = vpack.c.b16 %v5735, %v5730
  %v6056 = vpack.c.b16 %v5736, %v5731
  %v6057 = vpack.c.b16 %v5737, %v5732
  %v6058 = vpack.c.b16 %v5738, %v5733
  %v6059 = vpack.c.b16 %v5744, %v5739
  %v6060 = vpack.c.b16 %v5745, %v5740
  %v6061 = vpack.c.b16 %v5746, %v5741
  %v6062 = vpack.c.b16 %v5747, %v5742
  %v6063 = vpack.c.b16 %v5748, %v5743
  %v6064 = vpack.c.b16 %v5754, %v5749
  %v6065 = vpack.c.b16 %v5755, %v5750
  %v6066 = vpack.c.b16 %v5756, %v5751
  %v6067 = vpack.c.b16 %v5757, %v5752
  %v6068 = vpack.c.b16 %v5758, %v5753
  %v6069 = vpack.c.b16 %v5764, %v5759
  %v6070 = vpack.c.b16 %v5765, %v5760
  %v6071 = vpack.c.b16 %v5766, %v5761
  %v6072 = vpack.c.b16 %v5767, %v5762
  %v6073 = vpack.c.b16 %v5768, %v5763
  %v6074 = vpack.c.b16 %v5774, %v5769
  %v6075 = vpack.c.b16 %v5775, %v5770
  %v6076 = vpack.c.b16 %v5776, %v5771
  %v6077 = vpack.c.b16 %v5777, %v5772
  %v6078 = vpack.c.b16 %v5778, %v5773
  %v6079 = vpack.c.b16 %v5784, %v5779
  %v6080 = vpack.c.b16 %v5785, %v5780
  %v6081 = vpack.c.b16 %v5786, %v5781
  %v6082 = vpack.c.b16 %v5787, %v5782
  %v6083 = vpack.c.b16 %v5788, %v5783
  %v6084 = vpack.c.b16 %v5794, %v5789
  %v6085 = vpack.c.b16 %v5795, %v5790
  %v6086 = vpack.c.b16 %v5796, %v5791
  %v6087 = vpack.c.b16 %v5797, %v5792
  %v6088 = vpack.c.b16 %v5798, %v5793
  %v6089 = vpack.c.b16 %v5804, %v5799
  %v6090 = vpack.c.b16 %v5805, %v5800
  %v6091 = vpack.c.b16 %v5806, %v5801
  %v6092 = vpack.c.b16 %v5807, %v5802
  %v6093 = vpack.c.b16 %v5808, %v5803
  %v6094 = vpack.c.b16 %v5814, %v5809
  %v6095 = vpack.c.b16 %v5815, %v5810
  %v6096 = vpack.c.b16 %v5816, %v5811
  %v6097 = vpack.c.b16 %v5817, %v5812
  %v6098 = vpack.c.b16 %v5818, %v5813
  %v6099 = vpack.c.b16 %v5824, %v5819
  %v6100 = vpack.c.b16 %v5825, %v5820
  %v6101 = vpack.c.b16 %v5826, %v5821
  %v6102 = vpack.c.b16 %v5827, %v5822
  %v6103 = vpack.c.b16 %v5828, %v5823
  %v6104 = vpack.c.b16 %v5834, %v5829
  %v6105 = vpack.c.b16 %v5835, %v5830
  %v6106 = vpack.c.b16 %v5836, %v5831
  %v6107 = vpack.c.b16 %v5837, %v5832
  %v6108 = vpack.c.b16 %v5838, %v5833
  %v6109 = vpack.c.b16 %v5844, %v5839
  %v6110 = vpack.c.b16 %v5845, %v5840
  %v6111 = vpack.c.b16 %v5846, %v5841
  %v6112 = vpack.c.b16 %v5847, %v5842
  %v6113 = vpack.c.b16 %v5848, %v5843
  %v6114 = vpack.c.b16 %v5854, %v5849
  %v6115 = vpack.c.b16 %v5855, %v5850
  %v6116 = vpack.c.b16 %v5856, %v5851
  %v6117 = vpack.c.b16 %v5857, %v5852
  %v6118 = vpack.c.b16 %v5858, %v5853
  %v6119 = vpack.c.b16 %v5864, %v5859
  %v6120 = vpack.c.b16 %v5865, %v5860
  %v6121 = vpack.c.b16 %v5866, %v5861
  %v6122 = vpack.c.b16 %v5867, %v5862
  %v6123 = vpack.c.b16 %v5868, %v5863
  %v6124 = vpack.c.b16 %v5874, %v5869
  %v6125 = vpack.c.b16 %v5875, %v5870
  %v6126 = vpack.c.b16 %v5876, %v5871
  %v6127 = vpack.c.b16 %v5877, %v5872
  %v6128 = vpack.c.b16 %v5878, %v5873
  %v6129 = vpack.c.b16 %v5884, %v5879
  %v6130 = vpack.c.b16 %v5885, %v5880
  %v6131 = vpack.c.b16 %v5886, %v5881
  %v6132 = vpack.c.b16 %v5887, %v5882
  %v6133 = vpack.c.b16 %v5888, %v5883
  %v6134 = vpack.c.b16 %v5894, %v5889
  %v6135 = vpack.c.b16 %v5895, %v5890
  %v6136 = vpack.c.b16 %v5896, %v5891
  %v6137 = vpack.c.b16 %v5897, %v5892
  %v6138 = vpack.c.b16 %v5898, %v5893
  %v6139 = vpack.c.b16 %v5904, %v5899
  %v6140 = vpack.c.b16 %v5905, %v5900
  %v6141 = vpack.c.b16 %v5906, %v5901
  %v6142 = vpack.c.b16 %v5907, %v5902
  %v6143 = vpack.c.b16 %v5908, %v5903
  %v6144 = vpack.c.b16 %v5914, %v5909
  %v6145 = vpack.c.b16 %v5915, %v5910
  %v6146 = vpack.c.b16 %v5916, %v5911
  %v6147 = vpack.c.b16 %v5917, %v5912
  %v6148 = vpack.c.b16 %v5918, %v5913
  %v6149 = vpack.c.b16 %v5924, %v5919
  %v6150 = vpack.c.b16 %v5925, %v5920
  %v6151 = vpack.c.b16 %v5926, %v5921
  %v6152 = vpack.c.b16 %v5927, %v5922
  %v6153 = vpack.c.b16 %v5928, %v5923
  %v6154 = vpack.c.b16 %v5934, %v5929
  %v6155 = vpack.c.b16 %v5935, %v5930
  %v6156 = vpack.c.b16 %v5936, %v5931
  %v6157 = vpack.c.b16 %v5937, %v5932
  %v6158 = vpack.c.b16 %v5938, %v5933
  %v6159 = vpack.c.b16 %v5944, %v5939
  %v6160 = vpack.c.b16 %v5945, %v5940
  %v6161 = vpack.c.b16 %v5946, %v5941
  %v6162 = vpack.c.b16 %v5947, %v5942
  %v6163 = vpack.c.b16 %v5948, %v5943
  %v6164 = vpack.c.b16 %v5954, %v5949
  %v6165 = vpack.c.b16 %v5955, %v5950
  %v6166 = vpack.c.b16 %v5956, %v5951
  %v6167 = vpack.c.b16 %v5957, %v5952
  %v6168 = vpack.c.b16 %v5958, %v5953
  %v6169 = vpack.c.b16 %v5964, %v5959
  %v6170 = vpack.c.b16 %v5965, %v5960
  %v6171 = vpack.c.b16 %v5966, %v5961
  %v6172 = vpack.c.b16 %v5967, %v5962
  %v6173 = vpack.c.b16 %v5968, %v5963
  %v6174 = vpack.c.b16 %v5974, %v5969
  %v6175 = vpack.c.b16 %v5975, %v5970
  %v6176 = vpack.c.b16 %v5976, %v5971
  %v6177 = vpack.c.b16 %v5977, %v5972
  %v6178 = vpack.c.b16 %v5978, %v5973
  %6379 = vmatprep.subr.bf16.mxu0 %v5980
  %6380 = vmatpush1.bf16.msra.mxu0 %v5979
  %6381 = vmatprep.subr.bf16.mxu0 %v5985
  %6382 = vmatpush1.bf16.msra.mxu0 %v5984
  %6383 = vmatprep.subr.bf16.mxu0 %v5990
  %6384 = vmatpush1.bf16.msra.mxu0 %v5989
  %6385 = vmatprep.subr.bf16.mxu0 %v5995
  %6386 = vmatpush1.bf16.msra.mxu0 %v5994
  %6387 = vmatprep.subr.bf16.mxu0 %v6000
  %6388 = vmatpush1.bf16.msra.mxu0 %v5999
  %6389 = vmatprep.subr.bf16.mxu0 %v6005
  %6390 = vmatpush1.bf16.msra.mxu0 %v6004
  %6391 = vmatprep.subr.bf16.mxu0 %v6010
  %6392 = vmatpush1.bf16.msra.mxu0 %v6009
  %6393 = vmatprep.subr.bf16.mxu0 %v6015
  %6394 = vmatpush1.bf16.msra.mxu0 %v6014
  %6395 = vmatprep.subr.bf16.mxu0 %v6020
  %6396 = vmatpush1.bf16.msra.mxu0 %v6019
  %6397 = vmatprep.subr.bf16.mxu0 %v6025
  %6398 = vmatpush1.bf16.msra.mxu0 %v6024
  %6399 = vmatprep.subr.bf16.mxu0 %v6030
  %6400 = vmatpush1.bf16.msra.mxu0 %v6029
  %6401 = vmatprep.subr.bf16.mxu0 %v6035
  %6402 = vmatpush1.bf16.msra.mxu0 %v6034
  %6403 = vmatprep.subr.bf16.mxu0 %v6040
  %6404 = vmatpush1.bf16.msra.mxu0 %v6039
  %6405 = vmatprep.subr.bf16.mxu0 %v6045
  %6406 = vmatpush1.bf16.msra.mxu0 %v6044
  %6407 = vmatprep.subr.bf16.mxu0 %v6050
  %6408 = vmatpush1.bf16.msra.mxu0 %v6049
  %6409 = vmatprep.subr.bf16.mxu0 %v6055
  %6410 = vmatpush1.bf16.msra.mxu0 %v6054
  %6411 = vmatprep.mubr.bf16.mxu0 %v5330
  %6412 = vmatmul.mubr.bf16.gmra.mrb[0].mxu0 %v5329
  %v6413 = vpop.f32.mrb[0].mxu0
  %v6414 = vadd.f32 0.0, %v6413
  %v6415 = vpop.f32.mrb[0].mxu0
  %v6416 = vadd.f32 0.0, %v6415
  %v6417 = vpop.f32.mrb[0].mxu0
  %v6418 = vpop.f32.mrb[0].mxu0
  %6419 = vdwg.mxu0
  %6420 = vmatprep.subr.bf16.mxu0 %v6060
  %6421 = vmatpush1.bf16.msra.mxu0 %v6059
  %6422 = vmatprep.subr.bf16.mxu0 %v6065
  %6423 = vmatpush1.bf16.msra.mxu0 %v6064
  %6424 = vmatprep.subr.bf16.mxu0 %v6070
  %6425 = vmatpush1.bf16.msra.mxu0 %v6069
  %6426 = vmatprep.subr.bf16.mxu0 %v6075
  %6427 = vmatpush1.bf16.msra.mxu0 %v6074
  %6428 = vmatprep.subr.bf16.mxu0 %v6080
  %6429 = vmatpush1.bf16.msra.mxu0 %v6079
  %6430 = vmatprep.subr.bf16.mxu0 %v6085
  %6431 = vmatpush1.bf16.msra.mxu0 %v6084
  %6432 = vmatprep.subr.bf16.mxu0 %v6090
  %6433 = vmatpush1.bf16.msra.mxu0 %v6089
  %6434 = vmatprep.subr.bf16.mxu0 %v6095
  %6435 = vmatpush1.bf16.msra.mxu0 %v6094
  %6436 = vmatprep.subr.bf16.mxu0 %v6100
  %6437 = vmatpush1.bf16.msra.mxu0 %v6099
  %6438 = vmatprep.subr.bf16.mxu0 %v6105
  %6439 = vmatpush1.bf16.msra.mxu0 %v6104
  %6440 = vmatprep.subr.bf16.mxu0 %v6110
  %6441 = vmatpush1.bf16.msra.mxu0 %v6109
  %6442 = vmatprep.subr.bf16.mxu0 %v6115
  %6443 = vmatpush1.bf16.msra.mxu0 %v6114
  %6444 = vmatprep.subr.bf16.mxu0 %v6120
  %6445 = vmatpush1.bf16.msra.mxu0 %v6119
  %6446 = vmatprep.subr.bf16.mxu0 %v6125
  %6447 = vmatpush1.bf16.msra.mxu0 %v6124
  %6448 = vmatprep.subr.bf16.mxu0 %v6130
  %6449 = vmatpush1.bf16.msra.mxu0 %v6129
  %6450 = vmatprep.subr.bf16.mxu0 %v6135
  %6451 = vmatpush1.bf16.msra.mxu0 %v6134
  %6452 = vmatprep.mubr.bf16.mxu0 %v5332
  %6453 = vmatmul.mubr.bf16.gmra.mrb[0].mxu0 %v5331
  %v6454 = vpop.f32.mrb[0].mxu0
  %v6455 = vadd.f32 %v6414, %v6454
  %v6456 = vpop.f32.mrb[0].mxu0
  %v6457 = vadd.f32 %v6416, %v6456
  %v6458 = vpop.f32.mrb[0].mxu0
  %v6459 = vpop.f32.mrb[0].mxu0
  %6460 = vdwg.mxu0
  %6461 = vmatprep.subr.bf16.mxu0 %v6140
  %6462 = vmatpush1.bf16.msra.mxu0 %v6139
  %6463 = vmatprep.subr.bf16.mxu0 %v6145
  %6464 = vmatpush1.bf16.msra.mxu0 %v6144
  %6465 = vmatprep.subr.bf16.mxu0 %v6150
  %6466 = vmatpush1.bf16.msra.mxu0 %v6149
  %6467 = vmatprep.subr.bf16.mxu0 %v6155
  %6468 = vmatpush1.bf16.msra.mxu0 %v6154
  %6469 = vmatprep.subr.bf16.mxu0 %v6160
  %6470 = vmatpush1.bf16.msra.mxu0 %v6159
  %6471 = vmatprep.subr.bf16.mxu0 %v6165
  %6472 = vmatpush1.bf16.msra.mxu0 %v6164
  %6473 = vmatprep.subr.bf16.mxu0 %v6170
  %6474 = vmatpush1.bf16.msra.mxu0 %v6169
  %6475 = vmatprep.subr.bf16.mxu0 %v6175
  %6476 = vmatpush1.bf16.msra.mxu0 %v6174
  %6477 = vmatprep.subr.bf16.mxu0 0
  %6478 = vmatpush1.bf16.msra.mxu0 0
  %6479 = vmatprep.subr.bf16.mxu0 0
  %6480 = vmatpush1.bf16.msra.mxu0 0
  %6481 = vmatprep.subr.bf16.mxu0 0
  %6482 = vmatpush1.bf16.msra.mxu0 0
  %6483 = vmatprep.subr.bf16.mxu0 0
  %6484 = vmatpush1.bf16.msra.mxu0 0
  %6485 = vmatprep.subr.bf16.mxu0 0
  %6486 = vmatpush1.bf16.msra.mxu0 0
  %6487 = vmatprep.subr.bf16.mxu0 0
  %6488 = vmatpush1.bf16.msra.mxu0 0
  %6489 = vmatprep.subr.bf16.mxu0 0
  %6490 = vmatpush1.bf16.msra.mxu0 0
  %6491 = vmatprep.subr.bf16.mxu0 0
  %6492 = vmatpush1.bf16.msra.mxu0 0
  %6493 = vmatprep.mubr.bf16.mxu0 0
  %6494 = vmatmul.mubr.bf16.gmra.mrb[0].mxu0 %v5333
  %v6495 = vpop.f32.mrb[0].mxu0
  %v6496 = vadd.f32 %v6455, %v6495
  %v6497 = vpop.f32.mrb[0].mxu0
  %v6498 = vadd.f32 %v6457, %v6497
  %v6499 = vpop.f32.mrb[0].mxu0
  %v6500 = vpop.f32.mrb[0].mxu0
  %6501 = vdwg.mxu0
  %6502 = vmatprep.subr.bf16.mxu0 %v5982
  %6503 = vmatpush1.bf16.msra.mxu0 %v5981
  %6504 = vmatprep.subr.bf16.mxu0 %v5987
  %6505 = vmatpush1.bf16.msra.mxu0 %v5986
  %6506 = vmatprep.subr.bf16.mxu0 %v5992
  %6507 = vmatpush1.bf16.msra.mxu0 %v5991
  %6508 = vmatprep.subr.bf16.mxu0 %v5997
  %6509 = vmatpush1.bf16.msra.mxu0 %v5996
  %6510 = vmatprep.subr.bf16.mxu0 %v6002
  %6511 = vmatpush1.bf16.msra.mxu0 %v6001
  %6512 = vmatprep.subr.bf16.mxu0 %v6007
  %6513 = vmatpush1.bf16.msra.mxu0 %v6006
  %6514 = vmatprep.subr.bf16.mxu0 %v6012
  %6515 = vmatpush1.bf16.msra.mxu0 %v6011
  %6516 = vmatprep.subr.bf16.mxu0 %v6017
  %6517 = vmatpush1.bf16.msra.mxu0 %v6016
  %6518 = vmatprep.subr.bf16.mxu0 %v6022
  %6519 = vmatpush1.bf16.msra.mxu0 %v6021
  %6520 = vmatprep.subr.bf16.mxu0 %v6027
  %6521 = vmatpush1.bf16.msra.mxu0 %v6026
  %6522 = vmatprep.subr.bf16.mxu0 %v6032
  %6523 = vmatpush1.bf16.msra.mxu0 %v6031
  %6524 = vmatprep.subr.bf16.mxu0 %v6037
  %6525 = vmatpush1.bf16.msra.mxu0 %v6036
  %6526 = vmatprep.subr.bf16.mxu0 %v6042
  %6527 = vmatpush1.bf16.msra.mxu0 %v6041
  %6528 = vmatprep.subr.bf16.mxu0 %v6047
  %6529 = vmatpush1.bf16.msra.mxu0 %v6046
  %6530 = vmatprep.subr.bf16.mxu0 %v6052
  %6531 = vmatpush1.bf16.msra.mxu0 %v6051
  %6532 = vmatprep.subr.bf16.mxu0 %v6057
  %6533 = vmatpush1.bf16.msra.mxu0 %v6056
  %6534 = vmatprep.mubr.bf16.mxu0 %v5330
  %6535 = vmatmul.mubr.bf16.gmra.mrb[0].mxu0 %v5329
  %v6536 = vpop.f32.mrb[0].mxu0
  %v6537 = vadd.f32 0.0, %v6536
  %v6538 = vpop.f32.mrb[0].mxu0
  %v6539 = vadd.f32 0.0, %v6538
  %v6540 = vpop.f32.mrb[0].mxu0
  %v6541 = vpop.f32.mrb[0].mxu0
  %6542 = vdwg.mxu0
  %6543 = vmatprep.subr.bf16.mxu0 %v6062
  %6544 = vmatpush1.bf16.msra.mxu0 %v6061
  %6545 = vmatprep.subr.bf16.mxu0 %v6067
  %6546 = vmatpush1.bf16.msra.mxu0 %v6066
  %6547 = vmatprep.subr.bf16.mxu0 %v6072
  %6548 = vmatpush1.bf16.msra.mxu0 %v6071
  %6549 = vmatprep.subr.bf16.mxu0 %v6077
  %6550 = vmatpush1.bf16.msra.mxu0 %v6076
  %6551 = vmatprep.subr.bf16.mxu0 %v6082
  %6552 = vmatpush1.bf16.msra.mxu0 %v6081
  %6553 = vmatprep.subr.bf16.mxu0 %v6087
  %6554 = vmatpush1.bf16.msra.mxu0 %v6086
  %6555 = vmatprep.subr.bf16.mxu0 %v6092
  %6556 = vmatpush1.bf16.msra.mxu0 %v6091
  %6557 = vmatprep.subr.bf16.mxu0 %v6097
  %6558 = vmatpush1.bf16.msra.mxu0 %v6096
  %6559 = vmatprep.subr.bf16.mxu0 %v6102
  %6560 = vmatpush1.bf16.msra.mxu0 %v6101
  %6561 = vmatprep.subr.bf16.mxu0 %v6107
  %6562 = vmatpush1.bf16.msra.mxu0 %v6106
  %6563 = vmatprep.subr.bf16.mxu0 %v6112
  %6564 = vmatpush1.bf16.msra.mxu0 %v6111
  %6565 = vmatprep.subr.bf16.mxu0 %v6117
  %6566 = vmatpush1.bf16.msra.mxu0 %v6116
  %6567 = vmatprep.subr.bf16.mxu0 %v6122
  %6568 = vmatpush1.bf16.msra.mxu0 %v6121
  %6569 = vmatprep.subr.bf16.mxu0 %v6127
  %6570 = vmatpush1.bf16.msra.mxu0 %v6126
  %6571 = vmatprep.subr.bf16.mxu0 %v6132
  %6572 = vmatpush1.bf16.msra.mxu0 %v6131
  %6573 = vmatprep.subr.bf16.mxu0 %v6137
  %6574 = vmatpush1.bf16.msra.mxu0 %v6136
  %6575 = vmatprep.mubr.bf16.mxu0 %v5332
  %6576 = vmatmul.mubr.bf16.gmra.mrb[0].mxu0 %v5331
  %v6577 = vpop.f32.mrb[0].mxu0
  %v6578 = vadd.f32 %v6537, %v6577
  %v6579 = vpop.f32.mrb[0].mxu0
  %v6580 = vadd.f32 %v6539, %v6579
  %v6581 = vpop.f32.mrb[0].mxu0
  %v6582 = vpop.f32.mrb[0].mxu0
  %6583 = vdwg.mxu0
  %6584 = vmatprep.subr.bf16.mxu0 %v6142
  %6585 = vmatpush1.bf16.msra.mxu0 %v6141
  %6586 = vmatprep.subr.bf16.mxu0 %v6147
  %6587 = vmatpush1.bf16.msra.mxu0 %v6146
  %6588 = vmatprep.subr.bf16.mxu0 %v6152
  %6589 = vmatpush1.bf16.msra.mxu0 %v6151
  %6590 = vmatprep.subr.bf16.mxu0 %v6157
  %6591 = vmatpush1.bf16.msra.mxu0 %v6156
  %6592 = vmatprep.subr.bf16.mxu0 %v6162
  %6593 = vmatpush1.bf16.msra.mxu0 %v6161
  %6594 = vmatprep.subr.bf16.mxu0 %v6167
  %6595 = vmatpush1.bf16.msra.mxu0 %v6166
  %6596 = vmatprep.subr.bf16.mxu0 %v6172
  %6597 = vmatpush1.bf16.msra.mxu0 %v6171
  %6598 = vmatprep.subr.bf16.mxu0 %v6177
  %6599 = vmatpush1.bf16.msra.mxu0 %v6176
  %6600 = vmatprep.subr.bf16.mxu0 0
  %6601 = vmatpush1.bf16.msra.mxu0 0
  %6602 = vmatprep.subr.bf16.mxu0 0
  %6603 = vmatpush1.bf16.msra.mxu0 0
  %6604 = vmatprep.subr.bf16.mxu0 0
  %6605 = vmatpush1.bf16.msra.mxu0 0
  %6606 = vmatprep.subr.bf16.mxu0 0
  %6607 = vmatpush1.bf16.msra.mxu0 0
  %6608 = vmatprep.subr.bf16.mxu0 0
  %6609 = vmatpush1.bf16.msra.mxu0 0
  %6610 = vmatprep.subr.bf16.mxu0 0
  %6611 = vmatpush1.bf16.msra.mxu0 0
  %6612 = vmatprep.subr.bf16.mxu0 0
  %6613 = vmatpush1.bf16.msra.mxu0 0
  %6614 = vmatprep.subr.bf16.mxu0 0
  %6615 = vmatpush1.bf16.msra.mxu0 0
  %6616 = vmatprep.mubr.bf16.mxu0 0
  %6617 = vmatmul.mubr.bf16.gmra.mrb[0].mxu0 %v5333
  %v6618 = vpop.f32.mrb[0].mxu0
  %v6619 = vadd.f32 %v6578, %v6618
  %v6620 = vpop.f32.mrb[0].mxu0
  %v6621 = vadd.f32 %v6580, %v6620
  %v6622 = vpop.f32.mrb[0].mxu0
  %v6623 = vpop.f32.mrb[0].mxu0
  %6624 = vdwg.mxu0
  %6625 = vmatprep.subr.bf16.mxu0 0
  %6626 = vmatpush1.bf16.msra.mxu0 %v5983
  %6627 = vmatprep.subr.bf16.mxu0 0
  %6628 = vmatpush1.bf16.msra.mxu0 %v5988
  %6629 = vmatprep.subr.bf16.mxu0 0
  %6630 = vmatpush1.bf16.msra.mxu0 %v5993
  %6631 = vmatprep.subr.bf16.mxu0 0
  %6632 = vmatpush1.bf16.msra.mxu0 %v5998
  %6633 = vmatprep.subr.bf16.mxu0 0
  %6634 = vmatpush1.bf16.msra.mxu0 %v6003
  %6635 = vmatprep.subr.bf16.mxu0 0
  %6636 = vmatpush1.bf16.msra.mxu0 %v6008
  %6637 = vmatprep.subr.bf16.mxu0 0
  %6638 = vmatpush1.bf16.msra.mxu0 %v6013
  %6639 = vmatprep.subr.bf16.mxu0 0
  %6640 = vmatpush1.bf16.msra.mxu0 %v6018
  %6641 = vmatprep.subr.bf16.mxu0 0
  %6642 = vmatpush1.bf16.msra.mxu0 %v6023
  %6643 = vmatprep.subr.bf16.mxu0 0
  %6644 = vmatpush1.bf16.msra.mxu0 %v6028
  %6645 = vmatprep.subr.bf16.mxu0 0
  %6646 = vmatpush1.bf16.msra.mxu0 %v6033
  %6647 = vmatprep.subr.bf16.mxu0 0
  %6648 = vmatpush1.bf16.msra.mxu0 %v6038
  %6649 = vmatprep.subr.bf16.mxu0 0
  %6650 = vmatpush1.bf16.msra.mxu0 %v6043
  %6651 = vmatprep.subr.bf16.mxu0 0
  %6652 = vmatpush1.bf16.msra.mxu0 %v6048
  %6653 = vmatprep.subr.bf16.mxu0 0
  %6654 = vmatpush1.bf16.msra.mxu0 %v6053
  %6655 = vmatprep.subr.bf16.mxu0 0
  %6656 = vmatpush1.bf16.msra.mxu0 %v6058
  %6657 = vmatprep.mubr.bf16.mxu0 %v5330
  %6658 = vmatmul.mubr.bf16.gmra.mrb[0].mxu0 %v5329
  %v6659 = vpop.f32.mrb[0].mxu0
  %v6660 = vadd.f32 0.0, %v6659
  %v6661 = vpop.f32.mrb[0].mxu0
  %v6662 = vpop.f32.mrb[0].mxu0
  %v6663 = vpop.f32.mrb[0].mxu0
  %6664 = vdwg.mxu0
  %6665 = vmatprep.subr.bf16.mxu0 0
  %6666 = vmatpush1.bf16.msra.mxu0 %v6063
  %6667 = vmatprep.subr.bf16.mxu0 0
  %6668 = vmatpush1.bf16.msra.mxu0 %v6068
  %6669 = vmatprep.subr.bf16.mxu0 0
  %6670 = vmatpush1.bf16.msra.mxu0 %v6073
  %6671 = vmatprep.subr.bf16.mxu0 0
  %6672 = vmatpush1.bf16.msra.mxu0 %v6078
  %6673 = vmatprep.subr.bf16.mxu0 0
  %6674 = vmatpush1.bf16.msra.mxu0 %v6083
  %6675 = vmatprep.subr.bf16.mxu0 0
  %6676 = vmatpush1.bf16.msra.mxu0 %v6088
  %6677 = vmatprep.subr.bf16.mxu0 0
  %6678 = vmatpush1.bf16.msra.mxu0 %v6093
  %6679 = vmatprep.subr.bf16.mxu0 0
  %6680 = vmatpush1.bf16.msra.mxu0 %v6098
  %6681 = vmatprep.subr.bf16.mxu0 0
  %6682 = vmatpush1.bf16.msra.mxu0 %v6103
  %6683 = vmatprep.subr.bf16.mxu0 0
  %6684 = vmatpush1.bf16.msra.mxu0 %v6108
  %6685 = vmatprep.subr.bf16.mxu0 0
  %6686 = vmatpush1.bf16.msra.mxu0 %v6113
  %6687 = vmatprep.subr.bf16.mxu0 0
  %6688 = vmatpush1.bf16.msra.mxu0 %v6118
  %6689 = vmatprep.subr.bf16.mxu0 0
  %6690 = vmatpush1.bf16.msra.mxu0 %v6123
  %6691 = vmatprep.subr.bf16.mxu0 0
  %6692 = vmatpush1.bf16.msra.mxu0 %v6128
  %6693 = vmatprep.subr.bf16.mxu0 0
  %6694 = vmatpush1.bf16.msra.mxu0 %v6133
  %6695 = vmatprep.subr.bf16.mxu0 0
  %6696 = vmatpush1.bf16.msra.mxu0 %v6138
  %6697 = vmatprep.mubr.bf16.mxu0 %v5332
  %6698 = vmatmul.mubr.bf16.gmra.mrb[0].mxu0 %v5331
  %v6699 = vpop.f32.mrb[0].mxu0
  %v6700 = vadd.f32 %v6660, %v6699
  %v6701 = vpop.f32.mrb[0].mxu0
  %v6702 = vpop.f32.mrb[0].mxu0
  %v6703 = vpop.f32.mrb[0].mxu0
  %6704 = vdwg.mxu0
  %6705 = vmatprep.subr.bf16.mxu0 0
  %6706 = vmatpush1.bf16.msra.mxu0 %v6143
  %6707 = vmatprep.subr.bf16.mxu0 0
  %6708 = vmatpush1.bf16.msra.mxu0 %v6148
  %6709 = vmatprep.subr.bf16.mxu0 0
  %6710 = vmatpush1.bf16.msra.mxu0 %v6153
  %6711 = vmatprep.subr.bf16.mxu0 0
  %6712 = vmatpush1.bf16.msra.mxu0 %v6158
  %6713 = vmatprep.subr.bf16.mxu0 0
  %6714 = vmatpush1.bf16.msra.mxu0 %v6163
  %6715 = vmatprep.subr.bf16.mxu0 0
  %6716 = vmatpush1.bf16.msra.mxu0 %v6168
  %6717 = vmatprep.subr.bf16.mxu0 0
  %6718 = vmatpush1.bf16.msra.mxu0 %v6173
  %6719 = vmatprep.subr.bf16.mxu0 0
  %6720 = vmatpush1.bf16.msra.mxu0 %v6178
  %6721 = vmatprep.subr.bf16.mxu0 0
  %6722 = vmatpush1.bf16.msra.mxu0 0
  %6723 = vmatprep.subr.bf16.mxu0 0
  %6724 = vmatpush1.bf16.msra.mxu0 0
  %6725 = vmatprep.subr.bf16.mxu0 0
  %6726 = vmatpush1.bf16.msra.mxu0 0
  %6727 = vmatprep.subr.bf16.mxu0 0
  %6728 = vmatpush1.bf16.msra.mxu0 0
  %6729 = vmatprep.subr.bf16.mxu0 0
  %6730 = vmatpush1.bf16.msra.mxu0 0
  %6731 = vmatprep.subr.bf16.mxu0 0
  %6732 = vmatpush1.bf16.msra.mxu0 0
  %6733 = vmatprep.subr.bf16.mxu0 0
  %6734 = vmatpush1.bf16.msra.mxu0 0
  %6735 = vmatprep.subr.bf16.mxu0 0
  %6736 = vmatpush1.bf16.msra.mxu0 0
  %6737 = vmatprep.mubr.bf16.mxu0 0
  %6738 = vmatmul.mubr.bf16.gmra.mrb[0].mxu0 %v5333
  %v6739 = vpop.f32.mrb[0].mxu0
  %v6740 = vadd.f32 %v6700, %v6739
  %v6741 = vpop.f32.mrb[0].mxu0
  %v6742 = vpop.f32.mrb[0].mxu0
  %v6743 = vpop.f32.mrb[0].mxu0
  %6744 = vdwg.mxu0
  %v6745 = vld [vmem:[%s3 + $0x18] sm:$0xff]
  %v6746 = vld [vmem:[%s3 + $0x20] sm:$0xff]
  %v6747 = vld [vmem:[%s3 + $0x28] sm:$0xff]
  %v6748 = vld [vmem:[%s3 + $0x30] sm:$0xff]
  %v6749 = vld [vmem:[%s3 + $0x38] sm:$0xff]
  %v6750 = vadd.f32 %v6745, %v6496
  %v6751 = vadd.f32 %v6746, %v6498
  %v6752 = vadd.f32 %v6747, %v6619
  %v6753 = vadd.f32 %v6748, %v6621
  %v6754 = vadd.f32 %v6749, %v6740
  %6755 = vst [vmem:[%s3 + $0x18] sm:$0xff] %v6750
  %6756 = vst [vmem:[%s3 + $0x20] sm:$0xff] %v6751
  %6757 = vst [vmem:[%s3 + $0x28] sm:$0xff] %v6752
  %6758 = vst [vmem:[%s3 + $0x30] sm:$0xff] %v6753
  %6759 = vst [vmem:[%s3 + $0x38] sm:$0xff] %v6754
  %s6760 = scalar_lea.vmem %s0, 80
  %v6761 = vld [vmem:[%s6760] sm:$0xff]
  %v6762 = vld [vmem:[%s6760 + $0x8] sm:$0xff]
  %v6763 = vld [vmem:[%s6760 + $0x10] sm:$0xf]
  %v6764 = vld [vmem:[%s1] sm:$0xff]
  %v6765 = vld [vmem:[%s1 + $0x8] sm:$0xff]
  %v6766 = vld [vmem:[%s1 + $0x10] sm:$0xf]
  %v6767 = vld [vmem:[%s1 + $0x14] sm:$0xff]
  %v6768 = vld [vmem:[%s1 + $0x1c] sm:$0xff]
  %v6769 = vld [vmem:[%s1 + $0x24] sm:$0xf]
  %v6770 = vld [vmem:[%s1 + $0x28] sm:$0xff]
  %v6771 = vld [vmem:[%s1 + $0x30] sm:$0xff]
  %v6772 = vld [vmem:[%s1 + $0x38] sm:$0xf]
  %v6773 = vld [vmem:[%s1 + $0x3c] sm:$0xff]
  %v6774 = vld [vmem:[%s1 + $0x44] sm:$0xff]
  %v6775 = vld [vmem:[%s1 + $0x4c] sm:$0xf]
  %v6776 = vld [vmem:[%s1 + $0x50] sm:$0xff]
  %v6777 = vld [vmem:[%s1 + $0x58] sm:$0xff]
  %v6778 = vld [vmem:[%s1 + $0x60] sm:$0xf]
  %v6779 = vld [vmem:[%s1 + $0x64] sm:$0xff]
  %v6780 = vld [vmem:[%s1 + $0x6c] sm:$0xff]
  %v6781 = vld [vmem:[%s1 + $0x74] sm:$0xf]
  %v6782 = vld [vmem:[%s1 + $0x78] sm:$0xff]
  %v6783 = vld [vmem:[%s1 + $0x80] sm:$0xff]
  %v6784 = vld [vmem:[%s1 + $0x88] sm:$0xf]
  %v6785 = vld [vmem:[%s1 + $0x8c] sm:$0xff]
  %v6786 = vld [vmem:[%s1 + $0x94] sm:$0xff]
  %v6787 = vld [vmem:[%s1 + $0x9c] sm:$0xf]
  %v6788 = vld [vmem:[%s1 + $0xa0] sm:$0xff]
  %v6789 = vld [vmem:[%s1 + $0xa8] sm:$0xff]
  %v6790 = vld [vmem:[%s1 + $0xb0] sm:$0xf]
  %v6791 = vld [vmem:[%s1 + $0xb4] sm:$0xff]
  %v6792 = vld [vmem:[%s1 + $0xbc] sm:$0xff]
  %v6793 = vld [vmem:[%s1 + $0xc4] sm:$0xf]
  %v6794 = vld [vmem:[%s1 + $0xc8] sm:$0xff]
  %v6795 = vld [vmem:[%s1 + $0xd0] sm:$0xff]
  %v6796 = vld [vmem:[%s1 + $0xd8] sm:$0xf]
  %v6797 = vld [vmem:[%s1 + $0xdc] sm:$0xff]
  %v6798 = vld [vmem:[%s1 + $0xe4] sm:$0xff]
  %v6799 = vld [vmem:[%s1 + $0xec] sm:$0xf]
  %v6800 = vld [vmem:[%s1 + $0xf0] sm:$0xff]
  %v6801 = vld [vmem:[%s1 + $0xf8] sm:$0xff]
  %v6802 = vld [vmem:[%s1 + $0x100] sm:$0xf]
  %v6803 = vld [vmem:[%s1 + $0x104] sm:$0xff]
  %v6804 = vld [vmem:[%s1 + $0x10c] sm:$0xff]
  %v6805 = vld [vmem:[%s1 + $0x114] sm:$0xf]
  %v6806 = vld [vmem:[%s1 + $0x118] sm:$0xff]
  %v6807 = vld [vmem:[%s1 + $0x120] sm:$0xff]
  %v6808 = vld [vmem:[%s1 + $0x128] sm:$0xf]
  %v6809 = vld [vmem:[%s1 + $0x12c] sm:$0xff]
  %v6810 = vld [vmem:[%s1 + $0x134] sm:$0xff]
  %v6811 = vld [vmem:[%s1 + $0x13c] sm:$0xf]
  %v6812 = vld [vmem:[%s1 + $0x140] sm:$0xff]
  %v6813 = vld [vmem:[%s1 + $0x148] sm:$0xff]
  %v6814 = vld [vmem:[%s1 + $0x150] sm:$0xf]
  %v6815 = vld [vmem:[%s1 + $0x154] sm:$0xff]
  %v6816 = vld [vmem:[%s1 + $0x15c] sm:$0xff]
  %v6817 = vld [vmem:[%s1 + $0x164] sm:$0xf]
  %v6818 = vld [vmem:[%s1 + $0x168] sm:$0xff]
  %v6819 = vld [vmem:[%s1 + $0x170] sm:$0xff]
  %v6820 = vld [vmem:[%s1 + $0x178] sm:$0xf]
  %v6821 = vld [vmem:[%s1 + $0x17c] sm:$0xff]
  %v6822 = vld [vmem:[%s1 + $0x184] sm:$0xff]
  %v6823 = vld [vmem:[%s1 + $0x18c] sm:$0xf]
  %v6824 = vld [vmem:[%s1 + $0x190] sm:$0xff]
  %v6825 = vld [vmem:[%s1 + $0x198] sm:$0xff]
  %v6826 = vld [vmem:[%s1 + $0x1a0] sm:$0xf]
  %v6827 = vld [vmem:[%s1 + $0x1a4] sm:$0xff]
  %v6828 = vld [vmem:[%s1 + $0x1ac] sm:$0xff]
  %v6829 = vld [vmem:[%s1 + $0x1b4] sm:$0xf]
  %v6830 = vld [vmem:[%s1 + $0x1b8] sm:$0xff]
  %v6831 = vld [vmem:[%s1 + $0x1c0] sm:$0xff]
  %v6832 = vld [vmem:[%s1 + $0x1c8] sm:$0xf]
  %v6833 = vld [vmem:[%s1 + $0x1cc] sm:$0xff]
  %v6834 = vld [vmem:[%s1 + $0x1d4] sm:$0xff]
  %v6835 = vld [vmem:[%s1 + $0x1dc] sm:$0xf]
  %v6836 = vld [vmem:[%s1 + $0x1e0] sm:$0xff]
  %v6837 = vld [vmem:[%s1 + $0x1e8] sm:$0xff]
  %v6838 = vld [vmem:[%s1 + $0x1f0] sm:$0xf]
  %v6839 = vld [vmem:[%s1 + $0x1f4] sm:$0xff]
  %v6840 = vld [vmem:[%s1 + $0x1fc] sm:$0xff]
  %v6841 = vld [vmem:[%s1 + $0x204] sm:$0xf]
  %v6842 = vld [vmem:[%s1 + $0x208] sm:$0xff]
  %v6843 = vld [vmem:[%s1 + $0x210] sm:$0xff]
  %v6844 = vld [vmem:[%s1 + $0x218] sm:$0xf]
  %v6845 = vld [vmem:[%s1 + $0x21c] sm:$0xff]
  %v6846 = vld [vmem:[%s1 + $0x224] sm:$0xff]
  %v6847 = vld [vmem:[%s1 + $0x22c] sm:$0xf]
  %v6848 = vld [vmem:[%s1 + $0x230] sm:$0xff]
  %v6849 = vld [vmem:[%s1 + $0x238] sm:$0xff]
  %v6850 = vld [vmem:[%s1 + $0x240] sm:$0xf]
  %v6851 = vld [vmem:[%s1 + $0x244] sm:$0xff]
  %v6852 = vld [vmem:[%s1 + $0x24c] sm:$0xff]
  %v6853 = vld [vmem:[%s1 + $0x254] sm:$0xf]
  %v6854 = vld [vmem:[%s1 + $0x258] sm:$0xff]
  %v6855 = vld [vmem:[%s1 + $0x260] sm:$0xff]
  %v6856 = vld [vmem:[%s1 + $0x268] sm:$0xf]
  %v6857 = vld [vmem:[%s1 + $0x26c] sm:$0xff]
  %v6858 = vld [vmem:[%s1 + $0x274] sm:$0xff]
  %v6859 = vld [vmem:[%s1 + $0x27c] sm:$0xf]
  %v6860 = vld [vmem:[%s1 + $0x280] sm:$0xff]
  %v6861 = vld [vmem:[%s1 + $0x288] sm:$0xff]
  %v6862 = vld [vmem:[%s1 + $0x290] sm:$0xf]
  %v6863 = vld [vmem:[%s1 + $0x294] sm:$0xff]
  %v6864 = vld [vmem:[%s1 + $0x29c] sm:$0xff]
  %v6865 = vld [vmem:[%s1 + $0x2a4] sm:$0xf]
  %v6866 = vld [vmem:[%s1 + $0x2a8] sm:$0xff]
  %v6867 = vld [vmem:[%s1 + $0x2b0] sm:$0xff]
  %v6868 = vld [vmem:[%s1 + $0x2b8] sm:$0xf]
  %v6869 = vld [vmem:[%s1 + $0x2bc] sm:$0xff]
  %v6870 = vld [vmem:[%s1 + $0x2c4] sm:$0xff]
  %v6871 = vld [vmem:[%s1 + $0x2cc] sm:$0xf]
  %v6872 = vld [vmem:[%s1 + $0x2d0] sm:$0xff]
  %v6873 = vld [vmem:[%s1 + $0x2d8] sm:$0xff]
  %v6874 = vld [vmem:[%s1 + $0x2e0] sm:$0xf]
  %v6875 = vld [vmem:[%s1 + $0x2e4] sm:$0xff]
  %v6876 = vld [vmem:[%s1 + $0x2ec] sm:$0xff]
  %v6877 = vld [vmem:[%s1 + $0x2f4] sm:$0xf]
  %v6878 = vld [vmem:[%s1 + $0x2f8] sm:$0xff]
  %v6879 = vld [vmem:[%s1 + $0x300] sm:$0xff]
  %v6880 = vld [vmem:[%s1 + $0x308] sm:$0xf]
  %v6881 = vld [vmem:[%s1 + $0x30c] sm:$0xff]
  %v6882 = vld [vmem:[%s1 + $0x314] sm:$0xff]
  %v6883 = vld [vmem:[%s1 + $0x31c] sm:$0xf]
  %v6884 = vld [vmem:[%s1 + $0x320] sm:$0xff]
  %v6885 = vld [vmem:[%s1 + $0x328] sm:$0xff]
  %v6886 = vld [vmem:[%s1 + $0x330] sm:$0xf]
  %v6887 = vld [vmem:[%s1 + $0x334] sm:$0xff]
  %v6888 = vld [vmem:[%s1 + $0x33c] sm:$0xff]
  %v6889 = vld [vmem:[%s1 + $0x344] sm:$0xf]
  %v6890 = vld [vmem:[%s1 + $0x348] sm:$0xff]
  %v6891 = vld [vmem:[%s1 + $0x350] sm:$0xff]
  %v6892 = vld [vmem:[%s1 + $0x358] sm:$0xf]
  %v6893 = vld [vmem:[%s1 + $0x35c] sm:$0xff]
  %v6894 = vld [vmem:[%s1 + $0x364] sm:$0xff]
  %v6895 = vld [vmem:[%s1 + $0x36c] sm:$0xf]
  %v6896 = vld [vmem:[%s1 + $0x370] sm:$0xff]
  %v6897 = vld [vmem:[%s1 + $0x378] sm:$0xff]
  %v6898 = vld [vmem:[%s1 + $0x380] sm:$0xf]
  %v6899 = vld [vmem:[%s1 + $0x384] sm:$0xff]
  %v6900 = vld [vmem:[%s1 + $0x38c] sm:$0xff]
  %v6901 = vld [vmem:[%s1 + $0x394] sm:$0xf]
  %v6902 = vld [vmem:[%s1 + $0x398] sm:$0xff]
  %v6903 = vld [vmem:[%s1 + $0x3a0] sm:$0xff]
  %v6904 = vld [vmem:[%s1 + $0x3a8] sm:$0xf]
  %v6905 = vld [vmem:[%s1 + $0x3ac] sm:$0xff]
  %v6906 = vld [vmem:[%s1 + $0x3b4] sm:$0xff]
  %v6907 = vld [vmem:[%s1 + $0x3bc] sm:$0xf]
  %v6908 = vld [vmem:[%s1 + $0x3c0] sm:$0xff]
  %v6909 = vld [vmem:[%s1 + $0x3c8] sm:$0xff]
  %v6910 = vld [vmem:[%s1 + $0x3d0] sm:$0xf]
  %v6911 = vld [vmem:[%s1 + $0x3d4] sm:$0xff]
  %v6912 = vld [vmem:[%s1 + $0x3dc] sm:$0xff]
  %v6913 = vld [vmem:[%s1 + $0x3e4] sm:$0xf]
  %v6914 = vld [vmem:[%s1 + $0x3e8] sm:$0xff]
  %v6915 = vld [vmem:[%s1 + $0x3f0] sm:$0xff]
  %v6916 = vld [vmem:[%s1 + $0x3f8] sm:$0xf]
  %v6917 = vld [vmem:[%s1 + $0x3fc] sm:$0xff]
  %v6918 = vld [vmem:[%s1 + $0x404] sm:$0xff]
  %v6919 = vld [vmem:[%s1 + $0x40c] sm:$0xf]
  %v6920 = vld [vmem:[%s1 + $0x410] sm:$0xff]
  %v6921 = vld [vmem:[%s1 + $0x418] sm:$0xff]
  %v6922 = vld [vmem:[%s1 + $0x420] sm:$0xf]
  %v6923 = vld [vmem:[%s1 + $0x424] sm:$0xff]
  %v6924 = vld [vmem:[%s1 + $0x42c] sm:$0xff]
  %v6925 = vld [vmem:[%s1 + $0x434] sm:$0xf]
  %v6926 = vld [vmem:[%s1 + $0x438] sm:$0xff]
  %v6927 = vld [vmem:[%s1 + $0x440] sm:$0xff]
  %v6928 = vld [vmem:[%s1 + $0x448] sm:$0xf]
  %v6929 = vld [vmem:[%s1 + $0x44c] sm:$0xff]
  %v6930 = vld [vmem:[%s1 + $0x454] sm:$0xff]
  %v6931 = vld [vmem:[%s1 + $0x45c] sm:$0xf]
  %v6932 = vld [vmem:[%s1 + $0x460] sm:$0xff]
  %v6933 = vld [vmem:[%s1 + $0x468] sm:$0xff]
  %v6934 = vld [vmem:[%s1 + $0x470] sm:$0xf]
  %v6935 = vld [vmem:[%s1 + $0x474] sm:$0xff]
  %v6936 = vld [vmem:[%s1 + $0x47c] sm:$0xff]
  %v6937 = vld [vmem:[%s1 + $0x484] sm:$0xf]
  %v6938 = vld [vmem:[%s1 + $0x488] sm:$0xff]
  %v6939 = vld [vmem:[%s1 + $0x490] sm:$0xff]
  %v6940 = vld [vmem:[%s1 + $0x498] sm:$0xf]
  %v6941 = vld [vmem:[%s1 + $0x49c] sm:$0xff]
  %v6942 = vld [vmem:[%s1 + $0x4a4] sm:$0xff]
  %v6943 = vld [vmem:[%s1 + $0x4ac] sm:$0xf]
  %v6944 = vld [vmem:[%s1 + $0x4b0] sm:$0xff]
  %v6945 = vld [vmem:[%s1 + $0x4b8] sm:$0xff]
  %v6946 = vld [vmem:[%s1 + $0x4c0] sm:$0xf]
  %v6947 = vld [vmem:[%s1 + $0x4c4] sm:$0xff]
  %v6948 = vld [vmem:[%s1 + $0x4cc] sm:$0xff]
  %v6949 = vld [vmem:[%s1 + $0x4d4] sm:$0xf]
  %v6950 = vld [vmem:[%s1 + $0x4d8] sm:$0xff]
  %v6951 = vld [vmem:[%s1 + $0x4e0] sm:$0xff]
  %v6952 = vld [vmem:[%s1 + $0x4e8] sm:$0xf]
  %v6953 = vld [vmem:[%s1 + $0x4ec] sm:$0xff]
  %v6954 = vld [vmem:[%s1 + $0x4f4] sm:$0xff]
  %v6955 = vld [vmem:[%s1 + $0x4fc] sm:$0xf]
  %v6956 = vld [vmem:[%s1 + $0x500] sm:$0xff]
  %v6957 = vld [vmem:[%s1 + $0x508] sm:$0xff]
  %v6958 = vld [vmem:[%s1 + $0x510] sm:$0xf]
  %v6959 = vld [vmem:[%s1 + $0x514] sm:$0xff]
  %v6960 = vld [vmem:[%s1 + $0x51c] sm:$0xff]
  %v6961 = vld [vmem:[%s1 + $0x524] sm:$0xf]
  %v6962 = vld [vmem:[%s1 + $0x528] sm:$0xff]
  %v6963 = vld [vmem:[%s1 + $0x530] sm:$0xff]
  %v6964 = vld [vmem:[%s1 + $0x538] sm:$0xf]
  %v6965 = vld [vmem:[%s1 + $0x53c] sm:$0xff]
  %v6966 = vld [vmem:[%s1 + $0x544] sm:$0xff]
  %v6967 = vld [vmem:[%s1 + $0x54c] sm:$0xf]
  %v6968 = vld [vmem:[%s1 + $0x550] sm:$0xff]
  %v6969 = vld [vmem:[%s1 + $0x558] sm:$0xff]
  %v6970 = vld [vmem:[%s1 + $0x560] sm:$0xf]
  %v6971 = vld [vmem:[%s1 + $0x564] sm:$0xff]
  %v6972 = vld [vmem:[%s1 + $0x56c] sm:$0xff]
  %v6973 = vld [vmem:[%s1 + $0x574] sm:$0xf]
  %v6974 = vld [vmem:[%s1 + $0x578] sm:$0xff]
  %v6975 = vld [vmem:[%s1 + $0x580] sm:$0xff]
  %v6976 = vld [vmem:[%s1 + $0x588] sm:$0xf]
  %v6977 = vld [vmem:[%s1 + $0x58c] sm:$0xff]
  %v6978 = vld [vmem:[%s1 + $0x594] sm:$0xff]
  %v6979 = vld [vmem:[%s1 + $0x59c] sm:$0xf]
  %v6980 = vld [vmem:[%s1 + $0x5a0] sm:$0xff]
  %v6981 = vld [vmem:[%s1 + $0x5a8] sm:$0xff]
  %v6982 = vld [vmem:[%s1 + $0x5b0] sm:$0xf]
  %v6983 = vld [vmem:[%s1 + $0x5b4] sm:$0xff]
  %v6984 = vld [vmem:[%s1 + $0x5bc] sm:$0xff]
  %v6985 = vld [vmem:[%s1 + $0x5c4] sm:$0xf]
  %v6986 = vld [vmem:[%s1 + $0x5c8] sm:$0xff]
  %v6987 = vld [vmem:[%s1 + $0x5d0] sm:$0xff]
  %v6988 = vld [vmem:[%s1 + $0x5d8] sm:$0xf]
  %v6989 = vld [vmem:[%s1 + $0x5dc] sm:$0xff]
  %v6990 = vld [vmem:[%s1 + $0x5e4] sm:$0xff]
  %v6991 = vld [vmem:[%s1 + $0x5ec] sm:$0xf]
  %v6992 = vld [vmem:[%s1 + $0x5f0] sm:$0xff]
  %v6993 = vld [vmem:[%s1 + $0x5f8] sm:$0xff]
  %v6994 = vld [vmem:[%s1 + $0x600] sm:$0xf]
  %v6995 = vld [vmem:[%s1 + $0x604] sm:$0xff]
  %v6996 = vld [vmem:[%s1 + $0x60c] sm:$0xff]
  %v6997 = vld [vmem:[%s1 + $0x614] sm:$0xf]
  %v6998 = vld [vmem:[%s1 + $0x618] sm:$0xff]
  %v6999 = vld [vmem:[%s1 + $0x620] sm:$0xff]
  %v7000 = vld [vmem:[%s1 + $0x628] sm:$0xf]
  %v7001 = vld [vmem:[%s1 + $0x62c] sm:$0xff]
  %v7002 = vld [vmem:[%s1 + $0x634] sm:$0xff]
  %v7003 = vld [vmem:[%s1 + $0x63c] sm:$0xf]
  %v7007 = vunpack.c.l.b16 %v6761
  %v7008 = vunpack.c.h.b16 %v6761
  %v7009 = vunpack.c.l.b16 %v6762
  %v7010 = vunpack.c.h.b16 %v6762
  %v7011 = vunpack.c.l.b16 %v6763
  %v7012 = vpack.c.b16 %v7007, %v7007
  %v7013 = vpack.c.b16 %v7008, %v7008
  %v7014 = vpack.c.b16 %v7009, %v7009
  %v7015 = vpack.c.b16 %v7010, %v7010
  %v7016 = vpack.c.b16 %v7011, %v7011
  %v7262 = vunpack.c.l.b16 %v6764
  %v7263 = vunpack.c.h.b16 %v6764
  %v7264 = vunpack.c.l.b16 %v6765
  %v7265 = vunpack.c.h.b16 %v6765
  %v7266 = vunpack.c.l.b16 %v6766
  %v7267 = vunpack.c.l.b16 %v6767
  %v7268 = vunpack.c.h.b16 %v6767
  %v7269 = vunpack.c.l.b16 %v6768
  %v7270 = vunpack.c.h.b16 %v6768
  %v7271 = vunpack.c.l.b16 %v6769
  %v7272 = vunpack.c.l.b16 %v6770
  %v7273 = vunpack.c.h.b16 %v6770
  %v7274 = vunpack.c.l.b16 %v6771
  %v7275 = vunpack.c.h.b16 %v6771
  %v7276 = vunpack.c.l.b16 %v6772
  %v7277 = vunpack.c.l.b16 %v6773
  %v7278 = vunpack.c.h.b16 %v6773
  %v7279 = vunpack.c.l.b16 %v6774
  %v7280 = vunpack.c.h.b16 %v6774
  %v7281 = vunpack.c.l.b16 %v6775
  %v7282 = vunpack.c.l.b16 %v6776
  %v7283 = vunpack.c.h.b16 %v6776
  %v7284 = vunpack.c.l.b16 %v6777
  %v7285 = vunpack.c.h.b16 %v6777
  %v7286 = vunpack.c.l.b16 %v6778
  %v7287 = vunpack.c.l.b16 %v6779
  %v7288 = vunpack.c.h.b16 %v6779
  %v7289 = vunpack.c.l.b16 %v6780
  %v7290 = vunpack.c.h.b16 %v6780
  %v7291 = vunpack.c.l.b16 %v6781
  %v7292 = vunpack.c.l.b16 %v6782
  %v7293 = vunpack.c.h.b16 %v6782
  %v7294 = vunpack.c.l.b16 %v6783
  %v7295 = vunpack.c.h.b16 %v6783
  %v7296 = vunpack.c.l.b16 %v6784
  %v7297 = vunpack.c.l.b16 %v6785
  %v7298 = vunpack.c.h.b16 %v6785
  %v7299 = vunpack.c.l.b16 %v6786
  %v7300 = vunpack.c.h.b16 %v6786
  %v7301 = vunpack.c.l.b16 %v6787
  %v7302 = vunpack.c.l.b16 %v6788
  %v7303 = vunpack.c.h.b16 %v6788
  %v7304 = vunpack.c.l.b16 %v6789
  %v7305 = vunpack.c.h.b16 %v6789
  %v7306 = vunpack.c.l.b16 %v6790
  %v7307 = vunpack.c.l.b16 %v6791
  %v7308 = vunpack.c.h.b16 %v6791
  %v7309 = vunpack.c.l.b16 %v6792
  %v7310 = vunpack.c.h.b16 %v6792
  %v7311 = vunpack.c.l.b16 %v6793
  %v7312 = vunpack.c.l.b16 %v6794
  %v7313 = vunpack.c.h.b16 %v6794
  %v7314 = vunpack.c.l.b16 %v6795
  %v7315 = vunpack.c.h.b16 %v6795
  %v7316 = vunpack.c.l.b16 %v6796
  %v7317 = vunpack.c.l.b16 %v6797
  %v7318 = vunpack.c.h.b16 %v6797
  %v7319 = vunpack.c.l.b16 %v6798
  %v7320 = vunpack.c.h.b16 %v6798
  %v7321 = vunpack.c.l.b16 %v6799
  %v7322 = vunpack.c.l.b16 %v6800
  %v7323 = vunpack.c.h.b16 %v6800
  %v7324 = vunpack.c.l.b16 %v6801
  %v7325 = vunpack.c.h.b16 %v6801
  %v7326 = vunpack.c.l.b16 %v6802
  %v7327 = vunpack.c.l.b16 %v6803
  %v7328 = vunpack.c.h.b16 %v6803
  %v7329 = vunpack.c.l.b16 %v6804
  %v7330 = vunpack.c.h.b16 %v6804
  %v7331 = vunpack.c.l.b16 %v6805
  %v7332 = vunpack.c.l.b16 %v6806
  %v7333 = vunpack.c.h.b16 %v6806
  %v7334 = vunpack.c.l.b16 %v6807
  %v7335 = vunpack.c.h.b16 %v6807
  %v7336 = vunpack.c.l.b16 %v6808
  %v7337 = vunpack.c.l.b16 %v6809
  %v7338 = vunpack.c.h.b16 %v6809
  %v7339 = vunpack.c.l.b16 %v6810
  %v7340 = vunpack.c.h.b16 %v6810
  %v7341 = vunpack.c.l.b16 %v6811
  %v7342 = vunpack.c.l.b16 %v6812
  %v7343 = vunpack.c.h.b16 %v6812
  %v7344 = vunpack.c.l.b16 %v6813
  %v7345 = vunpack.c.h.b16 %v6813
  %v7346 = vunpack.c.l.b16 %v6814
  %v7347 = vunpack.c.l.b16 %v6815
  %v7348 = vunpack.c.h.b16 %v6815
  %v7349 = vunpack.c.l.b16 %v6816
  %v7350 = vunpack.c.h.b16 %v6816
  %v7351 = vunpack.c.l.b16 %v6817
  %v7352 = vunpack.c.l.b16 %v6818
  %v7353 = vunpack.c.h.b16 %v6818
  %v7354 = vunpack.c.l.b16 %v6819
  %v7355 = vunpack.c.h.b16 %v6819
  %v7356 = vunpack.c.l.b16 %v6820
  %v7357 = vunpack.c.l.b16 %v6821
  %v7358 = vunpack.c.h.b16 %v6821
  %v7359 = vunpack.c.l.b16 %v6822
  %v7360 = vunpack.c.h.b16 %v6822
  %v7361 = vunpack.c.l.b16 %v6823
  %v7362 = vunpack.c.l.b16 %v6824
  %v7363 = vunpack.c.h.b16 %v6824
  %v7364 = vunpack.c.l.b16 %v6825
  %v7365 = vunpack.c.h.b16 %v6825
  %v7366 = vunpack.c.l.b16 %v6826
  %v7367 = vunpack.c.l.b16 %v6827
  %v7368 = vunpack.c.h.b16 %v6827
  %v7369 = vunpack.c.l.b16 %v6828
  %v7370 = vunpack.c.h.b16 %v6828
  %v7371 = vunpack.c.l.b16 %v6829
  %v7372 = vunpack.c.l.b16 %v6830
  %v7373 = vunpack.c.h.b16 %v6830
  %v7374 = vunpack.c.l.b16 %v6831
  %v7375 = vunpack.c.h.b16 %v6831
  %v7376 = vunpack.c.l.b16 %v6832
  %v7377 = vunpack.c.l.b16 %v6833
  %v7378 = vunpack.c.h.b16 %v6833
  %v7379 = vunpack.c.l.b16 %v6834
  %v7380 = vunpack.c.h.b16 %v6834
  %v7381 = vunpack.c.l.b16 %v6835
  %v7382 = vunpack.c.l.b16 %v6836
  %v7383 = vunpack.c.h.b16 %v6836
  %v7384 = vunpack.c.l.b16 %v6837
  %v7385 = vunpack.c.h.b16 %v6837
  %v7386 = vunpack.c.l.b16 %v6838
  %v7387 = vunpack.c.l.b16 %v6839
  %v7388 = vunpack.c.h.b16 %v6839
  %v7389 = vunpack.c.l.b16 %v6840
  %v7390 = vunpack.c.h.b16 %v6840
  %v7391 = vunpack.c.l.b16 %v6841
  %v7392 = vunpack.c.l.b16 %v6842
  %v7393 = vunpack.c.h.b16 %v6842
  %v7394 = vunpack.c.l.b16 %v6843
  %v7395 = vunpack.c.h.b16 %v6843
  %v7396 = vunpack.c.l.b16 %v6844
  %v7397 = vunpack.c.l.b16 %v6845
  %v7398 = vunpack.c.h.b16 %v6845
  %v7399 = vunpack.c.l.b16 %v6846
  %v7400 = vunpack.c.h.b16 %v6846
  %v7401 = vunpack.c.l.b16 %v6847
  %v7402 = vunpack.c.l.b16 %v6848
  %v7403 = vunpack.c.h.b16 %v6848
  %v7404 = vunpack.c.l.b16 %v6849
  %v7405 = vunpack.c.h.b16 %v6849
  %v7406 = vunpack.c.l.b16 %v6850
  %v7407 = vunpack.c.l.b16 %v6851
  %v7408 = vunpack.c.h.b16 %v6851
  %v7409 = vunpack.c.l.b16 %v6852
  %v7410 = vunpack.c.h.b16 %v6852
  %v7411 = vunpack.c.l.b16 %v6853
  %v7412 = vunpack.c.l.b16 %v6854
  %v7413 = vunpack.c.h.b16 %v6854
  %v7414 = vunpack.c.l.b16 %v6855
  %v7415 = vunpack.c.h.b16 %v6855
  %v7416 = vunpack.c.l.b16 %v6856
  %v7417 = vunpack.c.l.b16 %v6857
  %v7418 = vunpack.c.h.b16 %v6857
  %v7419 = vunpack.c.l.b16 %v6858
  %v7420 = vunpack.c.h.b16 %v6858
  %v7421 = vunpack.c.l.b16 %v6859
  %v7422 = vunpack.c.l.b16 %v6860
  %v7423 = vunpack.c.h.b16 %v6860
  %v7424 = vunpack.c.l.b16 %v6861
  %v7425 = vunpack.c.h.b16 %v6861
  %v7426 = vunpack.c.l.b16 %v6862
  %v7427 = vunpack.c.l.b16 %v6863
  %v7428 = vunpack.c.h.b16 %v6863
  %v7429 = vunpack.c.l.b16 %v6864
  %v7430 = vunpack.c.h.b16 %v6864
  %v7431 = vunpack.c.l.b16 %v6865
  %v7432 = vunpack.c.l.b16 %v6866
  %v7433 = vunpack.c.h.b16 %v6866
  %v7434 = vunpack.c.l.b16 %v6867
  %v7435 = vunpack.c.h.b16 %v6867
  %v7436 = vunpack.c.l.b16 %v6868
  %v7437 = vunpack.c.l.b16 %v6869
  %v7438 = vunpack.c.h.b16 %v6869
  %v7439 = vunpack.c.l.b16 %v6870
  %v7440 = vunpack.c.h.b16 %v6870
  %v7441 = vunpack.c.l.b16 %v6871
  %v7442 = vunpack.c.l.b16 %v6872
  %v7443 = vunpack.c.h.b16 %v6872
  %v7444 = vunpack.c.l.b16 %v6873
  %v7445 = vunpack.c.h.b16 %v6873
  %v7446 = vunpack.c.l.b16 %v6874
  %v7447 = vunpack.c.l.b16 %v6875
  %v7448 = vunpack.c.h.b16 %v6875
  %v7449 = vunpack.c.l.b16 %v6876
  %v7450 = vunpack.c.h.b16 %v6876
  %v7451 = vunpack.c.l.b16 %v6877
  %v7452 = vunpack.c.l.b16 %v6878
  %v7453 = vunpack.c.h.b16 %v6878
  %v7454 = vunpack.c.l.b16 %v6879
  %v7455 = vunpack.c.h.b16 %v6879
  %v7456 = vunpack.c.l.b16 %v6880
  %v7457 = vunpack.c.l.b16 %v6881
  %v7458 = vunpack.c.h.b16 %v6881
  %v7459 = vunpack.c.l.b16 %v6882
  %v7460 = vunpack.c.h.b16 %v6882
  %v7461 = vunpack.c.l.b16 %v6883
  %v7462 = vunpack.c.l.b16 %v6884
  %v7463 = vunpack.c.h.b16 %v6884
  %v7464 = vunpack.c.l.b16 %v6885
  %v7465 = vunpack.c.h.b16 %v6885
  %v7466 = vunpack.c.l.b16 %v6886
  %v7467 = vunpack.c.l.b16 %v6887
  %v7468 = vunpack.c.h.b16 %v6887
  %v7469 = vunpack.c.l.b16 %v6888
  %v7470 = vunpack.c.h.b16 %v6888
  %v7471 = vunpack.c.l.b16 %v6889
  %v7472 = vunpack.c.l.b16 %v6890
  %v7473 = vunpack.c.h.b16 %v6890
  %v7474 = vunpack.c.l.b16 %v6891
  %v7475 = vunpack.c.h.b16 %v6891
  %v7476 = vunpack.c.l.b16 %v6892
  %v7477 = vunpack.c.l.b16 %v6893
  %v7478 = vunpack.c.h.b16 %v6893
  %v7479 = vunpack.c.l.b16 %v6894
  %v7480 = vunpack.c.h.b16 %v6894
  %v7481 = vunpack.c.l.b16 %v6895
  %v7482 = vunpack.c.l.b16 %v6896
  %v7483 = vunpack.c.h.b16 %v6896
  %v7484 = vunpack.c.l.b16 %v6897
  %v7485 = vunpack.c.h.b16 %v6897
  %v7486 = vunpack.c.l.b16 %v6898
  %v7487 = vunpack.c.l.b16 %v6899
  %v7488 = vunpack.c.h.b16 %v6899
  %v7489 = vunpack.c.l.b16 %v6900
  %v7490 = vunpack.c.h.b16 %v6900
  %v7491 = vunpack.c.l.b16 %v6901
  %v7492 = vunpack.c.l.b16 %v6902
  %v7493 = vunpack.c.h.b16 %v6902
  %v7494 = vunpack.c.l.b16 %v6903
  %v7495 = vunpack.c.h.b16 %v6903
  %v7496 = vunpack.c.l.b16 %v6904
  %v7497 = vunpack.c.l.b16 %v6905
  %v7498 = vunpack.c.h.b16 %v6905
  %v7499 = vunpack.c.l.b16 %v6906
  %v7500 = vunpack.c.h.b16 %v6906
  %v7501 = vunpack.c.l.b16 %v6907
  %v7502 = vunpack.c.l.b16 %v6908
  %v7503 = vunpack.c.h.b16 %v6908
  %v7504 = vunpack.c.l.b16 %v6909
  %v7505 = vunpack.c.h.b16 %v6909
  %v7506 = vunpack.c.l.b16 %v6910
  %v7507 = vunpack.c.l.b16 %v6911
  %v7508 = vunpack.c.h.b16 %v6911
  %v7509 = vunpack.c.l.b16 %v6912
  %v7510 = vunpack.c.h.b16 %v6912
  %v7511 = vunpack.c.l.b16 %v6913
  %v7512 = vunpack.c.l.b16 %v6914
  %v7513 = vunpack.c.h.b16 %v6914
  %v7514 = vunpack.c.l.b16 %v6915
  %v7515 = vunpack.c.h.b16 %v6915
  %v7516 = vunpack.c.l.b16 %v6916
  %v7517 = vunpack.c.l.b16 %v6917
  %v7518 = vunpack.c.h.b16 %v6917
  %v7519 = vunpack.c.l.b16 %v6918
  %v7520 = vunpack.c.h.b16 %v6918
  %v7521 = vunpack.c.l.b16 %v6919
  %v7522 = vunpack.c.l.b16 %v6920
  %v7523 = vunpack.c.h.b16 %v6920
  %v7524 = vunpack.c.l.b16 %v6921
  %v7525 = vunpack.c.h.b16 %v6921
  %v7526 = vunpack.c.l.b16 %v6922
  %v7527 = vunpack.c.l.b16 %v6923
  %v7528 = vunpack.c.h.b16 %v6923
  %v7529 = vunpack.c.l.b16 %v6924
  %v7530 = vunpack.c.h.b16 %v6924
  %v7531 = vunpack.c.l.b16 %v6925
  %v7532 = vunpack.c.l.b16 %v6926
  %v7533 = vunpack.c.h.b16 %v6926
  %v7534 = vunpack.c.l.b16 %v6927
  %v7535 = vunpack.c.h.b16 %v6927
  %v7536 = vunpack.c.l.b16 %v6928
  %v7537 = vunpack.c.l.b16 %v6929
  %v7538 = vunpack.c.h.b16 %v6929
  %v7539 = vunpack.c.l.b16 %v6930
  %v7540 = vunpack.c.h.b16 %v6930
  %v7541 = vunpack.c.l.b16 %v6931
  %v7542 = vunpack.c.l.b16 %v6932
  %v7543 = vunpack.c.h.b16 %v6932
  %v7544 = vunpack.c.l.b16 %v6933
  %v7545 = vunpack.c.h.b16 %v6933
  %v7546 = vunpack.c.l.b16 %v6934
  %v7547 = vunpack.c.l.b16 %v6935
  %v7548 = vunpack.c.h.b16 %v6935
  %v7549 = vunpack.c.l.b16 %v6936
  %v7550 = vunpack.c.h.b16 %v6936
  %v7551 = vunpack.c.l.b16 %v6937
  %v7552 = vunpack.c.l.b16 %v6938
  %v7553 = vunpack.c.h.b16 %v6938
  %v7554 = vunpack.c.l.b16 %v6939
  %v7555 = vunpack.c.h.b16 %v6939
  %v7556 = vunpack.c.l.b16 %v6940
  %v7557 = vunpack.c.l.b16 %v6941
  %v7558 = vunpack.c.h.b16 %v6941
  %v7559 = vunpack.c.l.b16 %v6942
  %v7560 = vunpack.c.h.b16 %v6942
  %v7561 = vunpack.c.l.b16 %v6943
  %v7562 = vunpack.c.l.b16 %v6944
  %v7563 = vunpack.c.h.b16 %v6944
  %v7564 = vunpack.c.l.b16 %v6945
  %v7565 = vunpack.c.h.b16 %v6945
  %v7566 = vunpack.c.l.b16 %v6946
  %v7567 = vunpack.c.l.b16 %v6947
  %v7568 = vunpack.c.h.b16 %v6947
  %v7569 = vunpack.c.l.b16 %v6948
  %v7570 = vunpack.c.h.b16 %v6948
  %v7571 = vunpack.c.l.b16 %v6949
  %v7572 = vunpack.c.l.b16 %v6950
  %v7573 = vunpack.c.h.b16 %v6950
  %v7574 = vunpack.c.l.b16 %v6951
  %v7575 = vunpack.c.h.b16 %v6951
  %v7576 = vunpack.c.l.b16 %v6952
  %v7577 = vunpack.c.l.b16 %v6953
  %v7578 = vunpack.c.h.b16 %v6953
  %v7579 = vunpack.c.l.b16 %v6954
  %v7580 = vunpack.c.h.b16 %v6954
  %v7581 = vunpack.c.l.b16 %v6955
  %v7582 = vunpack.c.l.b16 %v6956
  %v7583 = vunpack.c.h.b16 %v6956
  %v7584 = vunpack.c.l.b16 %v6957
  %v7585 = vunpack.c.h.b16 %v6957
  %v7586 = vunpack.c.l.b16 %v6958
  %v7587 = vunpack.c.l.b16 %v6959
  %v7588 = vunpack.c.h.b16 %v6959
  %v7589 = vunpack.c.l.b16 %v6960
  %v7590 = vunpack.c.h.b16 %v6960
  %v7591 = vunpack.c.l.b16 %v6961
  %v7592 = vunpack.c.l.b16 %v6962
  %v7593 = vunpack.c.h.b16 %v6962
  %v7594 = vunpack.c.l.b16 %v6963
  %v7595 = vunpack.c.h.b16 %v6963
  %v7596 = vunpack.c.l.b16 %v6964
  %v7597 = vunpack.c.l.b16 %v6965
  %v7598 = vunpack.c.h.b16 %v6965
  %v7599 = vunpack.c.l.b16 %v6966
  %v7600 = vunpack.c.h.b16 %v6966
  %v7601 = vunpack.c.l.b16 %v6967
  %v7602 = vunpack.c.l.b16 %v6968
  %v7603 = vunpack.c.h.b16 %v6968
  %v7604 = vunpack.c.l.b16 %v6969
  %v7605 = vunpack.c.h.b16 %v6969
  %v7606 = vunpack.c.l.b16 %v6970
  %v7607 = vunpack.c.l.b16 %v6971
  %v7608 = vunpack.c.h.b16 %v6971
  %v7609 = vunpack.c.l.b16 %v6972
  %v7610 = vunpack.c.h.b16 %v6972
  %v7611 = vunpack.c.l.b16 %v6973
  %v7612 = vunpack.c.l.b16 %v6974
  %v7613 = vunpack.c.h.b16 %v6974
  %v7614 = vunpack.c.l.b16 %v6975
  %v7615 = vunpack.c.h.b16 %v6975
  %v7616 = vunpack.c.l.b16 %v6976
  %v7617 = vunpack.c.l.b16 %v6977
  %v7618 = vunpack.c.h.b16 %v6977
  %v7619 = vunpack.c.l.b16 %v6978
  %v7620 = vunpack.c.h.b16 %v6978
  %v7621 = vunpack.c.l.b16 %v6979
  %v7622 = vunpack.c.l.b16 %v6980
  %v7623 = vunpack.c.h.b16 %v6980
  %v7624 = vunpack.c.l.b16 %v6981
  %v7625 = vunpack.c.h.b16 %v6981
  %v7626 = vunpack.c.l.b16 %v6982
  %v7627 = vunpack.c.l.b16 %v6983
  %v7628 = vunpack.c.h.b16 %v6983
  %v7629 = vunpack.c.l.b16 %v6984
  %v7630 = vunpack.c.h.b16 %v6984
  %v7631 = vunpack.c.l.b16 %v6985
  %v7632 = vunpack.c.l.b16 %v6986
  %v7633 = vunpack.c.h.b16 %v6986
  %v7634 = vunpack.c.l.b16 %v6987
  %v7635 = vunpack.c.h.b16 %v6987
  %v7636 = vunpack.c.l.b16 %v6988
  %v7637 = vunpack.c.l.b16 %v6989
  %v7638 = vunpack.c.h.b16 %v6989
  %v7639 = vunpack.c.l.b16 %v6990
  %v7640 = vunpack.c.h.b16 %v6990
  %v7641 = vunpack.c.l.b16 %v6991
  %v7642 = vunpack.c.l.b16 %v6992
  %v7643 = vunpack.c.h.b16 %v6992
  %v7644 = vunpack.c.l.b16 %v6993
  %v7645 = vunpack.c.h.b16 %v6993
  %v7646 = vunpack.c.l.b16 %v6994
  %v7647 = vunpack.c.l.b16 %v6995
  %v7648 = vunpack.c.h.b16 %v6995
  %v7649 = vunpack.c.l.b16 %v6996
  %v7650 = vunpack.c.h.b16 %v6996
  %v7651 = vunpack.c.l.b16 %v6997
  %v7652 = vunpack.c.l.b16 %v6998
  %v7653 = vunpack.c.h.b16 %v6998
  %v7654 = vunpack.c.l.b16 %v6999
  %v7655 = vunpack.c.h.b16 %v6999
  %v7656 = vunpack.c.l.b16 %v7000
  %v7657 = vunpack.c.l.b16 %v7001
  %v7658 = vunpack.c.h.b16 %v7001
  %v7659 = vunpack.c.l.b16 %v7002
  %v7660 = vunpack.c.h.b16 %v7002
  %v7661 = vunpack.c.l.b16 %v7003
  %v7662 = vpack.c.b16 %v7267, %v7262
  %v7663 = vpack.c.b16 %v7268, %v7263
  %v7664 = vpack.c.b16 %v7269, %v7264
  %v7665 = vpack.c.b16 %v7270, %v7265
  %v7666 = vpack.c.b16 %v7271, %v7266
  %v7667 = vpack.c.b16 %v7277, %v7272
  %v7668 = vpack.c.b16 %v7278, %v7273
  %v7669 = vpack.c.b16 %v7279, %v7274
  %v7670 = vpack.c.b16 %v7280, %v7275
  %v7671 = vpack.c.b16 %v7281, %v7276
  %v7672 = vpack.c.b16 %v7287, %v7282
  %v7673 = vpack.c.b16 %v7288, %v7283
  %v7674 = vpack.c.b16 %v7289, %v7284
  %v7675 = vpack.c.b16 %v7290, %v7285
  %v7676 = vpack.c.b16 %v7291, %v7286
  %v7677 = vpack.c.b16 %v7297, %v7292
  %v7678 = vpack.c.b16 %v7298, %v7293
  %v7679 = vpack.c.b16 %v7299, %v7294
  %v7680 = vpack.c.b16 %v7300, %v7295
  %v7681 = vpack.c.b16 %v7301, %v7296
  %v7682 = vpack.c.b16 %v7307, %v7302
  %v7683 = vpack.c.b16 %v7308, %v7303
  %v7684 = vpack.c.b16 %v7309, %v7304
  %v7685 = vpack.c.b16 %v7310, %v7305
  %v7686 = vpack.c.b16 %v7311, %v7306
  %v7687 = vpack.c.b16 %v7317, %v7312
  %v7688 = vpack.c.b16 %v7318, %v7313
  %v7689 = vpack.c.b16 %v7319, %v7314
  %v7690 = vpack.c.b16 %v7320, %v7315
  %v7691 = vpack.c.b16 %v7321, %v7316
  %v7692 = vpack.c.b16 %v7327, %v7322
  %v7693 = vpack.c.b16 %v7328, %v7323
  %v7694 = vpack.c.b16 %v7329, %v7324
  %v7695 = vpack.c.b16 %v7330, %v7325
  %v7696 = vpack.c.b16 %v7331, %v7326
  %v7697 = vpack.c.b16 %v7337, %v7332
  %v7698 = vpack.c.b16 %v7338, %v7333
  %v7699 = vpack.c.b16 %v7339, %v7334
  %v7700 = vpack.c.b16 %v7340, %v7335
  %v7701 = vpack.c.b16 %v7341, %v7336
  %v7702 = vpack.c.b16 %v7347, %v7342
  %v7703 = vpack.c.b16 %v7348, %v7343
  %v7704 = vpack.c.b16 %v7349, %v7344
  %v7705 = vpack.c.b16 %v7350, %v7345
  %v7706 = vpack.c.b16 %v7351, %v7346
  %v7707 = vpack.c.b16 %v7357, %v7352
  %v7708 = vpack.c.b16 %v7358, %v7353
  %v7709 = vpack.c.b16 %v7359, %v7354
  %v7710 = vpack.c.b16 %v7360, %v7355
  %v7711 = vpack.c.b16 %v7361, %v7356
  %v7712 = vpack.c.b16 %v7367, %v7362
  %v7713 = vpack.c.b16 %v7368, %v7363
  %v7714 = vpack.c.b16 %v7369, %v7364
  %v7715 = vpack.c.b16 %v7370, %v7365
  %v7716 = vpack.c.b16 %v7371, %v7366
  %v7717 = vpack.c.b16 %v7377, %v7372
  %v7718 = vpack.c.b16 %v7378, %v7373
  %v7719 = vpack.c.b16 %v7379, %v7374
  %v7720 = vpack.c.b16 %v7380, %v7375
  %v7721 = vpack.c.b16 %v7381, %v7376
  %v7722 = vpack.c.b16 %v7387, %v7382
  %v7723 = vpack.c.b16 %v7388, %v7383
  %v7724 = vpack.c.b16 %v7389, %v7384
  %v7725 = vpack.c.b16 %v7390, %v7385
  %v7726 = vpack.c.b16 %v7391, %v7386
  %v7727 = vpack.c.b16 %v7397, %v7392
  %v7728 = vpack.c.b16 %v7398, %v7393
  %v7729 = vpack.c.b16 %v7399, %v7394
  %v7730 = vpack.c.b16 %v7400, %v7395
  %v7731 = vpack.c.b16 %v7401, %v7396
  %v7732 = vpack.c.b16 %v7407, %v7402
  %v7733 = vpack.c.b16 %v7408, %v7403
  %v7734 = vpack.c.b16 %v7409, %v7404
  %v7735 = vpack.c.b16 %v7410, %v7405
  %v7736 = vpack.c.b16 %v7411, %v7406
  %v7737 = vpack.c.b16 %v7417, %v7412
  %v7738 = vpack.c.b16 %v7418, %v7413
  %v7739 = vpack.c.b16 %v7419, %v7414
  %v7740 = vpack.c.b16 %v7420, %v7415
  %v7741 = vpack.c.b16 %v7421, %v7416
  %v7742 = vpack.c.b16 %v7427, %v7422
  %v7743 = vpack.c.b16 %v7428, %v7423
  %v7744 = vpack.c.b16 %v7429, %v7424
  %v7745 = vpack.c.b16 %v7430, %v7425
  %v7746 = vpack.c.b16 %v7431, %v7426
  %v7747 = vpack.c.b16 %v7437, %v7432
  %v7748 = vpack.c.b16 %v7438, %v7433
  %v7749 = vpack.c.b16 %v7439, %v7434
  %v7750 = vpack.c.b16 %v7440, %v7435
  %v7751 = vpack.c.b16 %v7441, %v7436
  %v7752 = vpack.c.b16 %v7447, %v7442
  %v7753 = vpack.c.b16 %v7448, %v7443
  %v7754 = vpack.c.b16 %v7449, %v7444
  %v7755 = vpack.c.b16 %v7450, %v7445
  %v7756 = vpack.c.b16 %v7451, %v7446
  %v7757 = vpack.c.b16 %v7457, %v7452
  %v7758 = vpack.c.b16 %v7458, %v7453
  %v7759 = vpack.c.b16 %v7459, %v7454
  %v7760 = vpack.c.b16 %v7460, %v7455
  %v7761 = vpack.c.b16 %v7461, %v7456
  %v7762 = vpack.c.b16 %v7467, %v7462
  %v7763 = vpack.c.b16 %v7468, %v7463
  %v7764 = vpack.c.b16 %v7469, %v7464
  %v7765 = vpack.c.b16 %v7470, %v7465
  %v7766 = vpack.c.b16 %v7471, %v7466
  %v7767 = vpack.c.b16 %v7477, %v7472
  %v7768 = vpack.c.b16 %v7478, %v7473
  %v7769 = vpack.c.b16 %v7479, %v7474
  %v7770 = vpack.c.b16 %v7480, %v7475
  %v7771 = vpack.c.b16 %v7481, %v7476
  %v7772 = vpack.c.b16 %v7487, %v7482
  %v7773 = vpack.c.b16 %v7488, %v7483
  %v7774 = vpack.c.b16 %v7489, %v7484
  %v7775 = vpack.c.b16 %v7490, %v7485
  %v7776 = vpack.c.b16 %v7491, %v7486
  %v7777 = vpack.c.b16 %v7497, %v7492
  %v7778 = vpack.c.b16 %v7498, %v7493
  %v7779 = vpack.c.b16 %v7499, %v7494
  %v7780 = vpack.c.b16 %v7500, %v7495
  %v7781 = vpack.c.b16 %v7501, %v7496
  %v7782 = vpack.c.b16 %v7507, %v7502
  %v7783 = vpack.c.b16 %v7508, %v7503
  %v7784 = vpack.c.b16 %v7509, %v7504
  %v7785 = vpack.c.b16 %v7510, %v7505
  %v7786 = vpack.c.b16 %v7511, %v7506
  %v7787 = vpack.c.b16 %v7517, %v7512
  %v7788 = vpack.c.b16 %v7518, %v7513
  %v7789 = vpack.c.b16 %v7519, %v7514
  %v7790 = vpack.c.b16 %v7520, %v7515
  %v7791 = vpack.c.b16 %v7521, %v7516
  %v7792 = vpack.c.b16 %v7527, %v7522
  %v7793 = vpack.c.b16 %v7528, %v7523
  %v7794 = vpack.c.b16 %v7529, %v7524
  %v7795 = vpack.c.b16 %v7530, %v7525
  %v7796 = vpack.c.b16 %v7531, %v7526
  %v7797 = vpack.c.b16 %v7537, %v7532
  %v7798 = vpack.c.b16 %v7538, %v7533
  %v7799 = vpack.c.b16 %v7539, %v7534
  %v7800 = vpack.c.b16 %v7540, %v7535
  %v7801 = vpack.c.b16 %v7541, %v7536
  %v7802 = vpack.c.b16 %v7547, %v7542
  %v7803 = vpack.c.b16 %v7548, %v7543
  %v7804 = vpack.c.b16 %v7549, %v7544
  %v7805 = vpack.c.b16 %v7550, %v7545
  %v7806 = vpack.c.b16 %v7551, %v7546
  %v7807 = vpack.c.b16 %v7557, %v7552
  %v7808 = vpack.c.b16 %v7558, %v7553
  %v7809 = vpack.c.b16 %v7559, %v7554
  %v7810 = vpack.c.b16 %v7560, %v7555
  %v7811 = vpack.c.b16 %v7561, %v7556
  %v7812 = vpack.c.b16 %v7567, %v7562
  %v7813 = vpack.c.b16 %v7568, %v7563
  %v7814 = vpack.c.b16 %v7569, %v7564
  %v7815 = vpack.c.b16 %v7570, %v7565
  %v7816 = vpack.c.b16 %v7571, %v7566
  %v7817 = vpack.c.b16 %v7577, %v7572
  %v7818 = vpack.c.b16 %v7578, %v7573
  %v7819 = vpack.c.b16 %v7579, %v7574
  %v7820 = vpack.c.b16 %v7580, %v7575
  %v7821 = vpack.c.b16 %v7581, %v7576
  %v7822 = vpack.c.b16 %v7587, %v7582
  %v7823 = vpack.c.b16 %v7588, %v7583
  %v7824 = vpack.c.b16 %v7589, %v7584
  %v7825 = vpack.c.b16 %v7590, %v7585
  %v7826 = vpack.c.b16 %v7591, %v7586
  %v7827 = vpack.c.b16 %v7597, %v7592
  %v7828 = vpack.c.b16 %v7598, %v7593
  %v7829 = vpack.c.b16 %v7599, %v7594
  %v7830 = vpack.c.b16 %v7600, %v7595
  %v7831 = vpack.c.b16 %v7601, %v7596
  %v7832 = vpack.c.b16 %v7607, %v7602
  %v7833 = vpack.c.b16 %v7608, %v7603
  %v7834 = vpack.c.b16 %v7609, %v7604
  %v7835 = vpack.c.b16 %v7610, %v7605
  %v7836 = vpack.c.b16 %v7611, %v7606
  %v7837 = vpack.c.b16 %v7617, %v7612
  %v7838 = vpack.c.b16 %v7618, %v7613
  %v7839 = vpack.c.b16 %v7619, %v7614
  %v7840 = vpack.c.b16 %v7620, %v7615
  %v7841 = vpack.c.b16 %v7621, %v7616
  %v7842 = vpack.c.b16 %v7627, %v7622
  %v7843 = vpack.c.b16 %v7628, %v7623
  %v7844 = vpack.c.b16 %v7629, %v7624
  %v7845 = vpack.c.b16 %v7630, %v7625
  %v7846 = vpack.c.b16 %v7631, %v7626
  %v7847 = vpack.c.b16 %v7637, %v7632
  %v7848 = vpack.c.b16 %v7638, %v7633
  %v7849 = vpack.c.b16 %v7639, %v7634
  %v7850 = vpack.c.b16 %v7640, %v7635
  %v7851 = vpack.c.b16 %v7641, %v7636
  %v7852 = vpack.c.b16 %v7647, %v7642
  %v7853 = vpack.c.b16 %v7648, %v7643
  %v7854 = vpack.c.b16 %v7649, %v7644
  %v7855 = vpack.c.b16 %v7650, %v7645
  %v7856 = vpack.c.b16 %v7651, %v7646
  %v7857 = vpack.c.b16 %v7657, %v7652
  %v7858 = vpack.c.b16 %v7658, %v7653
  %v7859 = vpack.c.b16 %v7659, %v7654
  %v7860 = vpack.c.b16 %v7660, %v7655
  %v7861 = vpack.c.b16 %v7661, %v7656
  %8062 = vmatprep.subr.bf16.mxu0 %v7663
  %8063 = vmatpush1.bf16.msra.mxu0 %v7662
  %8064 = vmatprep.subr.bf16.mxu0 %v7668
  %8065 = vmatpush1.bf16.msra.mxu0 %v7667
  %8066 = vmatprep.subr.bf16.mxu0 %v7673
  %8067 = vmatpush1.bf16.msra.mxu0 %v7672
  %8068 = vmatprep.subr.bf16.mxu0 %v7678
  %8069 = vmatpush1.bf16.msra.mxu0 %v7677
  %8070 = vmatprep.subr.bf16.mxu0 %v7683
  %8071 = vmatpush1.bf16.msra.mxu0 %v7682
  %8072 = vmatprep.subr.bf16.mxu0 %v7688
  %8073 = vmatpush1.bf16.msra.mxu0 %v7687
  %8074 = vmatprep.subr.bf16.mxu0 %v7693
  %8075 = vmatpush1.bf16.msra.mxu0 %v7692
  %8076 = vmatprep.subr.bf16.mxu0 %v7698
  %8077 = vmatpush1.bf16.msra.mxu0 %v7697
  %8078 = vmatprep.subr.bf16.mxu0 %v7703
  %8079 = vmatpush1.bf16.msra.mxu0 %v7702
  %8080 = vmatprep.subr.bf16.mxu0 %v7708
  %8081 = vmatpush1.bf16.msra.mxu0 %v7707
  %8082 = vmatprep.subr.bf16.mxu0 %v7713
  %8083 = vmatpush1.bf16.msra.mxu0 %v7712
  %8084 = vmatprep.subr.bf16.mxu0 %v7718
  %8085 = vmatpush1.bf16.msra.mxu0 %v7717
  %8086 = vmatprep.subr.bf16.mxu0 %v7723
  %8087 = vmatpush1.bf16.msra.mxu0 %v7722
  %8088 = vmatprep.subr.bf16.mxu0 %v7728
  %8089 = vmatpush1.bf16.msra.mxu0 %v7727
  %8090 = vmatprep.subr.bf16.mxu0 %v7733
  %8091 = vmatpush1.bf16.msra.mxu0 %v7732
  %8092 = vmatprep.subr.bf16.mxu0 %v7738
  %8093 = vmatpush1.bf16.msra.mxu0 %v7737
  %8094 = vmatprep.mubr.bf16.mxu0 %v7013
  %8095 = vmatmul.mubr.bf16.gmra.mrb[0].mxu0 %v7012
  %v8096 = vpop.f32.mrb[0].mxu0
  %v8097 = vadd.f32 0.0, %v8096
  %v8098 = vpop.f32.mrb[0].mxu0
  %v8099 = vadd.f32 0.0, %v8098
  %v8100 = vpop.f32.mrb[0].mxu0
  %v8101 = vpop.f32.mrb[0].mxu0
  %8102 = vdwg.mxu0
  %8103 = vmatprep.subr.bf16.mxu0 %v7743
  %8104 = vmatpush1.bf16.msra.mxu0 %v7742
  %8105 = vmatprep.subr.bf16.mxu0 %v7748
  %8106 = vmatpush1.bf16.msra.mxu0 %v7747
  %8107 = vmatprep.subr.bf16.mxu0 %v7753
  %8108 = vmatpush1.bf16.msra.mxu0 %v7752
  %8109 = vmatprep.subr.bf16.mxu0 %v7758
  %8110 = vmatpush1.bf16.msra.mxu0 %v7757
  %8111 = vmatprep.subr.bf16.mxu0 %v7763
  %8112 = vmatpush1.bf16.msra.mxu0 %v7762
  %8113 = vmatprep.subr.bf16.mxu0 %v7768
  %8114 = vmatpush1.bf16.msra.mxu0 %v7767
  %8115 = vmatprep.subr.bf16.mxu0 %v7773
  %8116 = vmatpush1.bf16.msra.mxu0 %v7772
  %8117 = vmatprep.subr.bf16.mxu0 %v7778
  %8118 = vmatpush1.bf16.msra.mxu0 %v7777
  %8119 = vmatprep.subr.bf16.mxu0 %v7783
  %8120 = vmatpush1.bf16.msra.mxu0 %v7782
  %8121 = vmatprep.subr.bf16.mxu0 %v7788
  %8122 = vmatpush1.bf16.msra.mxu0 %v7787
  %8123 = vmatprep.subr.bf16.mxu0 %v7793
  %8124 = vmatpush1.bf16.msra.mxu0 %v7792
  %8125 = vmatprep.subr.bf16.mxu0 %v7798
  %8126 = vmatpush1.bf16.msra.mxu0 %v7797
  %8127 = vmatprep.subr.bf16.mxu0 %v7803
  %8128 = vmatpush1.bf16.msra.mxu0 %v7802
  %8129 = vmatprep.subr.bf16.mxu0 %v7808
  %8130 = vmatpush1.bf16.msra.mxu0 %v7807
  %8131 = vmatprep.subr.bf16.mxu0 %v7813
  %8132 = vmatpush1.bf16.msra.mxu0 %v7812
  %8133 = vmatprep.subr.bf16.mxu0 %v7818
  %8134 = vmatpush1.bf16.msra.mxu0 %v7817
  %8135 = vmatprep.mubr.bf16.mxu0 %v7015
  %8136 = vmatmul.mubr.bf16.gmra.mrb[0].mxu0 %v7014
  %v8137 = vpop.f32.mrb[0].mxu0
  %v8138 = vadd.f32 %v8097, %v8137
  %v8139 = vpop.f32.mrb[0].mxu0
  %v8140 = vadd.f32 %v8099, %v8139
  %v8141 = vpop.f32.mrb[0].mxu0
  %v8142 = vpop.f32.mrb[0].mxu0
  %8143 = vdwg.mxu0
  %8144 = vmatprep.subr.bf16.mxu0 %v7823
  %8145 = vmatpush1.bf16.msra.mxu0 %v7822
  %8146 = vmatprep.subr.bf16.mxu0 %v7828
  %8147 = vmatpush1.bf16.msra.mxu0 %v7827
  %8148 = vmatprep.subr.bf16.mxu0 %v7833
  %8149 = vmatpush1.bf16.msra.mxu0 %v7832
  %8150 = vmatprep.subr.bf16.mxu0 %v7838
  %8151 = vmatpush1.bf16.msra.mxu0 %v7837
  %8152 = vmatprep.subr.bf16.mxu0 %v7843
  %8153 = vmatpush1.bf16.msra.mxu0 %v7842
  %8154 = vmatprep.subr.bf16.mxu0 %v7848
  %8155 = vmatpush1.bf16.msra.mxu0 %v7847
  %8156 = vmatprep.subr.bf16.mxu0 %v7853
  %8157 = vmatpush1.bf16.msra.mxu0 %v7852
  %8158 = vmatprep.subr.bf16.mxu0 %v7858
  %8159 = vmatpush1.bf16.msra.mxu0 %v7857
  %8160 = vmatprep.subr.bf16.mxu0 0
  %8161 = vmatpush1.bf16.msra.mxu0 0
  %8162 = vmatprep.subr.bf16.mxu0 0
  %8163 = vmatpush1.bf16.msra.mxu0 0
  %8164 = vmatprep.subr.bf16.mxu0 0
  %8165 = vmatpush1.bf16.msra.mxu0 0
  %8166 = vmatprep.subr.bf16.mxu0 0
  %8167 = vmatpush1.bf16.msra.mxu0 0
  %8168 = vmatprep.subr.bf16.mxu0 0
  %8169 = vmatpush1.bf16.msra.mxu0 0
  %8170 = vmatprep.subr.bf16.mxu0 0
  %8171 = vmatpush1.bf16.msra.mxu0 0
  %8172 = vmatprep.subr.bf16.mxu0 0
  %8173 = vmatpush1.bf16.msra.mxu0 0
  %8174 = vmatprep.subr.bf16.mxu0 0
  %8175 = vmatpush1.bf16.msra.mxu0 0
  %8176 = vmatprep.mubr.bf16.mxu0 0
  %8177 = vmatmul.mubr.bf16.gmra.mrb[0].mxu0 %v7016
  %v8178 = vpop.f32.mrb[0].mxu0
  %v8179 = vadd.f32 %v8138, %v8178
  %v8180 = vpop.f32.mrb[0].mxu0
  %v8181 = vadd.f32 %v8140, %v8180
  %v8182 = vpop.f32.mrb[0].mxu0
  %v8183 = vpop.f32.mrb[0].mxu0
  %8184 = vdwg.mxu0
  %8185 = vmatprep.subr.bf16.mxu0 %v7665
  %8186 = vmatpush1.bf16.msra.mxu0 %v7664
  %8187 = vmatprep.subr.bf16.mxu0 %v7670
  %8188 = vmatpush1.bf16.msra.mxu0 %v7669
  %8189 = vmatprep.subr.bf16.mxu0 %v7675
  %8190 = vmatpush1.bf16.msra.mxu0 %v7674
  %8191 = vmatprep.subr.bf16.mxu0 %v7680
  %8192 = vmatpush1.bf16.msra.mxu0 %v7679
  %8193 = vmatprep.subr.bf16.mxu0 %v7685
  %8194 = vmatpush1.bf16.msra.mxu0 %v7684
  %8195 = vmatprep.subr.bf16.mxu0 %v7690
  %8196 = vmatpush1.bf16.msra.mxu0 %v7689
  %8197 = vmatprep.subr.bf16.mxu0 %v7695
  %8198 = vmatpush1.bf16.msra.mxu0 %v7694
  %8199 = vmatprep.subr.bf16.mxu0 %v7700
  %8200 = vmatpush1.bf16.msra.mxu0 %v7699
  %8201 = vmatprep.subr.bf16.mxu0 %v7705
  %8202 = vmatpush1.bf16.msra.mxu0 %v7704
  %8203 = vmatprep.subr.bf16.mxu0 %v7710
  %8204 = vmatpush1.bf16.msra.mxu0 %v7709
  %8205 = vmatprep.subr.bf16.mxu0 %v7715
  %8206 = vmatpush1.bf16.msra.mxu0 %v7714
  %8207 = vmatprep.subr.bf16.mxu0 %v7720
  %8208 = vmatpush1.bf16.msra.mxu0 %v7719
  %8209 = vmatprep.subr.bf16.mxu0 %v7725
  %8210 = vmatpush1.bf16.msra.mxu0 %v7724
  %8211 = vmatprep.subr.bf16.mxu0 %v7730
  %8212 = vmatpush1.bf16.msra.mxu0 %v7729
  %8213 = vmatprep.subr.bf16.mxu0 %v7735
  %8214 = vmatpush1.bf16.msra.mxu0 %v7734
  %8215 = vmatprep.subr.bf16.mxu0 %v7740
  %8216 = vmatpush1.bf16.msra.mxu0 %v7739
  %8217 = vmatprep.mubr.bf16.mxu0 %v7013
  %8218 = vmatmul.mubr.bf16.gmra.mrb[0].mxu0 %v7012
  %v8219 = vpop.f32.mrb[0].mxu0
  %v8220 = vadd.f32 0.0, %v8219
  %v8221 = vpop.f32.mrb[0].mxu0
  %v8222 = vadd.f32 0.0, %v8221
  %v8223 = vpop.f32.mrb[0].mxu0
  %v8224 = vpop.f32.mrb[0].mxu0
  %8225 = vdwg.mxu0
  %8226 = vmatprep.subr.bf16.mxu0 %v7745
  %8227 = vmatpush1.bf16.msra.mxu0 %v7744
  %8228 = vmatprep.subr.bf16.mxu0 %v7750
  %8229 = vmatpush1.bf16.msra.mxu0 %v7749
  %8230 = vmatprep.subr.bf16.mxu0 %v7755
  %8231 = vmatpush1.bf16.msra.mxu0 %v7754
  %8232 = vmatprep.subr.bf16.mxu0 %v7760
  %8233 = vmatpush1.bf16.msra.mxu0 %v7759
  %8234 = vmatprep.subr.bf16.mxu0 %v7765
  %8235 = vmatpush1.bf16.msra.mxu0 %v7764
  %8236 = vmatprep.subr.bf16.mxu0 %v7770
  %8237 = vmatpush1.bf16.msra.mxu0 %v7769
  %8238 = vmatprep.subr.bf16.mxu0 %v7775
  %8239 = vmatpush1.bf16.msra.mxu0 %v7774
  %8240 = vmatprep.subr.bf16.mxu0 %v7780
  %8241 = vmatpush1.bf16.msra.mxu0 %v7779
  %8242 = vmatprep.subr.bf16.mxu0 %v7785
  %8243 = vmatpush1.bf16.msra.mxu0 %v7784
  %8244 = vmatprep.subr.bf16.mxu0 %v7790
  %8245 = vmatpush1.bf16.msra.mxu0 %v7789
  %8246 = vmatprep.subr.bf16.mxu0 %v7795
  %8247 = vmatpush1.bf16.msra.mxu0 %v7794
  %8248 = vmatprep.subr.bf16.mxu0 %v7800
  %8249 = vmatpush1.bf16.msra.mxu0 %v7799
  %8250 = vmatprep.subr.bf16.mxu0 %v7805
  %8251 = vmatpush1.bf16.msra.mxu0 %v7804
  %8252 = vmatprep.subr.bf16.mxu0 %v7810
  %8253 = vmatpush1.bf16.msra.mxu0 %v7809
  %8254 = vmatprep.subr.bf16.mxu0 %v7815
  %8255 = vmatpush1.bf16.msra.mxu0 %v7814
  %8256 = vmatprep.subr.bf16.mxu0 %v7820
  %8257 = vmatpush1.bf16.msra.mxu0 %v7819
  %8258 = vmatprep.mubr.bf16.mxu0 %v7015
  %8259 = vmatmul.mubr.bf16.gmra.mrb[0].mxu0 %v7014
  %v8260 = vpop.f32.mrb[0].mxu0
  %v8261 = vadd.f32 %v8220, %v8260
  %v8262 = vpop.f32.mrb[0].mxu0
  %v8263 = vadd.f32 %v8222, %v8262
  %v8264 = vpop.f32.mrb[0].mxu0
  %v8265 = vpop.f32.mrb[0].mxu0
  %8266 = vdwg.mxu0
  %8267 = vmatprep.subr.bf16.mxu0 %v7825
  %8268 = vmatpush1.bf16.msra.mxu0 %v7824
  %8269 = vmatprep.subr.bf16.mxu0 %v7830
  %8270 = vmatpush1.bf16.msra.mxu0 %v7829
  %8271 = vmatprep.subr.bf16.mxu0 %v7835
  %8272 = vmatpush1.bf16.msra.mxu0 %v7834
  %8273 = vmatprep.subr.bf16.mxu0 %v7840
  %8274 = vmatpush1.bf16.msra.mxu0 %v7839
  %8275 = vmatprep.subr.bf16.mxu0 %v7845
  %8276 = vmatpush1.bf16.msra.mxu0 %v7844
  %8277 = vmatprep.subr.bf16.mxu0 %v7850
  %8278 = vmatpush1.bf16.msra.mxu0 %v7849
  %8279 = vmatprep.subr.bf16.mxu0 %v7855
  %8280 = vmatpush1.bf16.msra.mxu0 %v7854
  %8281 = vmatprep.subr.bf16.mxu0 %v7860
  %8282 = vmatpush1.bf16.msra.mxu0 %v7859
  %8283 = vmatprep.subr.bf16.mxu0 0
  %8284 = vmatpush1.bf16.msra.mxu0 0
  %8285 = vmatprep.subr.bf16.mxu0 0
  %8286 = vmatpush1.bf16.msra.mxu0 0
  %8287 = vmatprep.subr.bf16.mxu0 0
  %8288 = vmatpush1.bf16.msra.mxu0 0
  %8289 = vmatprep.subr.bf16.mxu0 0
  %8290 = vmatpush1.bf16.msra.mxu0 0
  %8291 = vmatprep.subr.bf16.mxu0 0
  %8292 = vmatpush1.bf16.msra.mxu0 0
  %8293 = vmatprep.subr.bf16.mxu0 0
  %8294 = vmatpush1.bf16.msra.mxu0 0
  %8295 = vmatprep.subr.bf16.mxu0 0
  %8296 = vmatpush1.bf16.msra.mxu0 0
  %8297 = vmatprep.subr.bf16.mxu0 0
  %8298 = vmatpush1.bf16.msra.mxu0 0
  %8299 = vmatprep.mubr.bf16.mxu0 0
  %8300 = vmatmul.mubr.bf16.gmra.mrb[0].mxu0 %v7016
  %v8301 = vpop.f32.mrb[0].mxu0
  %v8302 = vadd.f32 %v8261, %v8301
  %v8303 = vpop.f32.mrb[0].mxu0
  %v8304 = vadd.f32 %v8263, %v8303
  %v8305 = vpop.f32.mrb[0].mxu0
  %v8306 = vpop.f32.mrb[0].mxu0
  %8307 = vdwg.mxu0
  %8308 = vmatprep.subr.bf16.mxu0 0
  %8309 = vmatpush1.bf16.msra.mxu0 %v7666
  %8310 = vmatprep.subr.bf16.mxu0 0
  %8311 = vmatpush1.bf16.msra.mxu0 %v7671
  %8312 = vmatprep.subr.bf16.mxu0 0
  %8313 = vmatpush1.bf16.msra.mxu0 %v7676
  %8314 = vmatprep.subr.bf16.mxu0 0
  %8315 = vmatpush1.bf16.msra.mxu0 %v7681
  %8316 = vmatprep.subr.bf16.mxu0 0
  %8317 = vmatpush1.bf16.msra.mxu0 %v7686
  %8318 = vmatprep.subr.bf16.mxu0 0
  %8319 = vmatpush1.bf16.msra.mxu0 %v7691
  %8320 = vmatprep.subr.bf16.mxu0 0
  %8321 = vmatpush1.bf16.msra.mxu0 %v7696
  %8322 = vmatprep.subr.bf16.mxu0 0
  %8323 = vmatpush1.bf16.msra.mxu0 %v7701
  %8324 = vmatprep.subr.bf16.mxu0 0
  %8325 = vmatpush1.bf16.msra.mxu0 %v7706
  %8326 = vmatprep.subr.bf16.mxu0 0
  %8327 = vmatpush1.bf16.msra.mxu0 %v7711
  %8328 = vmatprep.subr.bf16.mxu0 0
  %8329 = vmatpush1.bf16.msra.mxu0 %v7716
  %8330 = vmatprep.subr.bf16.mxu0 0
  %8331 = vmatpush1.bf16.msra.mxu0 %v7721
  %8332 = vmatprep.subr.bf16.mxu0 0
  %8333 = vmatpush1.bf16.msra.mxu0 %v7726
  %8334 = vmatprep.subr.bf16.mxu0 0
  %8335 = vmatpush1.bf16.msra.mxu0 %v7731
  %8336 = vmatprep.subr.bf16.mxu0 0
  %8337 = vmatpush1.bf16.msra.mxu0 %v7736
  %8338 = vmatprep.subr.bf16.mxu0 0
  %8339 = vmatpush1.bf16.msra.mxu0 %v7741
  %8340 = vmatprep.mubr.bf16.mxu0 %v7013
  %8341 = vmatmul.mubr.bf16.gmra.mrb[0].mxu0 %v7012
  %v8342 = vpop.f32.mrb[0].mxu0
  %v8343 = vadd.f32 0.0, %v8342
  %v8344 = vpop.f32.mrb[0].mxu0
  %v8345 = vpop.f32.mrb[0].mxu0
  %v8346 = vpop.f32.mrb[0].mxu0
  %8347 = vdwg.mxu0
  %8348 = vmatprep.subr.bf16.mxu0 0
  %8349 = vmatpush1.bf16.msra.mxu0 %v7746
  %8350 = vmatprep.subr.bf16.mxu0 0
  %8351 = vmatpush1.bf16.msra.mxu0 %v7751
  %8352 = vmatprep.subr.bf16.mxu0 0
  %8353 = vmatpush1.bf16.msra.mxu0 %v7756
  %8354 = vmatprep.subr.bf16.mxu0 0
  %8355 = vmatpush1.bf16.msra.mxu0 %v7761
  %8356 = vmatprep.subr.bf16.mxu0 0
  %8357 = vmatpush1.bf16.msra.mxu0 %v7766
  %8358 = vmatprep.subr.bf16.mxu0 0
  %8359 = vmatpush1.bf16.msra.mxu0 %v7771
  %8360 = vmatprep.subr.bf16.mxu0 0
  %8361 = vmatpush1.bf16.msra.mxu0 %v7776
  %8362 = vmatprep.subr.bf16.mxu0 0
  %8363 = vmatpush1.bf16.msra.mxu0 %v7781
  %8364 = vmatprep.subr.bf16.mxu0 0
  %8365 = vmatpush1.bf16.msra.mxu0 %v7786
  %8366 = vmatprep.subr.bf16.mxu0 0
  %8367 = vmatpush1.bf16.msra.mxu0 %v7791
  %8368 = vmatprep.subr.bf16.mxu0 0
  %8369 = vmatpush1.bf16.msra.mxu0 %v7796
  %8370 = vmatprep.subr.bf16.mxu0 0
  %8371 = vmatpush1.bf16.msra.mxu0 %v7801
  %8372 = vmatprep.subr.bf16.mxu0 0
  %8373 = vmatpush1.bf16.msra.mxu0 %v7806
  %8374 = vmatprep.subr.bf16.mxu0 0
  %8375 = vmatpush1.bf16.msra.mxu0 %v7811
  %8376 = vmatprep.subr.bf16.mxu0 0
  %8377 = vmatpush1.bf16.msra.mxu0 %v7816
  %8378 = vmatprep.subr.bf16.mxu0 0
  %8379 = vmatpush1.bf16.msra.mxu0 %v7821
  %8380 = vmatprep.mubr.bf16.mxu0 %v7015
  %8381 = vmatmul.mubr.bf16.gmra.mrb[0].mxu0 %v7014
  %v8382 = vpop.f32.mrb[0].mxu0
  %v8383 = vadd.f32 %v8343, %v8382
  %v8384 = vpop.f32.mrb[0].mxu0
  %v8385 = vpop.f32.mrb[0].mxu0
  %v8386 = vpop.f32.mrb[0].mxu0
  %8387 = vdwg.mxu0
  %8388 = vmatprep.subr.bf16.mxu0 0
  %8389 = vmatpush1.bf16.msra.mxu0 %v7826
  %8390 = vmatprep.subr.bf16.mxu0 0
  %8391 = vmatpush1.bf16.msra.mxu0 %v7831
  %8392 = vmatprep.subr.bf16.mxu0 0
  %8393 = vmatpush1.bf16.msra.mxu0 %v7836
  %8394 = vmatprep.subr.bf16.mxu0 0
  %8395 = vmatpush1.bf16.msra.mxu0 %v7841
  %8396 = vmatprep.subr.bf16.mxu0 0
  %8397 = vmatpush1.bf16.msra.mxu0 %v7846
  %8398 = vmatprep.subr.bf16.mxu0 0
  %8399 = vmatpush1.bf16.msra.mxu0 %v7851
  %8400 = vmatprep.subr.bf16.mxu0 0
  %8401 = vmatpush1.bf16.msra.mxu0 %v7856
  %8402 = vmatprep.subr.bf16.mxu0 0
  %8403 = vmatpush1.bf16.msra.mxu0 %v7861
  %8404 = vmatprep.subr.bf16.mxu0 0
  %8405 = vmatpush1.bf16.msra.mxu0 0
  %8406 = vmatprep.subr.bf16.mxu0 0
  %8407 = vmatpush1.bf16.msra.mxu0 0
  %8408 = vmatprep.subr.bf16.mxu0 0
  %8409 = vmatpush1.bf16.msra.mxu0 0
  %8410 = vmatprep.subr.bf16.mxu0 0
  %8411 = vmatpush1.bf16.msra.mxu0 0
  %8412 = vmatprep.subr.bf16.mxu0 0
  %8413 = vmatpush1.bf16.msra.mxu0 0
  %8414 = vmatprep.subr.bf16.mxu0 0
  %8415 = vmatpush1.bf16.msra.mxu0 0
  %8416 = vmatprep.subr.bf16.mxu0 0
  %8417 = vmatpush1.bf16.msra.mxu0 0
  %8418 = vmatprep.subr.bf16.mxu0 0
  %8419 = vmatpush1.bf16.msra.mxu0 0
  %8420 = vmatprep.mubr.bf16.mxu0 0
  %8421 = vmatmul.mubr.bf16.gmra.mrb[0].mxu0 %v7016
  %v8422 = vpop.f32.mrb[0].mxu0
  %v8423 = vadd.f32 %v8383, %v8422
  %v8424 = vpop.f32.mrb[0].mxu0
  %v8425 = vpop.f32.mrb[0].mxu0
  %v8426 = vpop.f32.mrb[0].mxu0
  %8427 = vdwg.mxu0
  %v8428 = vld [vmem:[%s3 + $0x28] sm:$0xff]
  %v8429 = vld [vmem:[%s3 + $0x30] sm:$0xff]
  %v8430 = vld [vmem:[%s3 + $0x38] sm:$0xff]
  %v8431 = vld [vmem:[%s3 + $0x40] sm:$0xff]
  %v8432 = vld [vmem:[%s3 + $0x48] sm:$0xff]
  %v8433 = vadd.f32 %v8428, %v8179
  %v8434 = vadd.f32 %v8429, %v8181
  %v8435 = vadd.f32 %v8430, %v8302
  %v8436 = vadd.f32 %v8431, %v8304
  %v8437 = vadd.f32 %v8432, %v8423
  %8438 = vst [vmem:[%s3 + $0x28] sm:$0xff] %v8433
  %8439 = vst [vmem:[%s3 + $0x30] sm:$0xff] %v8434
  %8440 = vst [vmem:[%s3 + $0x38] sm:$0xff] %v8435
  %8441 = vst [vmem:[%s3 + $0x40] sm:$0xff] %v8436
  %8442 = vst [vmem:[%s3 + $0x48] sm:$0xff] %v8437
  %s8443 = scalar_lea.vmem %s0, 100
  %v8444 = vld [vmem:[%s8443] sm:$0xff]
  %v8445 = vld [vmem:[%s8443 + $0x8] sm:$0xff]
  %v8446 = vld [vmem:[%s8443 + $0x10] sm:$0xf]
  %v8447 = vld [vmem:[%s1712] sm:$0xff]
  %v8448 = vld [vmem:[%s1712 + $0x8] sm:$0xff]
  %v8449 = vld [vmem:[%s1712 + $0x10] sm:$0xf]
  %v8450 = vld [vmem:[%s1712 + $0x14] sm:$0xff]
  %v8451 = vld [vmem:[%s1712 + $0x1c] sm:$0xff]
  %v8452 = vld [vmem:[%s1712 + $0x24] sm:$0xf]
  %v8453 = vld [vmem:[%s1712 + $0x28] sm:$0xff]
  %v8454 = vld [vmem:[%s1712 + $0x30] sm:$0xff]
  %v8455 = vld [vmem:[%s1712 + $0x38] sm:$0xf]
  %v8456 = vld [vmem:[%s1712 + $0x3c] sm:$0xff]
  %v8457 = vld [vmem:[%s1712 + $0x44] sm:$0xff]
  %v8458 = vld [vmem:[%s1712 + $0x4c] sm:$0xf]
  %v8459 = vld [vmem:[%s1712 + $0x50] sm:$0xff]
  %v8460 = vld [vmem:[%s1712 + $0x58] sm:$0xff]
  %v8461 = vld [vmem:[%s1712 + $0x60] sm:$0xf]
  %v8462 = vld [vmem:[%s1712 + $0x64] sm:$0xff]
  %v8463 = vld [vmem:[%s1712 + $0x6c] sm:$0xff]
  %v8464 = vld [vmem:[%s1712 + $0x74] sm:$0xf]
  %v8465 = vld [vmem:[%s1712 + $0x78] sm:$0xff]
  %v8466 = vld [vmem:[%s1712 + $0x80] sm:$0xff]
  %v8467 = vld [vmem:[%s1712 + $0x88] sm:$0xf]
  %v8468 = vld [vmem:[%s1712 + $0x8c] sm:$0xff]
  %v8469 = vld [vmem:[%s1712 + $0x94] sm:$0xff]
  %v8470 = vld [vmem:[%s1712 + $0x9c] sm:$0xf]
  %v8471 = vld [vmem:[%s1712 + $0xa0] sm:$0xff]
  %v8472 = vld [vmem:[%s1712 + $0xa8] sm:$0xff]
  %v8473 = vld [vmem:[%s1712 + $0xb0] sm:$0xf]
  %v8474 = vld [vmem:[%s1712 + $0xb4] sm:$0xff]
  %v8475 = vld [vmem:[%s1712 + $0xbc] sm:$0xff]
  %v8476 = vld [vmem:[%s1712 + $0xc4] sm:$0xf]
  %v8477 = vld [vmem:[%s1712 + $0xc8] sm:$0xff]
  %v8478 = vld [vmem:[%s1712 + $0xd0] sm:$0xff]
  %v8479 = vld [vmem:[%s1712 + $0xd8] sm:$0xf]
  %v8480 = vld [vmem:[%s1712 + $0xdc] sm:$0xff]
  %v8481 = vld [vmem:[%s1712 + $0xe4] sm:$0xff]
  %v8482 = vld [vmem:[%s1712 + $0xec] sm:$0xf]
  %v8483 = vld [vmem:[%s1712 + $0xf0] sm:$0xff]
  %v8484 = vld [vmem:[%s1712 + $0xf8] sm:$0xff]
  %v8485 = vld [vmem:[%s1712 + $0x100] sm:$0xf]
  %v8486 = vld [vmem:[%s1712 + $0x104] sm:$0xff]
  %v8487 = vld [vmem:[%s1712 + $0x10c] sm:$0xff]
  %v8488 = vld [vmem:[%s1712 + $0x114] sm:$0xf]
  %v8489 = vld [vmem:[%s1712 + $0x118] sm:$0xff]
  %v8490 = vld [vmem:[%s1712 + $0x120] sm:$0xff]
  %v8491 = vld [vmem:[%s1712 + $0x128] sm:$0xf]
  %v8492 = vld [vmem:[%s1712 + $0x12c] sm:$0xff]
  %v8493 = vld [vmem:[%s1712 + $0x134] sm:$0xff]
  %v8494 = vld [vmem:[%s1712 + $0x13c] sm:$0xf]
  %v8495 = vld [vmem:[%s1712 + $0x140] sm:$0xff]
  %v8496 = vld [vmem:[%s1712 + $0x148] sm:$0xff]
  %v8497 = vld [vmem:[%s1712 + $0x150] sm:$0xf]
  %v8498 = vld [vmem:[%s1712 + $0x154] sm:$0xff]
  %v8499 = vld [vmem:[%s1712 + $0x15c] sm:$0xff]
  %v8500 = vld [vmem:[%s1712 + $0x164] sm:$0xf]
  %v8501 = vld [vmem:[%s1712 + $0x168] sm:$0xff]
  %v8502 = vld [vmem:[%s1712 + $0x170] sm:$0xff]
  %v8503 = vld [vmem:[%s1712 + $0x178] sm:$0xf]
  %v8504 = vld [vmem:[%s1712 + $0x17c] sm:$0xff]
  %v8505 = vld [vmem:[%s1712 + $0x184] sm:$0xff]
  %v8506 = vld [vmem:[%s1712 + $0x18c] sm:$0xf]
  %v8507 = vld [vmem:[%s1712 + $0x190] sm:$0xff]
  %v8508 = vld [vmem:[%s1712 + $0x198] sm:$0xff]
  %v8509 = vld [vmem:[%s1712 + $0x1a0] sm:$0xf]
  %v8510 = vld [vmem:[%s1712 + $0x1a4] sm:$0xff]
  %v8511 = vld [vmem:[%s1712 + $0x1ac] sm:$0xff]
  %v8512 = vld [vmem:[%s1712 + $0x1b4] sm:$0xf]
  %v8513 = vld [vmem:[%s1712 + $0x1b8] sm:$0xff]
  %v8514 = vld [vmem:[%s1712 + $0x1c0] sm:$0xff]
  %v8515 = vld [vmem:[%s1712 + $0x1c8] sm:$0xf]
  %v8516 = vld [vmem:[%s1712 + $0x1cc] sm:$0xff]
  %v8517 = vld [vmem:[%s1712 + $0x1d4] sm:$0xff]
  %v8518 = vld [vmem:[%s1712 + $0x1dc] sm:$0xf]
  %v8519 = vld [vmem:[%s1712 + $0x1e0] sm:$0xff]
  %v8520 = vld [vmem:[%s1712 + $0x1e8] sm:$0xff]
  %v8521 = vld [vmem:[%s1712 + $0x1f0] sm:$0xf]
  %v8522 = vld [vmem:[%s1712 + $0x1f4] sm:$0xff]
  %v8523 = vld [vmem:[%s1712 + $0x1fc] sm:$0xff]
  %v8524 = vld [vmem:[%s1712 + $0x204] sm:$0xf]
  %v8525 = vld [vmem:[%s1712 + $0x208] sm:$0xff]
  %v8526 = vld [vmem:[%s1712 + $0x210] sm:$0xff]
  %v8527 = vld [vmem:[%s1712 + $0x218] sm:$0xf]
  %v8528 = vld [vmem:[%s1712 + $0x21c] sm:$0xff]
  %v8529 = vld [vmem:[%s1712 + $0x224] sm:$0xff]
  %v8530 = vld [vmem:[%s1712 + $0x22c] sm:$0xf]
  %v8531 = vld [vmem:[%s1712 + $0x230] sm:$0xff]
  %v8532 = vld [vmem:[%s1712 + $0x238] sm:$0xff]
  %v8533 = vld [vmem:[%s1712 + $0x240] sm:$0xf]
  %v8534 = vld [vmem:[%s1712 + $0x244] sm:$0xff]
  %v8535 = vld [vmem:[%s1712 + $0x24c] sm:$0xff]
  %v8536 = vld [vmem:[%s1712 + $0x254] sm:$0xf]
  %v8537 = vld [vmem:[%s1712 + $0x258] sm:$0xff]
  %v8538 = vld [vmem:[%s1712 + $0x260] sm:$0xff]
  %v8539 = vld [vmem:[%s1712 + $0x268] sm:$0xf]
  %v8540 = vld [vmem:[%s1712 + $0x26c] sm:$0xff]
  %v8541 = vld [vmem:[%s1712 + $0x274] sm:$0xff]
  %v8542 = vld [vmem:[%s1712 + $0x27c] sm:$0xf]
  %v8543 = vld [vmem:[%s1712 + $0x280] sm:$0xff]
  %v8544 = vld [vmem:[%s1712 + $0x288] sm:$0xff]
  %v8545 = vld [vmem:[%s1712 + $0x290] sm:$0xf]
  %v8546 = vld [vmem:[%s1712 + $0x294] sm:$0xff]
  %v8547 = vld [vmem:[%s1712 + $0x29c] sm:$0xff]
  %v8548 = vld [vmem:[%s1712 + $0x2a4] sm:$0xf]
  %v8549 = vld [vmem:[%s1712 + $0x2a8] sm:$0xff]
  %v8550 = vld [vmem:[%s1712 + $0x2b0] sm:$0xff]
  %v8551 = vld [vmem:[%s1712 + $0x2b8] sm:$0xf]
  %v8552 = vld [vmem:[%s1712 + $0x2bc] sm:$0xff]
  %v8553 = vld [vmem:[%s1712 + $0x2c4] sm:$0xff]
  %v8554 = vld [vmem:[%s1712 + $0x2cc] sm:$0xf]
  %v8555 = vld [vmem:[%s1712 + $0x2d0] sm:$0xff]
  %v8556 = vld [vmem:[%s1712 + $0x2d8] sm:$0xff]
  %v8557 = vld [vmem:[%s1712 + $0x2e0] sm:$0xf]
  %v8558 = vld [vmem:[%s1712 + $0x2e4] sm:$0xff]
  %v8559 = vld [vmem:[%s1712 + $0x2ec] sm:$0xff]
  %v8560 = vld [vmem:[%s1712 + $0x2f4] sm:$0xf]
  %v8561 = vld [vmem:[%s1712 + $0x2f8] sm:$0xff]
  %v8562 = vld [vmem:[%s1712 + $0x300] sm:$0xff]
  %v8563 = vld [vmem:[%s1712 + $0x308] sm:$0xf]
  %v8564 = vld [vmem:[%s1712 + $0x30c] sm:$0xff]
  %v8565 = vld [vmem:[%s1712 + $0x314] sm:$0xff]
  %v8566 = vld [vmem:[%s1712 + $0x31c] sm:$0xf]
  %v8567 = vld [vmem:[%s1712 + $0x320] sm:$0xff]
  %v8568 = vld [vmem:[%s1712 + $0x328] sm:$0xff]
  %v8569 = vld [vmem:[%s1712 + $0x330] sm:$0xf]
  %v8570 = vld [vmem:[%s1712 + $0x334] sm:$0xff]
  %v8571 = vld [vmem:[%s1712 + $0x33c] sm:$0xff]
  %v8572 = vld [vmem:[%s1712 + $0x344] sm:$0xf]
  %v8573 = vld [vmem:[%s1712 + $0x348] sm:$0xff]
  %v8574 = vld [vmem:[%s1712 + $0x350] sm:$0xff]
  %v8575 = vld [vmem:[%s1712 + $0x358] sm:$0xf]
  %v8576 = vld [vmem:[%s1712 + $0x35c] sm:$0xff]
  %v8577 = vld [vmem:[%s1712 + $0x364] sm:$0xff]
  %v8578 = vld [vmem:[%s1712 + $0x36c] sm:$0xf]
  %v8579 = vld [vmem:[%s1712 + $0x370] sm:$0xff]
  %v8580 = vld [vmem:[%s1712 + $0x378] sm:$0xff]
  %v8581 = vld [vmem:[%s1712 + $0x380] sm:$0xf]
  %v8582 = vld [vmem:[%s1712 + $0x384] sm:$0xff]
  %v8583 = vld [vmem:[%s1712 + $0x38c] sm:$0xff]
  %v8584 = vld [vmem:[%s1712 + $0x394] sm:$0xf]
  %v8585 = vld [vmem:[%s1712 + $0x398] sm:$0xff]
  %v8586 = vld [vmem:[%s1712 + $0x3a0] sm:$0xff]
  %v8587 = vld [vmem:[%s1712 + $0x3a8] sm:$0xf]
  %v8588 = vld [vmem:[%s1712 + $0x3ac] sm:$0xff]
  %v8589 = vld [vmem:[%s1712 + $0x3b4] sm:$0xff]
  %v8590 = vld [vmem:[%s1712 + $0x3bc] sm:$0xf]
  %v8591 = vld [vmem:[%s1712 + $0x3c0] sm:$0xff]
  %v8592 = vld [vmem:[%s1712 + $0x3c8] sm:$0xff]
  %v8593 = vld [vmem:[%s1712 + $0x3d0] sm:$0xf]
  %v8594 = vld [vmem:[%s1712 + $0x3d4] sm:$0xff]
  %v8595 = vld [vmem:[%s1712 + $0x3dc] sm:$0xff]
  %v8596 = vld [vmem:[%s1712 + $0x3e4] sm:$0xf]
  %v8597 = vld [vmem:[%s1712 + $0x3e8] sm:$0xff]
  %v8598 = vld [vmem:[%s1712 + $0x3f0] sm:$0xff]
  %v8599 = vld [vmem:[%s1712 + $0x3f8] sm:$0xf]
  %v8600 = vld [vmem:[%s1712 + $0x3fc] sm:$0xff]
  %v8601 = vld [vmem:[%s1712 + $0x404] sm:$0xff]
  %v8602 = vld [vmem:[%s1712 + $0x40c] sm:$0xf]
  %v8603 = vld [vmem:[%s1712 + $0x410] sm:$0xff]
  %v8604 = vld [vmem:[%s1712 + $0x418] sm:$0xff]
  %v8605 = vld [vmem:[%s1712 + $0x420] sm:$0xf]
  %v8606 = vld [vmem:[%s1712 + $0x424] sm:$0xff]
  %v8607 = vld [vmem:[%s1712 + $0x42c] sm:$0xff]
  %v8608 = vld [vmem:[%s1712 + $0x434] sm:$0xf]
  %v8609 = vld [vmem:[%s1712 + $0x438] sm:$0xff]
  %v8610 = vld [vmem:[%s1712 + $0x440] sm:$0xff]
  %v8611 = vld [vmem:[%s1712 + $0x448] sm:$0xf]
  %v8612 = vld [vmem:[%s1712 + $0x44c] sm:$0xff]
  %v8613 = vld [vmem:[%s1712 + $0x454] sm:$0xff]
  %v8614 = vld [vmem:[%s1712 + $0x45c] sm:$0xf]
  %v8615 = vld [vmem:[%s1712 + $0x460] sm:$0xff]
  %v8616 = vld [vmem:[%s1712 + $0x468] sm:$0xff]
  %v8617 = vld [vmem:[%s1712 + $0x470] sm:$0xf]
  %v8618 = vld [vmem:[%s1712 + $0x474] sm:$0xff]
  %v8619 = vld [vmem:[%s1712 + $0x47c] sm:$0xff]
  %v8620 = vld [vmem:[%s1712 + $0x484] sm:$0xf]
  %v8621 = vld [vmem:[%s1712 + $0x488] sm:$0xff]
  %v8622 = vld [vmem:[%s1712 + $0x490] sm:$0xff]
  %v8623 = vld [vmem:[%s1712 + $0x498] sm:$0xf]
  %v8624 = vld [vmem:[%s1712 + $0x49c] sm:$0xff]
  %v8625 = vld [vmem:[%s1712 + $0x4a4] sm:$0xff]
  %v8626 = vld [vmem:[%s1712 + $0x4ac] sm:$0xf]
  %v8627 = vld [vmem:[%s1712 + $0x4b0] sm:$0xff]
  %v8628 = vld [vmem:[%s1712 + $0x4b8] sm:$0xff]
  %v8629 = vld [vmem:[%s1712 + $0x4c0] sm:$0xf]
  %v8630 = vld [vmem:[%s1712 + $0x4c4] sm:$0xff]
  %v8631 = vld [vmem:[%s1712 + $0x4cc] sm:$0xff]
  %v8632 = vld [vmem:[%s1712 + $0x4d4] sm:$0xf]
  %v8633 = vld [vmem:[%s1712 + $0x4d8] sm:$0xff]
  %v8634 = vld [vmem:[%s1712 + $0x4e0] sm:$0xff]
  %v8635 = vld [vmem:[%s1712 + $0x4e8] sm:$0xf]
  %v8636 = vld [vmem:[%s1712 + $0x4ec] sm:$0xff]
  %v8637 = vld [vmem:[%s1712 + $0x4f4] sm:$0xff]
  %v8638 = vld [vmem:[%s1712 + $0x4fc] sm:$0xf]
  %v8639 = vld [vmem:[%s1712 + $0x500] sm:$0xff]
  %v8640 = vld [vmem:[%s1712 + $0x508] sm:$0xff]
  %v8641 = vld [vmem:[%s1712 + $0x510] sm:$0xf]
  %v8642 = vld [vmem:[%s1712 + $0x514] sm:$0xff]
  %v8643 = vld [vmem:[%s1712 + $0x51c] sm:$0xff]
  %v8644 = vld [vmem:[%s1712 + $0x524] sm:$0xf]
  %v8645 = vld [vmem:[%s1712 + $0x528] sm:$0xff]
  %v8646 = vld [vmem:[%s1712 + $0x530] sm:$0xff]
  %v8647 = vld [vmem:[%s1712 + $0x538] sm:$0xf]
  %v8648 = vld [vmem:[%s1712 + $0x53c] sm:$0xff]
  %v8649 = vld [vmem:[%s1712 + $0x544] sm:$0xff]
  %v8650 = vld [vmem:[%s1712 + $0x54c] sm:$0xf]
  %v8651 = vld [vmem:[%s1712 + $0x550] sm:$0xff]
  %v8652 = vld [vmem:[%s1712 + $0x558] sm:$0xff]
  %v8653 = vld [vmem:[%s1712 + $0x560] sm:$0xf]
  %v8654 = vld [vmem:[%s1712 + $0x564] sm:$0xff]
  %v8655 = vld [vmem:[%s1712 + $0x56c] sm:$0xff]
  %v8656 = vld [vmem:[%s1712 + $0x574] sm:$0xf]
  %v8657 = vld [vmem:[%s1712 + $0x578] sm:$0xff]
  %v8658 = vld [vmem:[%s1712 + $0x580] sm:$0xff]
  %v8659 = vld [vmem:[%s1712 + $0x588] sm:$0xf]
  %v8660 = vld [vmem:[%s1712 + $0x58c] sm:$0xff]
  %v8661 = vld [vmem:[%s1712 + $0x594] sm:$0xff]
  %v8662 = vld [vmem:[%s1712 + $0x59c] sm:$0xf]
  %v8663 = vld [vmem:[%s1712 + $0x5a0] sm:$0xff]
  %v8664 = vld [vmem:[%s1712 + $0x5a8] sm:$0xff]
  %v8665 = vld [vmem:[%s1712 + $0x5b0] sm:$0xf]
  %v8666 = vld [vmem:[%s1712 + $0x5b4] sm:$0xff]
  %v8667 = vld [vmem:[%s1712 + $0x5bc] sm:$0xff]
  %v8668 = vld [vmem:[%s1712 + $0x5c4] sm:$0xf]
  %v8669 = vld [vmem:[%s1712 + $0x5c8] sm:$0xff]
  %v8670 = vld [vmem:[%s1712 + $0x5d0] sm:$0xff]
  %v8671 = vld [vmem:[%s1712 + $0x5d8] sm:$0xf]
  %v8672 = vld [vmem:[%s1712 + $0x5dc] sm:$0xff]
  %v8673 = vld [vmem:[%s1712 + $0x5e4] sm:$0xff]
  %v8674 = vld [vmem:[%s1712 + $0x5ec] sm:$0xf]
  %v8675 = vld [vmem:[%s1712 + $0x5f0] sm:$0xff]
  %v8676 = vld [vmem:[%s1712 + $0x5f8] sm:$0xff]
  %v8677 = vld [vmem:[%s1712 + $0x600] sm:$0xf]
  %v8678 = vld [vmem:[%s1712 + $0x604] sm:$0xff]
  %v8679 = vld [vmem:[%s1712 + $0x60c] sm:$0xff]
  %v8680 = vld [vmem:[%s1712 + $0x614] sm:$0xf]
  %v8681 = vld [vmem:[%s1712 + $0x618] sm:$0xff]
  %v8682 = vld [vmem:[%s1712 + $0x620] sm:$0xff]
  %v8683 = vld [vmem:[%s1712 + $0x628] sm:$0xf]
  %v8684 = vld [vmem:[%s1712 + $0x62c] sm:$0xff]
  %v8685 = vld [vmem:[%s1712 + $0x634] sm:$0xff]
  %v8686 = vld [vmem:[%s1712 + $0x63c] sm:$0xf]
  %v8690 = vunpack.c.l.b16 %v8444
  %v8691 = vunpack.c.h.b16 %v8444
  %v8692 = vunpack.c.l.b16 %v8445
  %v8693 = vunpack.c.h.b16 %v8445
  %v8694 = vunpack.c.l.b16 %v8446
  %v8695 = vpack.c.b16 %v8690, %v8690
  %v8696 = vpack.c.b16 %v8691, %v8691
  %v8697 = vpack.c.b16 %v8692, %v8692
  %v8698 = vpack.c.b16 %v8693, %v8693
  %v8699 = vpack.c.b16 %v8694, %v8694
  %v8945 = vunpack.c.l.b16 %v8447
  %v8946 = vunpack.c.h.b16 %v8447
  %v8947 = vunpack.c.l.b16 %v8448
  %v8948 = vunpack.c.h.b16 %v8448
  %v8949 = vunpack.c.l.b16 %v8449
  %v8950 = vunpack.c.l.b16 %v8450
  %v8951 = vunpack.c.h.b16 %v8450
  %v8952 = vunpack.c.l.b16 %v8451
  %v8953 = vunpack.c.h.b16 %v8451
  %v8954 = vunpack.c.l.b16 %v8452
  %v8955 = vunpack.c.l.b16 %v8453
  %v8956 = vunpack.c.h.b16 %v8453
  %v8957 = vunpack.c.l.b16 %v8454
  %v8958 = vunpack.c.h.b16 %v8454
  %v8959 = vunpack.c.l.b16 %v8455
  %v8960 = vunpack.c.l.b16 %v8456
  %v8961 = vunpack.c.h.b16 %v8456
  %v8962 = vunpack.c.l.b16 %v8457
  %v8963 = vunpack.c.h.b16 %v8457
  %v8964 = vunpack.c.l.b16 %v8458
  %v8965 = vunpack.c.l.b16 %v8459
  %v8966 = vunpack.c.h.b16 %v8459
  %v8967 = vunpack.c.l.b16 %v8460
  %v8968 = vunpack.c.h.b16 %v8460
  %v8969 = vunpack.c.l.b16 %v8461
  %v8970 = vunpack.c.l.b16 %v8462
  %v8971 = vunpack.c.h.b16 %v8462
  %v8972 = vunpack.c.l.b16 %v8463
  %v8973 = vunpack.c.h.b16 %v8463
  %v8974 = vunpack.c.l.b16 %v8464
  %v8975 = vunpack.c.l.b16 %v8465
  %v8976 = vunpack.c.h.b16 %v8465
  %v8977 = vunpack.c.l.b16 %v8466
  %v8978 = vunpack.c.h.b16 %v8466
  %v8979 = vunpack.c.l.b16 %v8467
  %v8980 = vunpack.c.l.b16 %v8468
  %v8981 = vunpack.c.h.b16 %v8468
  %v8982 = vunpack.c.l.b16 %v8469
  %v8983 = vunpack.c.h.b16 %v8469
  %v8984 = vunpack.c.l.b16 %v8470
  %v8985 = vunpack.c.l.b16 %v8471
  %v8986 = vunpack.c.h.b16 %v8471
  %v8987 = vunpack.c.l.b16 %v8472
  %v8988 = vunpack.c.h.b16 %v8472
  %v8989 = vunpack.c.l.b16 %v8473
  %v8990 = vunpack.c.l.b16 %v8474
  %v8991 = vunpack.c.h.b16 %v8474
  %v8992 = vunpack.c.l.b16 %v8475
  %v8993 = vunpack.c.h.b16 %v8475
  %v8994 = vunpack.c.l.b16 %v8476
  %v8995 = vunpack.c.l.b16 %v8477
  %v8996 = vunpack.c.h.b16 %v8477
  %v8997 = vunpack.c.l.b16 %v8478
  %v8998 = vunpack.c.h.b16 %v8478
  %v8999 = vunpack.c.l.b16 %v8479
  %v9000 = vunpack.c.l.b16 %v8480
  %v9001 = vunpack.c.h.b16 %v8480
  %v9002 = vunpack.c.l.b16 %v8481
  %v9003 = vunpack.c.h.b16 %v8481
  %v9004 = vunpack.c.l.b16 %v8482
  %v9005 = vunpack.c.l.b16 %v8483
  %v9006 = vunpack.c.h.b16 %v8483
  %v9007 = vunpack.c.l.b16 %v8484
  %v9008 = vunpack.c.h.b16 %v8484
  %v9009 = vunpack.c.l.b16 %v8485
  %v9010 = vunpack.c.l.b16 %v8486
  %v9011 = vunpack.c.h.b16 %v8486
  %v9012 = vunpack.c.l.b16 %v8487
  %v9013 = vunpack.c.h.b16 %v8487
  %v9014 = vunpack.c.l.b16 %v8488
  %v9015 = vunpack.c.l.b16 %v8489
  %v9016 = vunpack.c.h.b16 %v8489
  %v9017 = vunpack.c.l.b16 %v8490
  %v9018 = vunpack.c.h.b16 %v8490
  %v9019 = vunpack.c.l.b16 %v8491
  %v9020 = vunpack.c.l.b16 %v8492
  %v9021 = vunpack.c.h.b16 %v8492
  %v9022 = vunpack.c.l.b16 %v8493
  %v9023 = vunpack.c.h.b16 %v8493
  %v9024 = vunpack.c.l.b16 %v8494
  %v9025 = vunpack.c.l.b16 %v8495
  %v9026 = vunpack.c.h.b16 %v8495
  %v9027 = vunpack.c.l.b16 %v8496
  %v9028 = vunpack.c.h.b16 %v8496
  %v9029 = vunpack.c.l.b16 %v8497
  %v9030 = vunpack.c.l.b16 %v8498
  %v9031 = vunpack.c.h.b16 %v8498
  %v9032 = vunpack.c.l.b16 %v8499
  %v9033 = vunpack.c.h.b16 %v8499
  %v9034 = vunpack.c.l.b16 %v8500
  %v9035 = vunpack.c.l.b16 %v8501
  %v9036 = vunpack.c.h.b16 %v8501
  %v9037 = vunpack.c.l.b16 %v8502
  %v9038 = vunpack.c.h.b16 %v8502
  %v9039 = vunpack.c.l.b16 %v8503
  %v9040 = vunpack.c.l.b16 %v8504
  %v9041 = vunpack.c.h.b16 %v8504
  %v9042 = vunpack.c.l.b16 %v8505
  %v9043 = vunpack.c.h.b16 %v8505
  %v9044 = vunpack.c.l.b16 %v8506
  %v9045 = vunpack.c.l.b16 %v8507
  %v9046 = vunpack.c.h.b16 %v8507
  %v9047 = vunpack.c.l.b16 %v8508
  %v9048 = vunpack.c.h.b16 %v8508
  %v9049 = vunpack.c.l.b16 %v8509
  %v9050 = vunpack.c.l.b16 %v8510
  %v9051 = vunpack.c.h.b16 %v8510
  %v9052 = vunpack.c.l.b16 %v8511
  %v9053 = vunpack.c.h.b16 %v8511
  %v9054 = vunpack.c.l.b16 %v8512
  %v9055 = vunpack.c.l.b16 %v8513
  %v9056 = vunpack.c.h.b16 %v8513
  %v9057 = vunpack.c.l.b16 %v8514
  %v9058 = vunpack.c.h.b16 %v8514
  %v9059 = vunpack.c.l.b16 %v8515
  %v9060 = vunpack.c.l.b16 %v8516
  %v9061 = vunpack.c.h.b16 %v8516
  %v9062 = vunpack.c.l.b16 %v8517
  %v9063 = vunpack.c.h.b16 %v8517
  %v9064 = vunpack.c.l.b16 %v8518
  %v9065 = vunpack.c.l.b16 %v8519
  %v9066 = vunpack.c.h.b16 %v8519
  %v9067 = vunpack.c.l.b16 %v8520
  %v9068 = vunpack.c.h.b16 %v8520
  %v9069 = vunpack.c.l.b16 %v8521
  %v9070 = vunpack.c.l.b16 %v8522
  %v9071 = vunpack.c.h.b16 %v8522
  %v9072 = vunpack.c.l.b16 %v8523
  %v9073 = vunpack.c.h.b16 %v8523
  %v9074 = vunpack.c.l.b16 %v8524
  %v9075 = vunpack.c.l.b16 %v8525
  %v9076 = vunpack.c.h.b16 %v8525
  %v9077 = vunpack.c.l.b16 %v8526
  %v9078 = vunpack.c.h.b16 %v8526
  %v9079 = vunpack.c.l.b16 %v8527
  %v9080 = vunpack.c.l.b16 %v8528
  %v9081 = vunpack.c.h.b16 %v8528
  %v9082 = vunpack.c.l.b16 %v8529
  %v9083 = vunpack.c.h.b16 %v8529
  %v9084 = vunpack.c.l.b16 %v8530
  %v9085 = vunpack.c.l.b16 %v8531
  %v9086 = vunpack.c.h.b16 %v8531
  %v9087 = vunpack.c.l.b16 %v8532
  %v9088 = vunpack.c.h.b16 %v8532
  %v9089 = vunpack.c.l.b16 %v8533
  %v9090 = vunpack.c.l.b16 %v8534
  %v9091 = vunpack.c.h.b16 %v8534
  %v9092 = vunpack.c.l.b16 %v8535
  %v9093 = vunpack.c.h.b16 %v8535
  %v9094 = vunpack.c.l.b16 %v8536
  %v9095 = vunpack.c.l.b16 %v8537
  %v9096 = vunpack.c.h.b16 %v8537
  %v9097 = vunpack.c.l.b16 %v8538
  %v9098 = vunpack.c.h.b16 %v8538
  %v9099 = vunpack.c.l.b16 %v8539
  %v9100 = vunpack.c.l.b16 %v8540
  %v9101 = vunpack.c.h.b16 %v8540
  %v9102 = vunpack.c.l.b16 %v8541
  %v9103 = vunpack.c.h.b16 %v8541
  %v9104 = vunpack.c.l.b16 %v8542
  %v9105 = vunpack.c.l.b16 %v8543
  %v9106 = vunpack.c.h.b16 %v8543
  %v9107 = vunpack.c.l.b16 %v8544
  %v9108 = vunpack.c.h.b16 %v8544
  %v9109 = vunpack.c.l.b16 %v8545
  %v9110 = vunpack.c.l.b16 %v8546
  %v9111 = vunpack.c.h.b16 %v8546
  %v9112 = vunpack.c.l.b16 %v8547
  %v9113 = vunpack.c.h.b16 %v8547
  %v9114 = vunpack.c.l.b16 %v8548
  %v9115 = vunpack.c.l.b16 %v8549
  %v9116 = vunpack.c.h.b16 %v8549
  %v9117 = vunpack.c.l.b16 %v8550
  %v9118 = vunpack.c.h.b16 %v8550
  %v9119 = vunpack.c.l.b16 %v8551
  %v9120 = vunpack.c.l.b16 %v8552
  %v9121 = vunpack.c.h.b16 %v8552
  %v9122 = vunpack.c.l.b16 %v8553
  %v9123 = vunpack.c.h.b16 %v8553
  %v9124 = vunpack.c.l.b16 %v8554
  %v9125 = vunpack.c.l.b16 %v8555
  %v9126 = vunpack.c.h.b16 %v8555
  %v9127 = vunpack.c.l.b16 %v8556
  %v9128 = vunpack.c.h.b16 %v8556
  %v9129 = vunpack.c.l.b16 %v8557
  %v9130 = vunpack.c.l.b16 %v8558
  %v9131 = vunpack.c.h.b16 %v8558
  %v9132 = vunpack.c.l.b16 %v8559
  %v9133 = vunpack.c.h.b16 %v8559
  %v9134 = vunpack.c.l.b16 %v8560
  %v9135 = vunpack.c.l.b16 %v8561
  %v9136 = vunpack.c.h.b16 %v8561
  %v9137 = vunpack.c.l.b16 %v8562
  %v9138 = vunpack.c.h.b16 %v8562
  %v9139 = vunpack.c.l.b16 %v8563
  %v9140 = vunpack.c.l.b16 %v8564
  %v9141 = vunpack.c.h.b16 %v8564
  %v9142 = vunpack.c.l.b16 %v8565
  %v9143 = vunpack.c.h.b16 %v8565
  %v9144 = vunpack.c.l.b16 %v8566
  %v9145 = vunpack.c.l.b16 %v8567
  %v9146 = vunpack.c.h.b16 %v8567
  %v9147 = vunpack.c.l.b16 %v8568
  %v9148 = vunpack.c.h.b16 %v8568
  %v9149 = vunpack.c.l.b16 %v8569
  %v9150 = vunpack.c.l.b16 %v8570
  %v9151 = vunpack.c.h.b16 %v8570
  %v9152 = vunpack.c.l.b16 %v8571
  %v9153 = vunpack.c.h.b16 %v8571
  %v9154 = vunpack.c.l.b16 %v8572
  %v9155 = vunpack.c.l.b16 %v8573
  %v9156 = vunpack.c.h.b16 %v8573
  %v9157 = vunpack.c.l.b16 %v8574
  %v9158 = vunpack.c.h.b16 %v8574
  %v9159 = vunpack.c.l.b16 %v8575
  %v9160 = vunpack.c.l.b16 %v8576
  %v9161 = vunpack.c.h.b16 %v8576
  %v9162 = vunpack.c.l.b16 %v8577
  %v9163 = vunpack.c.h.b16 %v8577
  %v9164 = vunpack.c.l.b16 %v8578
  %v9165 = vunpack.c.l.b16 %v8579
  %v9166 = vunpack.c.h.b16 %v8579
  %v9167 = vunpack.c.l.b16 %v8580
  %v9168 = vunpack.c.h.b16 %v8580
  %v9169 = vunpack.c.l.b16 %v8581
  %v9170 = vunpack.c.l.b16 %v8582
  %v9171 = vunpack.c.h.b16 %v8582
  %v9172 = vunpack.c.l.b16 %v8583
  %v9173 = vunpack.c.h.b16 %v8583
  %v9174 = vunpack.c.l.b16 %v8584
  %v9175 = vunpack.c.l.b16 %v8585
  %v9176 = vunpack.c.h.b16 %v8585
  %v9177 = vunpack.c.l.b16 %v8586
  %v9178 = vunpack.c.h.b16 %v8586
  %v9179 = vunpack.c.l.b16 %v8587
  %v9180 = vunpack.c.l.b16 %v8588
  %v9181 = vunpack.c.h.b16 %v8588
  %v9182 = vunpack.c.l.b16 %v8589
  %v9183 = vunpack.c.h.b16 %v8589
  %v9184 = vunpack.c.l.b16 %v8590
  %v9185 = vunpack.c.l.b16 %v8591
  %v9186 = vunpack.c.h.b16 %v8591
  %v9187 = vunpack.c.l.b16 %v8592
  %v9188 = vunpack.c.h.b16 %v8592
  %v9189 = vunpack.c.l.b16 %v8593
  %v9190 = vunpack.c.l.b16 %v8594
  %v9191 = vunpack.c.h.b16 %v8594
  %v9192 = vunpack.c.l.b16 %v8595
  %v9193 = vunpack.c.h.b16 %v8595
  %v9194 = vunpack.c.l.b16 %v8596
  %v9195 = vunpack.c.l.b16 %v8597
  %v9196 = vunpack.c.h.b16 %v8597
  %v9197 = vunpack.c.l.b16 %v8598
  %v9198 = vunpack.c.h.b16 %v8598
  %v9199 = vunpack.c.l.b16 %v8599
  %v9200 = vunpack.c.l.b16 %v8600
  %v9201 = vunpack.c.h.b16 %v8600
  %v9202 = vunpack.c.l.b16 %v8601
  %v9203 = vunpack.c.h.b16 %v8601
  %v9204 = vunpack.c.l.b16 %v8602
  %v9205 = vunpack.c.l.b16 %v8603
  %v9206 = vunpack.c.h.b16 %v8603
  %v9207 = vunpack.c.l.b16 %v8604
  %v9208 = vunpack.c.h.b16 %v8604
  %v9209 = vunpack.c.l.b16 %v8605
  %v9210 = vunpack.c.l.b16 %v8606
  %v9211 = vunpack.c.h.b16 %v8606
  %v9212 = vunpack.c.l.b16 %v8607
  %v9213 = vunpack.c.h.b16 %v8607
  %v9214 = vunpack.c.l.b16 %v8608
  %v9215 = vunpack.c.l.b16 %v8609
  %v9216 = vunpack.c.h.b16 %v8609
  %v9217 = vunpack.c.l.b16 %v8610
  %v9218 = vunpack.c.h.b16 %v8610
  %v9219 = vunpack.c.l.b16 %v8611
  %v9220 = vunpack.c.l.b16 %v8612
  %v9221 = vunpack.c.h.b16 %v8612
  %v9222 = vunpack.c.l.b16 %v8613
  %v9223 = vunpack.c.h.b16 %v8613
  %v9224 = vunpack.c.l.b16 %v8614
  %v9225 = vunpack.c.l.b16 %v8615
  %v9226 = vunpack.c.h.b16 %v8615
  %v9227 = vunpack.c.l.b16 %v8616
  %v9228 = vunpack.c.h.b16 %v8616
  %v9229 = vunpack.c.l.b16 %v8617
  %v9230 = vunpack.c.l.b16 %v8618
  %v9231 = vunpack.c.h.b16 %v8618
  %v9232 = vunpack.c.l.b16 %v8619
  %v9233 = vunpack.c.h.b16 %v8619
  %v9234 = vunpack.c.l.b16 %v8620
  %v9235 = vunpack.c.l.b16 %v8621
  %v9236 = vunpack.c.h.b16 %v8621
  %v9237 = vunpack.c.l.b16 %v8622
  %v9238 = vunpack.c.h.b16 %v8622
  %v9239 = vunpack.c.l.b16 %v8623
  %v9240 = vunpack.c.l.b16 %v8624
  %v9241 = vunpack.c.h.b16 %v8624
  %v9242 = vunpack.c.l.b16 %v8625
  %v9243 = vunpack.c.h.b16 %v8625
  %v9244 = vunpack.c.l.b16 %v8626
  %v9245 = vunpack.c.l.b16 %v8627
  %v9246 = vunpack.c.h.b16 %v8627
  %v9247 = vunpack.c.l.b16 %v8628
  %v9248 = vunpack.c.h.b16 %v8628
  %v9249 = vunpack.c.l.b16 %v8629
  %v9250 = vunpack.c.l.b16 %v8630
  %v9251 = vunpack.c.h.b16 %v8630
  %v9252 = vunpack.c.l.b16 %v8631
  %v9253 = vunpack.c.h.b16 %v8631
  %v9254 = vunpack.c.l.b16 %v8632
  %v9255 = vunpack.c.l.b16 %v8633
  %v9256 = vunpack.c.h.b16 %v8633
  %v9257 = vunpack.c.l.b16 %v8634
  %v9258 = vunpack.c.h.b16 %v8634
  %v9259 = vunpack.c.l.b16 %v8635
  %v9260 = vunpack.c.l.b16 %v8636
  %v9261 = vunpack.c.h.b16 %v8636
  %v9262 = vunpack.c.l.b16 %v8637
  %v9263 = vunpack.c.h.b16 %v8637
  %v9264 = vunpack.c.l.b16 %v8638
  %v9265 = vunpack.c.l.b16 %v8639
  %v9266 = vunpack.c.h.b16 %v8639
  %v9267 = vunpack.c.l.b16 %v8640
  %v9268 = vunpack.c.h.b16 %v8640
  %v9269 = vunpack.c.l.b16 %v8641
  %v9270 = vunpack.c.l.b16 %v8642
  %v9271 = vunpack.c.h.b16 %v8642
  %v9272 = vunpack.c.l.b16 %v8643
  %v9273 = vunpack.c.h.b16 %v8643
  %v9274 = vunpack.c.l.b16 %v8644
  %v9275 = vunpack.c.l.b16 %v8645
  %v9276 = vunpack.c.h.b16 %v8645
  %v9277 = vunpack.c.l.b16 %v8646
  %v9278 = vunpack.c.h.b16 %v8646
  %v9279 = vunpack.c.l.b16 %v8647
  %v9280 = vunpack.c.l.b16 %v8648
  %v9281 = vunpack.c.h.b16 %v8648
  %v9282 = vunpack.c.l.b16 %v8649
  %v9283 = vunpack.c.h.b16 %v8649
  %v9284 = vunpack.c.l.b16 %v8650
  %v9285 = vunpack.c.l.b16 %v8651
  %v9286 = vunpack.c.h.b16 %v8651
  %v9287 = vunpack.c.l.b16 %v8652
  %v9288 = vunpack.c.h.b16 %v8652
  %v9289 = vunpack.c.l.b16 %v8653
  %v9290 = vunpack.c.l.b16 %v8654
  %v9291 = vunpack.c.h.b16 %v8654
  %v9292 = vunpack.c.l.b16 %v8655
  %v9293 = vunpack.c.h.b16 %v8655
  %v9294 = vunpack.c.l.b16 %v8656
  %v9295 = vunpack.c.l.b16 %v8657
  %v9296 = vunpack.c.h.b16 %v8657
  %v9297 = vunpack.c.l.b16 %v8658
  %v9298 = vunpack.c.h.b16 %v8658
  %v9299 = vunpack.c.l.b16 %v8659
  %v9300 = vunpack.c.l.b16 %v8660
  %v9301 = vunpack.c.h.b16 %v8660
  %v9302 = vunpack.c.l.b16 %v8661
  %v9303 = vunpack.c.h.b16 %v8661
  %v9304 = vunpack.c.l.b16 %v8662
  %v9305 = vunpack.c.l.b16 %v8663
  %v9306 = vunpack.c.h.b16 %v8663
  %v9307 = vunpack.c.l.b16 %v8664
  %v9308 = vunpack.c.h.b16 %v8664
  %v9309 = vunpack.c.l.b16 %v8665
  %v9310 = vunpack.c.l.b16 %v8666
  %v9311 = vunpack.c.h.b16 %v8666
  %v9312 = vunpack.c.l.b16 %v8667
  %v9313 = vunpack.c.h.b16 %v8667
  %v9314 = vunpack.c.l.b16 %v8668
  %v9315 = vunpack.c.l.b16 %v8669
  %v9316 = vunpack.c.h.b16 %v8669
  %v9317 = vunpack.c.l.b16 %v8670
  %v9318 = vunpack.c.h.b16 %v8670
  %v9319 = vunpack.c.l.b16 %v8671
  %v9320 = vunpack.c.l.b16 %v8672
  %v9321 = vunpack.c.h.b16 %v8672
  %v9322 = vunpack.c.l.b16 %v8673
  %v9323 = vunpack.c.h.b16 %v8673
  %v9324 = vunpack.c.l.b16 %v8674
  %v9325 = vunpack.c.l.b16 %v8675
  %v9326 = vunpack.c.h.b16 %v8675
  %v9327 = vunpack.c.l.b16 %v8676
  %v9328 = vunpack.c.h.b16 %v8676
  %v9329 = vunpack.c.l.b16 %v8677
  %v9330 = vunpack.c.l.b16 %v8678
  %v9331 = vunpack.c.h.b16 %v8678
  %v9332 = vunpack.c.l.b16 %v8679
  %v9333 = vunpack.c.h.b16 %v8679
  %v9334 = vunpack.c.l.b16 %v8680
  %v9335 = vunpack.c.l.b16 %v8681
  %v9336 = vunpack.c.h.b16 %v8681
  %v9337 = vunpack.c.l.b16 %v8682
  %v9338 = vunpack.c.h.b16 %v8682
  %v9339 = vunpack.c.l.b16 %v8683
  %v9340 = vunpack.c.l.b16 %v8684
  %v9341 = vunpack.c.h.b16 %v8684
  %v9342 = vunpack.c.l.b16 %v8685
  %v9343 = vunpack.c.h.b16 %v8685
  %v9344 = vunpack.c.l.b16 %v8686
  %v9345 = vpack.c.b16 %v8950, %v8945
  %v9346 = vpack.c.b16 %v8951, %v8946
  %v9347 = vpack.c.b16 %v8952, %v8947
  %v9348 = vpack.c.b16 %v8953, %v8948
  %v9349 = vpack.c.b16 %v8954, %v8949
  %v9350 = vpack.c.b16 %v8960, %v8955
  %v9351 = vpack.c.b16 %v8961, %v8956
  %v9352 = vpack.c.b16 %v8962, %v8957
  %v9353 = vpack.c.b16 %v8963, %v8958
  %v9354 = vpack.c.b16 %v8964, %v8959
  %v9355 = vpack.c.b16 %v8970, %v8965
  %v9356 = vpack.c.b16 %v8971, %v8966
  %v9357 = vpack.c.b16 %v8972, %v8967
  %v9358 = vpack.c.b16 %v8973, %v8968
  %v9359 = vpack.c.b16 %v8974, %v8969
  %v9360 = vpack.c.b16 %v8980, %v8975
  %v9361 = vpack.c.b16 %v8981, %v8976
  %v9362 = vpack.c.b16 %v8982, %v8977
  %v9363 = vpack.c.b16 %v8983, %v8978
  %v9364 = vpack.c.b16 %v8984, %v8979
  %v9365 = vpack.c.b16 %v8990, %v8985
  %v9366 = vpack.c.b16 %v8991, %v8986
  %v9367 = vpack.c.b16 %v8992, %v8987
  %v9368 = vpack.c.b16 %v8993, %v8988
  %v9369 = vpack.c.b16 %v8994, %v8989
  %v9370 = vpack.c.b16 %v9000, %v8995
  %v9371 = vpack.c.b16 %v9001, %v8996
  %v9372 = vpack.c.b16 %v9002, %v8997
  %v9373 = vpack.c.b16 %v9003, %v8998
  %v9374 = vpack.c.b16 %v9004, %v8999
  %v9375 = vpack.c.b16 %v9010, %v9005
  %v9376 = vpack.c.b16 %v9011, %v9006
  %v9377 = vpack.c.b16 %v9012, %v9007
  %v9378 = vpack.c.b16 %v9013, %v9008
  %v9379 = vpack.c.b16 %v9014, %v9009
  %v9380 = vpack.c.b16 %v9020, %v9015
  %v9381 = vpack.c.b16 %v9021, %v9016
  %v9382 = vpack.c.b16 %v9022, %v9017
  %v9383 = vpack.c.b16 %v9023, %v9018
  %v9384 = vpack.c.b16 %v9024, %v9019
  %v9385 = vpack.c.b16 %v9030, %v9025
  %v9386 = vpack.c.b16 %v9031, %v9026
  %v9387 = vpack.c.b16 %v9032, %v9027
  %v9388 = vpack.c.b16 %v9033, %v9028
  %v9389 = vpack.c.b16 %v9034, %v9029
  %v9390 = vpack.c.b16 %v9040, %v9035
  %v9391 = vpack.c.b16 %v9041, %v9036
  %v9392 = vpack.c.b16 %v9042, %v9037
  %v9393 = vpack.c.b16 %v9043, %v9038
  %v9394 = vpack.c.b16 %v9044, %v9039
  %v9395 = vpack.c.b16 %v9050, %v9045
  %v9396 = vpack.c.b16 %v9051, %v9046
  %v9397 = vpack.c.b16 %v9052, %v9047
  %v9398 = vpack.c.b16 %v9053, %v9048
  %v9399 = vpack.c.b16 %v9054, %v9049
  %v9400 = vpack.c.b16 %v9060, %v9055
  %v9401 = vpack.c.b16 %v9061, %v9056
  %v9402 = vpack.c.b16 %v9062, %v9057
  %v9403 = vpack.c.b16 %v9063, %v9058
  %v9404 = vpack.c.b16 %v9064, %v9059
  %v9405 = vpack.c.b16 %v9070, %v9065
  %v9406 = vpack.c.b16 %v9071, %v9066
  %v9407 = vpack.c.b16 %v9072, %v9067
  %v9408 = vpack.c.b16 %v9073, %v9068
  %v9409 = vpack.c.b16 %v9074, %v9069
  %v9410 = vpack.c.b16 %v9080, %v9075
  %v9411 = vpack.c.b16 %v9081, %v9076
  %v9412 = vpack.c.b16 %v9082, %v9077
  %v9413 = vpack.c.b16 %v9083, %v9078
  %v9414 = vpack.c.b16 %v9084, %v9079
  %v9415 = vpack.c.b16 %v9090, %v9085
  %v9416 = vpack.c.b16 %v9091, %v9086
  %v9417 = vpack.c.b16 %v9092, %v9087
  %v9418 = vpack.c.b16 %v9093, %v9088
  %v9419 = vpack.c.b16 %v9094, %v9089
  %v9420 = vpack.c.b16 %v9100, %v9095
  %v9421 = vpack.c.b16 %v9101, %v9096
  %v9422 = vpack.c.b16 %v9102, %v9097
  %v9423 = vpack.c.b16 %v9103, %v9098
  %v9424 = vpack.c.b16 %v9104, %v9099
  %v9425 = vpack.c.b16 %v9110, %v9105
  %v9426 = vpack.c.b16 %v9111, %v9106
  %v9427 = vpack.c.b16 %v9112, %v9107
  %v9428 = vpack.c.b16 %v9113, %v9108
  %v9429 = vpack.c.b16 %v9114, %v9109
  %v9430 = vpack.c.b16 %v9120, %v9115
  %v9431 = vpack.c.b16 %v9121, %v9116
  %v9432 = vpack.c.b16 %v9122, %v9117
  %v9433 = vpack.c.b16 %v9123, %v9118
  %v9434 = vpack.c.b16 %v9124, %v9119
  %v9435 = vpack.c.b16 %v9130, %v9125
  %v9436 = vpack.c.b16 %v9131, %v9126
  %v9437 = vpack.c.b16 %v9132, %v9127
  %v9438 = vpack.c.b16 %v9133, %v9128
  %v9439 = vpack.c.b16 %v9134, %v9129
  %v9440 = vpack.c.b16 %v9140, %v9135
  %v9441 = vpack.c.b16 %v9141, %v9136
  %v9442 = vpack.c.b16 %v9142, %v9137
  %v9443 = vpack.c.b16 %v9143, %v9138
  %v9444 = vpack.c.b16 %v9144, %v9139
  %v9445 = vpack.c.b16 %v9150, %v9145
  %v9446 = vpack.c.b16 %v9151, %v9146
  %v9447 = vpack.c.b16 %v9152, %v9147
  %v9448 = vpack.c.b16 %v9153, %v9148
  %v9449 = vpack.c.b16 %v9154, %v9149
  %v9450 = vpack.c.b16 %v9160, %v9155
  %v9451 = vpack.c.b16 %v9161, %v9156
  %v9452 = vpack.c.b16 %v9162, %v9157
  %v9453 = vpack.c.b16 %v9163, %v9158
  %v9454 = vpack.c.b16 %v9164, %v9159
  %v9455 = vpack.c.b16 %v9170, %v9165
  %v9456 = vpack.c.b16 %v9171, %v9166
  %v9457 = vpack.c.b16 %v9172, %v9167
  %v9458 = vpack.c.b16 %v9173, %v9168
  %v9459 = vpack.c.b16 %v9174, %v9169
  %v9460 = vpack.c.b16 %v9180, %v9175
  %v9461 = vpack.c.b16 %v9181, %v9176
  %v9462 = vpack.c.b16 %v9182, %v9177
  %v9463 = vpack.c.b16 %v9183, %v9178
  %v9464 = vpack.c.b16 %v9184, %v9179
  %v9465 = vpack.c.b16 %v9190, %v9185
  %v9466 = vpack.c.b16 %v9191, %v9186
  %v9467 = vpack.c.b16 %v9192, %v9187
  %v9468 = vpack.c.b16 %v9193, %v9188
  %v9469 = vpack.c.b16 %v9194, %v9189
  %v9470 = vpack.c.b16 %v9200, %v9195
  %v9471 = vpack.c.b16 %v9201, %v9196
  %v9472 = vpack.c.b16 %v9202, %v9197
  %v9473 = vpack.c.b16 %v9203, %v9198
  %v9474 = vpack.c.b16 %v9204, %v9199
  %v9475 = vpack.c.b16 %v9210, %v9205
  %v9476 = vpack.c.b16 %v9211, %v9206
  %v9477 = vpack.c.b16 %v9212, %v9207
  %v9478 = vpack.c.b16 %v9213, %v9208
  %v9479 = vpack.c.b16 %v9214, %v9209
  %v9480 = vpack.c.b16 %v9220, %v9215
  %v9481 = vpack.c.b16 %v9221, %v9216
  %v9482 = vpack.c.b16 %v9222, %v9217
  %v9483 = vpack.c.b16 %v9223, %v9218
  %v9484 = vpack.c.b16 %v9224, %v9219
  %v9485 = vpack.c.b16 %v9230, %v9225
  %v9486 = vpack.c.b16 %v9231, %v9226
  %v9487 = vpack.c.b16 %v9232, %v9227
  %v9488 = vpack.c.b16 %v9233, %v9228
  %v9489 = vpack.c.b16 %v9234, %v9229
  %v9490 = vpack.c.b16 %v9240, %v9235
  %v9491 = vpack.c.b16 %v9241, %v9236
  %v9492 = vpack.c.b16 %v9242, %v9237
  %v9493 = vpack.c.b16 %v9243, %v9238
  %v9494 = vpack.c.b16 %v9244, %v9239
  %v9495 = vpack.c.b16 %v9250, %v9245
  %v9496 = vpack.c.b16 %v9251, %v9246
  %v9497 = vpack.c.b16 %v9252, %v9247
  %v9498 = vpack.c.b16 %v9253, %v9248
  %v9499 = vpack.c.b16 %v9254, %v9249
  %v9500 = vpack.c.b16 %v9260, %v9255
  %v9501 = vpack.c.b16 %v9261, %v9256
  %v9502 = vpack.c.b16 %v9262, %v9257
  %v9503 = vpack.c.b16 %v9263, %v9258
  %v9504 = vpack.c.b16 %v9264, %v9259
  %v9505 = vpack.c.b16 %v9270, %v9265
  %v9506 = vpack.c.b16 %v9271, %v9266
  %v9507 = vpack.c.b16 %v9272, %v9267
  %v9508 = vpack.c.b16 %v9273, %v9268
  %v9509 = vpack.c.b16 %v9274, %v9269
  %v9510 = vpack.c.b16 %v9280, %v9275
  %v9511 = vpack.c.b16 %v9281, %v9276
  %v9512 = vpack.c.b16 %v9282, %v9277
  %v9513 = vpack.c.b16 %v9283, %v9278
  %v9514 = vpack.c.b16 %v9284, %v9279
  %v9515 = vpack.c.b16 %v9290, %v9285
  %v9516 = vpack.c.b16 %v9291, %v9286
  %v9517 = vpack.c.b16 %v9292, %v9287
  %v9518 = vpack.c.b16 %v9293, %v9288
  %v9519 = vpack.c.b16 %v9294, %v9289
  %v9520 = vpack.c.b16 %v9300, %v9295
  %v9521 = vpack.c.b16 %v9301, %v9296
  %v9522 = vpack.c.b16 %v9302, %v9297
  %v9523 = vpack.c.b16 %v9303, %v9298
  %v9524 = vpack.c.b16 %v9304, %v9299
  %v9525 = vpack.c.b16 %v9310, %v9305
  %v9526 = vpack.c.b16 %v9311, %v9306
  %v9527 = vpack.c.b16 %v9312, %v9307
  %v9528 = vpack.c.b16 %v9313, %v9308
  %v9529 = vpack.c.b16 %v9314, %v9309
  %v9530 = vpack.c.b16 %v9320, %v9315
  %v9531 = vpack.c.b16 %v9321, %v9316
  %v9532 = vpack.c.b16 %v9322, %v9317
  %v9533 = vpack.c.b16 %v9323, %v9318
  %v9534 = vpack.c.b16 %v9324, %v9319
  %v9535 = vpack.c.b16 %v9330, %v9325
  %v9536 = vpack.c.b16 %v9331, %v9326
  %v9537 = vpack.c.b16 %v9332, %v9327
  %v9538 = vpack.c.b16 %v9333, %v9328
  %v9539 = vpack.c.b16 %v9334, %v9329
  %v9540 = vpack.c.b16 %v9340, %v9335
  %v9541 = vpack.c.b16 %v9341, %v9336
  %v9542 = vpack.c.b16 %v9342, %v9337
  %v9543 = vpack.c.b16 %v9343, %v9338
  %v9544 = vpack.c.b16 %v9344, %v9339
  %9745 = vmatprep.subr.bf16.mxu0 %v9346
  %9746 = vmatpush1.bf16.msra.mxu0 %v9345
  %9747 = vmatprep.subr.bf16.mxu0 %v9351
  %9748 = vmatpush1.bf16.msra.mxu0 %v9350
  %9749 = vmatprep.subr.bf16.mxu0 %v9356
  %9750 = vmatpush1.bf16.msra.mxu0 %v9355
  %9751 = vmatprep.subr.bf16.mxu0 %v9361
  %9752 = vmatpush1.bf16.msra.mxu0 %v9360
  %9753 = vmatprep.subr.bf16.mxu0 %v9366
  %9754 = vmatpush1.bf16.msra.mxu0 %v9365
  %9755 = vmatprep.subr.bf16.mxu0 %v9371
  %9756 = vmatpush1.bf16.msra.mxu0 %v9370
  %9757 = vmatprep.subr.bf16.mxu0 %v9376
  %9758 = vmatpush1.bf16.msra.mxu0 %v9375
  %9759 = vmatprep.subr.bf16.mxu0 %v9381
  %9760 = vmatpush1.bf16.msra.mxu0 %v9380
  %9761 = vmatprep.subr.bf16.mxu0 %v9386
  %9762 = vmatpush1.bf16.msra.mxu0 %v9385
  %9763 = vmatprep.subr.bf16.mxu0 %v9391
  %9764 = vmatpush1.bf16.msra.mxu0 %v9390
  %9765 = vmatprep.subr.bf16.mxu0 %v9396
  %9766 = vmatpush1.bf16.msra.mxu0 %v9395
  %9767 = vmatprep.subr.bf16.mxu0 %v9401
  %9768 = vmatpush1.bf16.msra.mxu0 %v9400
  %9769 = vmatprep.subr.bf16.mxu0 %v9406
  %9770 = vmatpush1.bf16.msra.mxu0 %v9405
  %9771 = vmatprep.subr.bf16.mxu0 %v9411
  %9772 = vmatpush1.bf16.msra.mxu0 %v9410
  %9773 = vmatprep.subr.bf16.mxu0 %v9416
  %9774 = vmatpush1.bf16.msra.mxu0 %v9415
  %9775 = vmatprep.subr.bf16.mxu0 %v9421
  %9776 = vmatpush1.bf16.msra.mxu0 %v9420
  %9777 = vmatprep.mubr.bf16.mxu0 %v8696
  %9778 = vmatmul.mubr.bf16.gmra.mrb[0].mxu0 %v8695
  %v9779 = vpop.f32.mrb[0].mxu0
  %v9780 = vadd.f32 0.0, %v9779
  %v9781 = vpop.f32.mrb[0].mxu0
  %v9782 = vadd.f32 0.0, %v9781
  %v9783 = vpop.f32.mrb[0].mxu0
  %v9784 = vpop.f32.mrb[0].mxu0
  %9785 = vdwg.mxu0
  %9786 = vmatprep.subr.bf16.mxu0 %v9426
  %9787 = vmatpush1.bf16.msra.mxu0 %v9425
  %9788 = vmatprep.subr.bf16.mxu0 %v9431
  %9789 = vmatpush1.bf16.msra.mxu0 %v9430
  %9790 = vmatprep.subr.bf16.mxu0 %v9436
  %9791 = vmatpush1.bf16.msra.mxu0 %v9435
  %9792 = vmatprep.subr.bf16.mxu0 %v9441
  %9793 = vmatpush1.bf16.msra.mxu0 %v9440
  %9794 = vmatprep.subr.bf16.mxu0 %v9446
  %9795 = vmatpush1.bf16.msra.mxu0 %v9445
  %9796 = vmatprep.subr.bf16.mxu0 %v9451
  %9797 = vmatpush1.bf16.msra.mxu0 %v9450
  %9798 = vmatprep.subr.bf16.mxu0 %v9456
  %9799 = vmatpush1.bf16.msra.mxu0 %v9455
  %9800 = vmatprep.subr.bf16.mxu0 %v9461
  %9801 = vmatpush1.bf16.msra.mxu0 %v9460
  %9802 = vmatprep.subr.bf16.mxu0 %v9466
  %9803 = vmatpush1.bf16.msra.mxu0 %v9465
  %9804 = vmatprep.subr.bf16.mxu0 %v9471
  %9805 = vmatpush1.bf16.msra.mxu0 %v9470
  %9806 = vmatprep.subr.bf16.mxu0 %v9476
  %9807 = vmatpush1.bf16.msra.mxu0 %v9475
  %9808 = vmatprep.subr.bf16.mxu0 %v9481
  %9809 = vmatpush1.bf16.msra.mxu0 %v9480
  %9810 = vmatprep.subr.bf16.mxu0 %v9486
  %9811 = vmatpush1.bf16.msra.mxu0 %v9485
  %9812 = vmatprep.subr.bf16.mxu0 %v9491
  %9813 = vmatpush1.bf16.msra.mxu0 %v9490
  %9814 = vmatprep.subr.bf16.mxu0 %v9496
  %9815 = vmatpush1.bf16.msra.mxu0 %v9495
  %9816 = vmatprep.subr.bf16.mxu0 %v9501
  %9817 = vmatpush1.bf16.msra.mxu0 %v9500
  %9818 = vmatprep.mubr.bf16.mxu0 %v8698
  %9819 = vmatmul.mubr.bf16.gmra.mrb[0].mxu0 %v8697
  %v9820 = vpop.f32.mrb[0].mxu0
  %v9821 = vadd.f32 %v9780, %v9820
  %v9822 = vpop.f32.mrb[0].mxu0
  %v9823 = vadd.f32 %v9782, %v9822
  %v9824 = vpop.f32.mrb[0].mxu0
  %v9825 = vpop.f32.mrb[0].mxu0
  %9826 = vdwg.mxu0
  %9827 = vmatprep.subr.bf16.mxu0 %v9506
  %9828 = vmatpush1.bf16.msra.mxu0 %v9505
  %9829 = vmatprep.subr.bf16.mxu0 %v9511
  %9830 = vmatpush1.bf16.msra.mxu0 %v9510
  %9831 = vmatprep.subr.bf16.mxu0 %v9516
  %9832 = vmatpush1.bf16.msra.mxu0 %v9515
  %9833 = vmatprep.subr.bf16.mxu0 %v9521
  %9834 = vmatpush1.bf16.msra.mxu0 %v9520
  %9835 = vmatprep.subr.bf16.mxu0 %v9526
  %9836 = vmatpush1.bf16.msra.mxu0 %v9525
  %9837 = vmatprep.subr.bf16.mxu0 %v9531
  %9838 = vmatpush1.bf16.msra.mxu0 %v9530
  %9839 = vmatprep.subr.bf16.mxu0 %v9536
  %9840 = vmatpush1.bf16.msra.mxu0 %v9535
  %9841 = vmatprep.subr.bf16.mxu0 %v9541
  %9842 = vmatpush1.bf16.msra.mxu0 %v9540
  %9843 = vmatprep.subr.bf16.mxu0 0
  %9844 = vmatpush1.bf16.msra.mxu0 0
  %9845 = vmatprep.subr.bf16.mxu0 0
  %9846 = vmatpush1.bf16.msra.mxu0 0
  %9847 = vmatprep.subr.bf16.mxu0 0
  %9848 = vmatpush1.bf16.msra.mxu0 0
  %9849 = vmatprep.subr.bf16.mxu0 0
  %9850 = vmatpush1.bf16.msra.mxu0 0
  %9851 = vmatprep.subr.bf16.mxu0 0
  %9852 = vmatpush1.bf16.msra.mxu0 0
  %9853 = vmatprep.subr.bf16.mxu0 0
  %9854 = vmatpush1.bf16.msra.mxu0 0
  %9855 = vmatprep.subr.bf16.mxu0 0
  %9856 = vmatpush1.bf16.msra.mxu0 0
  %9857 = vmatprep.subr.bf16.mxu0 0
  %9858 = vmatpush1.bf16.msra.mxu0 0
  %9859 = vmatprep.mubr.bf16.mxu0 0
  %9860 = vmatmul.mubr.bf16.gmra.mrb[0].mxu0 %v8699
  %v9861 = vpop.f32.mrb[0].mxu0
  %v9862 = vadd.f32 %v9821, %v9861
  %v9863 = vpop.f32.mrb[0].mxu0
  %v9864 = vadd.f32 %v9823, %v9863
  %v9865 = vpop.f32.mrb[0].mxu0
  %v9866 = vpop.f32.mrb[0].mxu0
  %9867 = vdwg.mxu0
  %9868 = vmatprep.subr.bf16.mxu0 %v9348
  %9869 = vmatpush1.bf16.msra.mxu0 %v9347
  %9870 = vmatprep.subr.bf16.mxu0 %v9353
  %9871 = vmatpush1.bf16.msra.mxu0 %v9352
  %9872 = vmatprep.subr.bf16.mxu0 %v9358
  %9873 = vmatpush1.bf16.msra.mxu0 %v9357
  %9874 = vmatprep.subr.bf16.mxu0 %v9363
  %9875 = vmatpush1.bf16.msra.mxu0 %v9362
  %9876 = vmatprep.subr.bf16.mxu0 %v9368
  %9877 = vmatpush1.bf16.msra.mxu0 %v9367
  %9878 = vmatprep.subr.bf16.mxu0 %v9373
  %9879 = vmatpush1.bf16.msra.mxu0 %v9372
  %9880 = vmatprep.subr.bf16.mxu0 %v9378
  %9881 = vmatpush1.bf16.msra.mxu0 %v9377
  %9882 = vmatprep.subr.bf16.mxu0 %v9383
  %9883 = vmatpush1.bf16.msra.mxu0 %v9382
  %9884 = vmatprep.subr.bf16.mxu0 %v9388
  %9885 = vmatpush1.bf16.msra.mxu0 %v9387
  %9886 = vmatprep.subr.bf16.mxu0 %v9393
  %9887 = vmatpush1.bf16.msra.mxu0 %v9392
  %9888 = vmatprep.subr.bf16.mxu0 %v9398
  %9889 = vmatpush1.bf16.msra.mxu0 %v9397
  %9890 = vmatprep.subr.bf16.mxu0 %v9403
  %9891 = vmatpush1.bf16.msra.mxu0 %v9402
  %9892 = vmatprep.subr.bf16.mxu0 %v9408
  %9893 = vmatpush1.bf16.msra.mxu0 %v9407
  %9894 = vmatprep.subr.bf16.mxu0 %v9413
  %9895 = vmatpush1.bf16.msra.mxu0 %v9412
  %9896 = vmatprep.subr.bf16.mxu0 %v9418
  %9897 = vmatpush1.bf16.msra.mxu0 %v9417
  %9898 = vmatprep.subr.bf16.mxu0 %v9423
  %9899 = vmatpush1.bf16.msra.mxu0 %v9422
  %9900 = vmatprep.mubr.bf16.mxu0 %v8696
  %9901 = vmatmul.mubr.bf16.gmra.mrb[0].mxu0 %v8695
  %v9902 = vpop.f32.mrb[0].mxu0
  %v9903 = vadd.f32 0.0, %v9902
  %v9904 = vpop.f32.mrb[0].mxu0
  %v9905 = vadd.f32 0.0, %v9904
  %v9906 = vpop.f32.mrb[0].mxu0
  %v9907 = vpop.f32.mrb[0].mxu0
  %9908 = vdwg.mxu0
  %9909 = vmatprep.subr.bf16.mxu0 %v9428
  %9910 = vmatpush1.bf16.msra.mxu0 %v9427
  %9911 = vmatprep.subr.bf16.mxu0 %v9433
  %9912 = vmatpush1.bf16.msra.mxu0 %v9432
  %9913 = vmatprep.subr.bf16.mxu0 %v9438
  %9914 = vmatpush1.bf16.msra.mxu0 %v9437
  %9915 = vmatprep.subr.bf16.mxu0 %v9443
  %9916 = vmatpush1.bf16.msra.mxu0 %v9442
  %9917 = vmatprep.subr.bf16.mxu0 %v9448
  %9918 = vmatpush1.bf16.msra.mxu0 %v9447
  %9919 = vmatprep.subr.bf16.mxu0 %v9453
  %9920 = vmatpush1.bf16.msra.mxu0 %v9452
  %9921 = vmatprep.subr.bf16.mxu0 %v9458
  %9922 = vmatpush1.bf16.msra.mxu0 %v9457
  %9923 = vmatprep.subr.bf16.mxu0 %v9463
  %9924 = vmatpush1.bf16.msra.mxu0 %v9462
  %9925 = vmatprep.subr.bf16.mxu0 %v9468
  %9926 = vmatpush1.bf16.msra.mxu0 %v9467
  %9927 = vmatprep.subr.bf16.mxu0 %v9473
  %9928 = vmatpush1.bf16.msra.mxu0 %v9472
  %9929 = vmatprep.subr.bf16.mxu0 %v9478
  %9930 = vmatpush1.bf16.msra.mxu0 %v9477
  %9931 = vmatprep.subr.bf16.mxu0 %v9483
  %9932 = vmatpush1.bf16.msra.mxu0 %v9482
  %9933 = vmatprep.subr.bf16.mxu0 %v9488
  %9934 = vmatpush1.bf16.msra.mxu0 %v9487
  %9935 = vmatprep.subr.bf16.mxu0 %v9493
  %9936 = vmatpush1.bf16.msra.mxu0 %v9492
  %9937 = vmatprep.subr.bf16.mxu0 %v9498
  %9938 = vmatpush1.bf16.msra.mxu0 %v9497
  %9939 = vmatprep.subr.bf16.mxu0 %v9503
  %9940 = vmatpush1.bf16.msra.mxu0 %v9502
  %9941 = vmatprep.mubr.bf16.mxu0 %v8698
  %9942 = vmatmul.mubr.bf16.gmra.mrb[0].mxu0 %v8697
  %v9943 = vpop.f32.mrb[0].mxu0
  %v9944 = vadd.f32 %v9903, %v9943
  %v9945 = vpop.f32.mrb[0].mxu0
  %v9946 = vadd.f32 %v9905, %v9945
  %v9947 = vpop.f32.mrb[0].mxu0
  %v9948 = vpop.f32.mrb[0].mxu0
  %9949 = vdwg.mxu0
  %9950 = vmatprep.subr.bf16.mxu0 %v9508
  %9951 = vmatpush1.bf16.msra.mxu0 %v9507
  %9952 = vmatprep.subr.bf16.mxu0 %v9513
  %9953 = vmatpush1.bf16.msra.mxu0 %v9512
  %9954 = vmatprep.subr.bf16.mxu0 %v9518
  %9955 = vmatpush1.bf16.msra.mxu0 %v9517
  %9956 = vmatprep.subr.bf16.mxu0 %v9523
  %9957 = vmatpush1.bf16.msra.mxu0 %v9522
  %9958 = vmatprep.subr.bf16.mxu0 %v9528
  %9959 = vmatpush1.bf16.msra.mxu0 %v9527
  %9960 = vmatprep.subr.bf16.mxu0 %v9533
  %9961 = vmatpush1.bf16.msra.mxu0 %v9532
  %9962 = vmatprep.subr.bf16.mxu0 %v9538
  %9963 = vmatpush1.bf16.msra.mxu0 %v9537
  %9964 = vmatprep.subr.bf16.mxu0 %v9543
  %9965 = vmatpush1.bf16.msra.mxu0 %v9542
  %9966 = vmatprep.subr.bf16.mxu0 0
  %9967 = vmatpush1.bf16.msra.mxu0 0
  %9968 = vmatprep.subr.bf16.mxu0 0
  %9969 = vmatpush1.bf16.msra.mxu0 0
  %9970 = vmatprep.subr.bf16.mxu0 0
  %9971 = vmatpush1.bf16.msra.mxu0 0
  %9972 = vmatprep.subr.bf16.mxu0 0
  %9973 = vmatpush1.bf16.msra.mxu0 0
  %9974 = vmatprep.subr.bf16.mxu0 0
  %9975 = vmatpush1.bf16.msra.mxu0 0
  %9976 = vmatprep.subr.bf16.mxu0 0
  %9977 = vmatpush1.bf16.msra.mxu0 0
  %9978 = vmatprep.subr.bf16.mxu0 0
  %9979 = vmatpush1.bf16.msra.mxu0 0
  %9980 = vmatprep.subr.bf16.mxu0 0
  %9981 = vmatpush1.bf16.msra.mxu0 0
  %9982 = vmatprep.mubr.bf16.mxu0 0
  %9983 = vmatmul.mubr.bf16.gmra.mrb[0].mxu0 %v8699
  %v9984 = vpop.f32.mrb[0].mxu0
  %v9985 = vadd.f32 %v9944, %v9984
  %v9986 = vpop.f32.mrb[0].mxu0
  %v9987 = vadd.f32 %v9946, %v9986
  %v9988 = vpop.f32.mrb[0].mxu0
  %v9989 = vpop.f32.mrb[0].mxu0
  %9990 = vdwg.mxu0
  %9991 = vmatprep.subr.bf16.mxu0 0
  %9992 = vmatpush1.bf16.msra.mxu0 %v9349
  %9993 = vmatprep.subr.bf16.mxu0 0
  %9994 = vmatpush1.bf16.msra.mxu0 %v9354
  %9995 = vmatprep.subr.bf16.mxu0 0
  %9996 = vmatpush1.bf16.msra.mxu0 %v9359
  %9997 = vmatprep.subr.bf16.mxu0 0
  %9998 = vmatpush1.bf16.msra.mxu0 %v9364
  %9999 = vmatprep.subr.bf16.mxu0 0
  %10000 = vmatpush1.bf16.msra.mxu0 %v9369
  %10001 = vmatprep.subr.bf16.mxu0 0
  %10002 = vmatpush1.bf16.msra.mxu0 %v9374
  %10003 = vmatprep.subr.bf16.mxu0 0
  %10004 = vmatpush1.bf16.msra.mxu0 %v9379
  %10005 = vmatprep.subr.bf16.mxu0 0
  %10006 = vmatpush1.bf16.msra.mxu0 %v9384
  %10007 = vmatprep.subr.bf16.mxu0 0
  %10008 = vmatpush1.bf16.msra.mxu0 %v9389
  %10009 = vmatprep.subr.bf16.mxu0 0
  %10010 = vmatpush1.bf16.msra.mxu0 %v9394
  %10011 = vmatprep.subr.bf16.mxu0 0
  %10012 = vmatpush1.bf16.msra.mxu0 %v9399
  %10013 = vmatprep.subr.bf16.mxu0 0
  %10014 = vmatpush1.bf16.msra.mxu0 %v9404
  %10015 = vmatprep.subr.bf16.mxu0 0
  %10016 = vmatpush1.bf16.msra.mxu0 %v9409
  %10017 = vmatprep.subr.bf16.mxu0 0
  %10018 = vmatpush1.bf16.msra.mxu0 %v9414
  %10019 = vmatprep.subr.bf16.mxu0 0
  %10020 = vmatpush1.bf16.msra.mxu0 %v9419
  %10021 = vmatprep.subr.bf16.mxu0 0
  %10022 = vmatpush1.bf16.msra.mxu0 %v9424
  %10023 = vmatprep.mubr.bf16.mxu0 %v8696
  %10024 = vmatmul.mubr.bf16.gmra.mrb[0].mxu0 %v8695
  %v10025 = vpop.f32.mrb[0].mxu0
  %v10026 = vadd.f32 0.0, %v10025
  %v10027 = vpop.f32.mrb[0].mxu0
  %v10028 = vpop.f32.mrb[0].mxu0
  %v10029 = vpop.f32.mrb[0].mxu0
  %10030 = vdwg.mxu0
  %10031 = vmatprep.subr.bf16.mxu0 0
  %10032 = vmatpush1.bf16.msra.mxu0 %v9429
  %10033 = vmatprep.subr.bf16.mxu0 0
  %10034 = vmatpush1.bf16.msra.mxu0 %v9434
  %10035 = vmatprep.subr.bf16.mxu0 0
  %10036 = vmatpush1.bf16.msra.mxu0 %v9439
  %10037 = vmatprep.subr.bf16.mxu0 0
  %10038 = vmatpush1.bf16.msra.mxu0 %v9444
  %10039 = vmatprep.subr.bf16.mxu0 0
  %10040 = vmatpush1.bf16.msra.mxu0 %v9449
  %10041 = vmatprep.subr.bf16.mxu0 0
  %10042 = vmatpush1.bf16.msra.mxu0 %v9454
  %10043 = vmatprep.subr.bf16.mxu0 0
  %10044 = vmatpush1.bf16.msra.mxu0 %v9459
  %10045 = vmatprep.subr.bf16.mxu0 0
  %10046 = vmatpush1.bf16.msra.mxu0 %v9464
  %10047 = vmatprep.subr.bf16.mxu0 0
  %10048 = vmatpush1.bf16.msra.mxu0 %v9469
  %10049 = vmatprep.subr.bf16.mxu0 0
  %10050 = vmatpush1.bf16.msra.mxu0 %v9474
  %10051 = vmatprep.subr.bf16.mxu0 0
  %10052 = vmatpush1.bf16.msra.mxu0 %v9479
  %10053 = vmatprep.subr.bf16.mxu0 0
  %10054 = vmatpush1.bf16.msra.mxu0 %v9484
  %10055 = vmatprep.subr.bf16.mxu0 0
  %10056 = vmatpush1.bf16.msra.mxu0 %v9489
  %10057 = vmatprep.subr.bf16.mxu0 0
  %10058 = vmatpush1.bf16.msra.mxu0 %v9494
  %10059 = vmatprep.subr.bf16.mxu0 0
  %10060 = vmatpush1.bf16.msra.mxu0 %v9499
  %10061 = vmatprep.subr.bf16.mxu0 0
  %10062 = vmatpush1.bf16.msra.mxu0 %v9504
  %10063 = vmatprep.mubr.bf16.mxu0 %v8698
  %10064 = vmatmul.mubr.bf16.gmra.mrb[0].mxu0 %v8697
  %v10065 = vpop.f32.mrb[0].mxu0
  %v10066 = vadd.f32 %v10026, %v10065
  %v10067 = vpop.f32.mrb[0].mxu0
  %v10068 = vpop.f32.mrb[0].mxu0
  %v10069 = vpop.f32.mrb[0].mxu0
  %10070 = vdwg.mxu0
  %10071 = vmatprep.subr.bf16.mxu0 0
  %10072 = vmatpush1.bf16.msra.mxu0 %v9509
  %10073 = vmatprep.subr.bf16.mxu0 0
  %10074 = vmatpush1.bf16.msra.mxu0 %v9514
  %10075 = vmatprep.subr.bf16.mxu0 0
  %10076 = vmatpush1.bf16.msra.mxu0 %v9519
  %10077 = vmatprep.subr.bf16.mxu0 0
  %10078 = vmatpush1.bf16.msra.mxu0 %v9524
  %10079 = vmatprep.subr.bf16.mxu0 0
  %10080 = vmatpush1.bf16.msra.mxu0 %v9529
  %10081 = vmatprep.subr.bf16.mxu0 0
  %10082 = vmatpush1.bf16.msra.mxu0 %v9534
  %10083 = vmatprep.subr.bf16.mxu0 0
  %10084 = vmatpush1.bf16.msra.mxu0 %v9539
  %10085 = vmatprep.subr.bf16.mxu0 0
  %10086 = vmatpush1.bf16.msra.mxu0 %v9544
  %10087 = vmatprep.subr.bf16.mxu0 0
  %10088 = vmatpush1.bf16.msra.mxu0 0
  %10089 = vmatprep.subr.bf16.mxu0 0
  %10090 = vmatpush1.bf16.msra.mxu0 0
  %10091 = vmatprep.subr.bf16.mxu0 0
  %10092 = vmatpush1.bf16.msra.mxu0 0
  %10093 = vmatprep.subr.bf16.mxu0 0
  %10094 = vmatpush1.bf16.msra.mxu0 0
  %10095 = vmatprep.subr.bf16.mxu0 0
  %10096 = vmatpush1.bf16.msra.mxu0 0
  %10097 = vmatprep.subr.bf16.mxu0 0
  %10098 = vmatpush1.bf16.msra.mxu0 0
  %10099 = vmatprep.subr.bf16.mxu0 0
  %10100 = vmatpush1.bf16.msra.mxu0 0
  %10101 = vmatprep.subr.bf16.mxu0 0
  %10102 = vmatpush1.bf16.msra.mxu0 0
  %10103 = vmatprep.mubr.bf16.mxu0 0
  %10104 = vmatmul.mubr.bf16.gmra.mrb[0].mxu0 %v8699
  %v10105 = vpop.f32.mrb[0].mxu0
  %v10106 = vadd.f32 %v10066, %v10105
  %v10107 = vpop.f32.mrb[0].mxu0
  %v10108 = vpop.f32.mrb[0].mxu0
  %v10109 = vpop.f32.mrb[0].mxu0
  %10110 = vdwg.mxu0
  %v10111 = vld [vmem:[%s3 + $0x30] sm:$0xff]
  %v10112 = vld [vmem:[%s3 + $0x38] sm:$0xff]
  %v10113 = vld [vmem:[%s3 + $0x40] sm:$0xff]
  %v10114 = vld [vmem:[%s3 + $0x48] sm:$0xff]
  %v10115 = vld [vmem:[%s3 + $0x50] sm:$0xff]
  %v10116 = vadd.f32 %v10111, %v9862
  %v10117 = vadd.f32 %v10112, %v9864
  %v10118 = vadd.f32 %v10113, %v9985
  %v10119 = vadd.f32 %v10114, %v9987
  %v10120 = vadd.f32 %v10115, %v10106
  %10121 = vst [vmem:[%s3 + $0x30] sm:$0xff] %v10116
  %10122 = vst [vmem:[%s3 + $0x38] sm:$0xff] %v10117
  %10123 = vst [vmem:[%s3 + $0x40] sm:$0xff] %v10118
  %10124 = vst [vmem:[%s3 + $0x48] sm:$0xff] %v10119
  %10125 = vst [vmem:[%s3 + $0x50] sm:$0xff] %v10120
  %v10126 = vld [vmem:[%s3] sm:$0xff]
  %v10127 = vld [vmem:[%s3 + $0x8] sm:$0xff]
  %v10128 = vld [vmem:[%s3 + $0x10] sm:$0xff]
  %v10129 = vld [vmem:[%s3 + $0x18] sm:$0xff]
  %v10130 = vld [vmem:[%s3 + $0x20] sm:$0xff]
  %v10131 = vld [vmem:[%s3 + $0x28] sm:$0xff]
  %v10132 = vld [vmem:[%s3 + $0x30] sm:$0xff]
  %v10133 = vld [vmem:[%s3 + $0x38] sm:$0xff]
  %v10134 = vld [vmem:[%s3 + $0x40] sm:$0xff]
  %v10135 = vld [vmem:[%s3 + $0x48] sm:$0xff]
  %v10136 = vld [vmem:[%s3 + $0x50] sm:$0xff]
  %v10137 = vld [vmem:[%s2] sm:$0xff]
  %v10138 = vld [vmem:[%s2 + $0x8] sm:$0x7]
  %v10141 = vlaneseq
  %v10142 = vshrl.u32 %v10141, 7
  %v10143 = vsub.s32 0, %v10142
  %v10144 = vrot.slane %v10137, %v10143
  %v10145 = vlaneseq
  %v10146 = vshrl.u32 %v10145, 7
  %v10147 = vsub.s32 1, %v10146
  %v10148 = vrot.slane %v10137, %v10147
  %v10149 = vlaneseq
  %v10150 = vshrl.u32 %v10149, 7
  %v10151 = vsub.s32 2, %v10150
  %v10152 = vrot.slane %v10137, %v10151
  %v10153 = vlaneseq
  %v10154 = vshrl.u32 %v10153, 7
  %v10155 = vsub.s32 3, %v10154
  %v10156 = vrot.slane %v10137, %v10155
  %v10157 = vlaneseq
  %v10158 = vshrl.u32 %v10157, 7
  %v10159 = vsub.s32 4, %v10158
  %v10160 = vrot.slane %v10137, %v10159
  %v10161 = vlaneseq
  %v10162 = vshrl.u32 %v10161, 7
  %v10163 = vsub.s32 5, %v10162
  %v10164 = vrot.slane %v10137, %v10163
  %v10165 = vlaneseq
  %v10166 = vshrl.u32 %v10165, 7
  %v10167 = vsub.s32 6, %v10166
  %v10168 = vrot.slane %v10137, %v10167
  %v10169 = vlaneseq
  %v10170 = vshrl.u32 %v10169, 7
  %v10171 = vsub.s32 7, %v10170
  %v10172 = vrot.slane %v10137, %v10171
  %v10173 = vlaneseq
  %v10174 = vshrl.u32 %v10173, 7
  %v10175 = vsub.s32 0, %v10174
  %v10176 = vrot.slane %v10138, %v10175
  %v10177 = vlaneseq
  %v10178 = vshrl.u32 %v10177, 7
  %v10179 = vsub.s32 1, %v10178
  %v10180 = vrot.slane %v10138, %v10179
  %v10181 = vlaneseq
  %v10182 = vshrl.u32 %v10181, 7
  %v10183 = vsub.s32 2, %v10182
  %v10184 = vrot.slane %v10138, %v10183
  %v10196 = vmul.f32 %v10126, %v10144
  %v10197 = vmul.f32 %v10127, %v10148
  %v10198 = vmul.f32 %v10128, %v10152
  %v10199 = vmul.f32 %v10129, %v10156
  %v10200 = vmul.f32 %v10130, %v10160
  %v10201 = vmul.f32 %v10131, %v10164
  %v10202 = vmul.f32 %v10132, %v10168
  %v10203 = vmul.f32 %v10133, %v10172
  %v10204 = vmul.f32 %v10134, %v10176
  %v10205 = vmul.f32 %v10135, %v10180
  %v10206 = vmul.f32 %v10136, %v10184
  %10207 = vst [vmem:[%s3] sm:$0xff] %v10196
  %10208 = vst [vmem:[%s3 + $0x8] sm:$0xff] %v10197
  %10209 = vst [vmem:[%s3 + $0x10] sm:$0xff] %v10198
  %10210 = vst [vmem:[%s3 + $0x18] sm:$0xff] %v10199
  %10211 = vst [vmem:[%s3 + $0x20] sm:$0xff] %v10200
  %10212 = vst [vmem:[%s3 + $0x28] sm:$0xff] %v10201
  %10213 = vst [vmem:[%s3 + $0x30] sm:$0xff] %v10202
  %10214 = vst [vmem:[%s3 + $0x38] sm:$0xff] %v10203
  %10215 = vst [vmem:[%s3 + $0x40] sm:$0xff] %v10204
  %10216 = vst [vmem:[%s3 + $0x48] sm:$0xff] %v10205
  %10217 = vst [vmem:[%s3 + $0x50] sm:$0xff] %v10206
  // Predicated region
  $region14: #{istft_impl.1} parent=0 // pred_check
    _
  $region15: #{istft_impl.1} parent=0 // pred_check_branch
    %10219 = sbr.rel (0) target = $region17
  $region16: #{istft_impl.1} parent=0 // pred_region
    _
  $region17: #{istft_impl.1} parent=0 // pred_fallthru
    _
  // Predicated region
  $region18: #{istft_impl.1} parent=0 // pred_check
    _
  $region19: #{istft_impl.1} parent=0 // pred_check_branch
    %10221 = sbr.rel (0) target = $region21
  $region20: #{istft_impl.1} parent=0 // pred_region
    _
  $region21: #{istft_impl.1} parent=0 // pred_fallthru
    _

</llo_original>
